<compile_context>
chip_gen: v7x
topology: tpu7x:2x2x1
jax: 0.10.0
libtpu: 0.0.40
codegen_flags: <defaults>
</compile_context>

<pallas_src>
import functools

import jax
import jax.numpy as jnp
from jax import lax
from jax.experimental import pallas as pl
from jax.experimental.pallas import tpu as pltpu

EPS = 1e-5
C1, C2, NOUT = 12, 20, 3           # conv1 / conv2 / fc output channels


# ------------------------------ fused kernel ------------------------------- #

def _bconv_fused_kernel(x_ref, w1_ref, b1_ref, w2_ref, b2_ref, fcw_ref, fcb_ref,
                        o_ref, y1_scr, p_scr, *, H, W, Cin, P2):
  """Whole BConv forward for one image (one grid step).

  x_ref  : ((H+2)*W + 2, Cin)  row-flattened image, zero-padded with W+1 rows
           on each end (covers the ky=0/2 taps; kx wrap is masked in-kernel).
  w1_ref : (9, Cin, C1)   conv1 weights with bn1 scale folded, tap order ky*3+kx.
  b1_ref : (1, C1)        conv1 bias with bn1 folded.
  w2_ref : (9, C1, C2)    conv2 weights.
  b2_ref : (1, C2)        conv2 bias.
  fcw_ref: (NOUT, Hp*Wp, C2)  fc weights with bn3 scale + NCHW flatten
           permutation folded in ([o, r, c] with r = hp*Wp + wp).
  fcb_ref: (1, NOUT)      fc bias with bn3 shift folded in.
  o_ref  : (1, NOUT)      logits for this image.
  y1_scr : (H*W, C1)      VMEM scratch: conv1 + bn1 + relu output.
  p_scr  : (Hp*Wp + 2*P2, C1)  VMEM scratch: pooled map with P2 zero pad rows.
  """
  Hp, Wp = H // 2, W // 2
  HW, HWp, R = H * W, H * Wp, Hp * Wp

  # ---- conv1 (3x3, pad 1) + bn1 + relu: 9 shifted slices -> 9 MXU dots ----
  wcol = lax.broadcasted_iota(jnp.int32, (HW, 1), 0) % W
  not_left = wcol != 0              # tap kx=0 invalid where w == 0
  not_right = wcol != (W - 1)       # tap kx=2 invalid where w == W-1
  acc1 = jnp.zeros((HW, C1), jnp.float32)
  for ky in range(3):
    for kx in range(3):
      s = ky * W + kx
      patch = x_ref[s:s + HW, :]
      if kx == 0:
        patch = jnp.where(not_left, patch, 0.0)
      elif kx == 2:
        patch = jnp.where(not_right, patch, 0.0)
      acc1 = acc1 + jnp.dot(patch, w1_ref[3 * ky + kx],
                            preferred_element_type=jnp.float32)
  y1_scr[...] = jnp.maximum(acc1 + b1_ref[...], 0.0)

  # ---- fused 2x2 max pool (stride 2), all in VMEM ----
  # w-pairs: two stride-2 sublane reads of the raster-ordered y1 scratch.
  t = jnp.maximum(y1_scr[pl.ds(0, HWp, stride=2), :],
                  y1_scr[pl.ds(1, HWp, stride=2), :])      # (H*Wp, C1), row = h*Wp+wp
  # h-pairs: contiguous Wp-row blocks, assembled in registers -> one store into
  # the interior of conv2's zero-padded scratch.
  rows = []
  for hp in range(Hp):
    top = t[(2 * hp) * Wp:(2 * hp + 1) * Wp, :]
    bot = t[(2 * hp + 1) * Wp:(2 * hp + 2) * Wp, :]
    rows.append(jnp.maximum(top, bot))
  pooled = jnp.concatenate(rows, axis=0)                    # (R, C1)
  zpad = jnp.zeros((P2, C1), jnp.float32)
  p_scr[0:P2, :] = zpad                                     # zero pad rows only
  p_scr[P2 + R:P2 + R + P2, :] = zpad
  p_scr[P2:P2 + R, :] = pooled

  # ---- conv2 (3x3, pad 1) + relu (bn3 folded into the fc) ----
  wcol2 = lax.broadcasted_iota(jnp.int32, (R, 1), 0) % Wp
  not_left2 = wcol2 != 0
  not_right2 = wcol2 != (Wp - 1)
  acc2 = jnp.zeros((R, C2), jnp.float32)
  for ky in range(3):
    for kx in range(3):
      s = P2 + (ky - 1) * Wp + (kx - 1)
      patch = p_scr[s:s + R, :]
      if kx == 0:
        patch = jnp.where(not_left2, patch, 0.0)
      elif kx == 2:
        patch = jnp.where(not_right2, patch, 0.0)
      acc2 = acc2 + jnp.dot(patch, w2_ref[3 * ky + kx],
                            preferred_element_type=jnp.float32)
  z = jnp.maximum(acc2 + b2_ref[...], 0.0)                  # (R, C2)

  # ---- fc tail (bn3 + NCHW flatten permutation already folded into weights) --
  parts = []
  for o in range(NOUT):
    prod = z * fcw_ref[o]                                   # (R, C2)
    parts.append(jnp.sum(jnp.sum(prod, axis=1, keepdims=True),
                         axis=0, keepdims=True))            # (1, 1)
  o_ref[...] = jnp.concatenate(parts, axis=1) + fcb_ref[...]  # single (1, NOUT) store


# --------------------------------- wrapper --------------------------------- #

@jax.jit
def bconv_forward(x_nchw, params):
  p = params
  n, cin, h, w = x_nchw.shape
  hp, wp = h // 2, w // 2
  r = hp * wp                                   # pooled spatial size
  r1 = h * w + 2 * (w + 1)                      # padded flattened rows (stage 1)
  p2 = -(-(wp + 1) // 8) * 8                    # stage-2 pad rows, 8-aligned
  r2 = r + 2 * p2

  # ---- fold bn1 (inference running stats) into conv1 ----
  s1 = p["bn1_gamma"] * lax.rsqrt(p["bn1_var"] + EPS)
  w1f = (p["conv1_w"] * s1[None, None, None, :]).reshape(9, cin, C1)
  b1f = (p["conv1_b"] * s1 + p["bn1_beta"] - p["bn1_mean"] * s1).reshape(1, C1)

  w2 = p["conv2_w"].reshape(9, C1, C2)
  b2 = p["conv2_b"].reshape(1, C2)

  # ---- fold bn3 (post-relu affine) + torch NCHW flatten order into the fc ----
  s3 = p["bn3_gamma"] * lax.rsqrt(p["bn3_var"] + EPS)
  t3 = p["bn3_beta"] - p["bn3_mean"] * s3
  fcw3 = p["fc_w"].reshape(C2, r, NOUT)                     # [c, r, o] torch order
  fcw_perm = jnp.transpose(fcw3 * s3[:, None, None], (2, 1, 0))   # (NOUT, r, C2)
  fcb_fold = (p["fc_b"] + jnp.einsum("c,cro->o", t3, fcw3)).reshape(1, NOUT)

  # ---- row-flattened, H-zero-padded NHWC image (no 9x im2col expansion) ----
  x = jnp.transpose(x_nchw, (0, 2, 3, 1)).astype(jnp.float32)     # NHWC
  xpad = jnp.pad(x.reshape(n, h * w, cin), ((0, 0), (w + 1, w + 1), (0, 0)))

  kernel = functools.partial(_bconv_fused_kernel, H=h, W=w, Cin=cin, P2=p2)
  out = pl.pallas_call(
      kernel,
      out_shape=jax.ShapeDtypeStruct((n, 1, NOUT), jnp.float32),
      grid=(n,),
      in_specs=[
          pl.BlockSpec((None, r1, cin), lambda b: (b, 0, 0)),     # per-image stream
          pl.BlockSpec((9, cin, C1), lambda b: (0, 0, 0)),        # constant blocks:
          pl.BlockSpec((1, C1), lambda b: (0, 0)),                #   fetched once,
          pl.BlockSpec((9, C1, C2), lambda b: (0, 0, 0)),         #   resident in VMEM
          pl.BlockSpec((1, C2), lambda b: (0, 0)),
          pl.BlockSpec((NOUT, r, C2), lambda b: (0, 0, 0)),
          pl.BlockSpec((1, NOUT), lambda b: (0, 0)),
      ],
      out_specs=pl.BlockSpec((None, 1, NOUT), lambda b: (b, 0, 0)),
      scratch_shapes=[
          pltpu.VMEM((h * w, C1), jnp.float32),    # conv1+bn1+relu output
          pltpu.VMEM((r2, C1), jnp.float32),       # padded pooled map (conv2 input)
      ],
      compiler_params=pltpu.CompilerParams(
          dimension_semantics=("parallel",),       # megacore-shard over batch (v7x)
          vmem_limit_bytes=32 * 1024 * 1024,
      ),
  )(xpad, w1f, b1f, w2, b2, fcw_perm, fcb_fold)
  return out.reshape(n, NOUT)


# ------------------------- pure-JAX reference check ------------------------ #

def bconv_reference(x_nchw, p):
  def conv(x, w_hwio, b):
    w_oihw = jnp.transpose(w_hwio, (3, 2, 0, 1))
    y = lax.conv_general_dilated(
        x, w_oihw, window_strides=(1, 1), padding="SAME",
        dimension_numbers=("NCHW", "OIHW", "NCHW"))
    return y + b[None, :, None, None]

  def bn(x, g, be, m, v):
    return (x - m[None, :, None, None]) * (g / jnp.sqrt(v + EPS))[None, :, None, None] \
        + be[None, :, None, None]

  y = conv(x_nchw, p["conv1_w"], p["conv1_b"])
  y = bn(y, p["bn1_gamma"], p["bn1_beta"], p["bn1_mean"], p["bn1_var"])
  y = jnp.maximum(y, 0.0)
  y = lax.reduce_window(y, -jnp.inf, lax.max, (1, 1, 2, 2), (1, 1, 2, 2), "VALID")
  y = conv(y, p["conv2_w"], p["conv2_b"])
  y = jnp.maximum(y, 0.0)
  y = bn(y, p["bn3_gamma"], p["bn3_beta"], p["bn3_mean"], p["bn3_var"])
  y = y.reshape(y.shape[0], -1)
  return y @ p["fc_w"] + p["fc_b"][None, :]


# ----------------------------------- main ----------------------------------- #

def make_params(key, hp, wp):
  ks = jax.random.split(key, 16)
  f = C2 * hp * wp
  return {
      "conv1_w": 0.1 * jax.random.normal(ks[0], (3, 3, 3, C1), jnp.float32),
      "conv1_b": 0.1 * jax.random.normal(ks[1], (C1,), jnp.float32),
      "bn1_gamma": 1.0 + 0.1 * jax.random.normal(ks[2], (C1,), jnp.float32),
      "bn1_beta": 0.1 * jax.random.normal(ks[3], (C1,), jnp.float32),
      "bn1_mean": 0.1 * jax.random.normal(ks[4], (C1,), jnp.float32),
      "bn1_var": 0.5 + jnp.abs(jax.random.normal(ks[5], (C1,), jnp.float32)),
      "conv2_w": 0.1 * jax.random.normal(ks[6], (3, 3, C1, C2), jnp.float32),
      "conv2_b": 0.1 * jax.random.normal(ks[7], (C2,), jnp.float32),
      "bn3_gamma": 1.0 + 0.1 * jax.random.normal(ks[8], (C2,), jnp.float32),
      "bn3_beta": 0.1 * jax.random.normal(ks[9], (C2,), jnp.float32),
      "bn3_mean": 0.1 * jax.random.normal(ks[10], (C2,), jnp.float32),
      "bn3_var": 0.5 + jnp.abs(jax.random.normal(ks[11], (C2,), jnp.float32)),
      "fc_w": 0.05 * jax.random.normal(ks[12], (f, NOUT), jnp.float32),
      "fc_b": 0.05 * jax.random.normal(ks[13], (NOUT,), jnp.float32),
  }


if __name__ == "__main__":
  key = jax.random.PRNGKey(0)
  kdata, kparam = jax.random.split(key)

  # TODO(synk): Dropout(0.25) is identity at inference time, so it is a no-op here.
  N, C, H, W = 2, 3, 16, 16        # small shapes; torch module implies 150x150
  x = jax.random.normal(kdata, (N, C, H, W), jnp.float32)
  params = make_params(kparam, H // 2, W // 2)

  out = jax.block_until_ready(bconv_forward(x, params))
  ref = bconv_reference(x, params)

  assert out.shape == (N, NOUT), out.shape
  assert jnp.allclose(out, ref, rtol=1e-3, atol=1e-3), (out, ref)
  print("KERNEL_OK")
</pallas_src>

<mosaic_0001>
module attributes {stable_mosaic.version = 11 : i64} {
  func.func @_bconv_fused_kernel(%arg0: i32, %arg1: memref<1x290x3xf32, #tpu.memory_space<vmem>>, %arg2: memref<9x3x12xf32, #tpu.memory_space<vmem>>, %arg3: memref<1x12xf32, #tpu.memory_space<vmem>>, %arg4: memref<9x12x20xf32, #tpu.memory_space<vmem>>, %arg5: memref<1x20xf32, #tpu.memory_space<vmem>>, %arg6: memref<3x64x20xf32, #tpu.memory_space<vmem>>, %arg7: memref<1x3xf32, #tpu.memory_space<vmem>>, %arg8: memref<1x1x3xf32, #tpu.memory_space<vmem>>, %arg9: memref<256x12xf32, #tpu.memory_space<vmem>>, %arg10: memref<96x12xf32, #tpu.memory_space<vmem>>) attributes {dimension_semantics = [#tpu.dimension_semantics<parallel>], iteration_bounds = array<i64: 2>, scalar_prefetch = 0 : i64, scratch_operands = 2 : i64, tpu.core_type = #tpu.core_type<tc>, window_params = [{transform_indices = @transform_0, window_bounds = array<i64: 1, 290, 3>}, {pipeline_mode = #tpu.pipeline_mode<synchronous>, transform_indices = @transform_1, window_bounds = array<i64: 9, 3, 12>}, {pipeline_mode = #tpu.pipeline_mode<synchronous>, transform_indices = @transform_2, window_bounds = array<i64: 1, 12>}, {pipeline_mode = #tpu.pipeline_mode<synchronous>, transform_indices = @transform_3, window_bounds = array<i64: 9, 12, 20>}, {pipeline_mode = #tpu.pipeline_mode<synchronous>, transform_indices = @transform_4, window_bounds = array<i64: 1, 20>}, {pipeline_mode = #tpu.pipeline_mode<synchronous>, transform_indices = @transform_5, window_bounds = array<i64: 3, 64, 20>}, {pipeline_mode = #tpu.pipeline_mode<synchronous>, transform_indices = @transform_6, window_bounds = array<i64: 1, 3>}, {transform_indices = @transform_7, window_bounds = array<i64: 1, 1, 3>}]} {
    %0 = tpu.iota {dimensions = array<i32: 0>} : vector<256x1xi32>
    %c16_i32 = arith.constant 16 : i32
    %c0_i32 = arith.constant 0 : i32
    %1 = arith.cmpi eq, %c16_i32, %c0_i32 : i32
    %c1_i32 = arith.constant 1 : i32
    %2 = arith.select %1, %c1_i32, %c16_i32 : i32
    %3 = vector.broadcast %2 : i32 to vector<256x1xi32>
    %4 = arith.remsi %0, %3 : vector<256x1xi32>
    %c0_i32_0 = arith.constant 0 : i32
    %5 = vector.broadcast %c0_i32_0 : i32 to vector<256x1xi32>
    %6 = arith.cmpi ne, %4, %5 : vector<256x1xi32>
    %c0_i32_1 = arith.constant 0 : i32
    %7 = vector.broadcast %c0_i32_1 : i32 to vector<256x1xi32>
    %8 = arith.cmpi slt, %4, %7 : vector<256x1xi32>
    %c0_i32_2 = arith.constant 0 : i32
    %9 = arith.cmpi slt, %2, %c0_i32_2 : i32
    %10 = vector.broadcast %9 : i1 to vector<256x1xi1>
    %11 = vector.broadcast %10 : vector<256x1xi1> to vector<256x1xi1>
    %12 = arith.xori %8, %11 : vector<256x1xi1>
    %13 = arith.andi %12, %6 : vector<256x1xi1>
    %14 = vector.broadcast %2 : i32 to vector<256x1xi32>
    %15 = arith.addi %4, %14 : vector<256x1xi32>
    %16 = arith.select %13, %15, %4 : vector<256x1xi1>, vector<256x1xi32>
    %c0_i32_3 = arith.constant 0 : i32
    %17 = vector.broadcast %c0_i32_3 : i32 to vector<256x1xi32>
    %18 = arith.cmpi ne, %16, %17 : vector<256x1xi32>
    %c15_i32 = arith.constant 15 : i32
    %19 = vector.broadcast %c15_i32 : i32 to vector<256x1xi32>
    %20 = arith.cmpi ne, %16, %19 : vector<256x1xi32>
    %cst = arith.constant 0.000000e+00 : f32
    %21 = vector.broadcast %cst : f32 to vector<256x12xf32>
    %c0 = arith.constant 0 : index
    %c0_4 = arith.constant 0 : index
    %c0_5 = arith.constant 0 : index
    %22 = vector.load %arg1[%c0, %c0_4, %c0_5] : memref<1x290x3xf32, #tpu.memory_space<vmem>>, vector<1x256x3xf32>
    %23 = vector.shape_cast %22 : vector<1x256x3xf32> to vector<256x3xf32>
    %cst_6 = arith.constant 0.000000e+00 : f32
    %24 = vector.shape_cast %18 : vector<256x1xi1> to vector<256x1xi1>
    %25 = vector.broadcast %24 : vector<256x1xi1> to vector<256x3xi1>
    %26 = vector.broadcast %cst_6 : f32 to vector<256x3xf32>
    %27 = arith.select %25, %23, %26 : vector<256x3xi1>, vector<256x3xf32>
    %c0_7 = arith.constant 0 : index
    %c0_8 = arith.constant 0 : index
    %c0_9 = arith.constant 0 : index
    %28 = vector.load %arg2[%c0_7, %c0_8, %c0_9] : memref<9x3x12xf32, #tpu.memory_space<vmem>>, vector<1x3x12xf32>
    %29 = vector.shape_cast %28 : vector<1x3x12xf32> to vector<3x12xf32>
    %cst_10 = arith.constant dense<0.000000e+00> : vector<256x12xf32>
    %30 = tpu.matmul %27, %29, %cst_10 {dimension_numbers = #tpu.dot_dimension_numbers<[1], [0], [0], [1], [0, 0, 1, 1], [], []>} : vector<256x3xf32>, vector<3x12xf32>, vector<256x12xf32> -> vector<256x12xf32>
    %31 = arith.addf %21, %30 : vector<256x12xf32>
    %c0_11 = arith.constant 0 : index
    %c1 = arith.constant 1 : index
    %c0_12 = arith.constant 0 : index
    %32 = vector.load %arg1[%c0_11, %c1, %c0_12] : memref<1x290x3xf32, #tpu.memory_space<vmem>>, vector<1x256x3xf32>
    %33 = vector.shape_cast %32 : vector<1x256x3xf32> to vector<256x3xf32>
    %c1_13 = arith.constant 1 : index
    %c0_14 = arith.constant 0 : index
    %c0_15 = arith.constant 0 : index
    %34 = vector.load %arg2[%c1_13, %c0_14, %c0_15] : memref<9x3x12xf32, #tpu.memory_space<vmem>>, vector<1x3x12xf32>
    %35 = vector.shape_cast %34 : vector<1x3x12xf32> to vector<3x12xf32>
    %cst_16 = arith.constant dense<0.000000e+00> : vector<256x12xf32>
    %36 = tpu.matmul %33, %35, %cst_16 {dimension_numbers = #tpu.dot_dimension_numbers<[1], [0], [0], [1], [0, 0, 1, 1], [], []>} : vector<256x3xf32>, vector<3x12xf32>, vector<256x12xf32> -> vector<256x12xf32>
    %37 = arith.addf %31, %36 : vector<256x12xf32>
    %c0_17 = arith.constant 0 : index
    %c2 = arith.constant 2 : index
    %c0_18 = arith.constant 0 : index
    %38 = vector.load %arg1[%c0_17, %c2, %c0_18] : memref<1x290x3xf32, #tpu.memory_space<vmem>>, vector<1x256x3xf32>
    %39 = vector.shape_cast %38 : vector<1x256x3xf32> to vector<256x3xf32>
    %cst_19 = arith.constant 0.000000e+00 : f32
    %40 = vector.shape_cast %20 : vector<256x1xi1> to vector<256x1xi1>
    %41 = vector.broadcast %40 : vector<256x1xi1> to vector<256x3xi1>
    %42 = vector.broadcast %cst_19 : f32 to vector<256x3xf32>
    %43 = arith.select %41, %39, %42 : vector<256x3xi1>, vector<256x3xf32>
    %c2_20 = arith.constant 2 : index
    %c0_21 = arith.constant 0 : index
    %c0_22 = arith.constant 0 : index
    %44 = vector.load %arg2[%c2_20, %c0_21, %c0_22] : memref<9x3x12xf32, #tpu.memory_space<vmem>>, vector<1x3x12xf32>
    %45 = vector.shape_cast %44 : vector<1x3x12xf32> to vector<3x12xf32>
    %cst_23 = arith.constant dense<0.000000e+00> : vector<256x12xf32>
    %46 = tpu.matmul %43, %45, %cst_23 {dimension_numbers = #tpu.dot_dimension_numbers<[1], [0], [0], [1], [0, 0, 1, 1], [], []>} : vector<256x3xf32>, vector<3x12xf32>, vector<256x12xf32> -> vector<256x12xf32>
    %47 = arith.addf %37, %46 : vector<256x12xf32>
    %c0_24 = arith.constant 0 : index
    %c16 = arith.constant 16 : index
    %c0_25 = arith.constant 0 : index
    %48 = vector.load %arg1[%c0_24, %c16, %c0_25] : memref<1x290x3xf32, #tpu.memory_space<vmem>>, vector<1x256x3xf32>
    %49 = vector.shape_cast %48 : vector<1x256x3xf32> to vector<256x3xf32>
    %cst_26 = arith.constant 0.000000e+00 : f32
    %50 = vector.shape_cast %18 : vector<256x1xi1> to vector<256x1xi1>
    %51 = vector.broadcast %50 : vector<256x1xi1> to vector<256x3xi1>
    %52 = vector.broadcast %cst_26 : f32 to vector<256x3xf32>
    %53 = arith.select %51, %49, %52 : vector<256x3xi1>, vector<256x3xf32>
    %c3 = arith.constant 3 : index
    %c0_27 = arith.constant 0 : index
    %c0_28 = arith.constant 0 : index
    %54 = vector.load %arg2[%c3, %c0_27, %c0_28] : memref<9x3x12xf32, #tpu.memory_space<vmem>>, vector<1x3x12xf32>
    %55 = vector.shape_cast %54 : vector<1x3x12xf32> to vector<3x12xf32>
    %cst_29 = arith.constant dense<0.000000e+00> : vector<256x12xf32>
    %56 = tpu.matmul %53, %55, %cst_29 {dimension_numbers = #tpu.dot_dimension_numbers<[1], [0], [0], [1], [0, 0, 1, 1], [], []>} : vector<256x3xf32>, vector<3x12xf32>, vector<256x12xf32> -> vector<256x12xf32>
    %57 = arith.addf %47, %56 : vector<256x12xf32>
    %c0_30 = arith.constant 0 : index
    %c17 = arith.constant 17 : index
    %c0_31 = arith.constant 0 : index
    %58 = vector.load %arg1[%c0_30, %c17, %c0_31] : memref<1x290x3xf32, #tpu.memory_space<vmem>>, vector<1x256x3xf32>
    %59 = vector.shape_cast %58 : vector<1x256x3xf32> to vector<256x3xf32>
    %c4 = arith.constant 4 : index
    %c0_32 = arith.constant 0 : index
    %c0_33 = arith.constant 0 : index
    %60 = vector.load %arg2[%c4, %c0_32, %c0_33] : memref<9x3x12xf32, #tpu.memory_space<vmem>>, vector<1x3x12xf32>
    %61 = vector.shape_cast %60 : vector<1x3x12xf32> to vector<3x12xf32>
    %cst_34 = arith.constant dense<0.000000e+00> : vector<256x12xf32>
    %62 = tpu.matmul %59, %61, %cst_34 {dimension_numbers = #tpu.dot_dimension_numbers<[1], [0], [0], [1], [0, 0, 1, 1], [], []>} : vector<256x3xf32>, vector<3x12xf32>, vector<256x12xf32> -> vector<256x12xf32>
    %63 = arith.addf %57, %62 : vector<256x12xf32>
    %c0_35 = arith.constant 0 : index
    %c18 = arith.constant 18 : index
    %c0_36 = arith.constant 0 : index
    %64 = vector.load %arg1[%c0_35, %c18, %c0_36] : memref<1x290x3xf32, #tpu.memory_space<vmem>>, vector<1x256x3xf32>
    %65 = vector.shape_cast %64 : vector<1x256x3xf32> to vector<256x3xf32>
    %cst_37 = arith.constant 0.000000e+00 : f32
    %66 = vector.shape_cast %20 : vector<256x1xi1> to vector<256x1xi1>
    %67 = vector.broadcast %66 : vector<256x1xi1> to vector<256x3xi1>
    %68 = vector.broadcast %cst_37 : f32 to vector<256x3xf32>
    %69 = arith.select %67, %65, %68 : vector<256x3xi1>, vector<256x3xf32>
    %c5 = arith.constant 5 : index
    %c0_38 = arith.constant 0 : index
    %c0_39 = arith.constant 0 : index
    %70 = vector.load %arg2[%c5, %c0_38, %c0_39] : memref<9x3x12xf32, #tpu.memory_space<vmem>>, vector<1x3x12xf32>
    %71 = vector.shape_cast %70 : vector<1x3x12xf32> to vector<3x12xf32>
    %cst_40 = arith.constant dense<0.000000e+00> : vector<256x12xf32>
    %72 = tpu.matmul %69, %71, %cst_40 {dimension_numbers = #tpu.dot_dimension_numbers<[1], [0], [0], [1], [0, 0, 1, 1], [], []>} : vector<256x3xf32>, vector<3x12xf32>, vector<256x12xf32> -> vector<256x12xf32>
    %73 = arith.addf %63, %72 : vector<256x12xf32>
    %c0_41 = arith.constant 0 : index
    %c32 = arith.constant 32 : index
    %c0_42 = arith.constant 0 : index
    %74 = vector.load %arg1[%c0_41, %c32, %c0_42] : memref<1x290x3xf32, #tpu.memory_space<vmem>>, vector<1x256x3xf32>
    %75 = vector.shape_cast %74 : vector<1x256x3xf32> to vector<256x3xf32>
    %cst_43 = arith.constant 0.000000e+00 : f32
    %76 = vector.shape_cast %18 : vector<256x1xi1> to vector<256x1xi1>
    %77 = vector.broadcast %76 : vector<256x1xi1> to vector<256x3xi1>
    %78 = vector.broadcast %cst_43 : f32 to vector<256x3xf32>
    %79 = arith.select %77, %75, %78 : vector<256x3xi1>, vector<256x3xf32>
    %c6 = arith.constant 6 : index
    %c0_44 = arith.constant 0 : index
    %c0_45 = arith.constant 0 : index
    %80 = vector.load %arg2[%c6, %c0_44, %c0_45] : memref<9x3x12xf32, #tpu.memory_space<vmem>>, vector<1x3x12xf32>
    %81 = vector.shape_cast %80 : vector<1x3x12xf32> to vector<3x12xf32>
    %cst_46 = arith.constant dense<0.000000e+00> : vector<256x12xf32>
    %82 = tpu.matmul %79, %81, %cst_46 {dimension_numbers = #tpu.dot_dimension_numbers<[1], [0], [0], [1], [0, 0, 1, 1], [], []>} : vector<256x3xf32>, vector<3x12xf32>, vector<256x12xf32> -> vector<256x12xf32>
    %83 = arith.addf %73, %82 : vector<256x12xf32>
    %c0_47 = arith.constant 0 : index
    %c33 = arith.constant 33 : index
    %c0_48 = arith.constant 0 : index
    %84 = vector.load %arg1[%c0_47, %c33, %c0_48] : memref<1x290x3xf32, #tpu.memory_space<vmem>>, vector<1x256x3xf32>
    %85 = vector.shape_cast %84 : vector<1x256x3xf32> to vector<256x3xf32>
    %c7 = arith.constant 7 : index
    %c0_49 = arith.constant 0 : index
    %c0_50 = arith.constant 0 : index
    %86 = vector.load %arg2[%c7, %c0_49, %c0_50] : memref<9x3x12xf32, #tpu.memory_space<vmem>>, vector<1x3x12xf32>
    %87 = vector.shape_cast %86 : vector<1x3x12xf32> to vector<3x12xf32>
    %cst_51 = arith.constant dense<0.000000e+00> : vector<256x12xf32>
    %88 = tpu.matmul %85, %87, %cst_51 {dimension_numbers = #tpu.dot_dimension_numbers<[1], [0], [0], [1], [0, 0, 1, 1], [], []>} : vector<256x3xf32>, vector<3x12xf32>, vector<256x12xf32> -> vector<256x12xf32>
    %89 = arith.addf %83, %88 : vector<256x12xf32>
    %c0_52 = arith.constant 0 : index
    %c34 = arith.constant 34 : index
    %c0_53 = arith.constant 0 : index
    %90 = vector.load %arg1[%c0_52, %c34, %c0_53] : memref<1x290x3xf32, #tpu.memory_space<vmem>>, vector<1x256x3xf32>
    %91 = vector.shape_cast %90 : vector<1x256x3xf32> to vector<256x3xf32>
    %cst_54 = arith.constant 0.000000e+00 : f32
    %92 = vector.shape_cast %20 : vector<256x1xi1> to vector<256x1xi1>
    %93 = vector.broadcast %92 : vector<256x1xi1> to vector<256x3xi1>
    %94 = vector.broadcast %cst_54 : f32 to vector<256x3xf32>
    %95 = arith.select %93, %91, %94 : vector<256x3xi1>, vector<256x3xf32>
    %c8 = arith.constant 8 : index
    %c0_55 = arith.constant 0 : index
    %c0_56 = arith.constant 0 : index
    %96 = vector.load %arg2[%c8, %c0_55, %c0_56] : memref<9x3x12xf32, #tpu.memory_space<vmem>>, vector<1x3x12xf32>
    %97 = vector.shape_cast %96 : vector<1x3x12xf32> to vector<3x12xf32>
    %cst_57 = arith.constant dense<0.000000e+00> : vector<256x12xf32>
    %98 = tpu.matmul %95, %97, %cst_57 {dimension_numbers = #tpu.dot_dimension_numbers<[1], [0], [0], [1], [0, 0, 1, 1], [], []>} : vector<256x3xf32>, vector<3x12xf32>, vector<256x12xf32> -> vector<256x12xf32>
    %99 = arith.addf %89, %98 : vector<256x12xf32>
    %c0_58 = arith.constant 0 : index
    %c0_59 = arith.constant 0 : index
    %100 = vector.load %arg3[%c0_58, %c0_59] : memref<1x12xf32, #tpu.memory_space<vmem>>, vector<1x12xf32>
    %101 = vector.broadcast %100 : vector<1x12xf32> to vector<256x12xf32>
    %102 = arith.addf %99, %101 : vector<256x12xf32>
    %cst_60 = arith.constant 0.000000e+00 : f32
    %103 = vector.broadcast %cst_60 : f32 to vector<256x12xf32>
    %104 = arith.maximumf %102, %103 : vector<256x12xf32>
    %c0_61 = arith.constant 0 : index
    %c0_62 = arith.constant 0 : index
    %105 = vector.load %arg9[%c0_61, %c0_62] : memref<256x12xf32, #tpu.memory_space<vmem>>, vector<256x12xf32>
    tpu.vector_store %arg9[%c0_61, %c0_62], %104 {strides = array<i32>} : memref<256x12xf32, #tpu.memory_space<vmem>>, vector<256x12xf32>,
    %c0_63 = arith.constant 0 : index
    %c0_64 = arith.constant 0 : index
    %106 = tpu.strided_load %arg9[%c0_63, %c0_64] {strides = array<i32: 2, 1>} : memref<256x12xf32, #tpu.memory_space<vmem>>, vector<128x12xf32>
    %c1_65 = arith.constant 1 : index
    %c0_66 = arith.constant 0 : index
    %107 = tpu.strided_load %arg9[%c1_65, %c0_66] {strides = array<i32: 2, 1>} : memref<256x12xf32, #tpu.memory_space<vmem>>, vector<128x12xf32>
    %108 = arith.maximumf %106, %107 : vector<128x12xf32>
    %109 = vector.extract_strided_slice %108 {offsets = [0, 0], sizes = [8, 12], strides = [1, 1]} : vector<128x12xf32> to vector<8x12xf32>
    %110 = vector.extract_strided_slice %108 {offsets = [8, 0], sizes = [8, 12], strides = [1, 1]} : vector<128x12xf32> to vector<8x12xf32>
    %111 = arith.maximumf %109, %110 : vector<8x12xf32>
    %112 = vector.extract_strided_slice %108 {offsets = [16, 0], sizes = [8, 12], strides = [1, 1]} : vector<128x12xf32> to vector<8x12xf32>
    %113 = vector.extract_strided_slice %108 {offsets = [24, 0], sizes = [8, 12], strides = [1, 1]} : vector<128x12xf32> to vector<8x12xf32>
    %114 = arith.maximumf %112, %113 : vector<8x12xf32>
    %115 = vector.extract_strided_slice %108 {offsets = [32, 0], sizes = [8, 12], strides = [1, 1]} : vector<128x12xf32> to vector<8x12xf32>
    %116 = vector.extract_strided_slice %108 {offsets = [40, 0], sizes = [8, 12], strides = [1, 1]} : vector<128x12xf32> to vector<8x12xf32>
    %117 = arith.maximumf %115, %116 : vector<8x12xf32>
    %118 = vector.extract_strided_slice %108 {offsets = [48, 0], sizes = [8, 12], strides = [1, 1]} : vector<128x12xf32> to vector<8x12xf32>
    %119 = vector.extract_strided_slice %108 {offsets = [56, 0], sizes = [8, 12], strides = [1, 1]} : vector<128x12xf32> to vector<8x12xf32>
    %120 = arith.maximumf %118, %119 : vector<8x12xf32>
    %121 = vector.extract_strided_slice %108 {offsets = [64, 0], sizes = [8, 12], strides = [1, 1]} : vector<128x12xf32> to vector<8x12xf32>
    %122 = vector.extract_strided_slice %108 {offsets = [72, 0], sizes = [8, 12], strides = [1, 1]} : vector<128x12xf32> to vector<8x12xf32>
    %123 = arith.maximumf %121, %122 : vector<8x12xf32>
    %124 = vector.extract_strided_slice %108 {offsets = [80, 0], sizes = [8, 12], strides = [1, 1]} : vector<128x12xf32> to vector<8x12xf32>
    %125 = vector.extract_strided_slice %108 {offsets = [88, 0], sizes = [8, 12], strides = [1, 1]} : vector<128x12xf32> to vector<8x12xf32>
    %126 = arith.maximumf %124, %125 : vector<8x12xf32>
    %127 = vector.extract_strided_slice %108 {offsets = [96, 0], sizes = [8, 12], strides = [1, 1]} : vector<128x12xf32> to vector<8x12xf32>
    %128 = vector.extract_strided_slice %108 {offsets = [104, 0], sizes = [8, 12], strides = [1, 1]} : vector<128x12xf32> to vector<8x12xf32>
    %129 = arith.maximumf %127, %128 : vector<8x12xf32>
    %130 = vector.extract_strided_slice %108 {offsets = [112, 0], sizes = [8, 12], strides = [1, 1]} : vector<128x12xf32> to vector<8x12xf32>
    %131 = vector.extract_strided_slice %108 {offsets = [120, 0], sizes = [8, 12], strides = [1, 1]} : vector<128x12xf32> to vector<8x12xf32>
    %132 = arith.maximumf %130, %131 : vector<8x12xf32>
    %133 = tpu.concatenate %111, %114, %117, %120, %123, %126, %129, %132 in 0 : vector<8x12xf32>, vector<8x12xf32>, vector<8x12xf32>, vector<8x12xf32>, vector<8x12xf32>, vector<8x12xf32>, vector<8x12xf32>, vector<8x12xf32> -> vector<64x12xf32>
    %cst_67 = arith.constant 0.000000e+00 : f32
    %134 = vector.broadcast %cst_67 : f32 to vector<16x12xf32>
    %c0_68 = arith.constant 0 : index
    %c0_69 = arith.constant 0 : index
    %135 = vector.load %arg10[%c0_68, %c0_69] : memref<96x12xf32, #tpu.memory_space<vmem>>, vector<16x12xf32>
    tpu.vector_store %arg10[%c0_68, %c0_69], %134 {strides = array<i32>} : memref<96x12xf32, #tpu.memory_space<vmem>>, vector<16x12xf32>,
    %c80 = arith.constant 80 : index
    %c0_70 = arith.constant 0 : index
    %136 = vector.load %arg10[%c80, %c0_70] : memref<96x12xf32, #tpu.memory_space<vmem>>, vector<16x12xf32>
    tpu.vector_store %arg10[%c80, %c0_70], %134 {strides = array<i32>} : memref<96x12xf32, #tpu.memory_space<vmem>>, vector<16x12xf32>,
    %c16_71 = arith.constant 16 : index
    %c0_72 = arith.constant 0 : index
    %137 = vector.load %arg10[%c16_71, %c0_72] : memref<96x12xf32, #tpu.memory_space<vmem>>, vector<64x12xf32>
    tpu.vector_store %arg10[%c16_71, %c0_72], %133 {strides = array<i32>} : memref<96x12xf32, #tpu.memory_space<vmem>>, vector<64x12xf32>,
    %138 = tpu.iota {dimensions = array<i32: 0>} : vector<64x1xi32>
    %c8_i32 = arith.constant 8 : i32
    %c0_i32_73 = arith.constant 0 : i32
    %139 = arith.cmpi eq, %c8_i32, %c0_i32_73 : i32
    %c1_i32_74 = arith.constant 1 : i32
    %140 = arith.select %139, %c1_i32_74, %c8_i32 : i32
    %141 = vector.broadcast %140 : i32 to vector<64x1xi32>
    %142 = arith.remsi %138, %141 : vector<64x1xi32>
    %c0_i32_75 = arith.constant 0 : i32
    %143 = vector.broadcast %c0_i32_75 : i32 to vector<64x1xi32>
    %144 = arith.cmpi ne, %142, %143 : vector<64x1xi32>
    %c0_i32_76 = arith.constant 0 : i32
    %145 = vector.broadcast %c0_i32_76 : i32 to vector<64x1xi32>
    %146 = arith.cmpi slt, %142, %145 : vector<64x1xi32>
    %c0_i32_77 = arith.constant 0 : i32
    %147 = arith.cmpi slt, %140, %c0_i32_77 : i32
    %148 = vector.broadcast %147 : i1 to vector<64x1xi1>
    %149 = vector.broadcast %148 : vector<64x1xi1> to vector<64x1xi1>
    %150 = arith.xori %146, %149 : vector<64x1xi1>
    %151 = arith.andi %150, %144 : vector<64x1xi1>
    %152 = vector.broadcast %140 : i32 to vector<64x1xi32>
    %153 = arith.addi %142, %152 : vector<64x1xi32>
    %154 = arith.select %151, %153, %142 : vector<64x1xi1>, vector<64x1xi32>
    %c0_i32_78 = arith.constant 0 : i32
    %155 = vector.broadcast %c0_i32_78 : i32 to vector<64x1xi32>
    %156 = arith.cmpi ne, %154, %155 : vector<64x1xi32>
    %c7_i32 = arith.constant 7 : i32
    %157 = vector.broadcast %c7_i32 : i32 to vector<64x1xi32>
    %158 = arith.cmpi ne, %154, %157 : vector<64x1xi32>
    %cst_79 = arith.constant 0.000000e+00 : f32
    %159 = vector.broadcast %cst_79 : f32 to vector<64x20xf32>
    %c7_80 = arith.constant 7 : index
    %c0_81 = arith.constant 0 : index
    %160 = vector.load %arg10[%c7_80, %c0_81] : memref<96x12xf32, #tpu.memory_space<vmem>>, vector<64x12xf32>
    %cst_82 = arith.constant 0.000000e+00 : f32
    %161 = vector.shape_cast %156 : vector<64x1xi1> to vector<64x1xi1>
    %162 = vector.broadcast %161 : vector<64x1xi1> to vector<64x12xi1>
    %163 = vector.broadcast %cst_82 : f32 to vector<64x12xf32>
    %164 = arith.select %162, %160, %163 : vector<64x12xi1>, vector<64x12xf32>
    %c0_83 = arith.constant 0 : index
    %c0_84 = arith.constant 0 : index
    %c0_85 = arith.constant 0 : index
    %165 = vector.load %arg4[%c0_83, %c0_84, %c0_85] : memref<9x12x20xf32, #tpu.memory_space<vmem>>, vector<1x12x20xf32>
    %166 = vector.shape_cast %165 : vector<1x12x20xf32> to vector<12x20xf32>
    %cst_86 = arith.constant dense<0.000000e+00> : vector<64x20xf32>
    %167 = tpu.matmul %164, %166, %cst_86 {dimension_numbers = #tpu.dot_dimension_numbers<[1], [0], [0], [1], [0, 0, 1, 1], [], []>} : vector<64x12xf32>, vector<12x20xf32>, vector<64x20xf32> -> vector<64x20xf32>
    %168 = arith.addf %159, %167 : vector<64x20xf32>
    %c8_87 = arith.constant 8 : index
    %c0_88 = arith.constant 0 : index
    %169 = vector.load %arg10[%c8_87, %c0_88] : memref<96x12xf32, #tpu.memory_space<vmem>>, vector<64x12xf32>
    %c1_89 = arith.constant 1 : index
    %c0_90 = arith.constant 0 : index
    %c0_91 = arith.constant 0 : index
    %170 = vector.load %arg4[%c1_89, %c0_90, %c0_91] : memref<9x12x20xf32, #tpu.memory_space<vmem>>, vector<1x12x20xf32>
    %171 = vector.shape_cast %170 : vector<1x12x20xf32> to vector<12x20xf32>
    %cst_92 = arith.constant dense<0.000000e+00> : vector<64x20xf32>
    %172 = tpu.matmul %169, %171, %cst_92 {dimension_numbers = #tpu.dot_dimension_numbers<[1], [0], [0], [1], [0, 0, 1, 1], [], []>} : vector<64x12xf32>, vector<12x20xf32>, vector<64x20xf32> -> vector<64x20xf32>
    %173 = arith.addf %168, %172 : vector<64x20xf32>
    %c9 = arith.constant 9 : index
    %c0_93 = arith.constant 0 : index
    %174 = vector.load %arg10[%c9, %c0_93] : memref<96x12xf32, #tpu.memory_space<vmem>>, vector<64x12xf32>
    %cst_94 = arith.constant 0.000000e+00 : f32
    %175 = vector.shape_cast %158 : vector<64x1xi1> to vector<64x1xi1>
    %176 = vector.broadcast %175 : vector<64x1xi1> to vector<64x12xi1>
    %177 = vector.broadcast %cst_94 : f32 to vector<64x12xf32>
    %178 = arith.select %176, %174, %177 : vector<64x12xi1>, vector<64x12xf32>
    %c2_95 = arith.constant 2 : index
    %c0_96 = arith.constant 0 : index
    %c0_97 = arith.constant 0 : index
    %179 = vector.load %arg4[%c2_95, %c0_96, %c0_97] : memref<9x12x20xf32, #tpu.memory_space<vmem>>, vector<1x12x20xf32>
    %180 = vector.shape_cast %179 : vector<1x12x20xf32> to vector<12x20xf32>
    %cst_98 = arith.constant dense<0.000000e+00> : vector<64x20xf32>
    %181 = tpu.matmul %178, %180, %cst_98 {dimension_numbers = #tpu.dot_dimension_numbers<[1], [0], [0], [1], [0, 0, 1, 1], [], []>} : vector<64x12xf32>, vector<12x20xf32>, vector<64x20xf32> -> vector<64x20xf32>
    %182 = arith.addf %173, %181 : vector<64x20xf32>
    %c15 = arith.constant 15 : index
    %c0_99 = arith.constant 0 : index
    %183 = vector.load %arg10[%c15, %c0_99] : memref<96x12xf32, #tpu.memory_space<vmem>>, vector<64x12xf32>
    %cst_100 = arith.constant 0.000000e+00 : f32
    %184 = vector.shape_cast %156 : vector<64x1xi1> to vector<64x1xi1>
    %185 = vector.broadcast %184 : vector<64x1xi1> to vector<64x12xi1>
    %186 = vector.broadcast %cst_100 : f32 to vector<64x12xf32>
    %187 = arith.select %185, %183, %186 : vector<64x12xi1>, vector<64x12xf32>
    %c3_101 = arith.constant 3 : index
    %c0_102 = arith.constant 0 : index
    %c0_103 = arith.constant 0 : index
    %188 = vector.load %arg4[%c3_101, %c0_102, %c0_103] : memref<9x12x20xf32, #tpu.memory_space<vmem>>, vector<1x12x20xf32>
    %189 = vector.shape_cast %188 : vector<1x12x20xf32> to vector<12x20xf32>
    %cst_104 = arith.constant dense<0.000000e+00> : vector<64x20xf32>
    %190 = tpu.matmul %187, %189, %cst_104 {dimension_numbers = #tpu.dot_dimension_numbers<[1], [0], [0], [1], [0, 0, 1, 1], [], []>} : vector<64x12xf32>, vector<12x20xf32>, vector<64x20xf32> -> vector<64x20xf32>
    %191 = arith.addf %182, %190 : vector<64x20xf32>
    %c16_105 = arith.constant 16 : index
    %c0_106 = arith.constant 0 : index
    %192 = vector.load %arg10[%c16_105, %c0_106] : memref<96x12xf32, #tpu.memory_space<vmem>>, vector<64x12xf32>
    %c4_107 = arith.constant 4 : index
    %c0_108 = arith.constant 0 : index
    %c0_109 = arith.constant 0 : index
    %193 = vector.load %arg4[%c4_107, %c0_108, %c0_109] : memref<9x12x20xf32, #tpu.memory_space<vmem>>, vector<1x12x20xf32>
    %194 = vector.shape_cast %193 : vector<1x12x20xf32> to vector<12x20xf32>
    %cst_110 = arith.constant dense<0.000000e+00> : vector<64x20xf32>
    %195 = tpu.matmul %192, %194, %cst_110 {dimension_numbers = #tpu.dot_dimension_numbers<[1], [0], [0], [1], [0, 0, 1, 1], [], []>} : vector<64x12xf32>, vector<12x20xf32>, vector<64x20xf32> -> vector<64x20xf32>
    %196 = arith.addf %191, %195 : vector<64x20xf32>
    %c17_111 = arith.constant 17 : index
    %c0_112 = arith.constant 0 : index
    %197 = vector.load %arg10[%c17_111, %c0_112] : memref<96x12xf32, #tpu.memory_space<vmem>>, vector<64x12xf32>
    %cst_113 = arith.constant 0.000000e+00 : f32
    %198 = vector.shape_cast %158 : vector<64x1xi1> to vector<64x1xi1>
    %199 = vector.broadcast %198 : vector<64x1xi1> to vector<64x12xi1>
    %200 = vector.broadcast %cst_113 : f32 to vector<64x12xf32>
    %201 = arith.select %199, %197, %200 : vector<64x12xi1>, vector<64x12xf32>
    %c5_114 = arith.constant 5 : index
    %c0_115 = arith.constant 0 : index
    %c0_116 = arith.constant 0 : index
    %202 = vector.load %arg4[%c5_114, %c0_115, %c0_116] : memref<9x12x20xf32, #tpu.memory_space<vmem>>, vector<1x12x20xf32>
    %203 = vector.shape_cast %202 : vector<1x12x20xf32> to vector<12x20xf32>
    %cst_117 = arith.constant dense<0.000000e+00> : vector<64x20xf32>
    %204 = tpu.matmul %201, %203, %cst_117 {dimension_numbers = #tpu.dot_dimension_numbers<[1], [0], [0], [1], [0, 0, 1, 1], [], []>} : vector<64x12xf32>, vector<12x20xf32>, vector<64x20xf32> -> vector<64x20xf32>
    %205 = arith.addf %196, %204 : vector<64x20xf32>
    %c23 = arith.constant 23 : index
    %c0_118 = arith.constant 0 : index
    %206 = vector.load %arg10[%c23, %c0_118] : memref<96x12xf32, #tpu.memory_space<vmem>>, vector<64x12xf32>
    %cst_119 = arith.constant 0.000000e+00 : f32
    %207 = vector.shape_cast %156 : vector<64x1xi1> to vector<64x1xi1>
    %208 = vector.broadcast %207 : vector<64x1xi1> to vector<64x12xi1>
    %209 = vector.broadcast %cst_119 : f32 to vector<64x12xf32>
    %210 = arith.select %208, %206, %209 : vector<64x12xi1>, vector<64x12xf32>
    %c6_120 = arith.constant 6 : index
    %c0_121 = arith.constant 0 : index
    %c0_122 = arith.constant 0 : index
    %211 = vector.load %arg4[%c6_120, %c0_121, %c0_122] : memref<9x12x20xf32, #tpu.memory_space<vmem>>, vector<1x12x20xf32>
    %212 = vector.shape_cast %211 : vector<1x12x20xf32> to vector<12x20xf32>
    %cst_123 = arith.constant dense<0.000000e+00> : vector<64x20xf32>
    %213 = tpu.matmul %210, %212, %cst_123 {dimension_numbers = #tpu.dot_dimension_numbers<[1], [0], [0], [1], [0, 0, 1, 1], [], []>} : vector<64x12xf32>, vector<12x20xf32>, vector<64x20xf32> -> vector<64x20xf32>
    %214 = arith.addf %205, %213 : vector<64x20xf32>
    %c24 = arith.constant 24 : index
    %c0_124 = arith.constant 0 : index
    %215 = vector.load %arg10[%c24, %c0_124] : memref<96x12xf32, #tpu.memory_space<vmem>>, vector<64x12xf32>
    %c7_125 = arith.constant 7 : index
    %c0_126 = arith.constant 0 : index
    %c0_127 = arith.constant 0 : index
    %216 = vector.load %arg4[%c7_125, %c0_126, %c0_127] : memref<9x12x20xf32, #tpu.memory_space<vmem>>, vector<1x12x20xf32>
    %217 = vector.shape_cast %216 : vector<1x12x20xf32> to vector<12x20xf32>
    %cst_128 = arith.constant dense<0.000000e+00> : vector<64x20xf32>
    %218 = tpu.matmul %215, %217, %cst_128 {dimension_numbers = #tpu.dot_dimension_numbers<[1], [0], [0], [1], [0, 0, 1, 1], [], []>} : vector<64x12xf32>, vector<12x20xf32>, vector<64x20xf32> -> vector<64x20xf32>
    %219 = arith.addf %214, %218 : vector<64x20xf32>
    %c25 = arith.constant 25 : index
    %c0_129 = arith.constant 0 : index
    %220 = vector.load %arg10[%c25, %c0_129] : memref<96x12xf32, #tpu.memory_space<vmem>>, vector<64x12xf32>
    %cst_130 = arith.constant 0.000000e+00 : f32
    %221 = vector.shape_cast %158 : vector<64x1xi1> to vector<64x1xi1>
    %222 = vector.broadcast %221 : vector<64x1xi1> to vector<64x12xi1>
    %223 = vector.broadcast %cst_130 : f32 to vector<64x12xf32>
    %224 = arith.select %222, %220, %223 : vector<64x12xi1>, vector<64x12xf32>
    %c8_131 = arith.constant 8 : index
    %c0_132 = arith.constant 0 : index
    %c0_133 = arith.constant 0 : index
    %225 = vector.load %arg4[%c8_131, %c0_132, %c0_133] : memref<9x12x20xf32, #tpu.memory_space<vmem>>, vector<1x12x20xf32>
    %226 = vector.shape_cast %225 : vector<1x12x20xf32> to vector<12x20xf32>
    %cst_134 = arith.constant dense<0.000000e+00> : vector<64x20xf32>
    %227 = tpu.matmul %224, %226, %cst_134 {dimension_numbers = #tpu.dot_dimension_numbers<[1], [0], [0], [1], [0, 0, 1, 1], [], []>} : vector<64x12xf32>, vector<12x20xf32>, vector<64x20xf32> -> vector<64x20xf32>
    %228 = arith.addf %219, %227 : vector<64x20xf32>
    %c0_135 = arith.constant 0 : index
    %c0_136 = arith.constant 0 : index
    %229 = vector.load %arg5[%c0_135, %c0_136] : memref<1x20xf32, #tpu.memory_space<vmem>>, vector<1x20xf32>
    %230 = vector.broadcast %229 : vector<1x20xf32> to vector<64x20xf32>
    %231 = arith.addf %228, %230 : vector<64x20xf32>
    %cst_137 = arith.constant 0.000000e+00 : f32
    %232 = vector.broadcast %cst_137 : f32 to vector<64x20xf32>
    %233 = arith.maximumf %231, %232 : vector<64x20xf32>
    %c0_138 = arith.constant 0 : index
    %c0_139 = arith.constant 0 : index
    %c0_140 = arith.constant 0 : index
    %234 = vector.load %arg6[%c0_138, %c0_139, %c0_140] : memref<3x64x20xf32, #tpu.memory_space<vmem>>, vector<1x64x20xf32>
    %235 = vector.shape_cast %234 : vector<1x64x20xf32> to vector<64x20xf32>
    %236 = arith.mulf %233, %235 : vector<64x20xf32>
    %cst_141 = arith.constant dense<0.000000e+00> : vector<64xf32>
    %237 = vector.multi_reduction <add>, %236, %cst_141 [1] : vector<64x20xf32> to vector<64xf32>
    %238 = vector.shape_cast %237 : vector<64xf32> to vector<64x1xf32>
    %cst_142 = arith.constant dense<0.000000e+00> : vector<1xf32>
    %239 = vector.multi_reduction <add>, %238, %cst_142 [0] : vector<64x1xf32> to vector<1xf32>
    %240 = vector.shape_cast %239 : vector<1xf32> to vector<1x1xf32>
    %c1_143 = arith.constant 1 : index
    %c0_144 = arith.constant 0 : index
    %c0_145 = arith.constant 0 : index
    %241 = vector.load %arg6[%c1_143, %c0_144, %c0_145] : memref<3x64x20xf32, #tpu.memory_space<vmem>>, vector<1x64x20xf32>
    %242 = vector.shape_cast %241 : vector<1x64x20xf32> to vector<64x20xf32>
    %243 = arith.mulf %233, %242 : vector<64x20xf32>
    %cst_146 = arith.constant dense<0.000000e+00> : vector<64xf32>
    %244 = vector.multi_reduction <add>, %243, %cst_146 [1] : vector<64x20xf32> to vector<64xf32>
    %245 = vector.shape_cast %244 : vector<64xf32> to vector<64x1xf32>
    %cst_147 = arith.constant dense<0.000000e+00> : vector<1xf32>
    %246 = vector.multi_reduction <add>, %245, %cst_147 [0] : vector<64x1xf32> to vector<1xf32>
    %247 = vector.shape_cast %246 : vector<1xf32> to vector<1x1xf32>
    %c2_148 = arith.constant 2 : index
    %c0_149 = arith.constant 0 : index
    %c0_150 = arith.constant 0 : index
    %248 = vector.load %arg6[%c2_148, %c0_149, %c0_150] : memref<3x64x20xf32, #tpu.memory_space<vmem>>, vector<1x64x20xf32>
    %249 = vector.shape_cast %248 : vector<1x64x20xf32> to vector<64x20xf32>
    %250 = arith.mulf %233, %249 : vector<64x20xf32>
    %cst_151 = arith.constant dense<0.000000e+00> : vector<64xf32>
    %251 = vector.multi_reduction <add>, %250, %cst_151 [1] : vector<64x20xf32> to vector<64xf32>
    %252 = vector.shape_cast %251 : vector<64xf32> to vector<64x1xf32>
    %cst_152 = arith.constant dense<0.000000e+00> : vector<1xf32>
    %253 = vector.multi_reduction <add>, %252, %cst_152 [0] : vector<64x1xf32> to vector<1xf32>
    %254 = vector.shape_cast %253 : vector<1xf32> to vector<1x1xf32>
    %255 = tpu.concatenate %240, %247, %254 in 1 : vector<1x1xf32>, vector<1x1xf32>, vector<1x1xf32> -> vector<1x3xf32>
    %c0_153 = arith.constant 0 : index
    %c0_154 = arith.constant 0 : index
    %256 = vector.load %arg7[%c0_153, %c0_154] : memref<1x3xf32, #tpu.memory_space<vmem>>, vector<1x3xf32>
    %257 = arith.addf %255, %256 : vector<1x3xf32>
    %c0_155 = arith.constant 0 : index
    %c0_156 = arith.constant 0 : index
    %c0_157 = arith.constant 0 : index
    %258 = vector.load %arg8[%c0_155, %c0_156, %c0_157] : memref<1x1x3xf32, #tpu.memory_space<vmem>>, vector<1x1x3xf32>
    %259 = vector.shape_cast %258 : vector<1x1x3xf32> to vector<1x3xf32>
    %260 = vector.shape_cast %257 : vector<1x3xf32> to vector<1x1x3xf32>
    tpu.vector_store %arg8[%c0_155, %c0_156, %c0_157], %260 {strides = array<i32>} : memref<1x1x3xf32, #tpu.memory_space<vmem>>, vector<1x1x3xf32>,
    return
  }
  func.func @transform_0(%arg0: i32) -> (i32, i32, i32) {
    %c0_i32 = arith.constant 0 : i32
    %c0_i32_0 = arith.constant 0 : i32
    %c0_i32_1 = arith.constant 0 : i32
    return %arg0, %c0_i32, %c0_i32_0 : i32, i32, i32
  }
  func.func @transform_1(%arg0: i32) -> (i32, i32, i32) {
    %c0_i32 = arith.constant 0 : i32
    %c0_i32_0 = arith.constant 0 : i32
    %c0_i32_1 = arith.constant 0 : i32
    %c0_i32_2 = arith.constant 0 : i32
    return %c0_i32, %c0_i32_0, %c0_i32_1 : i32, i32, i32
  }
  func.func @transform_2(%arg0: i32) -> (i32, i32) {
    %c0_i32 = arith.constant 0 : i32
    %c0_i32_0 = arith.constant 0 : i32
    %c0_i32_1 = arith.constant 0 : i32
    return %c0_i32, %c0_i32_0 : i32, i32
  }
  func.func @transform_3(%arg0: i32) -> (i32, i32, i32) {
    %c0_i32 = arith.constant 0 : i32
    %c0_i32_0 = arith.constant 0 : i32
    %c0_i32_1 = arith.constant 0 : i32
    %c0_i32_2 = arith.constant 0 : i32
    return %c0_i32, %c0_i32_0, %c0_i32_1 : i32, i32, i32
  }
  func.func @transform_4(%arg0: i32) -> (i32, i32) {
    %c0_i32 = arith.constant 0 : i32
    %c0_i32_0 = arith.constant 0 : i32
    %c0_i32_1 = arith.constant 0 : i32
    return %c0_i32, %c0_i32_0 : i32, i32
  }
  func.func @transform_5(%arg0: i32) -> (i32, i32, i32) {
    %c0_i32 = arith.constant 0 : i32
    %c0_i32_0 = arith.constant 0 : i32
    %c0_i32_1 = arith.constant 0 : i32
    %c0_i32_2 = arith.constant 0 : i32
    return %c0_i32, %c0_i32_0, %c0_i32_1 : i32, i32, i32
  }
  func.func @transform_6(%arg0: i32) -> (i32, i32) {
    %c0_i32 = arith.constant 0 : i32
    %c0_i32_0 = arith.constant 0 : i32
    %c0_i32_1 = arith.constant 0 : i32
    return %c0_i32, %c0_i32_0 : i32, i32
  }
  func.func @transform_7(%arg0: i32) -> (i32, i32, i32) {
    %c0_i32 = arith.constant 0 : i32
    %c0_i32_0 = arith.constant 0 : i32
    %c0_i32_1 = arith.constant 0 : i32
    return %arg0, %c0_i32, %c0_i32_0 : i32, i32, i32
  }
}

</mosaic_0001>

<llo_original>
// kernel: bconv_forward.1
$region0: #{bconv_forward.1}
  #allocation0 [shape = 'u32[]', space=smem, size = 0x4, offset = 0x4, fixed_abs, tag = 'smem constant byte address 0x4 - core index']
  #allocation1 [shape = 'u32[144,128]{1,0:T(1,128)}', space=vmem, size = 0x12000, scoped, tag = 'internal scratch']
  #allocation2 [shape = 'f32[256,12]{1,0:T(8,128)}', space=vmem, size = 0x20000, scoped, tag = 'scratch operand']
  #allocation3 [shape = 'f32[96,12]{1,0:T(8,128)}', space=vmem, size = 0xc000, scoped, tag = 'scratch operand']
  %s0 = inlined_call_operand.vmem [shape: f32[2,290,3], index: 0, kind: input, shape index: {}]
  %s1 = inlined_call_operand.vmem [shape: f32[9,3,12], index: 1, kind: input, shape index: {}]
  %s2 = inlined_call_operand.vmem [shape: f32[1,12], index: 2, kind: input, shape index: {}]
  %s3 = inlined_call_operand.vmem [shape: f32[9,12,20], index: 3, kind: input, shape index: {}]
  %s4 = inlined_call_operand.vmem [shape: f32[1,20], index: 4, kind: input, shape index: {}]
  %s5 = inlined_call_operand.vmem [shape: f32[3,64,20], index: 5, kind: input, shape index: {}]
  %s6 = inlined_call_operand.vmem [shape: f32[1,3], index: 6, kind: input, shape index: {}]
  %s7 = inlined_call_operand.hbm [shape: f32[2,1,3], index: 7, kind: output, shape index: {}]
  %s8 = sld [smem:[#allocation0]]
  $region61: #{bconv_forward.1} parent=0
    _
  %s10 = ssub.s32 1, %s8
  %s11 = scalar_select 0, %s10, %s8
  $region1: #{bconv_forward.1} parent=0
    #allocation4 [shape = 'u8[1024]{0}', space=vmem, size = 0x400, scoped, tag = 'output window, operand 0']
    #allocation5 [shape = 's32[2]{0}', space=sflag, size = 0x8, scoped, tag = 'scoped memory for bconv_forward.1']
    %12 = vsyncpa [#allocation5], 0
    %s13 = scalar_lea.sflag [#allocation5], 1
    %14 = vsyncpa %s13, 0
    loop: start=0, step=1, limit=4
    $region2: #{bconv_forward.1} parent=1 // loop_pre_header
      _
    $region3: #{bconv_forward.1} parent=1 // loop_header
      %s16 = sphi 0, %s20
      %p17 = scmp.ge.s32.totalorder %s16, 4
      %s26 = sphi 0, %s28
      %s29 = sphi 0, %s26
      %s30 = sphi 0, %s29
      %s46 = sphi 0, %s30
      %s50 = sphi 0, %s50
      %s52 = sphi 0, %s50
      %s53 = sphi 0, %s52
      %s67 = sphi 0, %s53
      %s71 = sphi 0, %s71
      %s73 = sphi 0, %s71
      %s74 = sphi 0, %s73
      %s88 = sphi 0, %s74
      %s92 = sphi 0, %s92
      %s94 = sphi 0, %s92
      %s95 = sphi 0, %s94
      %s109 = sphi 0, %s95
      %s113 = sphi 0, %s113
      %s115 = sphi 0, %s113
      %s116 = sphi 0, %s115
      %s130 = sphi 0, %s116
      %s134 = sphi 0, %s134
      %s136 = sphi 0, %s134
      %s137 = sphi 0, %s136
      %s151 = sphi 0, %s137
      %s155 = sphi 0, %s155
      %s157 = sphi 0, %s155
      %s158 = sphi 0, %s157
      %s172 = sphi 0, %s158
      %s178 = sphi 0, %s180
      %s181 = sphi 0, %s178
      %s182 = sphi 0, %s181
      %s198 = sphi 0, %s182
    $region4: #{bconv_forward.1} parent=1 // loop_header_branch
      %19 = sbr.rel (%p17) target = $region8
    $region5: #{bconv_forward.1} parent=1 // loop_body
      %s21 = ssub.s32 %s16, 1
      %s22 = ssub.s32 %s16, 2
      %s23 = sadd.s32 %s16, 1
      %s24 = ssub.s32 %s16, %s23
      %p25 = scmp.eq.s32.totalorder %s24, 0
      %s27 = sadd.s32 %s26, 1
      %s28 = scalar_select %p25, %s26, %s27
      %p31 = pneg %p25
      %p32 = scmp.eq.s32.totalorder %s16, 1
      %p33 = por %p31, %p32
      %p34 = scmp.ne.s32.totalorder %s26, %s29
      %p35 = scmp.eq.s32.totalorder %s16, 0
      %p36 = por %p34, %p35
      %p37 = scmp.ne.s32.totalorder %s26, %s29
      %p38 = scmp.eq.s32.totalorder %s21, 1
      %p39 = por %p37, %p38
      %p40 = scmp.ne.s32.totalorder %s29, %s30
      %p41 = scmp.eq.s32.totalorder %s21, 0
      %p42 = por %p40, %p41
      %p43 = scmp.ne.s32.totalorder %s29, %s30
      %p44 = scmp.eq.s32.totalorder %s22, 1
      %p45 = por %p43, %p44
      %p47 = scmp.ne.s32.totalorder %s30, %s46
      %p48 = scmp.eq.s32.totalorder %s22, 0
      %p49 = por %p47, %p48
      %s51 = sadd.s32 %s50, 1
      %p54 = scmp.eq.s32.totalorder %s16, 1
      %p55 = scmp.ne.s32.totalorder %s50, %s52
      %p56 = scmp.eq.s32.totalorder %s16, 0
      %p57 = por %p55, %p56
      %p58 = scmp.ne.s32.totalorder %s50, %s52
      %p59 = scmp.eq.s32.totalorder %s21, 1
      %p60 = por %p58, %p59
      %p61 = scmp.ne.s32.totalorder %s52, %s53
      %p62 = scmp.eq.s32.totalorder %s21, 0
      %p63 = por %p61, %p62
      %p64 = scmp.ne.s32.totalorder %s52, %s53
      %p65 = scmp.eq.s32.totalorder %s22, 1
      %p66 = por %p64, %p65
      %p68 = scmp.ne.s32.totalorder %s53, %s67
      %p69 = scmp.eq.s32.totalorder %s22, 0
      %p70 = por %p68, %p69
      %s72 = sadd.s32 %s71, 1
      %p75 = scmp.eq.s32.totalorder %s16, 1
      %p76 = scmp.ne.s32.totalorder %s71, %s73
      %p77 = scmp.eq.s32.totalorder %s16, 0
      %p78 = por %p76, %p77
      %p79 = scmp.ne.s32.totalorder %s71, %s73
      %p80 = scmp.eq.s32.totalorder %s21, 1
      %p81 = por %p79, %p80
      %p82 = scmp.ne.s32.totalorder %s73, %s74
      %p83 = scmp.eq.s32.totalorder %s21, 0
      %p84 = por %p82, %p83
      %p85 = scmp.ne.s32.totalorder %s73, %s74
      %p86 = scmp.eq.s32.totalorder %s22, 1
      %p87 = por %p85, %p86
      %p89 = scmp.ne.s32.totalorder %s74, %s88
      %p90 = scmp.eq.s32.totalorder %s22, 0
      %p91 = por %p89, %p90
      %s93 = sadd.s32 %s92, 1
      %p96 = scmp.eq.s32.totalorder %s16, 1
      %p97 = scmp.ne.s32.totalorder %s92, %s94
      %p98 = scmp.eq.s32.totalorder %s16, 0
      %p99 = por %p97, %p98
      %p100 = scmp.ne.s32.totalorder %s92, %s94
      %p101 = scmp.eq.s32.totalorder %s21, 1
      %p102 = por %p100, %p101
      %p103 = scmp.ne.s32.totalorder %s94, %s95
      %p104 = scmp.eq.s32.totalorder %s21, 0
      %p105 = por %p103, %p104
      %p106 = scmp.ne.s32.totalorder %s94, %s95
      %p107 = scmp.eq.s32.totalorder %s22, 1
      %p108 = por %p106, %p107
      %p110 = scmp.ne.s32.totalorder %s95, %s109
      %p111 = scmp.eq.s32.totalorder %s22, 0
      %p112 = por %p110, %p111
      %s114 = sadd.s32 %s113, 1
      %p117 = scmp.eq.s32.totalorder %s16, 1
      %p118 = scmp.ne.s32.totalorder %s113, %s115
      %p119 = scmp.eq.s32.totalorder %s16, 0
      %p120 = por %p118, %p119
      %p121 = scmp.ne.s32.totalorder %s113, %s115
      %p122 = scmp.eq.s32.totalorder %s21, 1
      %p123 = por %p121, %p122
      %p124 = scmp.ne.s32.totalorder %s115, %s116
      %p125 = scmp.eq.s32.totalorder %s21, 0
      %p126 = por %p124, %p125
      %p127 = scmp.ne.s32.totalorder %s115, %s116
      %p128 = scmp.eq.s32.totalorder %s22, 1
      %p129 = por %p127, %p128
      %p131 = scmp.ne.s32.totalorder %s116, %s130
      %p132 = scmp.eq.s32.totalorder %s22, 0
      %p133 = por %p131, %p132
      %s135 = sadd.s32 %s134, 1
      %p138 = scmp.eq.s32.totalorder %s16, 1
      %p139 = scmp.ne.s32.totalorder %s134, %s136
      %p140 = scmp.eq.s32.totalorder %s16, 0
      %p141 = por %p139, %p140
      %p142 = scmp.ne.s32.totalorder %s134, %s136
      %p143 = scmp.eq.s32.totalorder %s21, 1
      %p144 = por %p142, %p143
      %p145 = scmp.ne.s32.totalorder %s136, %s137
      %p146 = scmp.eq.s32.totalorder %s21, 0
      %p147 = por %p145, %p146
      %p148 = scmp.ne.s32.totalorder %s136, %s137
      %p149 = scmp.eq.s32.totalorder %s22, 1
      %p150 = por %p148, %p149
      %p152 = scmp.ne.s32.totalorder %s137, %s151
      %p153 = scmp.eq.s32.totalorder %s22, 0
      %p154 = por %p152, %p153
      %s156 = sadd.s32 %s155, 1
      %p159 = scmp.eq.s32.totalorder %s16, 1
      %p160 = scmp.ne.s32.totalorder %s155, %s157
      %p161 = scmp.eq.s32.totalorder %s16, 0
      %p162 = por %p160, %p161
      %p163 = scmp.ne.s32.totalorder %s155, %s157
      %p164 = scmp.eq.s32.totalorder %s21, 1
      %p165 = por %p163, %p164
      %p166 = scmp.ne.s32.totalorder %s157, %s158
      %p167 = scmp.eq.s32.totalorder %s21, 0
      %p168 = por %p166, %p167
      %p169 = scmp.ne.s32.totalorder %s157, %s158
      %p170 = scmp.eq.s32.totalorder %s22, 1
      %p171 = por %p169, %p170
      %p173 = scmp.ne.s32.totalorder %s158, %s172
      %p174 = scmp.eq.s32.totalorder %s22, 0
      %p175 = por %p173, %p174
      %s176 = ssub.s32 %s16, %s23
      %p177 = scmp.eq.s32.totalorder %s176, 0
      %s179 = sadd.s32 %s178, 1
      %s180 = scalar_select %p177, %s178, %s179
      %p183 = pneg %p177
      %p184 = scmp.eq.s32.totalorder %s16, 1
      %p185 = por %p183, %p184
      %p186 = scmp.ne.s32.totalorder %s178, %s181
      %p187 = scmp.eq.s32.totalorder %s16, 0
      %p188 = por %p186, %p187
      %p189 = scmp.ne.s32.totalorder %s178, %s181
      %p190 = scmp.eq.s32.totalorder %s21, 1
      %p191 = por %p189, %p190
      %p192 = scmp.ne.s32.totalorder %s181, %s182
      %p193 = scmp.eq.s32.totalorder %s21, 0
      %p194 = por %p192, %p193
      %p195 = scmp.ne.s32.totalorder %s181, %s182
      %p196 = scmp.eq.s32.totalorder %s22, 1
      %p197 = por %p195, %p196
      %p199 = scmp.ne.s32.totalorder %s182, %s198
      %p200 = scmp.eq.s32.totalorder %s22, 0
      %p201 = por %p199, %p200
      %p202 = scmp.le.s32.totalorder 1, %s16
      %p203 = scmp.lt.s32.totalorder %s16, 3
      %p204 = pnand %p202, %p203
      %p205 = pneg %p204
      // Predicated region
      $region9: #{bconv_forward.1} parent=5 // pred_check
        _
      $region10: #{bconv_forward.1} parent=5 // pred_check_branch
        %207 = sbr.rel (%p204) target = $region12
      $region11: #{bconv_forward.1} parent=5 // pred_region
        %s208 = ssub.s32 %s16, 1
        // Predicated region
        $region13: #{bconv_forward.1} parent=11 // pred_check
          %p209 = pneg %p63
        $region14: #{bconv_forward.1} parent=11 // pred_check_branch
          %211 = sbr.rel (%p209) target = $region16
        $region15: #{bconv_forward.1} parent=11 // pred_region
          _
        $region16: #{bconv_forward.1} parent=11 // pred_fallthru
          _
        // Predicated region
        $region17: #{bconv_forward.1} parent=11 // pred_check
          %p212 = pneg %p84
        $region18: #{bconv_forward.1} parent=11 // pred_check_branch
          %214 = sbr.rel (%p212) target = $region20
        $region19: #{bconv_forward.1} parent=11 // pred_region
          _
        $region20: #{bconv_forward.1} parent=11 // pred_fallthru
          _
        // Predicated region
        $region21: #{bconv_forward.1} parent=11 // pred_check
          %p215 = pneg %p105
        $region22: #{bconv_forward.1} parent=11 // pred_check_branch
          %217 = sbr.rel (%p215) target = $region24
        $region23: #{bconv_forward.1} parent=11 // pred_region
          _
        $region24: #{bconv_forward.1} parent=11 // pred_fallthru
          _
        // Predicated region
        $region25: #{bconv_forward.1} parent=11 // pred_check
          %p218 = pneg %p126
        $region26: #{bconv_forward.1} parent=11 // pred_check_branch
          %220 = sbr.rel (%p218) target = $region28
        $region27: #{bconv_forward.1} parent=11 // pred_region
          _
        $region28: #{bconv_forward.1} parent=11 // pred_fallthru
          _
        // Predicated region
        $region29: #{bconv_forward.1} parent=11 // pred_check
          %p221 = pneg %p147
        $region30: #{bconv_forward.1} parent=11 // pred_check_branch
          %223 = sbr.rel (%p221) target = $region32
        $region31: #{bconv_forward.1} parent=11 // pred_region
          _
        $region32: #{bconv_forward.1} parent=11 // pred_fallthru
          _
        // Predicated region
        $region33: #{bconv_forward.1} parent=11 // pred_check
          %p224 = pneg %p168
        $region34: #{bconv_forward.1} parent=11 // pred_check_branch
          %226 = sbr.rel (%p224) target = $region36
        $region35: #{bconv_forward.1} parent=11 // pred_region
          _
        $region36: #{bconv_forward.1} parent=11 // pred_fallthru
          _
      $region12: #{bconv_forward.1} parent=5 // pred_fallthru
        _
      %p227 = scmp.lt.s32.totalorder %s16, 2
      // Predicated region
      $region37: #{bconv_forward.1} parent=5 // pred_check
        %p228 = pneg %p227
      $region38: #{bconv_forward.1} parent=5 // pred_check_branch
        %230 = sbr.rel (%p228) target = $region40
      $region39: #{bconv_forward.1} parent=5 // pred_region
        // Predicated region
        $region41: #{bconv_forward.1} parent=39 // pred_check
          %p231 = pneg %p36
        $region42: #{bconv_forward.1} parent=39 // pred_check_branch
          %233 = sbr.rel (%p231) target = $region44
        $region43: #{bconv_forward.1} parent=39 // pred_region
          %p234 = scmp.lt.s32.totalorder %s16, 1
          %s235 = scalar_select %p234, %s16, 1
          %s236 = smul.addr %s235, 37
          %s237 = smul.addr %s236, 8
          %s238 = scalar_lea.vmem %s0, %s237
        $region44: #{bconv_forward.1} parent=39 // pred_fallthru
          _
      $region40: #{bconv_forward.1} parent=5 // pred_fallthru
        _
      %p239 = scmp.le.s32.totalorder 1, %s16
      %p240 = scmp.lt.s32.totalorder %s16, 3
      %p241 = pnand %p239, %p240
      %p242 = pneg %p241
      // Predicated region
      $region45: #{bconv_forward.1} parent=5 // pred_check
        _
      $region46: #{bconv_forward.1} parent=5 // pred_check_branch
        %244 = sbr.rel (%p241) target = $region48
      $region47: #{bconv_forward.1} parent=5 // pred_region
        %s245 = ssub.s32 %s16, 1
        %p246 = scmp.lt.s32.totalorder %s21, 1
        %s247 = scalar_select %p246, %s21, 1
        %s248 = smul.addr %s247, 37
        %s249 = smul.addr %s248, 8
        %s250 = scalar_lea.vmem %s0, %s249
        %p251 = pneg %p42
        %p252 = pneg %p39
        %p253 = pneg %p63
        %p254 = pneg %p60
        %p255 = pneg %p84
        %p256 = pneg %p81
        %p257 = pneg %p105
        %p258 = pneg %p102
        %p259 = pneg %p126
        %p260 = pneg %p123
        %p261 = pneg %p147
        %p262 = pneg %p144
        %p263 = pneg %p168
        %p264 = pneg %p165
        %p265 = pneg %p194
        %p266 = pneg %p191
        %s267 = sand.u32 %s181, 1
        %s268 = scalar_lea.sflag [#allocation5], %s267
        %s269 = sand.u32 %s181, 1
        %s270 = scalar_lea.vmem [#allocation4], %s269
        %p271 = scmp.lt.s32.totalorder %s21, 1
        %s272 = scalar_select %p271, %s21, 1
        %s273 = smul.addr %s272, 37
        %s274 = smul.addr %s273, 8
        %s275 = scalar_lea.vmem %s0, %s274
        %v276 = vlaneseq
        %v277 = vshrl.u32 %v276, 7
        %v278 = vadd.s32 %v277, 8
        %v279 = vadd.s32 %v277, 16
        %v280 = vadd.s32 %v277, 24
        %v281 = vadd.s32 %v277, 32
        %v282 = vadd.s32 %v277, 40
        %v283 = vadd.s32 %v277, 48
        %v284 = vadd.s32 %v277, 56
        %v285 = vadd.s32 %v277, 64
        %v286 = vadd.s32 %v277, 72
        %v287 = vadd.s32 %v277, 80
        %v288 = vadd.s32 %v277, 88
        %v289 = vadd.s32 %v277, 96
        %v290 = vadd.s32 %v277, 104
        %v291 = vadd.s32 %v277, 112
        %v292 = vadd.s32 %v277, 120
        %v293 = vadd.s32 %v277, 128
        %v294 = vadd.s32 %v277, 136
        %v295 = vadd.s32 %v277, 144
        %v296 = vadd.s32 %v277, 152
        %v297 = vadd.s32 %v277, 160
        %v298 = vadd.s32 %v277, 168
        %v299 = vadd.s32 %v277, 176
        %v300 = vadd.s32 %v277, 184
        %v301 = vadd.s32 %v277, 192
        %v302 = vadd.s32 %v277, 200
        %v303 = vadd.s32 %v277, 208
        %v304 = vadd.s32 %v277, 216
        %v305 = vadd.s32 %v277, 224
        %v306 = vadd.s32 %v277, 232
        %v307 = vadd.s32 %v277, 240
        %v308 = vadd.s32 %v277, 248
        %vm309 = vcmp.lt.s32.totalorder %v277, 0
        %v310 = vsub.s32 0, %v277
        %v311 = vsel %vm309, %v310, %v277
        %v312 = vshrl.u32 %v311, 4
        %v313 = vand.u32 %v311, 15
        %v314 = vsub.s32 0, %v313
        %v315 = vsel %vm309, %v314, %v313
        %vm316 = vcmp.lt.s32.totalorder %v278, 0
        %v317 = vsub.s32 0, %v278
        %v318 = vsel %vm316, %v317, %v278
        %v319 = vshrl.u32 %v318, 4
        %v320 = vand.u32 %v318, 15
        %v321 = vsub.s32 0, %v320
        %v322 = vsel %vm316, %v321, %v320
        %vm323 = vcmp.lt.s32.totalorder %v279, 0
        %v324 = vsub.s32 0, %v279
        %v325 = vsel %vm323, %v324, %v279
        %v326 = vshrl.u32 %v325, 4
        %v327 = vand.u32 %v325, 15
        %v328 = vsub.s32 0, %v327
        %v329 = vsel %vm323, %v328, %v327
        %vm330 = vcmp.lt.s32.totalorder %v280, 0
        %v331 = vsub.s32 0, %v280
        %v332 = vsel %vm330, %v331, %v280
        %v333 = vshrl.u32 %v332, 4
        %v334 = vand.u32 %v332, 15
        %v335 = vsub.s32 0, %v334
        %v336 = vsel %vm330, %v335, %v334
        %vm337 = vcmp.lt.s32.totalorder %v281, 0
        %v338 = vsub.s32 0, %v281
        %v339 = vsel %vm337, %v338, %v281
        %v340 = vshrl.u32 %v339, 4
        %v341 = vand.u32 %v339, 15
        %v342 = vsub.s32 0, %v341
        %v343 = vsel %vm337, %v342, %v341
        %vm344 = vcmp.lt.s32.totalorder %v282, 0
        %v345 = vsub.s32 0, %v282
        %v346 = vsel %vm344, %v345, %v282
        %v347 = vshrl.u32 %v346, 4
        %v348 = vand.u32 %v346, 15
        %v349 = vsub.s32 0, %v348
        %v350 = vsel %vm344, %v349, %v348
        %vm351 = vcmp.lt.s32.totalorder %v283, 0
        %v352 = vsub.s32 0, %v283
        %v353 = vsel %vm351, %v352, %v283
        %v354 = vshrl.u32 %v353, 4
        %v355 = vand.u32 %v353, 15
        %v356 = vsub.s32 0, %v355
        %v357 = vsel %vm351, %v356, %v355
        %vm358 = vcmp.lt.s32.totalorder %v284, 0
        %v359 = vsub.s32 0, %v284
        %v360 = vsel %vm358, %v359, %v284
        %v361 = vshrl.u32 %v360, 4
        %v362 = vand.u32 %v360, 15
        %v363 = vsub.s32 0, %v362
        %v364 = vsel %vm358, %v363, %v362
        %vm365 = vcmp.lt.s32.totalorder %v285, 0
        %v366 = vsub.s32 0, %v285
        %v367 = vsel %vm365, %v366, %v285
        %v368 = vshrl.u32 %v367, 4
        %v369 = vand.u32 %v367, 15
        %v370 = vsub.s32 0, %v369
        %v371 = vsel %vm365, %v370, %v369
        %vm372 = vcmp.lt.s32.totalorder %v286, 0
        %v373 = vsub.s32 0, %v286
        %v374 = vsel %vm372, %v373, %v286
        %v375 = vshrl.u32 %v374, 4
        %v376 = vand.u32 %v374, 15
        %v377 = vsub.s32 0, %v376
        %v378 = vsel %vm372, %v377, %v376
        %vm379 = vcmp.lt.s32.totalorder %v287, 0
        %v380 = vsub.s32 0, %v287
        %v381 = vsel %vm379, %v380, %v287
        %v382 = vshrl.u32 %v381, 4
        %v383 = vand.u32 %v381, 15
        %v384 = vsub.s32 0, %v383
        %v385 = vsel %vm379, %v384, %v383
        %vm386 = vcmp.lt.s32.totalorder %v288, 0
        %v387 = vsub.s32 0, %v288
        %v388 = vsel %vm386, %v387, %v288
        %v389 = vshrl.u32 %v388, 4
        %v390 = vand.u32 %v388, 15
        %v391 = vsub.s32 0, %v390
        %v392 = vsel %vm386, %v391, %v390
        %vm393 = vcmp.lt.s32.totalorder %v289, 0
        %v394 = vsub.s32 0, %v289
        %v395 = vsel %vm393, %v394, %v289
        %v396 = vshrl.u32 %v395, 4
        %v397 = vand.u32 %v395, 15
        %v398 = vsub.s32 0, %v397
        %v399 = vsel %vm393, %v398, %v397
        %vm400 = vcmp.lt.s32.totalorder %v290, 0
        %v401 = vsub.s32 0, %v290
        %v402 = vsel %vm400, %v401, %v290
        %v403 = vshrl.u32 %v402, 4
        %v404 = vand.u32 %v402, 15
        %v405 = vsub.s32 0, %v404
        %v406 = vsel %vm400, %v405, %v404
        %vm407 = vcmp.lt.s32.totalorder %v291, 0
        %v408 = vsub.s32 0, %v291
        %v409 = vsel %vm407, %v408, %v291
        %v410 = vshrl.u32 %v409, 4
        %v411 = vand.u32 %v409, 15
        %v412 = vsub.s32 0, %v411
        %v413 = vsel %vm407, %v412, %v411
        %vm414 = vcmp.lt.s32.totalorder %v292, 0
        %v415 = vsub.s32 0, %v292
        %v416 = vsel %vm414, %v415, %v292
        %v417 = vshrl.u32 %v416, 4
        %v418 = vand.u32 %v416, 15
        %v419 = vsub.s32 0, %v418
        %v420 = vsel %vm414, %v419, %v418
        %vm421 = vcmp.lt.s32.totalorder %v293, 0
        %v422 = vsub.s32 0, %v293
        %v423 = vsel %vm421, %v422, %v293
        %v424 = vshrl.u32 %v423, 4
        %v425 = vand.u32 %v423, 15
        %v426 = vsub.s32 0, %v425
        %v427 = vsel %vm421, %v426, %v425
        %vm428 = vcmp.lt.s32.totalorder %v294, 0
        %v429 = vsub.s32 0, %v294
        %v430 = vsel %vm428, %v429, %v294
        %v431 = vshrl.u32 %v430, 4
        %v432 = vand.u32 %v430, 15
        %v433 = vsub.s32 0, %v432
        %v434 = vsel %vm428, %v433, %v432
        %vm435 = vcmp.lt.s32.totalorder %v295, 0
        %v436 = vsub.s32 0, %v295
        %v437 = vsel %vm435, %v436, %v295
        %v438 = vshrl.u32 %v437, 4
        %v439 = vand.u32 %v437, 15
        %v440 = vsub.s32 0, %v439
        %v441 = vsel %vm435, %v440, %v439
        %vm442 = vcmp.lt.s32.totalorder %v296, 0
        %v443 = vsub.s32 0, %v296
        %v444 = vsel %vm442, %v443, %v296
        %v445 = vshrl.u32 %v444, 4
        %v446 = vand.u32 %v444, 15
        %v447 = vsub.s32 0, %v446
        %v448 = vsel %vm442, %v447, %v446
        %vm449 = vcmp.lt.s32.totalorder %v297, 0
        %v450 = vsub.s32 0, %v297
        %v451 = vsel %vm449, %v450, %v297
        %v452 = vshrl.u32 %v451, 4
        %v453 = vand.u32 %v451, 15
        %v454 = vsub.s32 0, %v453
        %v455 = vsel %vm449, %v454, %v453
        %vm456 = vcmp.lt.s32.totalorder %v298, 0
        %v457 = vsub.s32 0, %v298
        %v458 = vsel %vm456, %v457, %v298
        %v459 = vshrl.u32 %v458, 4
        %v460 = vand.u32 %v458, 15
        %v461 = vsub.s32 0, %v460
        %v462 = vsel %vm456, %v461, %v460
        %vm463 = vcmp.lt.s32.totalorder %v299, 0
        %v464 = vsub.s32 0, %v299
        %v465 = vsel %vm463, %v464, %v299
        %v466 = vshrl.u32 %v465, 4
        %v467 = vand.u32 %v465, 15
        %v468 = vsub.s32 0, %v467
        %v469 = vsel %vm463, %v468, %v467
        %vm470 = vcmp.lt.s32.totalorder %v300, 0
        %v471 = vsub.s32 0, %v300
        %v472 = vsel %vm470, %v471, %v300
        %v473 = vshrl.u32 %v472, 4
        %v474 = vand.u32 %v472, 15
        %v475 = vsub.s32 0, %v474
        %v476 = vsel %vm470, %v475, %v474
        %vm477 = vcmp.lt.s32.totalorder %v301, 0
        %v478 = vsub.s32 0, %v301
        %v479 = vsel %vm477, %v478, %v301
        %v480 = vshrl.u32 %v479, 4
        %v481 = vand.u32 %v479, 15
        %v482 = vsub.s32 0, %v481
        %v483 = vsel %vm477, %v482, %v481
        %vm484 = vcmp.lt.s32.totalorder %v302, 0
        %v485 = vsub.s32 0, %v302
        %v486 = vsel %vm484, %v485, %v302
        %v487 = vshrl.u32 %v486, 4
        %v488 = vand.u32 %v486, 15
        %v489 = vsub.s32 0, %v488
        %v490 = vsel %vm484, %v489, %v488
        %vm491 = vcmp.lt.s32.totalorder %v303, 0
        %v492 = vsub.s32 0, %v303
        %v493 = vsel %vm491, %v492, %v303
        %v494 = vshrl.u32 %v493, 4
        %v495 = vand.u32 %v493, 15
        %v496 = vsub.s32 0, %v495
        %v497 = vsel %vm491, %v496, %v495
        %vm498 = vcmp.lt.s32.totalorder %v304, 0
        %v499 = vsub.s32 0, %v304
        %v500 = vsel %vm498, %v499, %v304
        %v501 = vshrl.u32 %v500, 4
        %v502 = vand.u32 %v500, 15
        %v503 = vsub.s32 0, %v502
        %v504 = vsel %vm498, %v503, %v502
        %vm505 = vcmp.lt.s32.totalorder %v305, 0
        %v506 = vsub.s32 0, %v305
        %v507 = vsel %vm505, %v506, %v305
        %v508 = vshrl.u32 %v507, 4
        %v509 = vand.u32 %v507, 15
        %v510 = vsub.s32 0, %v509
        %v511 = vsel %vm505, %v510, %v509
        %vm512 = vcmp.lt.s32.totalorder %v306, 0
        %v513 = vsub.s32 0, %v306
        %v514 = vsel %vm512, %v513, %v306
        %v515 = vshrl.u32 %v514, 4
        %v516 = vand.u32 %v514, 15
        %v517 = vsub.s32 0, %v516
        %v518 = vsel %vm512, %v517, %v516
        %vm519 = vcmp.lt.s32.totalorder %v307, 0
        %v520 = vsub.s32 0, %v307
        %v521 = vsel %vm519, %v520, %v307
        %v522 = vshrl.u32 %v521, 4
        %v523 = vand.u32 %v521, 15
        %v524 = vsub.s32 0, %v523
        %v525 = vsel %vm519, %v524, %v523
        %vm526 = vcmp.lt.s32.totalorder %v308, 0
        %v527 = vsub.s32 0, %v308
        %v528 = vsel %vm526, %v527, %v308
        %v529 = vshrl.u32 %v528, 4
        %v530 = vand.u32 %v528, 15
        %v531 = vsub.s32 0, %v530
        %v532 = vsel %vm526, %v531, %v530
        %vm533 = vcmp.ne.s32.totalorder %v315, 0
        %vm534 = vcmp.ne.s32.totalorder %v322, 0
        %vm535 = vcmp.ne.s32.totalorder %v329, 0
        %vm536 = vcmp.ne.s32.totalorder %v336, 0
        %vm537 = vcmp.ne.s32.totalorder %v343, 0
        %vm538 = vcmp.ne.s32.totalorder %v350, 0
        %vm539 = vcmp.ne.s32.totalorder %v357, 0
        %vm540 = vcmp.ne.s32.totalorder %v364, 0
        %vm541 = vcmp.ne.s32.totalorder %v371, 0
        %vm542 = vcmp.ne.s32.totalorder %v378, 0
        %vm543 = vcmp.ne.s32.totalorder %v385, 0
        %vm544 = vcmp.ne.s32.totalorder %v392, 0
        %vm545 = vcmp.ne.s32.totalorder %v399, 0
        %vm546 = vcmp.ne.s32.totalorder %v406, 0
        %vm547 = vcmp.ne.s32.totalorder %v413, 0
        %vm548 = vcmp.ne.s32.totalorder %v420, 0
        %vm549 = vcmp.ne.s32.totalorder %v427, 0
        %vm550 = vcmp.ne.s32.totalorder %v434, 0
        %vm551 = vcmp.ne.s32.totalorder %v441, 0
        %vm552 = vcmp.ne.s32.totalorder %v448, 0
        %vm553 = vcmp.ne.s32.totalorder %v455, 0
        %vm554 = vcmp.ne.s32.totalorder %v462, 0
        %vm555 = vcmp.ne.s32.totalorder %v469, 0
        %vm556 = vcmp.ne.s32.totalorder %v476, 0
        %vm557 = vcmp.ne.s32.totalorder %v483, 0
        %vm558 = vcmp.ne.s32.totalorder %v490, 0
        %vm559 = vcmp.ne.s32.totalorder %v497, 0
        %vm560 = vcmp.ne.s32.totalorder %v504, 0
        %vm561 = vcmp.ne.s32.totalorder %v511, 0
        %vm562 = vcmp.ne.s32.totalorder %v518, 0
        %vm563 = vcmp.ne.s32.totalorder %v525, 0
        %vm564 = vcmp.ne.s32.totalorder %v532, 0
        %vm565 = vcmp.lt.s32.totalorder %v315, 0
        %vm566 = vcmp.lt.s32.totalorder %v322, 0
        %vm567 = vcmp.lt.s32.totalorder %v329, 0
        %vm568 = vcmp.lt.s32.totalorder %v336, 0
        %vm569 = vcmp.lt.s32.totalorder %v343, 0
        %vm570 = vcmp.lt.s32.totalorder %v350, 0
        %vm571 = vcmp.lt.s32.totalorder %v357, 0
        %vm572 = vcmp.lt.s32.totalorder %v364, 0
        %vm573 = vcmp.lt.s32.totalorder %v371, 0
        %vm574 = vcmp.lt.s32.totalorder %v378, 0
        %vm575 = vcmp.lt.s32.totalorder %v385, 0
        %vm576 = vcmp.lt.s32.totalorder %v392, 0
        %vm577 = vcmp.lt.s32.totalorder %v399, 0
        %vm578 = vcmp.lt.s32.totalorder %v406, 0
        %vm579 = vcmp.lt.s32.totalorder %v413, 0
        %vm580 = vcmp.lt.s32.totalorder %v420, 0
        %vm581 = vcmp.lt.s32.totalorder %v427, 0
        %vm582 = vcmp.lt.s32.totalorder %v434, 0
        %vm583 = vcmp.lt.s32.totalorder %v441, 0
        %vm584 = vcmp.lt.s32.totalorder %v448, 0
        %vm585 = vcmp.lt.s32.totalorder %v455, 0
        %vm586 = vcmp.lt.s32.totalorder %v462, 0
        %vm587 = vcmp.lt.s32.totalorder %v469, 0
        %vm588 = vcmp.lt.s32.totalorder %v476, 0
        %vm589 = vcmp.lt.s32.totalorder %v483, 0
        %vm590 = vcmp.lt.s32.totalorder %v490, 0
        %vm591 = vcmp.lt.s32.totalorder %v497, 0
        %vm592 = vcmp.lt.s32.totalorder %v504, 0
        %vm593 = vcmp.lt.s32.totalorder %v511, 0
        %vm594 = vcmp.lt.s32.totalorder %v518, 0
        %vm595 = vcmp.lt.s32.totalorder %v525, 0
        %vm596 = vcmp.lt.s32.totalorder %v532, 0
        %vm597 = vmand %vm565, %vm533
        %vm598 = vmand %vm566, %vm534
        %vm599 = vmand %vm567, %vm535
        %vm600 = vmand %vm568, %vm536
        %vm601 = vmand %vm569, %vm537
        %vm602 = vmand %vm570, %vm538
        %vm603 = vmand %vm571, %vm539
        %vm604 = vmand %vm572, %vm540
        %vm605 = vmand %vm573, %vm541
        %vm606 = vmand %vm574, %vm542
        %vm607 = vmand %vm575, %vm543
        %vm608 = vmand %vm576, %vm544
        %vm609 = vmand %vm577, %vm545
        %vm610 = vmand %vm578, %vm546
        %vm611 = vmand %vm579, %vm547
        %vm612 = vmand %vm580, %vm548
        %vm613 = vmand %vm581, %vm549
        %vm614 = vmand %vm582, %vm550
        %vm615 = vmand %vm583, %vm551
        %vm616 = vmand %vm584, %vm552
        %vm617 = vmand %vm585, %vm553
        %vm618 = vmand %vm586, %vm554
        %vm619 = vmand %vm587, %vm555
        %vm620 = vmand %vm588, %vm556
        %vm621 = vmand %vm589, %vm557
        %vm622 = vmand %vm590, %vm558
        %vm623 = vmand %vm591, %vm559
        %vm624 = vmand %vm592, %vm560
        %vm625 = vmand %vm593, %vm561
        %vm626 = vmand %vm594, %vm562
        %vm627 = vmand %vm595, %vm563
        %vm628 = vmand %vm596, %vm564
        %v629 = vadd.s32 %v315, 16
        %v630 = vadd.s32 %v322, 16
        %v631 = vadd.s32 %v329, 16
        %v632 = vadd.s32 %v336, 16
        %v633 = vadd.s32 %v343, 16
        %v634 = vadd.s32 %v350, 16
        %v635 = vadd.s32 %v357, 16
        %v636 = vadd.s32 %v364, 16
        %v637 = vadd.s32 %v371, 16
        %v638 = vadd.s32 %v378, 16
        %v639 = vadd.s32 %v385, 16
        %v640 = vadd.s32 %v392, 16
        %v641 = vadd.s32 %v399, 16
        %v642 = vadd.s32 %v406, 16
        %v643 = vadd.s32 %v413, 16
        %v644 = vadd.s32 %v420, 16
        %v645 = vadd.s32 %v427, 16
        %v646 = vadd.s32 %v434, 16
        %v647 = vadd.s32 %v441, 16
        %v648 = vadd.s32 %v448, 16
        %v649 = vadd.s32 %v455, 16
        %v650 = vadd.s32 %v462, 16
        %v651 = vadd.s32 %v469, 16
        %v652 = vadd.s32 %v476, 16
        %v653 = vadd.s32 %v483, 16
        %v654 = vadd.s32 %v490, 16
        %v655 = vadd.s32 %v497, 16
        %v656 = vadd.s32 %v504, 16
        %v657 = vadd.s32 %v511, 16
        %v658 = vadd.s32 %v518, 16
        %v659 = vadd.s32 %v525, 16
        %v660 = vadd.s32 %v532, 16
        %v661 = vsel %vm597, %v629, %v315
        %v662 = vsel %vm598, %v630, %v322
        %v663 = vsel %vm599, %v631, %v329
        %v664 = vsel %vm600, %v632, %v336
        %v665 = vsel %vm601, %v633, %v343
        %v666 = vsel %vm602, %v634, %v350
        %v667 = vsel %vm603, %v635, %v357
        %v668 = vsel %vm604, %v636, %v364
        %v669 = vsel %vm605, %v637, %v371
        %v670 = vsel %vm606, %v638, %v378
        %v671 = vsel %vm607, %v639, %v385
        %v672 = vsel %vm608, %v640, %v392
        %v673 = vsel %vm609, %v641, %v399
        %v674 = vsel %vm610, %v642, %v406
        %v675 = vsel %vm611, %v643, %v413
        %v676 = vsel %vm612, %v644, %v420
        %v677 = vsel %vm613, %v645, %v427
        %v678 = vsel %vm614, %v646, %v434
        %v679 = vsel %vm615, %v647, %v441
        %v680 = vsel %vm616, %v648, %v448
        %v681 = vsel %vm617, %v649, %v455
        %v682 = vsel %vm618, %v650, %v462
        %v683 = vsel %vm619, %v651, %v469
        %v684 = vsel %vm620, %v652, %v476
        %v685 = vsel %vm621, %v653, %v483
        %v686 = vsel %vm622, %v654, %v490
        %v687 = vsel %vm623, %v655, %v497
        %v688 = vsel %vm624, %v656, %v504
        %v689 = vsel %vm625, %v657, %v511
        %v690 = vsel %vm626, %v658, %v518
        %v691 = vsel %vm627, %v659, %v525
        %v692 = vsel %vm628, %v660, %v532
        %vm693 = vcmp.ne.s32.totalorder %v661, 0
        %vm694 = vcmp.ne.s32.totalorder %v662, 0
        %vm695 = vcmp.ne.s32.totalorder %v663, 0
        %vm696 = vcmp.ne.s32.totalorder %v664, 0
        %vm697 = vcmp.ne.s32.totalorder %v665, 0
        %vm698 = vcmp.ne.s32.totalorder %v666, 0
        %vm699 = vcmp.ne.s32.totalorder %v667, 0
        %vm700 = vcmp.ne.s32.totalorder %v668, 0
        %vm701 = vcmp.ne.s32.totalorder %v669, 0
        %vm702 = vcmp.ne.s32.totalorder %v670, 0
        %vm703 = vcmp.ne.s32.totalorder %v671, 0
        %vm704 = vcmp.ne.s32.totalorder %v672, 0
        %vm705 = vcmp.ne.s32.totalorder %v673, 0
        %vm706 = vcmp.ne.s32.totalorder %v674, 0
        %vm707 = vcmp.ne.s32.totalorder %v675, 0
        %vm708 = vcmp.ne.s32.totalorder %v676, 0
        %vm709 = vcmp.ne.s32.totalorder %v677, 0
        %vm710 = vcmp.ne.s32.totalorder %v678, 0
        %vm711 = vcmp.ne.s32.totalorder %v679, 0
        %vm712 = vcmp.ne.s32.totalorder %v680, 0
        %vm713 = vcmp.ne.s32.totalorder %v681, 0
        %vm714 = vcmp.ne.s32.totalorder %v682, 0
        %vm715 = vcmp.ne.s32.totalorder %v683, 0
        %vm716 = vcmp.ne.s32.totalorder %v684, 0
        %vm717 = vcmp.ne.s32.totalorder %v685, 0
        %vm718 = vcmp.ne.s32.totalorder %v686, 0
        %vm719 = vcmp.ne.s32.totalorder %v687, 0
        %vm720 = vcmp.ne.s32.totalorder %v688, 0
        %vm721 = vcmp.ne.s32.totalorder %v689, 0
        %vm722 = vcmp.ne.s32.totalorder %v690, 0
        %vm723 = vcmp.ne.s32.totalorder %v691, 0
        %vm724 = vcmp.ne.s32.totalorder %v692, 0
        %vm725 = vcmp.ne.s32.totalorder %v661, 15
        %vm726 = vcmp.ne.s32.totalorder %v662, 15
        %vm727 = vcmp.ne.s32.totalorder %v663, 15
        %vm728 = vcmp.ne.s32.totalorder %v664, 15
        %vm729 = vcmp.ne.s32.totalorder %v665, 15
        %vm730 = vcmp.ne.s32.totalorder %v666, 15
        %vm731 = vcmp.ne.s32.totalorder %v667, 15
        %vm732 = vcmp.ne.s32.totalorder %v668, 15
        %vm733 = vcmp.ne.s32.totalorder %v669, 15
        %vm734 = vcmp.ne.s32.totalorder %v670, 15
        %vm735 = vcmp.ne.s32.totalorder %v671, 15
        %vm736 = vcmp.ne.s32.totalorder %v672, 15
        %vm737 = vcmp.ne.s32.totalorder %v673, 15
        %vm738 = vcmp.ne.s32.totalorder %v674, 15
        %vm739 = vcmp.ne.s32.totalorder %v675, 15
        %vm740 = vcmp.ne.s32.totalorder %v676, 15
        %vm741 = vcmp.ne.s32.totalorder %v677, 15
        %vm742 = vcmp.ne.s32.totalorder %v678, 15
        %vm743 = vcmp.ne.s32.totalorder %v679, 15
        %vm744 = vcmp.ne.s32.totalorder %v680, 15
        %vm745 = vcmp.ne.s32.totalorder %v681, 15
        %vm746 = vcmp.ne.s32.totalorder %v682, 15
        %vm747 = vcmp.ne.s32.totalorder %v683, 15
        %vm748 = vcmp.ne.s32.totalorder %v684, 15
        %vm749 = vcmp.ne.s32.totalorder %v685, 15
        %vm750 = vcmp.ne.s32.totalorder %v686, 15
        %vm751 = vcmp.ne.s32.totalorder %v687, 15
        %vm752 = vcmp.ne.s32.totalorder %v688, 15
        %vm753 = vcmp.ne.s32.totalorder %v689, 15
        %vm754 = vcmp.ne.s32.totalorder %v690, 15
        %vm755 = vcmp.ne.s32.totalorder %v691, 15
        %vm756 = vcmp.ne.s32.totalorder %v692, 15
        %v757 = vld [vmem:[%s275] sm:$0xff]
        %v758 = vld [vmem:[%s275 + $0x8] sm:$0xff]
        %v759 = vld [vmem:[%s275 + $0x10] sm:$0xff]
        %v760 = vld [vmem:[%s275 + $0x18] sm:$0xff]
        %v761 = vld [vmem:[%s275 + $0x20] sm:$0xff]
        %v762 = vld [vmem:[%s275 + $0x28] sm:$0xff]
        %v763 = vld [vmem:[%s275 + $0x30] sm:$0xff]
        %v764 = vld [vmem:[%s275 + $0x38] sm:$0xff]
        %v765 = vld [vmem:[%s275 + $0x40] sm:$0xff]
        %v766 = vld [vmem:[%s275 + $0x48] sm:$0xff]
        %v767 = vld [vmem:[%s275 + $0x50] sm:$0xff]
        %v768 = vld [vmem:[%s275 + $0x58] sm:$0xff]
        %v769 = vld [vmem:[%s275 + $0x60] sm:$0xff]
        %v770 = vld [vmem:[%s275 + $0x68] sm:$0xff]
        %v771 = vld [vmem:[%s275 + $0x70] sm:$0xff]
        %v772 = vld [vmem:[%s275 + $0x78] sm:$0xff]
        %v773 = vld [vmem:[%s275 + $0x80] sm:$0xff]
        %v774 = vld [vmem:[%s275 + $0x88] sm:$0xff]
        %v775 = vld [vmem:[%s275 + $0x90] sm:$0xff]
        %v776 = vld [vmem:[%s275 + $0x98] sm:$0xff]
        %v777 = vld [vmem:[%s275 + $0xa0] sm:$0xff]
        %v778 = vld [vmem:[%s275 + $0xa8] sm:$0xff]
        %v779 = vld [vmem:[%s275 + $0xb0] sm:$0xff]
        %v780 = vld [vmem:[%s275 + $0xb8] sm:$0xff]
        %v781 = vld [vmem:[%s275 + $0xc0] sm:$0xff]
        %v782 = vld [vmem:[%s275 + $0xc8] sm:$0xff]
        %v783 = vld [vmem:[%s275 + $0xd0] sm:$0xff]
        %v784 = vld [vmem:[%s275 + $0xd8] sm:$0xff]
        %v785 = vld [vmem:[%s275 + $0xe0] sm:$0xff]
        %v786 = vld [vmem:[%s275 + $0xe8] sm:$0xff]
        %v787 = vld [vmem:[%s275 + $0xf0] sm:$0xff]
        %v788 = vld [vmem:[%s275 + $0xf8] sm:$0xff]
        %v789 = vsel %vm693, 1, 0
        %v790 = vsel %vm694, 1, 0
        %v791 = vsel %vm695, 1, 0
        %v792 = vsel %vm696, 1, 0
        %v793 = vsel %vm697, 1, 0
        %v794 = vsel %vm698, 1, 0
        %v795 = vsel %vm699, 1, 0
        %v796 = vsel %vm700, 1, 0
        %v797 = vsel %vm701, 1, 0
        %v798 = vsel %vm702, 1, 0
        %v799 = vsel %vm703, 1, 0
        %v800 = vsel %vm704, 1, 0
        %v801 = vsel %vm705, 1, 0
        %v802 = vsel %vm706, 1, 0
        %v803 = vsel %vm707, 1, 0
        %v804 = vsel %vm708, 1, 0
        %v805 = vsel %vm709, 1, 0
        %v806 = vsel %vm710, 1, 0
        %v807 = vsel %vm711, 1, 0
        %v808 = vsel %vm712, 1, 0
        %v809 = vsel %vm713, 1, 0
        %v810 = vsel %vm714, 1, 0
        %v811 = vsel %vm715, 1, 0
        %v812 = vsel %vm716, 1, 0
        %v813 = vsel %vm717, 1, 0
        %v814 = vsel %vm718, 1, 0
        %v815 = vsel %vm719, 1, 0
        %v816 = vsel %vm720, 1, 0
        %v817 = vsel %vm721, 1, 0
        %v818 = vsel %vm722, 1, 0
        %v819 = vsel %vm723, 1, 0
        %v820 = vsel %vm724, 1, 0
        %vm821 = vcmp.eq.s32.totalorder %v789, 1
        %vm822 = vcmp.eq.s32.totalorder %v790, 1
        %vm823 = vcmp.eq.s32.totalorder %v791, 1
        %vm824 = vcmp.eq.s32.totalorder %v792, 1
        %vm825 = vcmp.eq.s32.totalorder %v793, 1
        %vm826 = vcmp.eq.s32.totalorder %v794, 1
        %vm827 = vcmp.eq.s32.totalorder %v795, 1
        %vm828 = vcmp.eq.s32.totalorder %v796, 1
        %vm829 = vcmp.eq.s32.totalorder %v797, 1
        %vm830 = vcmp.eq.s32.totalorder %v798, 1
        %vm831 = vcmp.eq.s32.totalorder %v799, 1
        %vm832 = vcmp.eq.s32.totalorder %v800, 1
        %vm833 = vcmp.eq.s32.totalorder %v801, 1
        %vm834 = vcmp.eq.s32.totalorder %v802, 1
        %vm835 = vcmp.eq.s32.totalorder %v803, 1
        %vm836 = vcmp.eq.s32.totalorder %v804, 1
        %vm837 = vcmp.eq.s32.totalorder %v805, 1
        %vm838 = vcmp.eq.s32.totalorder %v806, 1
        %vm839 = vcmp.eq.s32.totalorder %v807, 1
        %vm840 = vcmp.eq.s32.totalorder %v808, 1
        %vm841 = vcmp.eq.s32.totalorder %v809, 1
        %vm842 = vcmp.eq.s32.totalorder %v810, 1
        %vm843 = vcmp.eq.s32.totalorder %v811, 1
        %vm844 = vcmp.eq.s32.totalorder %v812, 1
        %vm845 = vcmp.eq.s32.totalorder %v813, 1
        %vm846 = vcmp.eq.s32.totalorder %v814, 1
        %vm847 = vcmp.eq.s32.totalorder %v815, 1
        %vm848 = vcmp.eq.s32.totalorder %v816, 1
        %vm849 = vcmp.eq.s32.totalorder %v817, 1
        %vm850 = vcmp.eq.s32.totalorder %v818, 1
        %vm851 = vcmp.eq.s32.totalorder %v819, 1
        %vm852 = vcmp.eq.s32.totalorder %v820, 1
        %v853 = vsel %vm821, %v757, 0.0
        %v854 = vsel %vm822, %v758, 0.0
        %v855 = vsel %vm823, %v759, 0.0
        %v856 = vsel %vm824, %v760, 0.0
        %v857 = vsel %vm825, %v761, 0.0
        %v858 = vsel %vm826, %v762, 0.0
        %v859 = vsel %vm827, %v763, 0.0
        %v860 = vsel %vm828, %v764, 0.0
        %v861 = vsel %vm829, %v765, 0.0
        %v862 = vsel %vm830, %v766, 0.0
        %v863 = vsel %vm831, %v767, 0.0
        %v864 = vsel %vm832, %v768, 0.0
        %v865 = vsel %vm833, %v769, 0.0
        %v866 = vsel %vm834, %v770, 0.0
        %v867 = vsel %vm835, %v771, 0.0
        %v868 = vsel %vm836, %v772, 0.0
        %v869 = vsel %vm837, %v773, 0.0
        %v870 = vsel %vm838, %v774, 0.0
        %v871 = vsel %vm839, %v775, 0.0
        %v872 = vsel %vm840, %v776, 0.0
        %v873 = vsel %vm841, %v777, 0.0
        %v874 = vsel %vm842, %v778, 0.0
        %v875 = vsel %vm843, %v779, 0.0
        %v876 = vsel %vm844, %v780, 0.0
        %v877 = vsel %vm845, %v781, 0.0
        %v878 = vsel %vm846, %v782, 0.0
        %v879 = vsel %vm847, %v783, 0.0
        %v880 = vsel %vm848, %v784, 0.0
        %v881 = vsel %vm849, %v785, 0.0
        %v882 = vsel %vm850, %v786, 0.0
        %v883 = vsel %vm851, %v787, 0.0
        %v884 = vsel %vm852, %v788, 0.0
        %v885 = vld [vmem:[%s1] sm:$0x7]
        %v886 = vld [vmem:[%s275 + $0x1] sm:$0xff]
        %v887 = vld [vmem:[%s275 + $0x9] sm:$0xff]
        %v888 = vld [vmem:[%s275 + $0x11] sm:$0xff]
        %v889 = vld [vmem:[%s275 + $0x19] sm:$0xff]
        %v890 = vld [vmem:[%s275 + $0x21] sm:$0xff]
        %v891 = vld [vmem:[%s275 + $0x29] sm:$0xff]
        %v892 = vld [vmem:[%s275 + $0x31] sm:$0xff]
        %v893 = vld [vmem:[%s275 + $0x39] sm:$0xff]
        %v894 = vld [vmem:[%s275 + $0x41] sm:$0xff]
        %v895 = vld [vmem:[%s275 + $0x49] sm:$0xff]
        %v896 = vld [vmem:[%s275 + $0x51] sm:$0xff]
        %v897 = vld [vmem:[%s275 + $0x59] sm:$0xff]
        %v898 = vld [vmem:[%s275 + $0x61] sm:$0xff]
        %v899 = vld [vmem:[%s275 + $0x69] sm:$0xff]
        %v900 = vld [vmem:[%s275 + $0x71] sm:$0xff]
        %v901 = vld [vmem:[%s275 + $0x79] sm:$0xff]
        %v902 = vld [vmem:[%s275 + $0x81] sm:$0xff]
        %v903 = vld [vmem:[%s275 + $0x89] sm:$0xff]
        %v904 = vld [vmem:[%s275 + $0x91] sm:$0xff]
        %v905 = vld [vmem:[%s275 + $0x99] sm:$0xff]
        %v906 = vld [vmem:[%s275 + $0xa1] sm:$0xff]
        %v907 = vld [vmem:[%s275 + $0xa9] sm:$0xff]
        %v908 = vld [vmem:[%s275 + $0xb1] sm:$0xff]
        %v909 = vld [vmem:[%s275 + $0xb9] sm:$0xff]
        %v910 = vld [vmem:[%s275 + $0xc1] sm:$0xff]
        %v911 = vld [vmem:[%s275 + $0xc9] sm:$0xff]
        %v912 = vld [vmem:[%s275 + $0xd1] sm:$0xff]
        %v913 = vld [vmem:[%s275 + $0xd9] sm:$0xff]
        %v914 = vld [vmem:[%s275 + $0xe1] sm:$0xff]
        %v915 = vld [vmem:[%s275 + $0xe9] sm:$0xff]
        %v916 = vld [vmem:[%s275 + $0xf1] sm:$0xff]
        %v917 = vld [vmem:[%s275 + $0xf9] sm:$0xff]
        %s918 = scalar_lea.vmem %s1, 4
        %v919 = vld [vmem:[%s918] sm:$0x7]
        %vm920 = vcmask 23552
        %v922 = vsel %vm920, %v886, 0
        %v925 = vsel %vm920, %v887, 0
        %v928 = vsel %vm920, %v888, 0
        %v931 = vsel %vm920, %v889, 0
        %v934 = vsel %vm920, %v890, 0
        %v937 = vsel %vm920, %v891, 0
        %v940 = vsel %vm920, %v892, 0
        %v943 = vsel %vm920, %v893, 0
        %v946 = vsel %vm920, %v894, 0
        %v949 = vsel %vm920, %v895, 0
        %v952 = vsel %vm920, %v896, 0
        %v955 = vsel %vm920, %v897, 0
        %v958 = vsel %vm920, %v898, 0
        %v961 = vsel %vm920, %v899, 0
        %v964 = vsel %vm920, %v900, 0
        %v967 = vsel %vm920, %v901, 0
        %v970 = vsel %vm920, %v902, 0
        %v973 = vsel %vm920, %v903, 0
        %v976 = vsel %vm920, %v904, 0
        %v979 = vsel %vm920, %v905, 0
        %v982 = vsel %vm920, %v906, 0
        %v985 = vsel %vm920, %v907, 0
        %v988 = vsel %vm920, %v908, 0
        %v991 = vsel %vm920, %v909, 0
        %v994 = vsel %vm920, %v910, 0
        %v997 = vsel %vm920, %v911, 0
        %v1000 = vsel %vm920, %v912, 0
        %v1003 = vsel %vm920, %v913, 0
        %v1006 = vsel %vm920, %v914, 0
        %v1009 = vsel %vm920, %v915, 0
        %v1012 = vsel %vm920, %v916, 0
        %v1015 = vsel %vm920, %v917, 0
        %vm1017 = vcmask 1042432
        %v1019 = vsel %vm1017, %v919, 0
        %1021 = vmatprep.subr.mxu0 0.0
        %1022 = vmatpush1.msra.mxu0 %v1019
        %1023 = vmatprep.subr.mxu0 0.0
        %1024 = vmatpush1.msra.mxu0 0.0
        %1025 = vmatprep.subr.mxu0 0.0
        %1026 = vmatpush1.msra.mxu0 0.0
        %1027 = vmatprep.subr.mxu0 0.0
        %1028 = vmatpush1.msra.mxu0 0.0
        %1029 = vmatprep.subr.mxu0 0.0
        %1030 = vmatpush1.msra.mxu0 0.0
        %1031 = vmatprep.subr.mxu0 0.0
        %1032 = vmatpush1.msra.mxu0 0.0
        %1033 = vmatprep.subr.mxu0 0.0
        %1034 = vmatpush1.msra.mxu0 0.0
        %1035 = vmatprep.subr.mxu0 0.0
        %1036 = vmatpush1.msra.mxu0 0.0
        %1037 = vmatprep.subr.mxu0 0.0
        %1038 = vmatpush1.msra.mxu0 0.0
        %1039 = vmatprep.subr.mxu0 0.0
        %1040 = vmatpush1.msra.mxu0 0.0
        %1041 = vmatprep.subr.mxu0 0.0
        %1042 = vmatpush1.msra.mxu0 0.0
        %1043 = vmatprep.subr.mxu0 0.0
        %1044 = vmatpush1.msra.mxu0 0.0
        %1045 = vmatprep.subr.mxu0 0.0
        %1046 = vmatpush1.msra.mxu0 0.0
        %1047 = vmatprep.subr.mxu0 0.0
        %1048 = vmatpush1.msra.mxu0 0.0
        %1049 = vmatprep.subr.mxu0 0.0
        %1050 = vmatpush1.msra.mxu0 0.0
        %1051 = vmatprep.subr.mxu0 0.0
        %1052 = vmatpush1.msra.mxu0 0.0
        %1053 = vmatprep.subr.mxu0 0.0
        %1054 = vmatpush1.msra.mxu0 0.0
        %1055 = vmatprep.subr.mxu0 0.0
        %1056 = vmatpush1.msra.mxu0 0.0
        %1057 = vmatprep.subr.mxu0 0.0
        %1058 = vmatpush1.msra.mxu0 0.0
        %1059 = vmatprep.subr.mxu0 0.0
        %1060 = vmatpush1.msra.mxu0 0.0
        %1061 = vmatprep.subr.mxu0 0.0
        %1062 = vmatpush1.msra.mxu0 0.0
        %1063 = vmatprep.subr.mxu0 0.0
        %1064 = vmatpush1.msra.mxu0 0.0
        %1065 = vmatprep.subr.mxu0 0.0
        %1066 = vmatpush1.msra.mxu0 0.0
        %1067 = vmatprep.subr.mxu0 0.0
        %1068 = vmatpush1.msra.mxu0 0.0
        %1069 = vmatprep.subr.mxu0 0.0
        %1070 = vmatpush1.msra.mxu0 0.0
        %1071 = vmatprep.subr.mxu0 0.0
        %1072 = vmatpush1.msra.mxu0 0.0
        %1073 = vmatprep.subr.mxu0 0.0
        %1074 = vmatpush1.msra.mxu0 0.0
        %1075 = vmatprep.subr.mxu0 0.0
        %1076 = vmatpush1.msra.mxu0 0.0
        %1077 = vmatprep.subr.mxu0 0.0
        %1078 = vmatpush1.msra.mxu0 0.0
        %1079 = vmatprep.subr.mxu0 0.0
        %1080 = vmatpush1.msra.mxu0 0.0
        %1081 = vmatprep.subr.mxu0 0.0
        %1082 = vmatpush1.msra.mxu0 0.0
        %1083 = vmatprep.subr.mxu0 0.0
        %1084 = vmatpush1.msra.mxu0 0.0
        %1085 = vmatprep.mubr.f32.mxu0 0.0
        %1086 = vmatmul.mubr.f32.gmra.mrb[0].mxu0 %v922
        %v1087 = vpop.f32.mrb[0].mxu0
        %v1088 = vadd.f32 0.0, %v1087
        %v1089 = vpop.f32.mrb[0].mxu0
        %1090 = vmatprep.mubr.f32.mxu0 0.0
        %1091 = vmatmul.mubr.f32.gmra.mrb[0].mxu0 %v925
        %v1092 = vpop.f32.mrb[0].mxu0
        %v1093 = vadd.f32 0.0, %v1092
        %v1094 = vpop.f32.mrb[0].mxu0
        %1095 = vmatprep.mubr.f32.mxu0 0.0
        %1096 = vmatmul.mubr.f32.gmra.mrb[0].mxu0 %v928
        %v1097 = vpop.f32.mrb[0].mxu0
        %v1098 = vadd.f32 0.0, %v1097
        %v1099 = vpop.f32.mrb[0].mxu0
        %1100 = vmatprep.mubr.f32.mxu0 0.0
        %1101 = vmatmul.mubr.f32.gmra.mrb[0].mxu0 %v931
        %v1102 = vpop.f32.mrb[0].mxu0
        %v1103 = vadd.f32 0.0, %v1102
        %v1104 = vpop.f32.mrb[0].mxu0
        %1105 = vmatprep.mubr.f32.mxu0 0.0
        %1106 = vmatmul.mubr.f32.gmra.mrb[0].mxu0 %v934
        %v1107 = vpop.f32.mrb[0].mxu0
        %v1108 = vadd.f32 0.0, %v1107
        %v1109 = vpop.f32.mrb[0].mxu0
        %1110 = vmatprep.mubr.f32.mxu0 0.0
        %1111 = vmatmul.mubr.f32.gmra.mrb[0].mxu0 %v937
        %v1112 = vpop.f32.mrb[0].mxu0
        %v1113 = vadd.f32 0.0, %v1112
        %v1114 = vpop.f32.mrb[0].mxu0
        %1115 = vmatprep.mubr.f32.mxu0 0.0
        %1116 = vmatmul.mubr.f32.gmra.mrb[0].mxu0 %v940
        %v1117 = vpop.f32.mrb[0].mxu0
        %v1118 = vadd.f32 0.0, %v1117
        %v1119 = vpop.f32.mrb[0].mxu0
        %1120 = vmatprep.mubr.f32.mxu0 0.0
        %1121 = vmatmul.mubr.f32.gmra.mrb[0].mxu0 %v943
        %v1122 = vpop.f32.mrb[0].mxu0
        %v1123 = vadd.f32 0.0, %v1122
        %v1124 = vpop.f32.mrb[0].mxu0
        %1125 = vmatprep.mubr.f32.mxu0 0.0
        %1126 = vmatmul.mubr.f32.gmra.mrb[0].mxu0 %v946
        %v1127 = vpop.f32.mrb[0].mxu0
        %v1128 = vadd.f32 0.0, %v1127
        %v1129 = vpop.f32.mrb[0].mxu0
        %1130 = vmatprep.mubr.f32.mxu0 0.0
        %1131 = vmatmul.mubr.f32.gmra.mrb[0].mxu0 %v949
        %v1132 = vpop.f32.mrb[0].mxu0
        %v1133 = vadd.f32 0.0, %v1132
        %v1134 = vpop.f32.mrb[0].mxu0
        %1135 = vmatprep.mubr.f32.mxu0 0.0
        %1136 = vmatmul.mubr.f32.gmra.mrb[0].mxu0 %v952
        %v1137 = vpop.f32.mrb[0].mxu0
        %v1138 = vadd.f32 0.0, %v1137
        %v1139 = vpop.f32.mrb[0].mxu0
        %1140 = vmatprep.mubr.f32.mxu0 0.0
        %1141 = vmatmul.mubr.f32.gmra.mrb[0].mxu0 %v955
        %v1142 = vpop.f32.mrb[0].mxu0
        %v1143 = vadd.f32 0.0, %v1142
        %v1144 = vpop.f32.mrb[0].mxu0
        %1145 = vmatprep.mubr.f32.mxu0 0.0
        %1146 = vmatmul.mubr.f32.gmra.mrb[0].mxu0 %v958
        %v1147 = vpop.f32.mrb[0].mxu0
        %v1148 = vadd.f32 0.0, %v1147
        %v1149 = vpop.f32.mrb[0].mxu0
        %1150 = vmatprep.mubr.f32.mxu0 0.0
        %1151 = vmatmul.mubr.f32.gmra.mrb[0].mxu0 %v961
        %v1152 = vpop.f32.mrb[0].mxu0
        %v1153 = vadd.f32 0.0, %v1152
        %v1154 = vpop.f32.mrb[0].mxu0
        %1155 = vmatprep.mubr.f32.mxu0 0.0
        %1156 = vmatmul.mubr.f32.gmra.mrb[0].mxu0 %v964
        %v1157 = vpop.f32.mrb[0].mxu0
        %v1158 = vadd.f32 0.0, %v1157
        %v1159 = vpop.f32.mrb[0].mxu0
        %1160 = vmatprep.mubr.f32.mxu0 0.0
        %1161 = vmatmul.mubr.f32.gmra.mrb[0].mxu0 %v967
        %v1162 = vpop.f32.mrb[0].mxu0
        %v1163 = vadd.f32 0.0, %v1162
        %v1164 = vpop.f32.mrb[0].mxu0
        %1165 = vmatprep.mubr.f32.mxu0 0.0
        %1166 = vmatmul.mubr.f32.gmra.mrb[0].mxu0 %v970
        %v1167 = vpop.f32.mrb[0].mxu0
        %v1168 = vadd.f32 0.0, %v1167
        %v1169 = vpop.f32.mrb[0].mxu0
        %1170 = vmatprep.mubr.f32.mxu0 0.0
        %1171 = vmatmul.mubr.f32.gmra.mrb[0].mxu0 %v973
        %v1172 = vpop.f32.mrb[0].mxu0
        %v1173 = vadd.f32 0.0, %v1172
        %v1174 = vpop.f32.mrb[0].mxu0
        %1175 = vmatprep.mubr.f32.mxu0 0.0
        %1176 = vmatmul.mubr.f32.gmra.mrb[0].mxu0 %v976
        %v1177 = vpop.f32.mrb[0].mxu0
        %v1178 = vadd.f32 0.0, %v1177
        %v1179 = vpop.f32.mrb[0].mxu0
        %1180 = vmatprep.mubr.f32.mxu0 0.0
        %1181 = vmatmul.mubr.f32.gmra.mrb[0].mxu0 %v979
        %v1182 = vpop.f32.mrb[0].mxu0
        %v1183 = vadd.f32 0.0, %v1182
        %v1184 = vpop.f32.mrb[0].mxu0
        %1185 = vmatprep.mubr.f32.mxu0 0.0
        %1186 = vmatmul.mubr.f32.gmra.mrb[0].mxu0 %v982
        %v1187 = vpop.f32.mrb[0].mxu0
        %v1188 = vadd.f32 0.0, %v1187
        %v1189 = vpop.f32.mrb[0].mxu0
        %1190 = vmatprep.mubr.f32.mxu0 0.0
        %1191 = vmatmul.mubr.f32.gmra.mrb[0].mxu0 %v985
        %v1192 = vpop.f32.mrb[0].mxu0
        %v1193 = vadd.f32 0.0, %v1192
        %v1194 = vpop.f32.mrb[0].mxu0
        %1195 = vmatprep.mubr.f32.mxu0 0.0
        %1196 = vmatmul.mubr.f32.gmra.mrb[0].mxu0 %v988
        %v1197 = vpop.f32.mrb[0].mxu0
        %v1198 = vadd.f32 0.0, %v1197
        %v1199 = vpop.f32.mrb[0].mxu0
        %1200 = vmatprep.mubr.f32.mxu0 0.0
        %1201 = vmatmul.mubr.f32.gmra.mrb[0].mxu0 %v991
        %v1202 = vpop.f32.mrb[0].mxu0
        %v1203 = vadd.f32 0.0, %v1202
        %v1204 = vpop.f32.mrb[0].mxu0
        %1205 = vmatprep.mubr.f32.mxu0 0.0
        %1206 = vmatmul.mubr.f32.gmra.mrb[0].mxu0 %v994
        %v1207 = vpop.f32.mrb[0].mxu0
        %v1208 = vadd.f32 0.0, %v1207
        %v1209 = vpop.f32.mrb[0].mxu0
        %1210 = vmatprep.mubr.f32.mxu0 0.0
        %1211 = vmatmul.mubr.f32.gmra.mrb[0].mxu0 %v997
        %v1212 = vpop.f32.mrb[0].mxu0
        %v1213 = vadd.f32 0.0, %v1212
        %v1214 = vpop.f32.mrb[0].mxu0
        %1215 = vmatprep.mubr.f32.mxu0 0.0
        %1216 = vmatmul.mubr.f32.gmra.mrb[0].mxu0 %v1000
        %v1217 = vpop.f32.mrb[0].mxu0
        %v1218 = vadd.f32 0.0, %v1217
        %v1219 = vpop.f32.mrb[0].mxu0
        %1220 = vmatprep.mubr.f32.mxu0 0.0
        %1221 = vmatmul.mubr.f32.gmra.mrb[0].mxu0 %v1003
        %v1222 = vpop.f32.mrb[0].mxu0
        %v1223 = vadd.f32 0.0, %v1222
        %v1224 = vpop.f32.mrb[0].mxu0
        %1225 = vmatprep.mubr.f32.mxu0 0.0
        %1226 = vmatmul.mubr.f32.gmra.mrb[0].mxu0 %v1006
        %v1227 = vpop.f32.mrb[0].mxu0
        %v1228 = vadd.f32 0.0, %v1227
        %v1229 = vpop.f32.mrb[0].mxu0
        %1230 = vmatprep.mubr.f32.mxu0 0.0
        %1231 = vmatmul.mubr.f32.gmra.mrb[0].mxu0 %v1009
        %v1232 = vpop.f32.mrb[0].mxu0
        %v1233 = vadd.f32 0.0, %v1232
        %v1234 = vpop.f32.mrb[0].mxu0
        %1235 = vmatprep.mubr.f32.mxu0 0.0
        %1236 = vmatmul.mubr.f32.gmra.mrb[0].mxu0 %v1012
        %v1237 = vpop.f32.mrb[0].mxu0
        %v1238 = vadd.f32 0.0, %v1237
        %v1239 = vpop.f32.mrb[0].mxu0
        %1240 = vmatprep.mubr.f32.mxu0 0.0
        %1241 = vmatmul.mubr.f32.gmra.mrb[0].mxu0 %v1015
        %v1242 = vpop.f32.mrb[0].mxu0
        %v1243 = vadd.f32 0.0, %v1242
        %v1244 = vpop.f32.mrb[0].mxu0
        %1245 = vdwg.mxu0
        %v1247 = vsel %vm920, %v853, 0
        %v1250 = vsel %vm920, %v854, 0
        %v1253 = vsel %vm920, %v855, 0
        %v1256 = vsel %vm920, %v856, 0
        %v1259 = vsel %vm920, %v857, 0
        %v1262 = vsel %vm920, %v858, 0
        %v1265 = vsel %vm920, %v859, 0
        %v1268 = vsel %vm920, %v860, 0
        %v1271 = vsel %vm920, %v861, 0
        %v1274 = vsel %vm920, %v862, 0
        %v1277 = vsel %vm920, %v863, 0
        %v1280 = vsel %vm920, %v864, 0
        %v1283 = vsel %vm920, %v865, 0
        %v1286 = vsel %vm920, %v866, 0
        %v1289 = vsel %vm920, %v867, 0
        %v1292 = vsel %vm920, %v868, 0
        %v1295 = vsel %vm920, %v869, 0
        %v1298 = vsel %vm920, %v870, 0
        %v1301 = vsel %vm920, %v871, 0
        %v1304 = vsel %vm920, %v872, 0
        %v1307 = vsel %vm920, %v873, 0
        %v1310 = vsel %vm920, %v874, 0
        %v1313 = vsel %vm920, %v875, 0
        %v1316 = vsel %vm920, %v876, 0
        %v1319 = vsel %vm920, %v877, 0
        %v1322 = vsel %vm920, %v878, 0
        %v1325 = vsel %vm920, %v879, 0
        %v1328 = vsel %vm920, %v880, 0
        %v1331 = vsel %vm920, %v881, 0
        %v1334 = vsel %vm920, %v882, 0
        %v1337 = vsel %vm920, %v883, 0
        %v1340 = vsel %vm920, %v884, 0
        %v1343 = vsel %vm1017, %v885, 0
        %1345 = vmatprep.subr.mxu0 0.0
        %1346 = vmatpush1.msra.mxu0 %v1343
        %1347 = vmatprep.subr.mxu0 0.0
        %1348 = vmatpush1.msra.mxu0 0.0
        %1349 = vmatprep.subr.mxu0 0.0
        %1350 = vmatpush1.msra.mxu0 0.0
        %1351 = vmatprep.subr.mxu0 0.0
        %1352 = vmatpush1.msra.mxu0 0.0
        %1353 = vmatprep.subr.mxu0 0.0
        %1354 = vmatpush1.msra.mxu0 0.0
        %1355 = vmatprep.subr.mxu0 0.0
        %1356 = vmatpush1.msra.mxu0 0.0
        %1357 = vmatprep.subr.mxu0 0.0
        %1358 = vmatpush1.msra.mxu0 0.0
        %1359 = vmatprep.subr.mxu0 0.0
        %1360 = vmatpush1.msra.mxu0 0.0
        %1361 = vmatprep.subr.mxu0 0.0
        %1362 = vmatpush1.msra.mxu0 0.0
        %1363 = vmatprep.subr.mxu0 0.0
        %1364 = vmatpush1.msra.mxu0 0.0
        %1365 = vmatprep.subr.mxu0 0.0
        %1366 = vmatpush1.msra.mxu0 0.0
        %1367 = vmatprep.subr.mxu0 0.0
        %1368 = vmatpush1.msra.mxu0 0.0
        %1369 = vmatprep.subr.mxu0 0.0
        %1370 = vmatpush1.msra.mxu0 0.0
        %1371 = vmatprep.subr.mxu0 0.0
        %1372 = vmatpush1.msra.mxu0 0.0
        %1373 = vmatprep.subr.mxu0 0.0
        %1374 = vmatpush1.msra.mxu0 0.0
        %1375 = vmatprep.subr.mxu0 0.0
        %1376 = vmatpush1.msra.mxu0 0.0
        %1377 = vmatprep.subr.mxu0 0.0
        %1378 = vmatpush1.msra.mxu0 0.0
        %1379 = vmatprep.subr.mxu0 0.0
        %1380 = vmatpush1.msra.mxu0 0.0
        %1381 = vmatprep.subr.mxu0 0.0
        %1382 = vmatpush1.msra.mxu0 0.0
        %1383 = vmatprep.subr.mxu0 0.0
        %1384 = vmatpush1.msra.mxu0 0.0
        %1385 = vmatprep.subr.mxu0 0.0
        %1386 = vmatpush1.msra.mxu0 0.0
        %1387 = vmatprep.subr.mxu0 0.0
        %1388 = vmatpush1.msra.mxu0 0.0
        %1389 = vmatprep.subr.mxu0 0.0
        %1390 = vmatpush1.msra.mxu0 0.0
        %1391 = vmatprep.subr.mxu0 0.0
        %1392 = vmatpush1.msra.mxu0 0.0
        %1393 = vmatprep.subr.mxu0 0.0
        %1394 = vmatpush1.msra.mxu0 0.0
        %1395 = vmatprep.subr.mxu0 0.0
        %1396 = vmatpush1.msra.mxu0 0.0
        %1397 = vmatprep.subr.mxu0 0.0
        %1398 = vmatpush1.msra.mxu0 0.0
        %1399 = vmatprep.subr.mxu0 0.0
        %1400 = vmatpush1.msra.mxu0 0.0
        %1401 = vmatprep.subr.mxu0 0.0
        %1402 = vmatpush1.msra.mxu0 0.0
        %1403 = vmatprep.subr.mxu0 0.0
        %1404 = vmatpush1.msra.mxu0 0.0
        %1405 = vmatprep.subr.mxu0 0.0
        %1406 = vmatpush1.msra.mxu0 0.0
        %1407 = vmatprep.subr.mxu0 0.0
        %1408 = vmatpush1.msra.mxu0 0.0
        %1409 = vmatprep.mubr.f32.mxu0 0.0
        %1410 = vmatmul.mubr.f32.gmra.mrb[0].mxu0 %v1247
        %v1411 = vpop.f32.mrb[0].mxu0
        %v1412 = vadd.f32 %v1088, %v1411
        %v1413 = vpop.f32.mrb[0].mxu0
        %1414 = vmatprep.mubr.f32.mxu0 0.0
        %1415 = vmatmul.mubr.f32.gmra.mrb[0].mxu0 %v1250
        %v1416 = vpop.f32.mrb[0].mxu0
        %v1417 = vadd.f32 %v1093, %v1416
        %v1418 = vpop.f32.mrb[0].mxu0
        %1419 = vmatprep.mubr.f32.mxu0 0.0
        %1420 = vmatmul.mubr.f32.gmra.mrb[0].mxu0 %v1253
        %v1421 = vpop.f32.mrb[0].mxu0
        %v1422 = vadd.f32 %v1098, %v1421
        %v1423 = vpop.f32.mrb[0].mxu0
        %1424 = vmatprep.mubr.f32.mxu0 0.0
        %1425 = vmatmul.mubr.f32.gmra.mrb[0].mxu0 %v1256
        %v1426 = vpop.f32.mrb[0].mxu0
        %v1427 = vadd.f32 %v1103, %v1426
        %v1428 = vpop.f32.mrb[0].mxu0
        %1429 = vmatprep.mubr.f32.mxu0 0.0
        %1430 = vmatmul.mubr.f32.gmra.mrb[0].mxu0 %v1259
        %v1431 = vpop.f32.mrb[0].mxu0
        %v1432 = vadd.f32 %v1108, %v1431
        %v1433 = vpop.f32.mrb[0].mxu0
        %1434 = vmatprep.mubr.f32.mxu0 0.0
        %1435 = vmatmul.mubr.f32.gmra.mrb[0].mxu0 %v1262
        %v1436 = vpop.f32.mrb[0].mxu0
        %v1437 = vadd.f32 %v1113, %v1436
        %v1438 = vpop.f32.mrb[0].mxu0
        %1439 = vmatprep.mubr.f32.mxu0 0.0
        %1440 = vmatmul.mubr.f32.gmra.mrb[0].mxu0 %v1265
        %v1441 = vpop.f32.mrb[0].mxu0
        %v1442 = vadd.f32 %v1118, %v1441
        %v1443 = vpop.f32.mrb[0].mxu0
        %1444 = vmatprep.mubr.f32.mxu0 0.0
        %1445 = vmatmul.mubr.f32.gmra.mrb[0].mxu0 %v1268
        %v1446 = vpop.f32.mrb[0].mxu0
        %v1447 = vadd.f32 %v1123, %v1446
        %v1448 = vpop.f32.mrb[0].mxu0
        %1449 = vmatprep.mubr.f32.mxu0 0.0
        %1450 = vmatmul.mubr.f32.gmra.mrb[0].mxu0 %v1271
        %v1451 = vpop.f32.mrb[0].mxu0
        %v1452 = vadd.f32 %v1128, %v1451
        %v1453 = vpop.f32.mrb[0].mxu0
        %1454 = vmatprep.mubr.f32.mxu0 0.0
        %1455 = vmatmul.mubr.f32.gmra.mrb[0].mxu0 %v1274
        %v1456 = vpop.f32.mrb[0].mxu0
        %v1457 = vadd.f32 %v1133, %v1456
        %v1458 = vpop.f32.mrb[0].mxu0
        %1459 = vmatprep.mubr.f32.mxu0 0.0
        %1460 = vmatmul.mubr.f32.gmra.mrb[0].mxu0 %v1277
        %v1461 = vpop.f32.mrb[0].mxu0
        %v1462 = vadd.f32 %v1138, %v1461
        %v1463 = vpop.f32.mrb[0].mxu0
        %1464 = vmatprep.mubr.f32.mxu0 0.0
        %1465 = vmatmul.mubr.f32.gmra.mrb[0].mxu0 %v1280
        %v1466 = vpop.f32.mrb[0].mxu0
        %v1467 = vadd.f32 %v1143, %v1466
        %v1468 = vpop.f32.mrb[0].mxu0
        %1469 = vmatprep.mubr.f32.mxu0 0.0
        %1470 = vmatmul.mubr.f32.gmra.mrb[0].mxu0 %v1283
        %v1471 = vpop.f32.mrb[0].mxu0
        %v1472 = vadd.f32 %v1148, %v1471
        %v1473 = vpop.f32.mrb[0].mxu0
        %1474 = vmatprep.mubr.f32.mxu0 0.0
        %1475 = vmatmul.mubr.f32.gmra.mrb[0].mxu0 %v1286
        %v1476 = vpop.f32.mrb[0].mxu0
        %v1477 = vadd.f32 %v1153, %v1476
        %v1478 = vpop.f32.mrb[0].mxu0
        %1479 = vmatprep.mubr.f32.mxu0 0.0
        %1480 = vmatmul.mubr.f32.gmra.mrb[0].mxu0 %v1289
        %v1481 = vpop.f32.mrb[0].mxu0
        %v1482 = vadd.f32 %v1158, %v1481
        %v1483 = vpop.f32.mrb[0].mxu0
        %1484 = vmatprep.mubr.f32.mxu0 0.0
        %1485 = vmatmul.mubr.f32.gmra.mrb[0].mxu0 %v1292
        %v1486 = vpop.f32.mrb[0].mxu0
        %v1487 = vadd.f32 %v1163, %v1486
        %v1488 = vpop.f32.mrb[0].mxu0
        %1489 = vmatprep.mubr.f32.mxu0 0.0
        %1490 = vmatmul.mubr.f32.gmra.mrb[0].mxu0 %v1295
        %v1491 = vpop.f32.mrb[0].mxu0
        %v1492 = vadd.f32 %v1168, %v1491
        %v1493 = vpop.f32.mrb[0].mxu0
        %1494 = vmatprep.mubr.f32.mxu0 0.0
        %1495 = vmatmul.mubr.f32.gmra.mrb[0].mxu0 %v1298
        %v1496 = vpop.f32.mrb[0].mxu0
        %v1497 = vadd.f32 %v1173, %v1496
        %v1498 = vpop.f32.mrb[0].mxu0
        %1499 = vmatprep.mubr.f32.mxu0 0.0
        %1500 = vmatmul.mubr.f32.gmra.mrb[0].mxu0 %v1301
        %v1501 = vpop.f32.mrb[0].mxu0
        %v1502 = vadd.f32 %v1178, %v1501
        %v1503 = vpop.f32.mrb[0].mxu0
        %1504 = vmatprep.mubr.f32.mxu0 0.0
        %1505 = vmatmul.mubr.f32.gmra.mrb[0].mxu0 %v1304
        %v1506 = vpop.f32.mrb[0].mxu0
        %v1507 = vadd.f32 %v1183, %v1506
        %v1508 = vpop.f32.mrb[0].mxu0
        %1509 = vmatprep.mubr.f32.mxu0 0.0
        %1510 = vmatmul.mubr.f32.gmra.mrb[0].mxu0 %v1307
        %v1511 = vpop.f32.mrb[0].mxu0
        %v1512 = vadd.f32 %v1188, %v1511
        %v1513 = vpop.f32.mrb[0].mxu0
        %1514 = vmatprep.mubr.f32.mxu0 0.0
        %1515 = vmatmul.mubr.f32.gmra.mrb[0].mxu0 %v1310
        %v1516 = vpop.f32.mrb[0].mxu0
        %v1517 = vadd.f32 %v1193, %v1516
        %v1518 = vpop.f32.mrb[0].mxu0
        %1519 = vmatprep.mubr.f32.mxu0 0.0
        %1520 = vmatmul.mubr.f32.gmra.mrb[0].mxu0 %v1313
        %v1521 = vpop.f32.mrb[0].mxu0
        %v1522 = vadd.f32 %v1198, %v1521
        %v1523 = vpop.f32.mrb[0].mxu0
        %1524 = vmatprep.mubr.f32.mxu0 0.0
        %1525 = vmatmul.mubr.f32.gmra.mrb[0].mxu0 %v1316
        %v1526 = vpop.f32.mrb[0].mxu0
        %v1527 = vadd.f32 %v1203, %v1526
        %v1528 = vpop.f32.mrb[0].mxu0
        %1529 = vmatprep.mubr.f32.mxu0 0.0
        %1530 = vmatmul.mubr.f32.gmra.mrb[0].mxu0 %v1319
        %v1531 = vpop.f32.mrb[0].mxu0
        %v1532 = vadd.f32 %v1208, %v1531
        %v1533 = vpop.f32.mrb[0].mxu0
        %1534 = vmatprep.mubr.f32.mxu0 0.0
        %1535 = vmatmul.mubr.f32.gmra.mrb[0].mxu0 %v1322
        %v1536 = vpop.f32.mrb[0].mxu0
        %v1537 = vadd.f32 %v1213, %v1536
        %v1538 = vpop.f32.mrb[0].mxu0
        %1539 = vmatprep.mubr.f32.mxu0 0.0
        %1540 = vmatmul.mubr.f32.gmra.mrb[0].mxu0 %v1325
        %v1541 = vpop.f32.mrb[0].mxu0
        %v1542 = vadd.f32 %v1218, %v1541
        %v1543 = vpop.f32.mrb[0].mxu0
        %1544 = vmatprep.mubr.f32.mxu0 0.0
        %1545 = vmatmul.mubr.f32.gmra.mrb[0].mxu0 %v1328
        %v1546 = vpop.f32.mrb[0].mxu0
        %v1547 = vadd.f32 %v1223, %v1546
        %v1548 = vpop.f32.mrb[0].mxu0
        %1549 = vmatprep.mubr.f32.mxu0 0.0
        %1550 = vmatmul.mubr.f32.gmra.mrb[0].mxu0 %v1331
        %v1551 = vpop.f32.mrb[0].mxu0
        %v1552 = vadd.f32 %v1228, %v1551
        %v1553 = vpop.f32.mrb[0].mxu0
        %1554 = vmatprep.mubr.f32.mxu0 0.0
        %1555 = vmatmul.mubr.f32.gmra.mrb[0].mxu0 %v1334
        %v1556 = vpop.f32.mrb[0].mxu0
        %v1557 = vadd.f32 %v1233, %v1556
        %v1558 = vpop.f32.mrb[0].mxu0
        %1559 = vmatprep.mubr.f32.mxu0 0.0
        %1560 = vmatmul.mubr.f32.gmra.mrb[0].mxu0 %v1337
        %v1561 = vpop.f32.mrb[0].mxu0
        %v1562 = vadd.f32 %v1238, %v1561
        %v1563 = vpop.f32.mrb[0].mxu0
        %1564 = vmatprep.mubr.f32.mxu0 0.0
        %1565 = vmatmul.mubr.f32.gmra.mrb[0].mxu0 %v1340
        %v1566 = vpop.f32.mrb[0].mxu0
        %v1567 = vadd.f32 %v1243, %v1566
        %v1568 = vpop.f32.mrb[0].mxu0
        %1569 = vdwg.mxu0
        %v1570 = vld [vmem:[%s275 + $0x2] sm:$0xff]
        %v1571 = vld [vmem:[%s275 + $0xa] sm:$0xff]
        %v1572 = vld [vmem:[%s275 + $0x12] sm:$0xff]
        %v1573 = vld [vmem:[%s275 + $0x1a] sm:$0xff]
        %v1574 = vld [vmem:[%s275 + $0x22] sm:$0xff]
        %v1575 = vld [vmem:[%s275 + $0x2a] sm:$0xff]
        %v1576 = vld [vmem:[%s275 + $0x32] sm:$0xff]
        %v1577 = vld [vmem:[%s275 + $0x3a] sm:$0xff]
        %v1578 = vld [vmem:[%s275 + $0x42] sm:$0xff]
        %v1579 = vld [vmem:[%s275 + $0x4a] sm:$0xff]
        %v1580 = vld [vmem:[%s275 + $0x52] sm:$0xff]
        %v1581 = vld [vmem:[%s275 + $0x5a] sm:$0xff]
        %v1582 = vld [vmem:[%s275 + $0x62] sm:$0xff]
        %v1583 = vld [vmem:[%s275 + $0x6a] sm:$0xff]
        %v1584 = vld [vmem:[%s275 + $0x72] sm:$0xff]
        %v1585 = vld [vmem:[%s275 + $0x7a] sm:$0xff]
        %v1586 = vld [vmem:[%s275 + $0x82] sm:$0xff]
        %v1587 = vld [vmem:[%s275 + $0x8a] sm:$0xff]
        %v1588 = vld [vmem:[%s275 + $0x92] sm:$0xff]
        %v1589 = vld [vmem:[%s275 + $0x9a] sm:$0xff]
        %v1590 = vld [vmem:[%s275 + $0xa2] sm:$0xff]
        %v1591 = vld [vmem:[%s275 + $0xaa] sm:$0xff]
        %v1592 = vld [vmem:[%s275 + $0xb2] sm:$0xff]
        %v1593 = vld [vmem:[%s275 + $0xba] sm:$0xff]
        %v1594 = vld [vmem:[%s275 + $0xc2] sm:$0xff]
        %v1595 = vld [vmem:[%s275 + $0xca] sm:$0xff]
        %v1596 = vld [vmem:[%s275 + $0xd2] sm:$0xff]
        %v1597 = vld [vmem:[%s275 + $0xda] sm:$0xff]
        %v1598 = vld [vmem:[%s275 + $0xe2] sm:$0xff]
        %v1599 = vld [vmem:[%s275 + $0xea] sm:$0xff]
        %v1600 = vld [vmem:[%s275 + $0xf2] sm:$0xff]
        %v1601 = vld [vmem:[%s275 + $0xfa] sm:$0xff]
        %v1602 = vsel %vm725, 1, 0
        %v1603 = vsel %vm726, 1, 0
        %v1604 = vsel %vm727, 1, 0
        %v1605 = vsel %vm728, 1, 0
        %v1606 = vsel %vm729, 1, 0
        %v1607 = vsel %vm730, 1, 0
        %v1608 = vsel %vm731, 1, 0
        %v1609 = vsel %vm732, 1, 0
        %v1610 = vsel %vm733, 1, 0
        %v1611 = vsel %vm734, 1, 0
        %v1612 = vsel %vm735, 1, 0
        %v1613 = vsel %vm736, 1, 0
        %v1614 = vsel %vm737, 1, 0
        %v1615 = vsel %vm738, 1, 0
        %v1616 = vsel %vm739, 1, 0
        %v1617 = vsel %vm740, 1, 0
        %v1618 = vsel %vm741, 1, 0
        %v1619 = vsel %vm742, 1, 0
        %v1620 = vsel %vm743, 1, 0
        %v1621 = vsel %vm744, 1, 0
        %v1622 = vsel %vm745, 1, 0
        %v1623 = vsel %vm746, 1, 0
        %v1624 = vsel %vm747, 1, 0
        %v1625 = vsel %vm748, 1, 0
        %v1626 = vsel %vm749, 1, 0
        %v1627 = vsel %vm750, 1, 0
        %v1628 = vsel %vm751, 1, 0
        %v1629 = vsel %vm752, 1, 0
        %v1630 = vsel %vm753, 1, 0
        %v1631 = vsel %vm754, 1, 0
        %v1632 = vsel %vm755, 1, 0
        %v1633 = vsel %vm756, 1, 0
        %vm1634 = vcmp.eq.s32.totalorder %v1602, 1
        %vm1635 = vcmp.eq.s32.totalorder %v1603, 1
        %vm1636 = vcmp.eq.s32.totalorder %v1604, 1
        %vm1637 = vcmp.eq.s32.totalorder %v1605, 1
        %vm1638 = vcmp.eq.s32.totalorder %v1606, 1
        %vm1639 = vcmp.eq.s32.totalorder %v1607, 1
        %vm1640 = vcmp.eq.s32.totalorder %v1608, 1
        %vm1641 = vcmp.eq.s32.totalorder %v1609, 1
        %vm1642 = vcmp.eq.s32.totalorder %v1610, 1
        %vm1643 = vcmp.eq.s32.totalorder %v1611, 1
        %vm1644 = vcmp.eq.s32.totalorder %v1612, 1
        %vm1645 = vcmp.eq.s32.totalorder %v1613, 1
        %vm1646 = vcmp.eq.s32.totalorder %v1614, 1
        %vm1647 = vcmp.eq.s32.totalorder %v1615, 1
        %vm1648 = vcmp.eq.s32.totalorder %v1616, 1
        %vm1649 = vcmp.eq.s32.totalorder %v1617, 1
        %vm1650 = vcmp.eq.s32.totalorder %v1618, 1
        %vm1651 = vcmp.eq.s32.totalorder %v1619, 1
        %vm1652 = vcmp.eq.s32.totalorder %v1620, 1
        %vm1653 = vcmp.eq.s32.totalorder %v1621, 1
        %vm1654 = vcmp.eq.s32.totalorder %v1622, 1
        %vm1655 = vcmp.eq.s32.totalorder %v1623, 1
        %vm1656 = vcmp.eq.s32.totalorder %v1624, 1
        %vm1657 = vcmp.eq.s32.totalorder %v1625, 1
        %vm1658 = vcmp.eq.s32.totalorder %v1626, 1
        %vm1659 = vcmp.eq.s32.totalorder %v1627, 1
        %vm1660 = vcmp.eq.s32.totalorder %v1628, 1
        %vm1661 = vcmp.eq.s32.totalorder %v1629, 1
        %vm1662 = vcmp.eq.s32.totalorder %v1630, 1
        %vm1663 = vcmp.eq.s32.totalorder %v1631, 1
        %vm1664 = vcmp.eq.s32.totalorder %v1632, 1
        %vm1665 = vcmp.eq.s32.totalorder %v1633, 1
        %v1666 = vsel %vm1634, %v1570, 0.0
        %v1667 = vsel %vm1635, %v1571, 0.0
        %v1668 = vsel %vm1636, %v1572, 0.0
        %v1669 = vsel %vm1637, %v1573, 0.0
        %v1670 = vsel %vm1638, %v1574, 0.0
        %v1671 = vsel %vm1639, %v1575, 0.0
        %v1672 = vsel %vm1640, %v1576, 0.0
        %v1673 = vsel %vm1641, %v1577, 0.0
        %v1674 = vsel %vm1642, %v1578, 0.0
        %v1675 = vsel %vm1643, %v1579, 0.0
        %v1676 = vsel %vm1644, %v1580, 0.0
        %v1677 = vsel %vm1645, %v1581, 0.0
        %v1678 = vsel %vm1646, %v1582, 0.0
        %v1679 = vsel %vm1647, %v1583, 0.0
        %v1680 = vsel %vm1648, %v1584, 0.0
        %v1681 = vsel %vm1649, %v1585, 0.0
        %v1682 = vsel %vm1650, %v1586, 0.0
        %v1683 = vsel %vm1651, %v1587, 0.0
        %v1684 = vsel %vm1652, %v1588, 0.0
        %v1685 = vsel %vm1653, %v1589, 0.0
        %v1686 = vsel %vm1654, %v1590, 0.0
        %v1687 = vsel %vm1655, %v1591, 0.0
        %v1688 = vsel %vm1656, %v1592, 0.0
        %v1689 = vsel %vm1657, %v1593, 0.0
        %v1690 = vsel %vm1658, %v1594, 0.0
        %v1691 = vsel %vm1659, %v1595, 0.0
        %v1692 = vsel %vm1660, %v1596, 0.0
        %v1693 = vsel %vm1661, %v1597, 0.0
        %v1694 = vsel %vm1662, %v1598, 0.0
        %v1695 = vsel %vm1663, %v1599, 0.0
        %v1696 = vsel %vm1664, %v1600, 0.0
        %v1697 = vsel %vm1665, %v1601, 0.0
        %s1698 = scalar_lea.vmem %s1, 8
        %v1699 = vld [vmem:[%s1698] sm:$0x7]
        %v1701 = vsel %vm920, %v1666, 0
        %v1704 = vsel %vm920, %v1667, 0
        %v1707 = vsel %vm920, %v1668, 0
        %v1710 = vsel %vm920, %v1669, 0
        %v1713 = vsel %vm920, %v1670, 0
        %v1716 = vsel %vm920, %v1671, 0
        %v1719 = vsel %vm920, %v1672, 0
        %v1722 = vsel %vm920, %v1673, 0
        %v1725 = vsel %vm920, %v1674, 0
        %v1728 = vsel %vm920, %v1675, 0
        %v1731 = vsel %vm920, %v1676, 0
        %v1734 = vsel %vm920, %v1677, 0
        %v1737 = vsel %vm920, %v1678, 0
        %v1740 = vsel %vm920, %v1679, 0
        %v1743 = vsel %vm920, %v1680, 0
        %v1746 = vsel %vm920, %v1681, 0
        %v1749 = vsel %vm920, %v1682, 0
        %v1752 = vsel %vm920, %v1683, 0
        %v1755 = vsel %vm920, %v1684, 0
        %v1758 = vsel %vm920, %v1685, 0
        %v1761 = vsel %vm920, %v1686, 0
        %v1764 = vsel %vm920, %v1687, 0
        %v1767 = vsel %vm920, %v1688, 0
        %v1770 = vsel %vm920, %v1689, 0
        %v1773 = vsel %vm920, %v1690, 0
        %v1776 = vsel %vm920, %v1691, 0
        %v1779 = vsel %vm920, %v1692, 0
        %v1782 = vsel %vm920, %v1693, 0
        %v1785 = vsel %vm920, %v1694, 0
        %v1788 = vsel %vm920, %v1695, 0
        %v1791 = vsel %vm920, %v1696, 0
        %v1794 = vsel %vm920, %v1697, 0
        %v1797 = vsel %vm1017, %v1699, 0
        %1799 = vmatprep.subr.mxu0 0.0
        %1800 = vmatpush1.msra.mxu0 %v1797
        %1801 = vmatprep.subr.mxu0 0.0
        %1802 = vmatpush1.msra.mxu0 0.0
        %1803 = vmatprep.subr.mxu0 0.0
        %1804 = vmatpush1.msra.mxu0 0.0
        %1805 = vmatprep.subr.mxu0 0.0
        %1806 = vmatpush1.msra.mxu0 0.0
        %1807 = vmatprep.subr.mxu0 0.0
        %1808 = vmatpush1.msra.mxu0 0.0
        %1809 = vmatprep.subr.mxu0 0.0
        %1810 = vmatpush1.msra.mxu0 0.0
        %1811 = vmatprep.subr.mxu0 0.0
        %1812 = vmatpush1.msra.mxu0 0.0
        %1813 = vmatprep.subr.mxu0 0.0
        %1814 = vmatpush1.msra.mxu0 0.0
        %1815 = vmatprep.subr.mxu0 0.0
        %1816 = vmatpush1.msra.mxu0 0.0
        %1817 = vmatprep.subr.mxu0 0.0
        %1818 = vmatpush1.msra.mxu0 0.0
        %1819 = vmatprep.subr.mxu0 0.0
        %1820 = vmatpush1.msra.mxu0 0.0
        %1821 = vmatprep.subr.mxu0 0.0
        %1822 = vmatpush1.msra.mxu0 0.0
        %1823 = vmatprep.subr.mxu0 0.0
        %1824 = vmatpush1.msra.mxu0 0.0
        %1825 = vmatprep.subr.mxu0 0.0
        %1826 = vmatpush1.msra.mxu0 0.0
        %1827 = vmatprep.subr.mxu0 0.0
        %1828 = vmatpush1.msra.mxu0 0.0
        %1829 = vmatprep.subr.mxu0 0.0
        %1830 = vmatpush1.msra.mxu0 0.0
        %1831 = vmatprep.subr.mxu0 0.0
        %1832 = vmatpush1.msra.mxu0 0.0
        %1833 = vmatprep.subr.mxu0 0.0
        %1834 = vmatpush1.msra.mxu0 0.0
        %1835 = vmatprep.subr.mxu0 0.0
        %1836 = vmatpush1.msra.mxu0 0.0
        %1837 = vmatprep.subr.mxu0 0.0
        %1838 = vmatpush1.msra.mxu0 0.0
        %1839 = vmatprep.subr.mxu0 0.0
        %1840 = vmatpush1.msra.mxu0 0.0
        %1841 = vmatprep.subr.mxu0 0.0
        %1842 = vmatpush1.msra.mxu0 0.0
        %1843 = vmatprep.subr.mxu0 0.0
        %1844 = vmatpush1.msra.mxu0 0.0
        %1845 = vmatprep.subr.mxu0 0.0
        %1846 = vmatpush1.msra.mxu0 0.0
        %1847 = vmatprep.subr.mxu0 0.0
        %1848 = vmatpush1.msra.mxu0 0.0
        %1849 = vmatprep.subr.mxu0 0.0
        %1850 = vmatpush1.msra.mxu0 0.0
        %1851 = vmatprep.subr.mxu0 0.0
        %1852 = vmatpush1.msra.mxu0 0.0
        %1853 = vmatprep.subr.mxu0 0.0
        %1854 = vmatpush1.msra.mxu0 0.0
        %1855 = vmatprep.subr.mxu0 0.0
        %1856 = vmatpush1.msra.mxu0 0.0
        %1857 = vmatprep.subr.mxu0 0.0
        %1858 = vmatpush1.msra.mxu0 0.0
        %1859 = vmatprep.subr.mxu0 0.0
        %1860 = vmatpush1.msra.mxu0 0.0
        %1861 = vmatprep.subr.mxu0 0.0
        %1862 = vmatpush1.msra.mxu0 0.0
        %1863 = vmatprep.mubr.f32.mxu0 0.0
        %1864 = vmatmul.mubr.f32.gmra.mrb[0].mxu0 %v1701
        %v1865 = vpop.f32.mrb[0].mxu0
        %v1866 = vadd.f32 0.0, %v1865
        %v1867 = vpop.f32.mrb[0].mxu0
        %1868 = vmatprep.mubr.f32.mxu0 0.0
        %1869 = vmatmul.mubr.f32.gmra.mrb[0].mxu0 %v1704
        %v1870 = vpop.f32.mrb[0].mxu0
        %v1871 = vadd.f32 0.0, %v1870
        %v1872 = vpop.f32.mrb[0].mxu0
        %1873 = vmatprep.mubr.f32.mxu0 0.0
        %1874 = vmatmul.mubr.f32.gmra.mrb[0].mxu0 %v1707
        %v1875 = vpop.f32.mrb[0].mxu0
        %v1876 = vadd.f32 0.0, %v1875
        %v1877 = vpop.f32.mrb[0].mxu0
        %1878 = vmatprep.mubr.f32.mxu0 0.0
        %1879 = vmatmul.mubr.f32.gmra.mrb[0].mxu0 %v1710
        %v1880 = vpop.f32.mrb[0].mxu0
        %v1881 = vadd.f32 0.0, %v1880
        %v1882 = vpop.f32.mrb[0].mxu0
        %1883 = vmatprep.mubr.f32.mxu0 0.0
        %1884 = vmatmul.mubr.f32.gmra.mrb[0].mxu0 %v1713
        %v1885 = vpop.f32.mrb[0].mxu0
        %v1886 = vadd.f32 0.0, %v1885
        %v1887 = vpop.f32.mrb[0].mxu0
        %1888 = vmatprep.mubr.f32.mxu0 0.0
        %1889 = vmatmul.mubr.f32.gmra.mrb[0].mxu0 %v1716
        %v1890 = vpop.f32.mrb[0].mxu0
        %v1891 = vadd.f32 0.0, %v1890
        %v1892 = vpop.f32.mrb[0].mxu0
        %1893 = vmatprep.mubr.f32.mxu0 0.0
        %1894 = vmatmul.mubr.f32.gmra.mrb[0].mxu0 %v1719
        %v1895 = vpop.f32.mrb[0].mxu0
        %v1896 = vadd.f32 0.0, %v1895
        %v1897 = vpop.f32.mrb[0].mxu0
        %1898 = vmatprep.mubr.f32.mxu0 0.0
        %1899 = vmatmul.mubr.f32.gmra.mrb[0].mxu0 %v1722
        %v1900 = vpop.f32.mrb[0].mxu0
        %v1901 = vadd.f32 0.0, %v1900
        %v1902 = vpop.f32.mrb[0].mxu0
        %1903 = vmatprep.mubr.f32.mxu0 0.0
        %1904 = vmatmul.mubr.f32.gmra.mrb[0].mxu0 %v1725
        %v1905 = vpop.f32.mrb[0].mxu0
        %v1906 = vadd.f32 0.0, %v1905
        %v1907 = vpop.f32.mrb[0].mxu0
        %1908 = vmatprep.mubr.f32.mxu0 0.0
        %1909 = vmatmul.mubr.f32.gmra.mrb[0].mxu0 %v1728
        %v1910 = vpop.f32.mrb[0].mxu0
        %v1911 = vadd.f32 0.0, %v1910
        %v1912 = vpop.f32.mrb[0].mxu0
        %1913 = vmatprep.mubr.f32.mxu0 0.0
        %1914 = vmatmul.mubr.f32.gmra.mrb[0].mxu0 %v1731
        %v1915 = vpop.f32.mrb[0].mxu0
        %v1916 = vadd.f32 0.0, %v1915
        %v1917 = vpop.f32.mrb[0].mxu0
        %1918 = vmatprep.mubr.f32.mxu0 0.0
        %1919 = vmatmul.mubr.f32.gmra.mrb[0].mxu0 %v1734
        %v1920 = vpop.f32.mrb[0].mxu0
        %v1921 = vadd.f32 0.0, %v1920
        %v1922 = vpop.f32.mrb[0].mxu0
        %1923 = vmatprep.mubr.f32.mxu0 0.0
        %1924 = vmatmul.mubr.f32.gmra.mrb[0].mxu0 %v1737
        %v1925 = vpop.f32.mrb[0].mxu0
        %v1926 = vadd.f32 0.0, %v1925
        %v1927 = vpop.f32.mrb[0].mxu0
        %1928 = vmatprep.mubr.f32.mxu0 0.0
        %1929 = vmatmul.mubr.f32.gmra.mrb[0].mxu0 %v1740
        %v1930 = vpop.f32.mrb[0].mxu0
        %v1931 = vadd.f32 0.0, %v1930
        %v1932 = vpop.f32.mrb[0].mxu0
        %1933 = vmatprep.mubr.f32.mxu0 0.0
        %1934 = vmatmul.mubr.f32.gmra.mrb[0].mxu0 %v1743
        %v1935 = vpop.f32.mrb[0].mxu0
        %v1936 = vadd.f32 0.0, %v1935
        %v1937 = vpop.f32.mrb[0].mxu0
        %1938 = vmatprep.mubr.f32.mxu0 0.0
        %1939 = vmatmul.mubr.f32.gmra.mrb[0].mxu0 %v1746
        %v1940 = vpop.f32.mrb[0].mxu0
        %v1941 = vadd.f32 0.0, %v1940
        %v1942 = vpop.f32.mrb[0].mxu0
        %1943 = vmatprep.mubr.f32.mxu0 0.0
        %1944 = vmatmul.mubr.f32.gmra.mrb[0].mxu0 %v1749
        %v1945 = vpop.f32.mrb[0].mxu0
        %v1946 = vadd.f32 0.0, %v1945
        %v1947 = vpop.f32.mrb[0].mxu0
        %1948 = vmatprep.mubr.f32.mxu0 0.0
        %1949 = vmatmul.mubr.f32.gmra.mrb[0].mxu0 %v1752
        %v1950 = vpop.f32.mrb[0].mxu0
        %v1951 = vadd.f32 0.0, %v1950
        %v1952 = vpop.f32.mrb[0].mxu0
        %1953 = vmatprep.mubr.f32.mxu0 0.0
        %1954 = vmatmul.mubr.f32.gmra.mrb[0].mxu0 %v1755
        %v1955 = vpop.f32.mrb[0].mxu0
        %v1956 = vadd.f32 0.0, %v1955
        %v1957 = vpop.f32.mrb[0].mxu0
        %1958 = vmatprep.mubr.f32.mxu0 0.0
        %1959 = vmatmul.mubr.f32.gmra.mrb[0].mxu0 %v1758
        %v1960 = vpop.f32.mrb[0].mxu0
        %v1961 = vadd.f32 0.0, %v1960
        %v1962 = vpop.f32.mrb[0].mxu0
        %1963 = vmatprep.mubr.f32.mxu0 0.0
        %1964 = vmatmul.mubr.f32.gmra.mrb[0].mxu0 %v1761
        %v1965 = vpop.f32.mrb[0].mxu0
        %v1966 = vadd.f32 0.0, %v1965
        %v1967 = vpop.f32.mrb[0].mxu0
        %1968 = vmatprep.mubr.f32.mxu0 0.0
        %1969 = vmatmul.mubr.f32.gmra.mrb[0].mxu0 %v1764
        %v1970 = vpop.f32.mrb[0].mxu0
        %v1971 = vadd.f32 0.0, %v1970
        %v1972 = vpop.f32.mrb[0].mxu0
        %1973 = vmatprep.mubr.f32.mxu0 0.0
        %1974 = vmatmul.mubr.f32.gmra.mrb[0].mxu0 %v1767
        %v1975 = vpop.f32.mrb[0].mxu0
        %v1976 = vadd.f32 0.0, %v1975
        %v1977 = vpop.f32.mrb[0].mxu0
        %1978 = vmatprep.mubr.f32.mxu0 0.0
        %1979 = vmatmul.mubr.f32.gmra.mrb[0].mxu0 %v1770
        %v1980 = vpop.f32.mrb[0].mxu0
        %v1981 = vadd.f32 0.0, %v1980
        %v1982 = vpop.f32.mrb[0].mxu0
        %1983 = vmatprep.mubr.f32.mxu0 0.0
        %1984 = vmatmul.mubr.f32.gmra.mrb[0].mxu0 %v1773
        %v1985 = vpop.f32.mrb[0].mxu0
        %v1986 = vadd.f32 0.0, %v1985
        %v1987 = vpop.f32.mrb[0].mxu0
        %1988 = vmatprep.mubr.f32.mxu0 0.0
        %1989 = vmatmul.mubr.f32.gmra.mrb[0].mxu0 %v1776
        %v1990 = vpop.f32.mrb[0].mxu0
        %v1991 = vadd.f32 0.0, %v1990
        %v1992 = vpop.f32.mrb[0].mxu0
        %1993 = vmatprep.mubr.f32.mxu0 0.0
        %1994 = vmatmul.mubr.f32.gmra.mrb[0].mxu0 %v1779
        %v1995 = vpop.f32.mrb[0].mxu0
        %v1996 = vadd.f32 0.0, %v1995
        %v1997 = vpop.f32.mrb[0].mxu0
        %1998 = vmatprep.mubr.f32.mxu0 0.0
        %1999 = vmatmul.mubr.f32.gmra.mrb[0].mxu0 %v1782
        %v2000 = vpop.f32.mrb[0].mxu0
        %v2001 = vadd.f32 0.0, %v2000
        %v2002 = vpop.f32.mrb[0].mxu0
        %2003 = vmatprep.mubr.f32.mxu0 0.0
        %2004 = vmatmul.mubr.f32.gmra.mrb[0].mxu0 %v1785
        %v2005 = vpop.f32.mrb[0].mxu0
        %v2006 = vadd.f32 0.0, %v2005
        %v2007 = vpop.f32.mrb[0].mxu0
        %2008 = vmatprep.mubr.f32.mxu0 0.0
        %2009 = vmatmul.mubr.f32.gmra.mrb[0].mxu0 %v1788
        %v2010 = vpop.f32.mrb[0].mxu0
        %v2011 = vadd.f32 0.0, %v2010
        %v2012 = vpop.f32.mrb[0].mxu0
        %2013 = vmatprep.mubr.f32.mxu0 0.0
        %2014 = vmatmul.mubr.f32.gmra.mrb[0].mxu0 %v1791
        %v2015 = vpop.f32.mrb[0].mxu0
        %v2016 = vadd.f32 0.0, %v2015
        %v2017 = vpop.f32.mrb[0].mxu0
        %2018 = vmatprep.mubr.f32.mxu0 0.0
        %2019 = vmatmul.mubr.f32.gmra.mrb[0].mxu0 %v1794
        %v2020 = vpop.f32.mrb[0].mxu0
        %v2021 = vadd.f32 0.0, %v2020
        %v2022 = vpop.f32.mrb[0].mxu0
        %2023 = vdwg.mxu0
        %v2024 = vadd.f32 %v1412, %v1866
        %v2025 = vadd.f32 %v1417, %v1871
        %v2026 = vadd.f32 %v1422, %v1876
        %v2027 = vadd.f32 %v1427, %v1881
        %v2028 = vadd.f32 %v1432, %v1886
        %v2029 = vadd.f32 %v1437, %v1891
        %v2030 = vadd.f32 %v1442, %v1896
        %v2031 = vadd.f32 %v1447, %v1901
        %v2032 = vadd.f32 %v1452, %v1906
        %v2033 = vadd.f32 %v1457, %v1911
        %v2034 = vadd.f32 %v1462, %v1916
        %v2035 = vadd.f32 %v1467, %v1921
        %v2036 = vadd.f32 %v1472, %v1926
        %v2037 = vadd.f32 %v1477, %v1931
        %v2038 = vadd.f32 %v1482, %v1936
        %v2039 = vadd.f32 %v1487, %v1941
        %v2040 = vadd.f32 %v1492, %v1946
        %v2041 = vadd.f32 %v1497, %v1951
        %v2042 = vadd.f32 %v1502, %v1956
        %v2043 = vadd.f32 %v1507, %v1961
        %v2044 = vadd.f32 %v1512, %v1966
        %v2045 = vadd.f32 %v1517, %v1971
        %v2046 = vadd.f32 %v1522, %v1976
        %v2047 = vadd.f32 %v1527, %v1981
        %v2048 = vadd.f32 %v1532, %v1986
        %v2049 = vadd.f32 %v1537, %v1991
        %v2050 = vadd.f32 %v1542, %v1996
        %v2051 = vadd.f32 %v1547, %v2001
        %v2052 = vadd.f32 %v1552, %v2006
        %v2053 = vadd.f32 %v1557, %v2011
        %v2054 = vadd.f32 %v1562, %v2016
        %v2055 = vadd.f32 %v1567, %v2021
        %v2056 = vld [vmem:[%s275 + $0x10] sm:$0xff]
        %v2057 = vld [vmem:[%s275 + $0x18] sm:$0xff]
        %v2058 = vld [vmem:[%s275 + $0x20] sm:$0xff]
        %v2059 = vld [vmem:[%s275 + $0x28] sm:$0xff]
        %v2060 = vld [vmem:[%s275 + $0x30] sm:$0xff]
        %v2061 = vld [vmem:[%s275 + $0x38] sm:$0xff]
        %v2062 = vld [vmem:[%s275 + $0x40] sm:$0xff]
        %v2063 = vld [vmem:[%s275 + $0x48] sm:$0xff]
        %v2064 = vld [vmem:[%s275 + $0x50] sm:$0xff]
        %v2065 = vld [vmem:[%s275 + $0x58] sm:$0xff]
        %v2066 = vld [vmem:[%s275 + $0x60] sm:$0xff]
        %v2067 = vld [vmem:[%s275 + $0x68] sm:$0xff]
        %v2068 = vld [vmem:[%s275 + $0x70] sm:$0xff]
        %v2069 = vld [vmem:[%s275 + $0x78] sm:$0xff]
        %v2070 = vld [vmem:[%s275 + $0x80] sm:$0xff]
        %v2071 = vld [vmem:[%s275 + $0x88] sm:$0xff]
        %v2072 = vld [vmem:[%s275 + $0x90] sm:$0xff]
        %v2073 = vld [vmem:[%s275 + $0x98] sm:$0xff]
        %v2074 = vld [vmem:[%s275 + $0xa0] sm:$0xff]
        %v2075 = vld [vmem:[%s275 + $0xa8] sm:$0xff]
        %v2076 = vld [vmem:[%s275 + $0xb0] sm:$0xff]
        %v2077 = vld [vmem:[%s275 + $0xb8] sm:$0xff]
        %v2078 = vld [vmem:[%s275 + $0xc0] sm:$0xff]
        %v2079 = vld [vmem:[%s275 + $0xc8] sm:$0xff]
        %v2080 = vld [vmem:[%s275 + $0xd0] sm:$0xff]
        %v2081 = vld [vmem:[%s275 + $0xd8] sm:$0xff]
        %v2082 = vld [vmem:[%s275 + $0xe0] sm:$0xff]
        %v2083 = vld [vmem:[%s275 + $0xe8] sm:$0xff]
        %v2084 = vld [vmem:[%s275 + $0xf0] sm:$0xff]
        %v2085 = vld [vmem:[%s275 + $0xf8] sm:$0xff]
        %v2086 = vld [vmem:[%s275 + $0x100] sm:$0xff]
        %v2087 = vld [vmem:[%s275 + $0x108] sm:$0xff]
        %v2088 = vsel %vm821, %v2056, 0.0
        %v2089 = vsel %vm822, %v2057, 0.0
        %v2090 = vsel %vm823, %v2058, 0.0
        %v2091 = vsel %vm824, %v2059, 0.0
        %v2092 = vsel %vm825, %v2060, 0.0
        %v2093 = vsel %vm826, %v2061, 0.0
        %v2094 = vsel %vm827, %v2062, 0.0
        %v2095 = vsel %vm828, %v2063, 0.0
        %v2096 = vsel %vm829, %v2064, 0.0
        %v2097 = vsel %vm830, %v2065, 0.0
        %v2098 = vsel %vm831, %v2066, 0.0
        %v2099 = vsel %vm832, %v2067, 0.0
        %v2100 = vsel %vm833, %v2068, 0.0
        %v2101 = vsel %vm834, %v2069, 0.0
        %v2102 = vsel %vm835, %v2070, 0.0
        %v2103 = vsel %vm836, %v2071, 0.0
        %v2104 = vsel %vm837, %v2072, 0.0
        %v2105 = vsel %vm838, %v2073, 0.0
        %v2106 = vsel %vm839, %v2074, 0.0
        %v2107 = vsel %vm840, %v2075, 0.0
        %v2108 = vsel %vm841, %v2076, 0.0
        %v2109 = vsel %vm842, %v2077, 0.0
        %v2110 = vsel %vm843, %v2078, 0.0
        %v2111 = vsel %vm844, %v2079, 0.0
        %v2112 = vsel %vm845, %v2080, 0.0
        %v2113 = vsel %vm846, %v2081, 0.0
        %v2114 = vsel %vm847, %v2082, 0.0
        %v2115 = vsel %vm848, %v2083, 0.0
        %v2116 = vsel %vm849, %v2084, 0.0
        %v2117 = vsel %vm850, %v2085, 0.0
        %v2118 = vsel %vm851, %v2086, 0.0
        %v2119 = vsel %vm852, %v2087, 0.0
        %s2120 = scalar_lea.vmem %s1, 12
        %v2121 = vld [vmem:[%s2120] sm:$0x7]
        %v2123 = vsel %vm920, %v2088, 0
        %v2126 = vsel %vm920, %v2089, 0
        %v2129 = vsel %vm920, %v2090, 0
        %v2132 = vsel %vm920, %v2091, 0
        %v2135 = vsel %vm920, %v2092, 0
        %v2138 = vsel %vm920, %v2093, 0
        %v2141 = vsel %vm920, %v2094, 0
        %v2144 = vsel %vm920, %v2095, 0
        %v2147 = vsel %vm920, %v2096, 0
        %v2150 = vsel %vm920, %v2097, 0
        %v2153 = vsel %vm920, %v2098, 0
        %v2156 = vsel %vm920, %v2099, 0
        %v2159 = vsel %vm920, %v2100, 0
        %v2162 = vsel %vm920, %v2101, 0
        %v2165 = vsel %vm920, %v2102, 0
        %v2168 = vsel %vm920, %v2103, 0
        %v2171 = vsel %vm920, %v2104, 0
        %v2174 = vsel %vm920, %v2105, 0
        %v2177 = vsel %vm920, %v2106, 0
        %v2180 = vsel %vm920, %v2107, 0
        %v2183 = vsel %vm920, %v2108, 0
        %v2186 = vsel %vm920, %v2109, 0
        %v2189 = vsel %vm920, %v2110, 0
        %v2192 = vsel %vm920, %v2111, 0
        %v2195 = vsel %vm920, %v2112, 0
        %v2198 = vsel %vm920, %v2113, 0
        %v2201 = vsel %vm920, %v2114, 0
        %v2204 = vsel %vm920, %v2115, 0
        %v2207 = vsel %vm920, %v2116, 0
        %v2210 = vsel %vm920, %v2117, 0
        %v2213 = vsel %vm920, %v2118, 0
        %v2216 = vsel %vm920, %v2119, 0
        %v2219 = vsel %vm1017, %v2121, 0
        %2221 = vmatprep.subr.mxu0 0.0
        %2222 = vmatpush1.msra.mxu0 %v2219
        %2223 = vmatprep.subr.mxu0 0.0
        %2224 = vmatpush1.msra.mxu0 0.0
        %2225 = vmatprep.subr.mxu0 0.0
        %2226 = vmatpush1.msra.mxu0 0.0
        %2227 = vmatprep.subr.mxu0 0.0
        %2228 = vmatpush1.msra.mxu0 0.0
        %2229 = vmatprep.subr.mxu0 0.0
        %2230 = vmatpush1.msra.mxu0 0.0
        %2231 = vmatprep.subr.mxu0 0.0
        %2232 = vmatpush1.msra.mxu0 0.0
        %2233 = vmatprep.subr.mxu0 0.0
        %2234 = vmatpush1.msra.mxu0 0.0
        %2235 = vmatprep.subr.mxu0 0.0
        %2236 = vmatpush1.msra.mxu0 0.0
        %2237 = vmatprep.subr.mxu0 0.0
        %2238 = vmatpush1.msra.mxu0 0.0
        %2239 = vmatprep.subr.mxu0 0.0
        %2240 = vmatpush1.msra.mxu0 0.0
        %2241 = vmatprep.subr.mxu0 0.0
        %2242 = vmatpush1.msra.mxu0 0.0
        %2243 = vmatprep.subr.mxu0 0.0
        %2244 = vmatpush1.msra.mxu0 0.0
        %2245 = vmatprep.subr.mxu0 0.0
        %2246 = vmatpush1.msra.mxu0 0.0
        %2247 = vmatprep.subr.mxu0 0.0
        %2248 = vmatpush1.msra.mxu0 0.0
        %2249 = vmatprep.subr.mxu0 0.0
        %2250 = vmatpush1.msra.mxu0 0.0
        %2251 = vmatprep.subr.mxu0 0.0
        %2252 = vmatpush1.msra.mxu0 0.0
        %2253 = vmatprep.subr.mxu0 0.0
        %2254 = vmatpush1.msra.mxu0 0.0
        %2255 = vmatprep.subr.mxu0 0.0
        %2256 = vmatpush1.msra.mxu0 0.0
        %2257 = vmatprep.subr.mxu0 0.0
        %2258 = vmatpush1.msra.mxu0 0.0
        %2259 = vmatprep.subr.mxu0 0.0
        %2260 = vmatpush1.msra.mxu0 0.0
        %2261 = vmatprep.subr.mxu0 0.0
        %2262 = vmatpush1.msra.mxu0 0.0
        %2263 = vmatprep.subr.mxu0 0.0
        %2264 = vmatpush1.msra.mxu0 0.0
        %2265 = vmatprep.subr.mxu0 0.0
        %2266 = vmatpush1.msra.mxu0 0.0
        %2267 = vmatprep.subr.mxu0 0.0
        %2268 = vmatpush1.msra.mxu0 0.0
        %2269 = vmatprep.subr.mxu0 0.0
        %2270 = vmatpush1.msra.mxu0 0.0
        %2271 = vmatprep.subr.mxu0 0.0
        %2272 = vmatpush1.msra.mxu0 0.0
        %2273 = vmatprep.subr.mxu0 0.0
        %2274 = vmatpush1.msra.mxu0 0.0
        %2275 = vmatprep.subr.mxu0 0.0
        %2276 = vmatpush1.msra.mxu0 0.0
        %2277 = vmatprep.subr.mxu0 0.0
        %2278 = vmatpush1.msra.mxu0 0.0
        %2279 = vmatprep.subr.mxu0 0.0
        %2280 = vmatpush1.msra.mxu0 0.0
        %2281 = vmatprep.subr.mxu0 0.0
        %2282 = vmatpush1.msra.mxu0 0.0
        %2283 = vmatprep.subr.mxu0 0.0
        %2284 = vmatpush1.msra.mxu0 0.0
        %2285 = vmatprep.mubr.f32.mxu0 0.0
        %2286 = vmatmul.mubr.f32.gmra.mrb[0].mxu0 %v2123
        %v2287 = vpop.f32.mrb[0].mxu0
        %v2288 = vadd.f32 0.0, %v2287
        %v2289 = vpop.f32.mrb[0].mxu0
        %2290 = vmatprep.mubr.f32.mxu0 0.0
        %2291 = vmatmul.mubr.f32.gmra.mrb[0].mxu0 %v2126
        %v2292 = vpop.f32.mrb[0].mxu0
        %v2293 = vadd.f32 0.0, %v2292
        %v2294 = vpop.f32.mrb[0].mxu0
        %2295 = vmatprep.mubr.f32.mxu0 0.0
        %2296 = vmatmul.mubr.f32.gmra.mrb[0].mxu0 %v2129
        %v2297 = vpop.f32.mrb[0].mxu0
        %v2298 = vadd.f32 0.0, %v2297
        %v2299 = vpop.f32.mrb[0].mxu0
        %2300 = vmatprep.mubr.f32.mxu0 0.0
        %2301 = vmatmul.mubr.f32.gmra.mrb[0].mxu0 %v2132
        %v2302 = vpop.f32.mrb[0].mxu0
        %v2303 = vadd.f32 0.0, %v2302
        %v2304 = vpop.f32.mrb[0].mxu0
        %2305 = vmatprep.mubr.f32.mxu0 0.0
        %2306 = vmatmul.mubr.f32.gmra.mrb[0].mxu0 %v2135
        %v2307 = vpop.f32.mrb[0].mxu0
        %v2308 = vadd.f32 0.0, %v2307
        %v2309 = vpop.f32.mrb[0].mxu0
        %2310 = vmatprep.mubr.f32.mxu0 0.0
        %2311 = vmatmul.mubr.f32.gmra.mrb[0].mxu0 %v2138
        %v2312 = vpop.f32.mrb[0].mxu0
        %v2313 = vadd.f32 0.0, %v2312
        %v2314 = vpop.f32.mrb[0].mxu0
        %2315 = vmatprep.mubr.f32.mxu0 0.0
        %2316 = vmatmul.mubr.f32.gmra.mrb[0].mxu0 %v2141
        %v2317 = vpop.f32.mrb[0].mxu0
        %v2318 = vadd.f32 0.0, %v2317
        %v2319 = vpop.f32.mrb[0].mxu0
        %2320 = vmatprep.mubr.f32.mxu0 0.0
        %2321 = vmatmul.mubr.f32.gmra.mrb[0].mxu0 %v2144
        %v2322 = vpop.f32.mrb[0].mxu0
        %v2323 = vadd.f32 0.0, %v2322
        %v2324 = vpop.f32.mrb[0].mxu0
        %2325 = vmatprep.mubr.f32.mxu0 0.0
        %2326 = vmatmul.mubr.f32.gmra.mrb[0].mxu0 %v2147
        %v2327 = vpop.f32.mrb[0].mxu0
        %v2328 = vadd.f32 0.0, %v2327
        %v2329 = vpop.f32.mrb[0].mxu0
        %2330 = vmatprep.mubr.f32.mxu0 0.0
        %2331 = vmatmul.mubr.f32.gmra.mrb[0].mxu0 %v2150
        %v2332 = vpop.f32.mrb[0].mxu0
        %v2333 = vadd.f32 0.0, %v2332
        %v2334 = vpop.f32.mrb[0].mxu0
        %2335 = vmatprep.mubr.f32.mxu0 0.0
        %2336 = vmatmul.mubr.f32.gmra.mrb[0].mxu0 %v2153
        %v2337 = vpop.f32.mrb[0].mxu0
        %v2338 = vadd.f32 0.0, %v2337
        %v2339 = vpop.f32.mrb[0].mxu0
        %2340 = vmatprep.mubr.f32.mxu0 0.0
        %2341 = vmatmul.mubr.f32.gmra.mrb[0].mxu0 %v2156
        %v2342 = vpop.f32.mrb[0].mxu0
        %v2343 = vadd.f32 0.0, %v2342
        %v2344 = vpop.f32.mrb[0].mxu0
        %2345 = vmatprep.mubr.f32.mxu0 0.0
        %2346 = vmatmul.mubr.f32.gmra.mrb[0].mxu0 %v2159
        %v2347 = vpop.f32.mrb[0].mxu0
        %v2348 = vadd.f32 0.0, %v2347
        %v2349 = vpop.f32.mrb[0].mxu0
        %2350 = vmatprep.mubr.f32.mxu0 0.0
        %2351 = vmatmul.mubr.f32.gmra.mrb[0].mxu0 %v2162
        %v2352 = vpop.f32.mrb[0].mxu0
        %v2353 = vadd.f32 0.0, %v2352
        %v2354 = vpop.f32.mrb[0].mxu0
        %2355 = vmatprep.mubr.f32.mxu0 0.0
        %2356 = vmatmul.mubr.f32.gmra.mrb[0].mxu0 %v2165
        %v2357 = vpop.f32.mrb[0].mxu0
        %v2358 = vadd.f32 0.0, %v2357
        %v2359 = vpop.f32.mrb[0].mxu0
        %2360 = vmatprep.mubr.f32.mxu0 0.0
        %2361 = vmatmul.mubr.f32.gmra.mrb[0].mxu0 %v2168
        %v2362 = vpop.f32.mrb[0].mxu0
        %v2363 = vadd.f32 0.0, %v2362
        %v2364 = vpop.f32.mrb[0].mxu0
        %2365 = vmatprep.mubr.f32.mxu0 0.0
        %2366 = vmatmul.mubr.f32.gmra.mrb[0].mxu0 %v2171
        %v2367 = vpop.f32.mrb[0].mxu0
        %v2368 = vadd.f32 0.0, %v2367
        %v2369 = vpop.f32.mrb[0].mxu0
        %2370 = vmatprep.mubr.f32.mxu0 0.0
        %2371 = vmatmul.mubr.f32.gmra.mrb[0].mxu0 %v2174
        %v2372 = vpop.f32.mrb[0].mxu0
        %v2373 = vadd.f32 0.0, %v2372
        %v2374 = vpop.f32.mrb[0].mxu0
        %2375 = vmatprep.mubr.f32.mxu0 0.0
        %2376 = vmatmul.mubr.f32.gmra.mrb[0].mxu0 %v2177
        %v2377 = vpop.f32.mrb[0].mxu0
        %v2378 = vadd.f32 0.0, %v2377
        %v2379 = vpop.f32.mrb[0].mxu0
        %2380 = vmatprep.mubr.f32.mxu0 0.0
        %2381 = vmatmul.mubr.f32.gmra.mrb[0].mxu0 %v2180
        %v2382 = vpop.f32.mrb[0].mxu0
        %v2383 = vadd.f32 0.0, %v2382
        %v2384 = vpop.f32.mrb[0].mxu0
        %2385 = vmatprep.mubr.f32.mxu0 0.0
        %2386 = vmatmul.mubr.f32.gmra.mrb[0].mxu0 %v2183
        %v2387 = vpop.f32.mrb[0].mxu0
        %v2388 = vadd.f32 0.0, %v2387
        %v2389 = vpop.f32.mrb[0].mxu0
        %2390 = vmatprep.mubr.f32.mxu0 0.0
        %2391 = vmatmul.mubr.f32.gmra.mrb[0].mxu0 %v2186
        %v2392 = vpop.f32.mrb[0].mxu0
        %v2393 = vadd.f32 0.0, %v2392
        %v2394 = vpop.f32.mrb[0].mxu0
        %2395 = vmatprep.mubr.f32.mxu0 0.0
        %2396 = vmatmul.mubr.f32.gmra.mrb[0].mxu0 %v2189
        %v2397 = vpop.f32.mrb[0].mxu0
        %v2398 = vadd.f32 0.0, %v2397
        %v2399 = vpop.f32.mrb[0].mxu0
        %2400 = vmatprep.mubr.f32.mxu0 0.0
        %2401 = vmatmul.mubr.f32.gmra.mrb[0].mxu0 %v2192
        %v2402 = vpop.f32.mrb[0].mxu0
        %v2403 = vadd.f32 0.0, %v2402
        %v2404 = vpop.f32.mrb[0].mxu0
        %2405 = vmatprep.mubr.f32.mxu0 0.0
        %2406 = vmatmul.mubr.f32.gmra.mrb[0].mxu0 %v2195
        %v2407 = vpop.f32.mrb[0].mxu0
        %v2408 = vadd.f32 0.0, %v2407
        %v2409 = vpop.f32.mrb[0].mxu0
        %2410 = vmatprep.mubr.f32.mxu0 0.0
        %2411 = vmatmul.mubr.f32.gmra.mrb[0].mxu0 %v2198
        %v2412 = vpop.f32.mrb[0].mxu0
        %v2413 = vadd.f32 0.0, %v2412
        %v2414 = vpop.f32.mrb[0].mxu0
        %2415 = vmatprep.mubr.f32.mxu0 0.0
        %2416 = vmatmul.mubr.f32.gmra.mrb[0].mxu0 %v2201
        %v2417 = vpop.f32.mrb[0].mxu0
        %v2418 = vadd.f32 0.0, %v2417
        %v2419 = vpop.f32.mrb[0].mxu0
        %2420 = vmatprep.mubr.f32.mxu0 0.0
        %2421 = vmatmul.mubr.f32.gmra.mrb[0].mxu0 %v2204
        %v2422 = vpop.f32.mrb[0].mxu0
        %v2423 = vadd.f32 0.0, %v2422
        %v2424 = vpop.f32.mrb[0].mxu0
        %2425 = vmatprep.mubr.f32.mxu0 0.0
        %2426 = vmatmul.mubr.f32.gmra.mrb[0].mxu0 %v2207
        %v2427 = vpop.f32.mrb[0].mxu0
        %v2428 = vadd.f32 0.0, %v2427
        %v2429 = vpop.f32.mrb[0].mxu0
        %2430 = vmatprep.mubr.f32.mxu0 0.0
        %2431 = vmatmul.mubr.f32.gmra.mrb[0].mxu0 %v2210
        %v2432 = vpop.f32.mrb[0].mxu0
        %v2433 = vadd.f32 0.0, %v2432
        %v2434 = vpop.f32.mrb[0].mxu0
        %2435 = vmatprep.mubr.f32.mxu0 0.0
        %2436 = vmatmul.mubr.f32.gmra.mrb[0].mxu0 %v2213
        %v2437 = vpop.f32.mrb[0].mxu0
        %v2438 = vadd.f32 0.0, %v2437
        %v2439 = vpop.f32.mrb[0].mxu0
        %2440 = vmatprep.mubr.f32.mxu0 0.0
        %2441 = vmatmul.mubr.f32.gmra.mrb[0].mxu0 %v2216
        %v2442 = vpop.f32.mrb[0].mxu0
        %v2443 = vadd.f32 0.0, %v2442
        %v2444 = vpop.f32.mrb[0].mxu0
        %2445 = vdwg.mxu0
        %v2446 = vadd.f32 %v2024, %v2288
        %v2447 = vadd.f32 %v2025, %v2293
        %v2448 = vadd.f32 %v2026, %v2298
        %v2449 = vadd.f32 %v2027, %v2303
        %v2450 = vadd.f32 %v2028, %v2308
        %v2451 = vadd.f32 %v2029, %v2313
        %v2452 = vadd.f32 %v2030, %v2318
        %v2453 = vadd.f32 %v2031, %v2323
        %v2454 = vadd.f32 %v2032, %v2328
        %v2455 = vadd.f32 %v2033, %v2333
        %v2456 = vadd.f32 %v2034, %v2338
        %v2457 = vadd.f32 %v2035, %v2343
        %v2458 = vadd.f32 %v2036, %v2348
        %v2459 = vadd.f32 %v2037, %v2353
        %v2460 = vadd.f32 %v2038, %v2358
        %v2461 = vadd.f32 %v2039, %v2363
        %v2462 = vadd.f32 %v2040, %v2368
        %v2463 = vadd.f32 %v2041, %v2373
        %v2464 = vadd.f32 %v2042, %v2378
        %v2465 = vadd.f32 %v2043, %v2383
        %v2466 = vadd.f32 %v2044, %v2388
        %v2467 = vadd.f32 %v2045, %v2393
        %v2468 = vadd.f32 %v2046, %v2398
        %v2469 = vadd.f32 %v2047, %v2403
        %v2470 = vadd.f32 %v2048, %v2408
        %v2471 = vadd.f32 %v2049, %v2413
        %v2472 = vadd.f32 %v2050, %v2418
        %v2473 = vadd.f32 %v2051, %v2423
        %v2474 = vadd.f32 %v2052, %v2428
        %v2475 = vadd.f32 %v2053, %v2433
        %v2476 = vadd.f32 %v2054, %v2438
        %v2477 = vadd.f32 %v2055, %v2443
        %v2478 = vld [vmem:[%s275 + $0x11] sm:$0xff]
        %v2479 = vld [vmem:[%s275 + $0x19] sm:$0xff]
        %v2480 = vld [vmem:[%s275 + $0x21] sm:$0xff]
        %v2481 = vld [vmem:[%s275 + $0x29] sm:$0xff]
        %v2482 = vld [vmem:[%s275 + $0x31] sm:$0xff]
        %v2483 = vld [vmem:[%s275 + $0x39] sm:$0xff]
        %v2484 = vld [vmem:[%s275 + $0x41] sm:$0xff]
        %v2485 = vld [vmem:[%s275 + $0x49] sm:$0xff]
        %v2486 = vld [vmem:[%s275 + $0x51] sm:$0xff]
        %v2487 = vld [vmem:[%s275 + $0x59] sm:$0xff]
        %v2488 = vld [vmem:[%s275 + $0x61] sm:$0xff]
        %v2489 = vld [vmem:[%s275 + $0x69] sm:$0xff]
        %v2490 = vld [vmem:[%s275 + $0x71] sm:$0xff]
        %v2491 = vld [vmem:[%s275 + $0x79] sm:$0xff]
        %v2492 = vld [vmem:[%s275 + $0x81] sm:$0xff]
        %v2493 = vld [vmem:[%s275 + $0x89] sm:$0xff]
        %v2494 = vld [vmem:[%s275 + $0x91] sm:$0xff]
        %v2495 = vld [vmem:[%s275 + $0x99] sm:$0xff]
        %v2496 = vld [vmem:[%s275 + $0xa1] sm:$0xff]
        %v2497 = vld [vmem:[%s275 + $0xa9] sm:$0xff]
        %v2498 = vld [vmem:[%s275 + $0xb1] sm:$0xff]
        %v2499 = vld [vmem:[%s275 + $0xb9] sm:$0xff]
        %v2500 = vld [vmem:[%s275 + $0xc1] sm:$0xff]
        %v2501 = vld [vmem:[%s275 + $0xc9] sm:$0xff]
        %v2502 = vld [vmem:[%s275 + $0xd1] sm:$0xff]
        %v2503 = vld [vmem:[%s275 + $0xd9] sm:$0xff]
        %v2504 = vld [vmem:[%s275 + $0xe1] sm:$0xff]
        %v2505 = vld [vmem:[%s275 + $0xe9] sm:$0xff]
        %v2506 = vld [vmem:[%s275 + $0xf1] sm:$0xff]
        %v2507 = vld [vmem:[%s275 + $0xf9] sm:$0xff]
        %v2508 = vld [vmem:[%s275 + $0x101] sm:$0xff]
        %v2509 = vld [vmem:[%s275 + $0x109] sm:$0xff]
        %s2510 = scalar_lea.vmem %s1, 16
        %v2511 = vld [vmem:[%s2510] sm:$0x7]
        %v2513 = vsel %vm920, %v2478, 0
        %v2516 = vsel %vm920, %v2479, 0
        %v2519 = vsel %vm920, %v2480, 0
        %v2522 = vsel %vm920, %v2481, 0
        %v2525 = vsel %vm920, %v2482, 0
        %v2528 = vsel %vm920, %v2483, 0
        %v2531 = vsel %vm920, %v2484, 0
        %v2534 = vsel %vm920, %v2485, 0
        %v2537 = vsel %vm920, %v2486, 0
        %v2540 = vsel %vm920, %v2487, 0
        %v2543 = vsel %vm920, %v2488, 0
        %v2546 = vsel %vm920, %v2489, 0
        %v2549 = vsel %vm920, %v2490, 0
        %v2552 = vsel %vm920, %v2491, 0
        %v2555 = vsel %vm920, %v2492, 0
        %v2558 = vsel %vm920, %v2493, 0
        %v2561 = vsel %vm920, %v2494, 0
        %v2564 = vsel %vm920, %v2495, 0
        %v2567 = vsel %vm920, %v2496, 0
        %v2570 = vsel %vm920, %v2497, 0
        %v2573 = vsel %vm920, %v2498, 0
        %v2576 = vsel %vm920, %v2499, 0
        %v2579 = vsel %vm920, %v2500, 0
        %v2582 = vsel %vm920, %v2501, 0
        %v2585 = vsel %vm920, %v2502, 0
        %v2588 = vsel %vm920, %v2503, 0
        %v2591 = vsel %vm920, %v2504, 0
        %v2594 = vsel %vm920, %v2505, 0
        %v2597 = vsel %vm920, %v2506, 0
        %v2600 = vsel %vm920, %v2507, 0
        %v2603 = vsel %vm920, %v2508, 0
        %v2606 = vsel %vm920, %v2509, 0
        %v2609 = vsel %vm1017, %v2511, 0
        %2611 = vmatprep.subr.mxu0 0.0
        %2612 = vmatpush1.msra.mxu0 %v2609
        %2613 = vmatprep.subr.mxu0 0.0
        %2614 = vmatpush1.msra.mxu0 0.0
        %2615 = vmatprep.subr.mxu0 0.0
        %2616 = vmatpush1.msra.mxu0 0.0
        %2617 = vmatprep.subr.mxu0 0.0
        %2618 = vmatpush1.msra.mxu0 0.0
        %2619 = vmatprep.subr.mxu0 0.0
        %2620 = vmatpush1.msra.mxu0 0.0
        %2621 = vmatprep.subr.mxu0 0.0
        %2622 = vmatpush1.msra.mxu0 0.0
        %2623 = vmatprep.subr.mxu0 0.0
        %2624 = vmatpush1.msra.mxu0 0.0
        %2625 = vmatprep.subr.mxu0 0.0
        %2626 = vmatpush1.msra.mxu0 0.0
        %2627 = vmatprep.subr.mxu0 0.0
        %2628 = vmatpush1.msra.mxu0 0.0
        %2629 = vmatprep.subr.mxu0 0.0
        %2630 = vmatpush1.msra.mxu0 0.0
        %2631 = vmatprep.subr.mxu0 0.0
        %2632 = vmatpush1.msra.mxu0 0.0
        %2633 = vmatprep.subr.mxu0 0.0
        %2634 = vmatpush1.msra.mxu0 0.0
        %2635 = vmatprep.subr.mxu0 0.0
        %2636 = vmatpush1.msra.mxu0 0.0
        %2637 = vmatprep.subr.mxu0 0.0
        %2638 = vmatpush1.msra.mxu0 0.0
        %2639 = vmatprep.subr.mxu0 0.0
        %2640 = vmatpush1.msra.mxu0 0.0
        %2641 = vmatprep.subr.mxu0 0.0
        %2642 = vmatpush1.msra.mxu0 0.0
        %2643 = vmatprep.subr.mxu0 0.0
        %2644 = vmatpush1.msra.mxu0 0.0
        %2645 = vmatprep.subr.mxu0 0.0
        %2646 = vmatpush1.msra.mxu0 0.0
        %2647 = vmatprep.subr.mxu0 0.0
        %2648 = vmatpush1.msra.mxu0 0.0
        %2649 = vmatprep.subr.mxu0 0.0
        %2650 = vmatpush1.msra.mxu0 0.0
        %2651 = vmatprep.subr.mxu0 0.0
        %2652 = vmatpush1.msra.mxu0 0.0
        %2653 = vmatprep.subr.mxu0 0.0
        %2654 = vmatpush1.msra.mxu0 0.0
        %2655 = vmatprep.subr.mxu0 0.0
        %2656 = vmatpush1.msra.mxu0 0.0
        %2657 = vmatprep.subr.mxu0 0.0
        %2658 = vmatpush1.msra.mxu0 0.0
        %2659 = vmatprep.subr.mxu0 0.0
        %2660 = vmatpush1.msra.mxu0 0.0
        %2661 = vmatprep.subr.mxu0 0.0
        %2662 = vmatpush1.msra.mxu0 0.0
        %2663 = vmatprep.subr.mxu0 0.0
        %2664 = vmatpush1.msra.mxu0 0.0
        %2665 = vmatprep.subr.mxu0 0.0
        %2666 = vmatpush1.msra.mxu0 0.0
        %2667 = vmatprep.subr.mxu0 0.0
        %2668 = vmatpush1.msra.mxu0 0.0
        %2669 = vmatprep.subr.mxu0 0.0
        %2670 = vmatpush1.msra.mxu0 0.0
        %2671 = vmatprep.subr.mxu0 0.0
        %2672 = vmatpush1.msra.mxu0 0.0
        %2673 = vmatprep.subr.mxu0 0.0
        %2674 = vmatpush1.msra.mxu0 0.0
        %2675 = vmatprep.mubr.f32.mxu0 0.0
        %2676 = vmatmul.mubr.f32.gmra.mrb[0].mxu0 %v2513
        %v2677 = vpop.f32.mrb[0].mxu0
        %v2678 = vadd.f32 0.0, %v2677
        %v2679 = vpop.f32.mrb[0].mxu0
        %2680 = vmatprep.mubr.f32.mxu0 0.0
        %2681 = vmatmul.mubr.f32.gmra.mrb[0].mxu0 %v2516
        %v2682 = vpop.f32.mrb[0].mxu0
        %v2683 = vadd.f32 0.0, %v2682
        %v2684 = vpop.f32.mrb[0].mxu0
        %2685 = vmatprep.mubr.f32.mxu0 0.0
        %2686 = vmatmul.mubr.f32.gmra.mrb[0].mxu0 %v2519
        %v2687 = vpop.f32.mrb[0].mxu0
        %v2688 = vadd.f32 0.0, %v2687
        %v2689 = vpop.f32.mrb[0].mxu0
        %2690 = vmatprep.mubr.f32.mxu0 0.0
        %2691 = vmatmul.mubr.f32.gmra.mrb[0].mxu0 %v2522
        %v2692 = vpop.f32.mrb[0].mxu0
        %v2693 = vadd.f32 0.0, %v2692
        %v2694 = vpop.f32.mrb[0].mxu0
        %2695 = vmatprep.mubr.f32.mxu0 0.0
        %2696 = vmatmul.mubr.f32.gmra.mrb[0].mxu0 %v2525
        %v2697 = vpop.f32.mrb[0].mxu0
        %v2698 = vadd.f32 0.0, %v2697
        %v2699 = vpop.f32.mrb[0].mxu0
        %2700 = vmatprep.mubr.f32.mxu0 0.0
        %2701 = vmatmul.mubr.f32.gmra.mrb[0].mxu0 %v2528
        %v2702 = vpop.f32.mrb[0].mxu0
        %v2703 = vadd.f32 0.0, %v2702
        %v2704 = vpop.f32.mrb[0].mxu0
        %2705 = vmatprep.mubr.f32.mxu0 0.0
        %2706 = vmatmul.mubr.f32.gmra.mrb[0].mxu0 %v2531
        %v2707 = vpop.f32.mrb[0].mxu0
        %v2708 = vadd.f32 0.0, %v2707
        %v2709 = vpop.f32.mrb[0].mxu0
        %2710 = vmatprep.mubr.f32.mxu0 0.0
        %2711 = vmatmul.mubr.f32.gmra.mrb[0].mxu0 %v2534
        %v2712 = vpop.f32.mrb[0].mxu0
        %v2713 = vadd.f32 0.0, %v2712
        %v2714 = vpop.f32.mrb[0].mxu0
        %2715 = vmatprep.mubr.f32.mxu0 0.0
        %2716 = vmatmul.mubr.f32.gmra.mrb[0].mxu0 %v2537
        %v2717 = vpop.f32.mrb[0].mxu0
        %v2718 = vadd.f32 0.0, %v2717
        %v2719 = vpop.f32.mrb[0].mxu0
        %2720 = vmatprep.mubr.f32.mxu0 0.0
        %2721 = vmatmul.mubr.f32.gmra.mrb[0].mxu0 %v2540
        %v2722 = vpop.f32.mrb[0].mxu0
        %v2723 = vadd.f32 0.0, %v2722
        %v2724 = vpop.f32.mrb[0].mxu0
        %2725 = vmatprep.mubr.f32.mxu0 0.0
        %2726 = vmatmul.mubr.f32.gmra.mrb[0].mxu0 %v2543
        %v2727 = vpop.f32.mrb[0].mxu0
        %v2728 = vadd.f32 0.0, %v2727
        %v2729 = vpop.f32.mrb[0].mxu0
        %2730 = vmatprep.mubr.f32.mxu0 0.0
        %2731 = vmatmul.mubr.f32.gmra.mrb[0].mxu0 %v2546
        %v2732 = vpop.f32.mrb[0].mxu0
        %v2733 = vadd.f32 0.0, %v2732
        %v2734 = vpop.f32.mrb[0].mxu0
        %2735 = vmatprep.mubr.f32.mxu0 0.0
        %2736 = vmatmul.mubr.f32.gmra.mrb[0].mxu0 %v2549
        %v2737 = vpop.f32.mrb[0].mxu0
        %v2738 = vadd.f32 0.0, %v2737
        %v2739 = vpop.f32.mrb[0].mxu0
        %2740 = vmatprep.mubr.f32.mxu0 0.0
        %2741 = vmatmul.mubr.f32.gmra.mrb[0].mxu0 %v2552
        %v2742 = vpop.f32.mrb[0].mxu0
        %v2743 = vadd.f32 0.0, %v2742
        %v2744 = vpop.f32.mrb[0].mxu0
        %2745 = vmatprep.mubr.f32.mxu0 0.0
        %2746 = vmatmul.mubr.f32.gmra.mrb[0].mxu0 %v2555
        %v2747 = vpop.f32.mrb[0].mxu0
        %v2748 = vadd.f32 0.0, %v2747
        %v2749 = vpop.f32.mrb[0].mxu0
        %2750 = vmatprep.mubr.f32.mxu0 0.0
        %2751 = vmatmul.mubr.f32.gmra.mrb[0].mxu0 %v2558
        %v2752 = vpop.f32.mrb[0].mxu0
        %v2753 = vadd.f32 0.0, %v2752
        %v2754 = vpop.f32.mrb[0].mxu0
        %2755 = vmatprep.mubr.f32.mxu0 0.0
        %2756 = vmatmul.mubr.f32.gmra.mrb[0].mxu0 %v2561
        %v2757 = vpop.f32.mrb[0].mxu0
        %v2758 = vadd.f32 0.0, %v2757
        %v2759 = vpop.f32.mrb[0].mxu0
        %2760 = vmatprep.mubr.f32.mxu0 0.0
        %2761 = vmatmul.mubr.f32.gmra.mrb[0].mxu0 %v2564
        %v2762 = vpop.f32.mrb[0].mxu0
        %v2763 = vadd.f32 0.0, %v2762
        %v2764 = vpop.f32.mrb[0].mxu0
        %2765 = vmatprep.mubr.f32.mxu0 0.0
        %2766 = vmatmul.mubr.f32.gmra.mrb[0].mxu0 %v2567
        %v2767 = vpop.f32.mrb[0].mxu0
        %v2768 = vadd.f32 0.0, %v2767
        %v2769 = vpop.f32.mrb[0].mxu0
        %2770 = vmatprep.mubr.f32.mxu0 0.0
        %2771 = vmatmul.mubr.f32.gmra.mrb[0].mxu0 %v2570
        %v2772 = vpop.f32.mrb[0].mxu0
        %v2773 = vadd.f32 0.0, %v2772
        %v2774 = vpop.f32.mrb[0].mxu0
        %2775 = vmatprep.mubr.f32.mxu0 0.0
        %2776 = vmatmul.mubr.f32.gmra.mrb[0].mxu0 %v2573
        %v2777 = vpop.f32.mrb[0].mxu0
        %v2778 = vadd.f32 0.0, %v2777
        %v2779 = vpop.f32.mrb[0].mxu0
        %2780 = vmatprep.mubr.f32.mxu0 0.0
        %2781 = vmatmul.mubr.f32.gmra.mrb[0].mxu0 %v2576
        %v2782 = vpop.f32.mrb[0].mxu0
        %v2783 = vadd.f32 0.0, %v2782
        %v2784 = vpop.f32.mrb[0].mxu0
        %2785 = vmatprep.mubr.f32.mxu0 0.0
        %2786 = vmatmul.mubr.f32.gmra.mrb[0].mxu0 %v2579
        %v2787 = vpop.f32.mrb[0].mxu0
        %v2788 = vadd.f32 0.0, %v2787
        %v2789 = vpop.f32.mrb[0].mxu0
        %2790 = vmatprep.mubr.f32.mxu0 0.0
        %2791 = vmatmul.mubr.f32.gmra.mrb[0].mxu0 %v2582
        %v2792 = vpop.f32.mrb[0].mxu0
        %v2793 = vadd.f32 0.0, %v2792
        %v2794 = vpop.f32.mrb[0].mxu0
        %2795 = vmatprep.mubr.f32.mxu0 0.0
        %2796 = vmatmul.mubr.f32.gmra.mrb[0].mxu0 %v2585
        %v2797 = vpop.f32.mrb[0].mxu0
        %v2798 = vadd.f32 0.0, %v2797
        %v2799 = vpop.f32.mrb[0].mxu0
        %2800 = vmatprep.mubr.f32.mxu0 0.0
        %2801 = vmatmul.mubr.f32.gmra.mrb[0].mxu0 %v2588
        %v2802 = vpop.f32.mrb[0].mxu0
        %v2803 = vadd.f32 0.0, %v2802
        %v2804 = vpop.f32.mrb[0].mxu0
        %2805 = vmatprep.mubr.f32.mxu0 0.0
        %2806 = vmatmul.mubr.f32.gmra.mrb[0].mxu0 %v2591
        %v2807 = vpop.f32.mrb[0].mxu0
        %v2808 = vadd.f32 0.0, %v2807
        %v2809 = vpop.f32.mrb[0].mxu0
        %2810 = vmatprep.mubr.f32.mxu0 0.0
        %2811 = vmatmul.mubr.f32.gmra.mrb[0].mxu0 %v2594
        %v2812 = vpop.f32.mrb[0].mxu0
        %v2813 = vadd.f32 0.0, %v2812
        %v2814 = vpop.f32.mrb[0].mxu0
        %2815 = vmatprep.mubr.f32.mxu0 0.0
        %2816 = vmatmul.mubr.f32.gmra.mrb[0].mxu0 %v2597
        %v2817 = vpop.f32.mrb[0].mxu0
        %v2818 = vadd.f32 0.0, %v2817
        %v2819 = vpop.f32.mrb[0].mxu0
        %2820 = vmatprep.mubr.f32.mxu0 0.0
        %2821 = vmatmul.mubr.f32.gmra.mrb[0].mxu0 %v2600
        %v2822 = vpop.f32.mrb[0].mxu0
        %v2823 = vadd.f32 0.0, %v2822
        %v2824 = vpop.f32.mrb[0].mxu0
        %2825 = vmatprep.mubr.f32.mxu0 0.0
        %2826 = vmatmul.mubr.f32.gmra.mrb[0].mxu0 %v2603
        %v2827 = vpop.f32.mrb[0].mxu0
        %v2828 = vadd.f32 0.0, %v2827
        %v2829 = vpop.f32.mrb[0].mxu0
        %2830 = vmatprep.mubr.f32.mxu0 0.0
        %2831 = vmatmul.mubr.f32.gmra.mrb[0].mxu0 %v2606
        %v2832 = vpop.f32.mrb[0].mxu0
        %v2833 = vadd.f32 0.0, %v2832
        %v2834 = vpop.f32.mrb[0].mxu0
        %2835 = vdwg.mxu0
        %v2836 = vadd.f32 %v2446, %v2678
        %v2837 = vadd.f32 %v2447, %v2683
        %v2838 = vadd.f32 %v2448, %v2688
        %v2839 = vadd.f32 %v2449, %v2693
        %v2840 = vadd.f32 %v2450, %v2698
        %v2841 = vadd.f32 %v2451, %v2703
        %v2842 = vadd.f32 %v2452, %v2708
        %v2843 = vadd.f32 %v2453, %v2713
        %v2844 = vadd.f32 %v2454, %v2718
        %v2845 = vadd.f32 %v2455, %v2723
        %v2846 = vadd.f32 %v2456, %v2728
        %v2847 = vadd.f32 %v2457, %v2733
        %v2848 = vadd.f32 %v2458, %v2738
        %v2849 = vadd.f32 %v2459, %v2743
        %v2850 = vadd.f32 %v2460, %v2748
        %v2851 = vadd.f32 %v2461, %v2753
        %v2852 = vadd.f32 %v2462, %v2758
        %v2853 = vadd.f32 %v2463, %v2763
        %v2854 = vadd.f32 %v2464, %v2768
        %v2855 = vadd.f32 %v2465, %v2773
        %v2856 = vadd.f32 %v2466, %v2778
        %v2857 = vadd.f32 %v2467, %v2783
        %v2858 = vadd.f32 %v2468, %v2788
        %v2859 = vadd.f32 %v2469, %v2793
        %v2860 = vadd.f32 %v2470, %v2798
        %v2861 = vadd.f32 %v2471, %v2803
        %v2862 = vadd.f32 %v2472, %v2808
        %v2863 = vadd.f32 %v2473, %v2813
        %v2864 = vadd.f32 %v2474, %v2818
        %v2865 = vadd.f32 %v2475, %v2823
        %v2866 = vadd.f32 %v2476, %v2828
        %v2867 = vadd.f32 %v2477, %v2833
        %v2868 = vld [vmem:[%s275 + $0x12] sm:$0xff]
        %v2869 = vld [vmem:[%s275 + $0x1a] sm:$0xff]
        %v2870 = vld [vmem:[%s275 + $0x22] sm:$0xff]
        %v2871 = vld [vmem:[%s275 + $0x2a] sm:$0xff]
        %v2872 = vld [vmem:[%s275 + $0x32] sm:$0xff]
        %v2873 = vld [vmem:[%s275 + $0x3a] sm:$0xff]
        %v2874 = vld [vmem:[%s275 + $0x42] sm:$0xff]
        %v2875 = vld [vmem:[%s275 + $0x4a] sm:$0xff]
        %v2876 = vld [vmem:[%s275 + $0x52] sm:$0xff]
        %v2877 = vld [vmem:[%s275 + $0x5a] sm:$0xff]
        %v2878 = vld [vmem:[%s275 + $0x62] sm:$0xff]
        %v2879 = vld [vmem:[%s275 + $0x6a] sm:$0xff]
        %v2880 = vld [vmem:[%s275 + $0x72] sm:$0xff]
        %v2881 = vld [vmem:[%s275 + $0x7a] sm:$0xff]
        %v2882 = vld [vmem:[%s275 + $0x82] sm:$0xff]
        %v2883 = vld [vmem:[%s275 + $0x8a] sm:$0xff]
        %v2884 = vld [vmem:[%s275 + $0x92] sm:$0xff]
        %v2885 = vld [vmem:[%s275 + $0x9a] sm:$0xff]
        %v2886 = vld [vmem:[%s275 + $0xa2] sm:$0xff]
        %v2887 = vld [vmem:[%s275 + $0xaa] sm:$0xff]
        %v2888 = vld [vmem:[%s275 + $0xb2] sm:$0xff]
        %v2889 = vld [vmem:[%s275 + $0xba] sm:$0xff]
        %v2890 = vld [vmem:[%s275 + $0xc2] sm:$0xff]
        %v2891 = vld [vmem:[%s275 + $0xca] sm:$0xff]
        %v2892 = vld [vmem:[%s275 + $0xd2] sm:$0xff]
        %v2893 = vld [vmem:[%s275 + $0xda] sm:$0xff]
        %v2894 = vld [vmem:[%s275 + $0xe2] sm:$0xff]
        %v2895 = vld [vmem:[%s275 + $0xea] sm:$0xff]
        %v2896 = vld [vmem:[%s275 + $0xf2] sm:$0xff]
        %v2897 = vld [vmem:[%s275 + $0xfa] sm:$0xff]
        %v2898 = vld [vmem:[%s275 + $0x102] sm:$0xff]
        %v2899 = vld [vmem:[%s275 + $0x10a] sm:$0xff]
        %v2900 = vsel %vm1634, %v2868, 0.0
        %v2901 = vsel %vm1635, %v2869, 0.0
        %v2902 = vsel %vm1636, %v2870, 0.0
        %v2903 = vsel %vm1637, %v2871, 0.0
        %v2904 = vsel %vm1638, %v2872, 0.0
        %v2905 = vsel %vm1639, %v2873, 0.0
        %v2906 = vsel %vm1640, %v2874, 0.0
        %v2907 = vsel %vm1641, %v2875, 0.0
        %v2908 = vsel %vm1642, %v2876, 0.0
        %v2909 = vsel %vm1643, %v2877, 0.0
        %v2910 = vsel %vm1644, %v2878, 0.0
        %v2911 = vsel %vm1645, %v2879, 0.0
        %v2912 = vsel %vm1646, %v2880, 0.0
        %v2913 = vsel %vm1647, %v2881, 0.0
        %v2914 = vsel %vm1648, %v2882, 0.0
        %v2915 = vsel %vm1649, %v2883, 0.0
        %v2916 = vsel %vm1650, %v2884, 0.0
        %v2917 = vsel %vm1651, %v2885, 0.0
        %v2918 = vsel %vm1652, %v2886, 0.0
        %v2919 = vsel %vm1653, %v2887, 0.0
        %v2920 = vsel %vm1654, %v2888, 0.0
        %v2921 = vsel %vm1655, %v2889, 0.0
        %v2922 = vsel %vm1656, %v2890, 0.0
        %v2923 = vsel %vm1657, %v2891, 0.0
        %v2924 = vsel %vm1658, %v2892, 0.0
        %v2925 = vsel %vm1659, %v2893, 0.0
        %v2926 = vsel %vm1660, %v2894, 0.0
        %v2927 = vsel %vm1661, %v2895, 0.0
        %v2928 = vsel %vm1662, %v2896, 0.0
        %v2929 = vsel %vm1663, %v2897, 0.0
        %v2930 = vsel %vm1664, %v2898, 0.0
        %v2931 = vsel %vm1665, %v2899, 0.0
        %s2932 = scalar_lea.vmem %s1, 20
        %v2933 = vld [vmem:[%s2932] sm:$0x7]
        %v2935 = vsel %vm920, %v2900, 0
        %v2938 = vsel %vm920, %v2901, 0
        %v2941 = vsel %vm920, %v2902, 0
        %v2944 = vsel %vm920, %v2903, 0
        %v2947 = vsel %vm920, %v2904, 0
        %v2950 = vsel %vm920, %v2905, 0
        %v2953 = vsel %vm920, %v2906, 0
        %v2956 = vsel %vm920, %v2907, 0
        %v2959 = vsel %vm920, %v2908, 0
        %v2962 = vsel %vm920, %v2909, 0
        %v2965 = vsel %vm920, %v2910, 0
        %v2968 = vsel %vm920, %v2911, 0
        %v2971 = vsel %vm920, %v2912, 0
        %v2974 = vsel %vm920, %v2913, 0
        %v2977 = vsel %vm920, %v2914, 0
        %v2980 = vsel %vm920, %v2915, 0
        %v2983 = vsel %vm920, %v2916, 0
        %v2986 = vsel %vm920, %v2917, 0
        %v2989 = vsel %vm920, %v2918, 0
        %v2992 = vsel %vm920, %v2919, 0
        %v2995 = vsel %vm920, %v2920, 0
        %v2998 = vsel %vm920, %v2921, 0
        %v3001 = vsel %vm920, %v2922, 0
        %v3004 = vsel %vm920, %v2923, 0
        %v3007 = vsel %vm920, %v2924, 0
        %v3010 = vsel %vm920, %v2925, 0
        %v3013 = vsel %vm920, %v2926, 0
        %v3016 = vsel %vm920, %v2927, 0
        %v3019 = vsel %vm920, %v2928, 0
        %v3022 = vsel %vm920, %v2929, 0
        %v3025 = vsel %vm920, %v2930, 0
        %v3028 = vsel %vm920, %v2931, 0
        %v3031 = vsel %vm1017, %v2933, 0
        %3033 = vmatprep.subr.mxu0 0.0
        %3034 = vmatpush1.msra.mxu0 %v3031
        %3035 = vmatprep.subr.mxu0 0.0
        %3036 = vmatpush1.msra.mxu0 0.0
        %3037 = vmatprep.subr.mxu0 0.0
        %3038 = vmatpush1.msra.mxu0 0.0
        %3039 = vmatprep.subr.mxu0 0.0
        %3040 = vmatpush1.msra.mxu0 0.0
        %3041 = vmatprep.subr.mxu0 0.0
        %3042 = vmatpush1.msra.mxu0 0.0
        %3043 = vmatprep.subr.mxu0 0.0
        %3044 = vmatpush1.msra.mxu0 0.0
        %3045 = vmatprep.subr.mxu0 0.0
        %3046 = vmatpush1.msra.mxu0 0.0
        %3047 = vmatprep.subr.mxu0 0.0
        %3048 = vmatpush1.msra.mxu0 0.0
        %3049 = vmatprep.subr.mxu0 0.0
        %3050 = vmatpush1.msra.mxu0 0.0
        %3051 = vmatprep.subr.mxu0 0.0
        %3052 = vmatpush1.msra.mxu0 0.0
        %3053 = vmatprep.subr.mxu0 0.0
        %3054 = vmatpush1.msra.mxu0 0.0
        %3055 = vmatprep.subr.mxu0 0.0
        %3056 = vmatpush1.msra.mxu0 0.0
        %3057 = vmatprep.subr.mxu0 0.0
        %3058 = vmatpush1.msra.mxu0 0.0
        %3059 = vmatprep.subr.mxu0 0.0
        %3060 = vmatpush1.msra.mxu0 0.0
        %3061 = vmatprep.subr.mxu0 0.0
        %3062 = vmatpush1.msra.mxu0 0.0
        %3063 = vmatprep.subr.mxu0 0.0
        %3064 = vmatpush1.msra.mxu0 0.0
        %3065 = vmatprep.subr.mxu0 0.0
        %3066 = vmatpush1.msra.mxu0 0.0
        %3067 = vmatprep.subr.mxu0 0.0
        %3068 = vmatpush1.msra.mxu0 0.0
        %3069 = vmatprep.subr.mxu0 0.0
        %3070 = vmatpush1.msra.mxu0 0.0
        %3071 = vmatprep.subr.mxu0 0.0
        %3072 = vmatpush1.msra.mxu0 0.0
        %3073 = vmatprep.subr.mxu0 0.0
        %3074 = vmatpush1.msra.mxu0 0.0
        %3075 = vmatprep.subr.mxu0 0.0
        %3076 = vmatpush1.msra.mxu0 0.0
        %3077 = vmatprep.subr.mxu0 0.0
        %3078 = vmatpush1.msra.mxu0 0.0
        %3079 = vmatprep.subr.mxu0 0.0
        %3080 = vmatpush1.msra.mxu0 0.0
        %3081 = vmatprep.subr.mxu0 0.0
        %3082 = vmatpush1.msra.mxu0 0.0
        %3083 = vmatprep.subr.mxu0 0.0
        %3084 = vmatpush1.msra.mxu0 0.0
        %3085 = vmatprep.subr.mxu0 0.0
        %3086 = vmatpush1.msra.mxu0 0.0
        %3087 = vmatprep.subr.mxu0 0.0
        %3088 = vmatpush1.msra.mxu0 0.0
        %3089 = vmatprep.subr.mxu0 0.0
        %3090 = vmatpush1.msra.mxu0 0.0
        %3091 = vmatprep.subr.mxu0 0.0
        %3092 = vmatpush1.msra.mxu0 0.0
        %3093 = vmatprep.subr.mxu0 0.0
        %3094 = vmatpush1.msra.mxu0 0.0
        %3095 = vmatprep.subr.mxu0 0.0
        %3096 = vmatpush1.msra.mxu0 0.0
        %3097 = vmatprep.mubr.f32.mxu0 0.0
        %3098 = vmatmul.mubr.f32.gmra.mrb[0].mxu0 %v2935
        %v3099 = vpop.f32.mrb[0].mxu0
        %v3100 = vadd.f32 0.0, %v3099
        %v3101 = vpop.f32.mrb[0].mxu0
        %3102 = vmatprep.mubr.f32.mxu0 0.0
        %3103 = vmatmul.mubr.f32.gmra.mrb[0].mxu0 %v2938
        %v3104 = vpop.f32.mrb[0].mxu0
        %v3105 = vadd.f32 0.0, %v3104
        %v3106 = vpop.f32.mrb[0].mxu0
        %3107 = vmatprep.mubr.f32.mxu0 0.0
        %3108 = vmatmul.mubr.f32.gmra.mrb[0].mxu0 %v2941
        %v3109 = vpop.f32.mrb[0].mxu0
        %v3110 = vadd.f32 0.0, %v3109
        %v3111 = vpop.f32.mrb[0].mxu0
        %3112 = vmatprep.mubr.f32.mxu0 0.0
        %3113 = vmatmul.mubr.f32.gmra.mrb[0].mxu0 %v2944
        %v3114 = vpop.f32.mrb[0].mxu0
        %v3115 = vadd.f32 0.0, %v3114
        %v3116 = vpop.f32.mrb[0].mxu0
        %3117 = vmatprep.mubr.f32.mxu0 0.0
        %3118 = vmatmul.mubr.f32.gmra.mrb[0].mxu0 %v2947
        %v3119 = vpop.f32.mrb[0].mxu0
        %v3120 = vadd.f32 0.0, %v3119
        %v3121 = vpop.f32.mrb[0].mxu0
        %3122 = vmatprep.mubr.f32.mxu0 0.0
        %3123 = vmatmul.mubr.f32.gmra.mrb[0].mxu0 %v2950
        %v3124 = vpop.f32.mrb[0].mxu0
        %v3125 = vadd.f32 0.0, %v3124
        %v3126 = vpop.f32.mrb[0].mxu0
        %3127 = vmatprep.mubr.f32.mxu0 0.0
        %3128 = vmatmul.mubr.f32.gmra.mrb[0].mxu0 %v2953
        %v3129 = vpop.f32.mrb[0].mxu0
        %v3130 = vadd.f32 0.0, %v3129
        %v3131 = vpop.f32.mrb[0].mxu0
        %3132 = vmatprep.mubr.f32.mxu0 0.0
        %3133 = vmatmul.mubr.f32.gmra.mrb[0].mxu0 %v2956
        %v3134 = vpop.f32.mrb[0].mxu0
        %v3135 = vadd.f32 0.0, %v3134
        %v3136 = vpop.f32.mrb[0].mxu0
        %3137 = vmatprep.mubr.f32.mxu0 0.0
        %3138 = vmatmul.mubr.f32.gmra.mrb[0].mxu0 %v2959
        %v3139 = vpop.f32.mrb[0].mxu0
        %v3140 = vadd.f32 0.0, %v3139
        %v3141 = vpop.f32.mrb[0].mxu0
        %3142 = vmatprep.mubr.f32.mxu0 0.0
        %3143 = vmatmul.mubr.f32.gmra.mrb[0].mxu0 %v2962
        %v3144 = vpop.f32.mrb[0].mxu0
        %v3145 = vadd.f32 0.0, %v3144
        %v3146 = vpop.f32.mrb[0].mxu0
        %3147 = vmatprep.mubr.f32.mxu0 0.0
        %3148 = vmatmul.mubr.f32.gmra.mrb[0].mxu0 %v2965
        %v3149 = vpop.f32.mrb[0].mxu0
        %v3150 = vadd.f32 0.0, %v3149
        %v3151 = vpop.f32.mrb[0].mxu0
        %3152 = vmatprep.mubr.f32.mxu0 0.0
        %3153 = vmatmul.mubr.f32.gmra.mrb[0].mxu0 %v2968
        %v3154 = vpop.f32.mrb[0].mxu0
        %v3155 = vadd.f32 0.0, %v3154
        %v3156 = vpop.f32.mrb[0].mxu0
        %3157 = vmatprep.mubr.f32.mxu0 0.0
        %3158 = vmatmul.mubr.f32.gmra.mrb[0].mxu0 %v2971
        %v3159 = vpop.f32.mrb[0].mxu0
        %v3160 = vadd.f32 0.0, %v3159
        %v3161 = vpop.f32.mrb[0].mxu0
        %3162 = vmatprep.mubr.f32.mxu0 0.0
        %3163 = vmatmul.mubr.f32.gmra.mrb[0].mxu0 %v2974
        %v3164 = vpop.f32.mrb[0].mxu0
        %v3165 = vadd.f32 0.0, %v3164
        %v3166 = vpop.f32.mrb[0].mxu0
        %3167 = vmatprep.mubr.f32.mxu0 0.0
        %3168 = vmatmul.mubr.f32.gmra.mrb[0].mxu0 %v2977
        %v3169 = vpop.f32.mrb[0].mxu0
        %v3170 = vadd.f32 0.0, %v3169
        %v3171 = vpop.f32.mrb[0].mxu0
        %3172 = vmatprep.mubr.f32.mxu0 0.0
        %3173 = vmatmul.mubr.f32.gmra.mrb[0].mxu0 %v2980
        %v3174 = vpop.f32.mrb[0].mxu0
        %v3175 = vadd.f32 0.0, %v3174
        %v3176 = vpop.f32.mrb[0].mxu0
        %3177 = vmatprep.mubr.f32.mxu0 0.0
        %3178 = vmatmul.mubr.f32.gmra.mrb[0].mxu0 %v2983
        %v3179 = vpop.f32.mrb[0].mxu0
        %v3180 = vadd.f32 0.0, %v3179
        %v3181 = vpop.f32.mrb[0].mxu0
        %3182 = vmatprep.mubr.f32.mxu0 0.0
        %3183 = vmatmul.mubr.f32.gmra.mrb[0].mxu0 %v2986
        %v3184 = vpop.f32.mrb[0].mxu0
        %v3185 = vadd.f32 0.0, %v3184
        %v3186 = vpop.f32.mrb[0].mxu0
        %3187 = vmatprep.mubr.f32.mxu0 0.0
        %3188 = vmatmul.mubr.f32.gmra.mrb[0].mxu0 %v2989
        %v3189 = vpop.f32.mrb[0].mxu0
        %v3190 = vadd.f32 0.0, %v3189
        %v3191 = vpop.f32.mrb[0].mxu0
        %3192 = vmatprep.mubr.f32.mxu0 0.0
        %3193 = vmatmul.mubr.f32.gmra.mrb[0].mxu0 %v2992
        %v3194 = vpop.f32.mrb[0].mxu0
        %v3195 = vadd.f32 0.0, %v3194
        %v3196 = vpop.f32.mrb[0].mxu0
        %3197 = vmatprep.mubr.f32.mxu0 0.0
        %3198 = vmatmul.mubr.f32.gmra.mrb[0].mxu0 %v2995
        %v3199 = vpop.f32.mrb[0].mxu0
        %v3200 = vadd.f32 0.0, %v3199
        %v3201 = vpop.f32.mrb[0].mxu0
        %3202 = vmatprep.mubr.f32.mxu0 0.0
        %3203 = vmatmul.mubr.f32.gmra.mrb[0].mxu0 %v2998
        %v3204 = vpop.f32.mrb[0].mxu0
        %v3205 = vadd.f32 0.0, %v3204
        %v3206 = vpop.f32.mrb[0].mxu0
        %3207 = vmatprep.mubr.f32.mxu0 0.0
        %3208 = vmatmul.mubr.f32.gmra.mrb[0].mxu0 %v3001
        %v3209 = vpop.f32.mrb[0].mxu0
        %v3210 = vadd.f32 0.0, %v3209
        %v3211 = vpop.f32.mrb[0].mxu0
        %3212 = vmatprep.mubr.f32.mxu0 0.0
        %3213 = vmatmul.mubr.f32.gmra.mrb[0].mxu0 %v3004
        %v3214 = vpop.f32.mrb[0].mxu0
        %v3215 = vadd.f32 0.0, %v3214
        %v3216 = vpop.f32.mrb[0].mxu0
        %3217 = vmatprep.mubr.f32.mxu0 0.0
        %3218 = vmatmul.mubr.f32.gmra.mrb[0].mxu0 %v3007
        %v3219 = vpop.f32.mrb[0].mxu0
        %v3220 = vadd.f32 0.0, %v3219
        %v3221 = vpop.f32.mrb[0].mxu0
        %3222 = vmatprep.mubr.f32.mxu0 0.0
        %3223 = vmatmul.mubr.f32.gmra.mrb[0].mxu0 %v3010
        %v3224 = vpop.f32.mrb[0].mxu0
        %v3225 = vadd.f32 0.0, %v3224
        %v3226 = vpop.f32.mrb[0].mxu0
        %3227 = vmatprep.mubr.f32.mxu0 0.0
        %3228 = vmatmul.mubr.f32.gmra.mrb[0].mxu0 %v3013
        %v3229 = vpop.f32.mrb[0].mxu0
        %v3230 = vadd.f32 0.0, %v3229
        %v3231 = vpop.f32.mrb[0].mxu0
        %3232 = vmatprep.mubr.f32.mxu0 0.0
        %3233 = vmatmul.mubr.f32.gmra.mrb[0].mxu0 %v3016
        %v3234 = vpop.f32.mrb[0].mxu0
        %v3235 = vadd.f32 0.0, %v3234
        %v3236 = vpop.f32.mrb[0].mxu0
        %3237 = vmatprep.mubr.f32.mxu0 0.0
        %3238 = vmatmul.mubr.f32.gmra.mrb[0].mxu0 %v3019
        %v3239 = vpop.f32.mrb[0].mxu0
        %v3240 = vadd.f32 0.0, %v3239
        %v3241 = vpop.f32.mrb[0].mxu0
        %3242 = vmatprep.mubr.f32.mxu0 0.0
        %3243 = vmatmul.mubr.f32.gmra.mrb[0].mxu0 %v3022
        %v3244 = vpop.f32.mrb[0].mxu0
        %v3245 = vadd.f32 0.0, %v3244
        %v3246 = vpop.f32.mrb[0].mxu0
        %3247 = vmatprep.mubr.f32.mxu0 0.0
        %3248 = vmatmul.mubr.f32.gmra.mrb[0].mxu0 %v3025
        %v3249 = vpop.f32.mrb[0].mxu0
        %v3250 = vadd.f32 0.0, %v3249
        %v3251 = vpop.f32.mrb[0].mxu0
        %3252 = vmatprep.mubr.f32.mxu0 0.0
        %3253 = vmatmul.mubr.f32.gmra.mrb[0].mxu0 %v3028
        %v3254 = vpop.f32.mrb[0].mxu0
        %v3255 = vadd.f32 0.0, %v3254
        %v3256 = vpop.f32.mrb[0].mxu0
        %3257 = vdwg.mxu0
        %v3258 = vadd.f32 %v2836, %v3100
        %v3259 = vadd.f32 %v2837, %v3105
        %v3260 = vadd.f32 %v2838, %v3110
        %v3261 = vadd.f32 %v2839, %v3115
        %v3262 = vadd.f32 %v2840, %v3120
        %v3263 = vadd.f32 %v2841, %v3125
        %v3264 = vadd.f32 %v2842, %v3130
        %v3265 = vadd.f32 %v2843, %v3135
        %v3266 = vadd.f32 %v2844, %v3140
        %v3267 = vadd.f32 %v2845, %v3145
        %v3268 = vadd.f32 %v2846, %v3150
        %v3269 = vadd.f32 %v2847, %v3155
        %v3270 = vadd.f32 %v2848, %v3160
        %v3271 = vadd.f32 %v2849, %v3165
        %v3272 = vadd.f32 %v2850, %v3170
        %v3273 = vadd.f32 %v2851, %v3175
        %v3274 = vadd.f32 %v2852, %v3180
        %v3275 = vadd.f32 %v2853, %v3185
        %v3276 = vadd.f32 %v2854, %v3190
        %v3277 = vadd.f32 %v2855, %v3195
        %v3278 = vadd.f32 %v2856, %v3200
        %v3279 = vadd.f32 %v2857, %v3205
        %v3280 = vadd.f32 %v2858, %v3210
        %v3281 = vadd.f32 %v2859, %v3215
        %v3282 = vadd.f32 %v2860, %v3220
        %v3283 = vadd.f32 %v2861, %v3225
        %v3284 = vadd.f32 %v2862, %v3230
        %v3285 = vadd.f32 %v2863, %v3235
        %v3286 = vadd.f32 %v2864, %v3240
        %v3287 = vadd.f32 %v2865, %v3245
        %v3288 = vadd.f32 %v2866, %v3250
        %v3289 = vadd.f32 %v2867, %v3255
        %v3290 = vld [vmem:[%s275 + $0x20] sm:$0xff]
        %v3291 = vld [vmem:[%s275 + $0x28] sm:$0xff]
        %v3292 = vld [vmem:[%s275 + $0x30] sm:$0xff]
        %v3293 = vld [vmem:[%s275 + $0x38] sm:$0xff]
        %v3294 = vld [vmem:[%s275 + $0x40] sm:$0xff]
        %v3295 = vld [vmem:[%s275 + $0x48] sm:$0xff]
        %v3296 = vld [vmem:[%s275 + $0x50] sm:$0xff]
        %v3297 = vld [vmem:[%s275 + $0x58] sm:$0xff]
        %v3298 = vld [vmem:[%s275 + $0x60] sm:$0xff]
        %v3299 = vld [vmem:[%s275 + $0x68] sm:$0xff]
        %v3300 = vld [vmem:[%s275 + $0x70] sm:$0xff]
        %v3301 = vld [vmem:[%s275 + $0x78] sm:$0xff]
        %v3302 = vld [vmem:[%s275 + $0x80] sm:$0xff]
        %v3303 = vld [vmem:[%s275 + $0x88] sm:$0xff]
        %v3304 = vld [vmem:[%s275 + $0x90] sm:$0xff]
        %v3305 = vld [vmem:[%s275 + $0x98] sm:$0xff]
        %v3306 = vld [vmem:[%s275 + $0xa0] sm:$0xff]
        %v3307 = vld [vmem:[%s275 + $0xa8] sm:$0xff]
        %v3308 = vld [vmem:[%s275 + $0xb0] sm:$0xff]
        %v3309 = vld [vmem:[%s275 + $0xb8] sm:$0xff]
        %v3310 = vld [vmem:[%s275 + $0xc0] sm:$0xff]
        %v3311 = vld [vmem:[%s275 + $0xc8] sm:$0xff]
        %v3312 = vld [vmem:[%s275 + $0xd0] sm:$0xff]
        %v3313 = vld [vmem:[%s275 + $0xd8] sm:$0xff]
        %v3314 = vld [vmem:[%s275 + $0xe0] sm:$0xff]
        %v3315 = vld [vmem:[%s275 + $0xe8] sm:$0xff]
        %v3316 = vld [vmem:[%s275 + $0xf0] sm:$0xff]
        %v3317 = vld [vmem:[%s275 + $0xf8] sm:$0xff]
        %v3318 = vld [vmem:[%s275 + $0x100] sm:$0xff]
        %v3319 = vld [vmem:[%s275 + $0x108] sm:$0xff]
        %v3320 = vld [vmem:[%s275 + $0x110] sm:$0xff]
        %v3321 = vld [vmem:[%s275 + $0x118] sm:$0xff]
        %v3322 = vsel %vm821, %v3290, 0.0
        %v3323 = vsel %vm822, %v3291, 0.0
        %v3324 = vsel %vm823, %v3292, 0.0
        %v3325 = vsel %vm824, %v3293, 0.0
        %v3326 = vsel %vm825, %v3294, 0.0
        %v3327 = vsel %vm826, %v3295, 0.0
        %v3328 = vsel %vm827, %v3296, 0.0
        %v3329 = vsel %vm828, %v3297, 0.0
        %v3330 = vsel %vm829, %v3298, 0.0
        %v3331 = vsel %vm830, %v3299, 0.0
        %v3332 = vsel %vm831, %v3300, 0.0
        %v3333 = vsel %vm832, %v3301, 0.0
        %v3334 = vsel %vm833, %v3302, 0.0
        %v3335 = vsel %vm834, %v3303, 0.0
        %v3336 = vsel %vm835, %v3304, 0.0
        %v3337 = vsel %vm836, %v3305, 0.0
        %v3338 = vsel %vm837, %v3306, 0.0
        %v3339 = vsel %vm838, %v3307, 0.0
        %v3340 = vsel %vm839, %v3308, 0.0
        %v3341 = vsel %vm840, %v3309, 0.0
        %v3342 = vsel %vm841, %v3310, 0.0
        %v3343 = vsel %vm842, %v3311, 0.0
        %v3344 = vsel %vm843, %v3312, 0.0
        %v3345 = vsel %vm844, %v3313, 0.0
        %v3346 = vsel %vm845, %v3314, 0.0
        %v3347 = vsel %vm846, %v3315, 0.0
        %v3348 = vsel %vm847, %v3316, 0.0
        %v3349 = vsel %vm848, %v3317, 0.0
        %v3350 = vsel %vm849, %v3318, 0.0
        %v3351 = vsel %vm850, %v3319, 0.0
        %v3352 = vsel %vm851, %v3320, 0.0
        %v3353 = vsel %vm852, %v3321, 0.0
        %s3354 = scalar_lea.vmem %s1, 24
        %v3355 = vld [vmem:[%s3354] sm:$0x7]
        %v3357 = vsel %vm920, %v3322, 0
        %v3360 = vsel %vm920, %v3323, 0
        %v3363 = vsel %vm920, %v3324, 0
        %v3366 = vsel %vm920, %v3325, 0
        %v3369 = vsel %vm920, %v3326, 0
        %v3372 = vsel %vm920, %v3327, 0
        %v3375 = vsel %vm920, %v3328, 0
        %v3378 = vsel %vm920, %v3329, 0
        %v3381 = vsel %vm920, %v3330, 0
        %v3384 = vsel %vm920, %v3331, 0
        %v3387 = vsel %vm920, %v3332, 0
        %v3390 = vsel %vm920, %v3333, 0
        %v3393 = vsel %vm920, %v3334, 0
        %v3396 = vsel %vm920, %v3335, 0
        %v3399 = vsel %vm920, %v3336, 0
        %v3402 = vsel %vm920, %v3337, 0
        %v3405 = vsel %vm920, %v3338, 0
        %v3408 = vsel %vm920, %v3339, 0
        %v3411 = vsel %vm920, %v3340, 0
        %v3414 = vsel %vm920, %v3341, 0
        %v3417 = vsel %vm920, %v3342, 0
        %v3420 = vsel %vm920, %v3343, 0
        %v3423 = vsel %vm920, %v3344, 0
        %v3426 = vsel %vm920, %v3345, 0
        %v3429 = vsel %vm920, %v3346, 0
        %v3432 = vsel %vm920, %v3347, 0
        %v3435 = vsel %vm920, %v3348, 0
        %v3438 = vsel %vm920, %v3349, 0
        %v3441 = vsel %vm920, %v3350, 0
        %v3444 = vsel %vm920, %v3351, 0
        %v3447 = vsel %vm920, %v3352, 0
        %v3450 = vsel %vm920, %v3353, 0
        %v3453 = vsel %vm1017, %v3355, 0
        %3455 = vmatprep.subr.mxu0 0.0
        %3456 = vmatpush1.msra.mxu0 %v3453
        %3457 = vmatprep.subr.mxu0 0.0
        %3458 = vmatpush1.msra.mxu0 0.0
        %3459 = vmatprep.subr.mxu0 0.0
        %3460 = vmatpush1.msra.mxu0 0.0
        %3461 = vmatprep.subr.mxu0 0.0
        %3462 = vmatpush1.msra.mxu0 0.0
        %3463 = vmatprep.subr.mxu0 0.0
        %3464 = vmatpush1.msra.mxu0 0.0
        %3465 = vmatprep.subr.mxu0 0.0
        %3466 = vmatpush1.msra.mxu0 0.0
        %3467 = vmatprep.subr.mxu0 0.0
        %3468 = vmatpush1.msra.mxu0 0.0
        %3469 = vmatprep.subr.mxu0 0.0
        %3470 = vmatpush1.msra.mxu0 0.0
        %3471 = vmatprep.subr.mxu0 0.0
        %3472 = vmatpush1.msra.mxu0 0.0
        %3473 = vmatprep.subr.mxu0 0.0
        %3474 = vmatpush1.msra.mxu0 0.0
        %3475 = vmatprep.subr.mxu0 0.0
        %3476 = vmatpush1.msra.mxu0 0.0
        %3477 = vmatprep.subr.mxu0 0.0
        %3478 = vmatpush1.msra.mxu0 0.0
        %3479 = vmatprep.subr.mxu0 0.0
        %3480 = vmatpush1.msra.mxu0 0.0
        %3481 = vmatprep.subr.mxu0 0.0
        %3482 = vmatpush1.msra.mxu0 0.0
        %3483 = vmatprep.subr.mxu0 0.0
        %3484 = vmatpush1.msra.mxu0 0.0
        %3485 = vmatprep.subr.mxu0 0.0
        %3486 = vmatpush1.msra.mxu0 0.0
        %3487 = vmatprep.subr.mxu0 0.0
        %3488 = vmatpush1.msra.mxu0 0.0
        %3489 = vmatprep.subr.mxu0 0.0
        %3490 = vmatpush1.msra.mxu0 0.0
        %3491 = vmatprep.subr.mxu0 0.0
        %3492 = vmatpush1.msra.mxu0 0.0
        %3493 = vmatprep.subr.mxu0 0.0
        %3494 = vmatpush1.msra.mxu0 0.0
        %3495 = vmatprep.subr.mxu0 0.0
        %3496 = vmatpush1.msra.mxu0 0.0
        %3497 = vmatprep.subr.mxu0 0.0
        %3498 = vmatpush1.msra.mxu0 0.0
        %3499 = vmatprep.subr.mxu0 0.0
        %3500 = vmatpush1.msra.mxu0 0.0
        %3501 = vmatprep.subr.mxu0 0.0
        %3502 = vmatpush1.msra.mxu0 0.0
        %3503 = vmatprep.subr.mxu0 0.0
        %3504 = vmatpush1.msra.mxu0 0.0
        %3505 = vmatprep.subr.mxu0 0.0
        %3506 = vmatpush1.msra.mxu0 0.0
        %3507 = vmatprep.subr.mxu0 0.0
        %3508 = vmatpush1.msra.mxu0 0.0
        %3509 = vmatprep.subr.mxu0 0.0
        %3510 = vmatpush1.msra.mxu0 0.0
        %3511 = vmatprep.subr.mxu0 0.0
        %3512 = vmatpush1.msra.mxu0 0.0
        %3513 = vmatprep.subr.mxu0 0.0
        %3514 = vmatpush1.msra.mxu0 0.0
        %3515 = vmatprep.subr.mxu0 0.0
        %3516 = vmatpush1.msra.mxu0 0.0
        %3517 = vmatprep.subr.mxu0 0.0
        %3518 = vmatpush1.msra.mxu0 0.0
        %3519 = vmatprep.mubr.f32.mxu0 0.0
        %3520 = vmatmul.mubr.f32.gmra.mrb[0].mxu0 %v3357
        %v3521 = vpop.f32.mrb[0].mxu0
        %v3522 = vadd.f32 0.0, %v3521
        %v3523 = vpop.f32.mrb[0].mxu0
        %3524 = vmatprep.mubr.f32.mxu0 0.0
        %3525 = vmatmul.mubr.f32.gmra.mrb[0].mxu0 %v3360
        %v3526 = vpop.f32.mrb[0].mxu0
        %v3527 = vadd.f32 0.0, %v3526
        %v3528 = vpop.f32.mrb[0].mxu0
        %3529 = vmatprep.mubr.f32.mxu0 0.0
        %3530 = vmatmul.mubr.f32.gmra.mrb[0].mxu0 %v3363
        %v3531 = vpop.f32.mrb[0].mxu0
        %v3532 = vadd.f32 0.0, %v3531
        %v3533 = vpop.f32.mrb[0].mxu0
        %3534 = vmatprep.mubr.f32.mxu0 0.0
        %3535 = vmatmul.mubr.f32.gmra.mrb[0].mxu0 %v3366
        %v3536 = vpop.f32.mrb[0].mxu0
        %v3537 = vadd.f32 0.0, %v3536
        %v3538 = vpop.f32.mrb[0].mxu0
        %3539 = vmatprep.mubr.f32.mxu0 0.0
        %3540 = vmatmul.mubr.f32.gmra.mrb[0].mxu0 %v3369
        %v3541 = vpop.f32.mrb[0].mxu0
        %v3542 = vadd.f32 0.0, %v3541
        %v3543 = vpop.f32.mrb[0].mxu0
        %3544 = vmatprep.mubr.f32.mxu0 0.0
        %3545 = vmatmul.mubr.f32.gmra.mrb[0].mxu0 %v3372
        %v3546 = vpop.f32.mrb[0].mxu0
        %v3547 = vadd.f32 0.0, %v3546
        %v3548 = vpop.f32.mrb[0].mxu0
        %3549 = vmatprep.mubr.f32.mxu0 0.0
        %3550 = vmatmul.mubr.f32.gmra.mrb[0].mxu0 %v3375
        %v3551 = vpop.f32.mrb[0].mxu0
        %v3552 = vadd.f32 0.0, %v3551
        %v3553 = vpop.f32.mrb[0].mxu0
        %3554 = vmatprep.mubr.f32.mxu0 0.0
        %3555 = vmatmul.mubr.f32.gmra.mrb[0].mxu0 %v3378
        %v3556 = vpop.f32.mrb[0].mxu0
        %v3557 = vadd.f32 0.0, %v3556
        %v3558 = vpop.f32.mrb[0].mxu0
        %3559 = vmatprep.mubr.f32.mxu0 0.0
        %3560 = vmatmul.mubr.f32.gmra.mrb[0].mxu0 %v3381
        %v3561 = vpop.f32.mrb[0].mxu0
        %v3562 = vadd.f32 0.0, %v3561
        %v3563 = vpop.f32.mrb[0].mxu0
        %3564 = vmatprep.mubr.f32.mxu0 0.0
        %3565 = vmatmul.mubr.f32.gmra.mrb[0].mxu0 %v3384
        %v3566 = vpop.f32.mrb[0].mxu0
        %v3567 = vadd.f32 0.0, %v3566
        %v3568 = vpop.f32.mrb[0].mxu0
        %3569 = vmatprep.mubr.f32.mxu0 0.0
        %3570 = vmatmul.mubr.f32.gmra.mrb[0].mxu0 %v3387
        %v3571 = vpop.f32.mrb[0].mxu0
        %v3572 = vadd.f32 0.0, %v3571
        %v3573 = vpop.f32.mrb[0].mxu0
        %3574 = vmatprep.mubr.f32.mxu0 0.0
        %3575 = vmatmul.mubr.f32.gmra.mrb[0].mxu0 %v3390
        %v3576 = vpop.f32.mrb[0].mxu0
        %v3577 = vadd.f32 0.0, %v3576
        %v3578 = vpop.f32.mrb[0].mxu0
        %3579 = vmatprep.mubr.f32.mxu0 0.0
        %3580 = vmatmul.mubr.f32.gmra.mrb[0].mxu0 %v3393
        %v3581 = vpop.f32.mrb[0].mxu0
        %v3582 = vadd.f32 0.0, %v3581
        %v3583 = vpop.f32.mrb[0].mxu0
        %3584 = vmatprep.mubr.f32.mxu0 0.0
        %3585 = vmatmul.mubr.f32.gmra.mrb[0].mxu0 %v3396
        %v3586 = vpop.f32.mrb[0].mxu0
        %v3587 = vadd.f32 0.0, %v3586
        %v3588 = vpop.f32.mrb[0].mxu0
        %3589 = vmatprep.mubr.f32.mxu0 0.0
        %3590 = vmatmul.mubr.f32.gmra.mrb[0].mxu0 %v3399
        %v3591 = vpop.f32.mrb[0].mxu0
        %v3592 = vadd.f32 0.0, %v3591
        %v3593 = vpop.f32.mrb[0].mxu0
        %3594 = vmatprep.mubr.f32.mxu0 0.0
        %3595 = vmatmul.mubr.f32.gmra.mrb[0].mxu0 %v3402
        %v3596 = vpop.f32.mrb[0].mxu0
        %v3597 = vadd.f32 0.0, %v3596
        %v3598 = vpop.f32.mrb[0].mxu0
        %3599 = vmatprep.mubr.f32.mxu0 0.0
        %3600 = vmatmul.mubr.f32.gmra.mrb[0].mxu0 %v3405
        %v3601 = vpop.f32.mrb[0].mxu0
        %v3602 = vadd.f32 0.0, %v3601
        %v3603 = vpop.f32.mrb[0].mxu0
        %3604 = vmatprep.mubr.f32.mxu0 0.0
        %3605 = vmatmul.mubr.f32.gmra.mrb[0].mxu0 %v3408
        %v3606 = vpop.f32.mrb[0].mxu0
        %v3607 = vadd.f32 0.0, %v3606
        %v3608 = vpop.f32.mrb[0].mxu0
        %3609 = vmatprep.mubr.f32.mxu0 0.0
        %3610 = vmatmul.mubr.f32.gmra.mrb[0].mxu0 %v3411
        %v3611 = vpop.f32.mrb[0].mxu0
        %v3612 = vadd.f32 0.0, %v3611
        %v3613 = vpop.f32.mrb[0].mxu0
        %3614 = vmatprep.mubr.f32.mxu0 0.0
        %3615 = vmatmul.mubr.f32.gmra.mrb[0].mxu0 %v3414
        %v3616 = vpop.f32.mrb[0].mxu0
        %v3617 = vadd.f32 0.0, %v3616
        %v3618 = vpop.f32.mrb[0].mxu0
        %3619 = vmatprep.mubr.f32.mxu0 0.0
        %3620 = vmatmul.mubr.f32.gmra.mrb[0].mxu0 %v3417
        %v3621 = vpop.f32.mrb[0].mxu0
        %v3622 = vadd.f32 0.0, %v3621
        %v3623 = vpop.f32.mrb[0].mxu0
        %3624 = vmatprep.mubr.f32.mxu0 0.0
        %3625 = vmatmul.mubr.f32.gmra.mrb[0].mxu0 %v3420
        %v3626 = vpop.f32.mrb[0].mxu0
        %v3627 = vadd.f32 0.0, %v3626
        %v3628 = vpop.f32.mrb[0].mxu0
        %3629 = vmatprep.mubr.f32.mxu0 0.0
        %3630 = vmatmul.mubr.f32.gmra.mrb[0].mxu0 %v3423
        %v3631 = vpop.f32.mrb[0].mxu0
        %v3632 = vadd.f32 0.0, %v3631
        %v3633 = vpop.f32.mrb[0].mxu0
        %3634 = vmatprep.mubr.f32.mxu0 0.0
        %3635 = vmatmul.mubr.f32.gmra.mrb[0].mxu0 %v3426
        %v3636 = vpop.f32.mrb[0].mxu0
        %v3637 = vadd.f32 0.0, %v3636
        %v3638 = vpop.f32.mrb[0].mxu0
        %3639 = vmatprep.mubr.f32.mxu0 0.0
        %3640 = vmatmul.mubr.f32.gmra.mrb[0].mxu0 %v3429
        %v3641 = vpop.f32.mrb[0].mxu0
        %v3642 = vadd.f32 0.0, %v3641
        %v3643 = vpop.f32.mrb[0].mxu0
        %3644 = vmatprep.mubr.f32.mxu0 0.0
        %3645 = vmatmul.mubr.f32.gmra.mrb[0].mxu0 %v3432
        %v3646 = vpop.f32.mrb[0].mxu0
        %v3647 = vadd.f32 0.0, %v3646
        %v3648 = vpop.f32.mrb[0].mxu0
        %3649 = vmatprep.mubr.f32.mxu0 0.0
        %3650 = vmatmul.mubr.f32.gmra.mrb[0].mxu0 %v3435
        %v3651 = vpop.f32.mrb[0].mxu0
        %v3652 = vadd.f32 0.0, %v3651
        %v3653 = vpop.f32.mrb[0].mxu0
        %3654 = vmatprep.mubr.f32.mxu0 0.0
        %3655 = vmatmul.mubr.f32.gmra.mrb[0].mxu0 %v3438
        %v3656 = vpop.f32.mrb[0].mxu0
        %v3657 = vadd.f32 0.0, %v3656
        %v3658 = vpop.f32.mrb[0].mxu0
        %3659 = vmatprep.mubr.f32.mxu0 0.0
        %3660 = vmatmul.mubr.f32.gmra.mrb[0].mxu0 %v3441
        %v3661 = vpop.f32.mrb[0].mxu0
        %v3662 = vadd.f32 0.0, %v3661
        %v3663 = vpop.f32.mrb[0].mxu0
        %3664 = vmatprep.mubr.f32.mxu0 0.0
        %3665 = vmatmul.mubr.f32.gmra.mrb[0].mxu0 %v3444
        %v3666 = vpop.f32.mrb[0].mxu0
        %v3667 = vadd.f32 0.0, %v3666
        %v3668 = vpop.f32.mrb[0].mxu0
        %3669 = vmatprep.mubr.f32.mxu0 0.0
        %3670 = vmatmul.mubr.f32.gmra.mrb[0].mxu0 %v3447
        %v3671 = vpop.f32.mrb[0].mxu0
        %v3672 = vadd.f32 0.0, %v3671
        %v3673 = vpop.f32.mrb[0].mxu0
        %3674 = vmatprep.mubr.f32.mxu0 0.0
        %3675 = vmatmul.mubr.f32.gmra.mrb[0].mxu0 %v3450
        %v3676 = vpop.f32.mrb[0].mxu0
        %v3677 = vadd.f32 0.0, %v3676
        %v3678 = vpop.f32.mrb[0].mxu0
        %3679 = vdwg.mxu0
        %v3680 = vadd.f32 %v3258, %v3522
        %v3681 = vadd.f32 %v3259, %v3527
        %v3682 = vadd.f32 %v3260, %v3532
        %v3683 = vadd.f32 %v3261, %v3537
        %v3684 = vadd.f32 %v3262, %v3542
        %v3685 = vadd.f32 %v3263, %v3547
        %v3686 = vadd.f32 %v3264, %v3552
        %v3687 = vadd.f32 %v3265, %v3557
        %v3688 = vadd.f32 %v3266, %v3562
        %v3689 = vadd.f32 %v3267, %v3567
        %v3690 = vadd.f32 %v3268, %v3572
        %v3691 = vadd.f32 %v3269, %v3577
        %v3692 = vadd.f32 %v3270, %v3582
        %v3693 = vadd.f32 %v3271, %v3587
        %v3694 = vadd.f32 %v3272, %v3592
        %v3695 = vadd.f32 %v3273, %v3597
        %v3696 = vadd.f32 %v3274, %v3602
        %v3697 = vadd.f32 %v3275, %v3607
        %v3698 = vadd.f32 %v3276, %v3612
        %v3699 = vadd.f32 %v3277, %v3617
        %v3700 = vadd.f32 %v3278, %v3622
        %v3701 = vadd.f32 %v3279, %v3627
        %v3702 = vadd.f32 %v3280, %v3632
        %v3703 = vadd.f32 %v3281, %v3637
        %v3704 = vadd.f32 %v3282, %v3642
        %v3705 = vadd.f32 %v3283, %v3647
        %v3706 = vadd.f32 %v3284, %v3652
        %v3707 = vadd.f32 %v3285, %v3657
        %v3708 = vadd.f32 %v3286, %v3662
        %v3709 = vadd.f32 %v3287, %v3667
        %v3710 = vadd.f32 %v3288, %v3672
        %v3711 = vadd.f32 %v3289, %v3677
        %v3712 = vld [vmem:[%s275 + $0x21] sm:$0xff]
        %v3713 = vld [vmem:[%s275 + $0x29] sm:$0xff]
        %v3714 = vld [vmem:[%s275 + $0x31] sm:$0xff]
        %v3715 = vld [vmem:[%s275 + $0x39] sm:$0xff]
        %v3716 = vld [vmem:[%s275 + $0x41] sm:$0xff]
        %v3717 = vld [vmem:[%s275 + $0x49] sm:$0xff]
        %v3718 = vld [vmem:[%s275 + $0x51] sm:$0xff]
        %v3719 = vld [vmem:[%s275 + $0x59] sm:$0xff]
        %v3720 = vld [vmem:[%s275 + $0x61] sm:$0xff]
        %v3721 = vld [vmem:[%s275 + $0x69] sm:$0xff]
        %v3722 = vld [vmem:[%s275 + $0x71] sm:$0xff]
        %v3723 = vld [vmem:[%s275 + $0x79] sm:$0xff]
        %v3724 = vld [vmem:[%s275 + $0x81] sm:$0xff]
        %v3725 = vld [vmem:[%s275 + $0x89] sm:$0xff]
        %v3726 = vld [vmem:[%s275 + $0x91] sm:$0xff]
        %v3727 = vld [vmem:[%s275 + $0x99] sm:$0xff]
        %v3728 = vld [vmem:[%s275 + $0xa1] sm:$0xff]
        %v3729 = vld [vmem:[%s275 + $0xa9] sm:$0xff]
        %v3730 = vld [vmem:[%s275 + $0xb1] sm:$0xff]
        %v3731 = vld [vmem:[%s275 + $0xb9] sm:$0xff]
        %v3732 = vld [vmem:[%s275 + $0xc1] sm:$0xff]
        %v3733 = vld [vmem:[%s275 + $0xc9] sm:$0xff]
        %v3734 = vld [vmem:[%s275 + $0xd1] sm:$0xff]
        %v3735 = vld [vmem:[%s275 + $0xd9] sm:$0xff]
        %v3736 = vld [vmem:[%s275 + $0xe1] sm:$0xff]
        %v3737 = vld [vmem:[%s275 + $0xe9] sm:$0xff]
        %v3738 = vld [vmem:[%s275 + $0xf1] sm:$0xff]
        %v3739 = vld [vmem:[%s275 + $0xf9] sm:$0xff]
        %v3740 = vld [vmem:[%s275 + $0x101] sm:$0xff]
        %v3741 = vld [vmem:[%s275 + $0x109] sm:$0xff]
        %v3742 = vld [vmem:[%s275 + $0x111] sm:$0xff]
        %v3743 = vld [vmem:[%s275 + $0x119] sm:$0xff]
        %s3744 = scalar_lea.vmem %s1, 28
        %v3745 = vld [vmem:[%s3744] sm:$0x7]
        %v3747 = vsel %vm920, %v3712, 0
        %v3750 = vsel %vm920, %v3713, 0
        %v3753 = vsel %vm920, %v3714, 0
        %v3756 = vsel %vm920, %v3715, 0
        %v3759 = vsel %vm920, %v3716, 0
        %v3762 = vsel %vm920, %v3717, 0
        %v3765 = vsel %vm920, %v3718, 0
        %v3768 = vsel %vm920, %v3719, 0
        %v3771 = vsel %vm920, %v3720, 0
        %v3774 = vsel %vm920, %v3721, 0
        %v3777 = vsel %vm920, %v3722, 0
        %v3780 = vsel %vm920, %v3723, 0
        %v3783 = vsel %vm920, %v3724, 0
        %v3786 = vsel %vm920, %v3725, 0
        %v3789 = vsel %vm920, %v3726, 0
        %v3792 = vsel %vm920, %v3727, 0
        %v3795 = vsel %vm920, %v3728, 0
        %v3798 = vsel %vm920, %v3729, 0
        %v3801 = vsel %vm920, %v3730, 0
        %v3804 = vsel %vm920, %v3731, 0
        %v3807 = vsel %vm920, %v3732, 0
        %v3810 = vsel %vm920, %v3733, 0
        %v3813 = vsel %vm920, %v3734, 0
        %v3816 = vsel %vm920, %v3735, 0
        %v3819 = vsel %vm920, %v3736, 0
        %v3822 = vsel %vm920, %v3737, 0
        %v3825 = vsel %vm920, %v3738, 0
        %v3828 = vsel %vm920, %v3739, 0
        %v3831 = vsel %vm920, %v3740, 0
        %v3834 = vsel %vm920, %v3741, 0
        %v3837 = vsel %vm920, %v3742, 0
        %v3840 = vsel %vm920, %v3743, 0
        %v3843 = vsel %vm1017, %v3745, 0
        %3845 = vmatprep.subr.mxu0 0.0
        %3846 = vmatpush1.msra.mxu0 %v3843
        %3847 = vmatprep.subr.mxu0 0.0
        %3848 = vmatpush1.msra.mxu0 0.0
        %3849 = vmatprep.subr.mxu0 0.0
        %3850 = vmatpush1.msra.mxu0 0.0
        %3851 = vmatprep.subr.mxu0 0.0
        %3852 = vmatpush1.msra.mxu0 0.0
        %3853 = vmatprep.subr.mxu0 0.0
        %3854 = vmatpush1.msra.mxu0 0.0
        %3855 = vmatprep.subr.mxu0 0.0
        %3856 = vmatpush1.msra.mxu0 0.0
        %3857 = vmatprep.subr.mxu0 0.0
        %3858 = vmatpush1.msra.mxu0 0.0
        %3859 = vmatprep.subr.mxu0 0.0
        %3860 = vmatpush1.msra.mxu0 0.0
        %3861 = vmatprep.subr.mxu0 0.0
        %3862 = vmatpush1.msra.mxu0 0.0
        %3863 = vmatprep.subr.mxu0 0.0
        %3864 = vmatpush1.msra.mxu0 0.0
        %3865 = vmatprep.subr.mxu0 0.0
        %3866 = vmatpush1.msra.mxu0 0.0
        %3867 = vmatprep.subr.mxu0 0.0
        %3868 = vmatpush1.msra.mxu0 0.0
        %3869 = vmatprep.subr.mxu0 0.0
        %3870 = vmatpush1.msra.mxu0 0.0
        %3871 = vmatprep.subr.mxu0 0.0
        %3872 = vmatpush1.msra.mxu0 0.0
        %3873 = vmatprep.subr.mxu0 0.0
        %3874 = vmatpush1.msra.mxu0 0.0
        %3875 = vmatprep.subr.mxu0 0.0
        %3876 = vmatpush1.msra.mxu0 0.0
        %3877 = vmatprep.subr.mxu0 0.0
        %3878 = vmatpush1.msra.mxu0 0.0
        %3879 = vmatprep.subr.mxu0 0.0
        %3880 = vmatpush1.msra.mxu0 0.0
        %3881 = vmatprep.subr.mxu0 0.0
        %3882 = vmatpush1.msra.mxu0 0.0
        %3883 = vmatprep.subr.mxu0 0.0
        %3884 = vmatpush1.msra.mxu0 0.0
        %3885 = vmatprep.subr.mxu0 0.0
        %3886 = vmatpush1.msra.mxu0 0.0
        %3887 = vmatprep.subr.mxu0 0.0
        %3888 = vmatpush1.msra.mxu0 0.0
        %3889 = vmatprep.subr.mxu0 0.0
        %3890 = vmatpush1.msra.mxu0 0.0
        %3891 = vmatprep.subr.mxu0 0.0
        %3892 = vmatpush1.msra.mxu0 0.0
        %3893 = vmatprep.subr.mxu0 0.0
        %3894 = vmatpush1.msra.mxu0 0.0
        %3895 = vmatprep.subr.mxu0 0.0
        %3896 = vmatpush1.msra.mxu0 0.0
        %3897 = vmatprep.subr.mxu0 0.0
        %3898 = vmatpush1.msra.mxu0 0.0
        %3899 = vmatprep.subr.mxu0 0.0
        %3900 = vmatpush1.msra.mxu0 0.0
        %3901 = vmatprep.subr.mxu0 0.0
        %3902 = vmatpush1.msra.mxu0 0.0
        %3903 = vmatprep.subr.mxu0 0.0
        %3904 = vmatpush1.msra.mxu0 0.0
        %3905 = vmatprep.subr.mxu0 0.0
        %3906 = vmatpush1.msra.mxu0 0.0
        %3907 = vmatprep.subr.mxu0 0.0
        %3908 = vmatpush1.msra.mxu0 0.0
        %3909 = vmatprep.mubr.f32.mxu0 0.0
        %3910 = vmatmul.mubr.f32.gmra.mrb[0].mxu0 %v3747
        %v3911 = vpop.f32.mrb[0].mxu0
        %v3912 = vadd.f32 0.0, %v3911
        %v3913 = vpop.f32.mrb[0].mxu0
        %3914 = vmatprep.mubr.f32.mxu0 0.0
        %3915 = vmatmul.mubr.f32.gmra.mrb[0].mxu0 %v3750
        %v3916 = vpop.f32.mrb[0].mxu0
        %v3917 = vadd.f32 0.0, %v3916
        %v3918 = vpop.f32.mrb[0].mxu0
        %3919 = vmatprep.mubr.f32.mxu0 0.0
        %3920 = vmatmul.mubr.f32.gmra.mrb[0].mxu0 %v3753
        %v3921 = vpop.f32.mrb[0].mxu0
        %v3922 = vadd.f32 0.0, %v3921
        %v3923 = vpop.f32.mrb[0].mxu0
        %3924 = vmatprep.mubr.f32.mxu0 0.0
        %3925 = vmatmul.mubr.f32.gmra.mrb[0].mxu0 %v3756
        %v3926 = vpop.f32.mrb[0].mxu0
        %v3927 = vadd.f32 0.0, %v3926
        %v3928 = vpop.f32.mrb[0].mxu0
        %3929 = vmatprep.mubr.f32.mxu0 0.0
        %3930 = vmatmul.mubr.f32.gmra.mrb[0].mxu0 %v3759
        %v3931 = vpop.f32.mrb[0].mxu0
        %v3932 = vadd.f32 0.0, %v3931
        %v3933 = vpop.f32.mrb[0].mxu0
        %3934 = vmatprep.mubr.f32.mxu0 0.0
        %3935 = vmatmul.mubr.f32.gmra.mrb[0].mxu0 %v3762
        %v3936 = vpop.f32.mrb[0].mxu0
        %v3937 = vadd.f32 0.0, %v3936
        %v3938 = vpop.f32.mrb[0].mxu0
        %3939 = vmatprep.mubr.f32.mxu0 0.0
        %3940 = vmatmul.mubr.f32.gmra.mrb[0].mxu0 %v3765
        %v3941 = vpop.f32.mrb[0].mxu0
        %v3942 = vadd.f32 0.0, %v3941
        %v3943 = vpop.f32.mrb[0].mxu0
        %3944 = vmatprep.mubr.f32.mxu0 0.0
        %3945 = vmatmul.mubr.f32.gmra.mrb[0].mxu0 %v3768
        %v3946 = vpop.f32.mrb[0].mxu0
        %v3947 = vadd.f32 0.0, %v3946
        %v3948 = vpop.f32.mrb[0].mxu0
        %3949 = vmatprep.mubr.f32.mxu0 0.0
        %3950 = vmatmul.mubr.f32.gmra.mrb[0].mxu0 %v3771
        %v3951 = vpop.f32.mrb[0].mxu0
        %v3952 = vadd.f32 0.0, %v3951
        %v3953 = vpop.f32.mrb[0].mxu0
        %3954 = vmatprep.mubr.f32.mxu0 0.0
        %3955 = vmatmul.mubr.f32.gmra.mrb[0].mxu0 %v3774
        %v3956 = vpop.f32.mrb[0].mxu0
        %v3957 = vadd.f32 0.0, %v3956
        %v3958 = vpop.f32.mrb[0].mxu0
        %3959 = vmatprep.mubr.f32.mxu0 0.0
        %3960 = vmatmul.mubr.f32.gmra.mrb[0].mxu0 %v3777
        %v3961 = vpop.f32.mrb[0].mxu0
        %v3962 = vadd.f32 0.0, %v3961
        %v3963 = vpop.f32.mrb[0].mxu0
        %3964 = vmatprep.mubr.f32.mxu0 0.0
        %3965 = vmatmul.mubr.f32.gmra.mrb[0].mxu0 %v3780
        %v3966 = vpop.f32.mrb[0].mxu0
        %v3967 = vadd.f32 0.0, %v3966
        %v3968 = vpop.f32.mrb[0].mxu0
        %3969 = vmatprep.mubr.f32.mxu0 0.0
        %3970 = vmatmul.mubr.f32.gmra.mrb[0].mxu0 %v3783
        %v3971 = vpop.f32.mrb[0].mxu0
        %v3972 = vadd.f32 0.0, %v3971
        %v3973 = vpop.f32.mrb[0].mxu0
        %3974 = vmatprep.mubr.f32.mxu0 0.0
        %3975 = vmatmul.mubr.f32.gmra.mrb[0].mxu0 %v3786
        %v3976 = vpop.f32.mrb[0].mxu0
        %v3977 = vadd.f32 0.0, %v3976
        %v3978 = vpop.f32.mrb[0].mxu0
        %3979 = vmatprep.mubr.f32.mxu0 0.0
        %3980 = vmatmul.mubr.f32.gmra.mrb[0].mxu0 %v3789
        %v3981 = vpop.f32.mrb[0].mxu0
        %v3982 = vadd.f32 0.0, %v3981
        %v3983 = vpop.f32.mrb[0].mxu0
        %3984 = vmatprep.mubr.f32.mxu0 0.0
        %3985 = vmatmul.mubr.f32.gmra.mrb[0].mxu0 %v3792
        %v3986 = vpop.f32.mrb[0].mxu0
        %v3987 = vadd.f32 0.0, %v3986
        %v3988 = vpop.f32.mrb[0].mxu0
        %3989 = vmatprep.mubr.f32.mxu0 0.0
        %3990 = vmatmul.mubr.f32.gmra.mrb[0].mxu0 %v3795
        %v3991 = vpop.f32.mrb[0].mxu0
        %v3992 = vadd.f32 0.0, %v3991
        %v3993 = vpop.f32.mrb[0].mxu0
        %3994 = vmatprep.mubr.f32.mxu0 0.0
        %3995 = vmatmul.mubr.f32.gmra.mrb[0].mxu0 %v3798
        %v3996 = vpop.f32.mrb[0].mxu0
        %v3997 = vadd.f32 0.0, %v3996
        %v3998 = vpop.f32.mrb[0].mxu0
        %3999 = vmatprep.mubr.f32.mxu0 0.0
        %4000 = vmatmul.mubr.f32.gmra.mrb[0].mxu0 %v3801
        %v4001 = vpop.f32.mrb[0].mxu0
        %v4002 = vadd.f32 0.0, %v4001
        %v4003 = vpop.f32.mrb[0].mxu0
        %4004 = vmatprep.mubr.f32.mxu0 0.0
        %4005 = vmatmul.mubr.f32.gmra.mrb[0].mxu0 %v3804
        %v4006 = vpop.f32.mrb[0].mxu0
        %v4007 = vadd.f32 0.0, %v4006
        %v4008 = vpop.f32.mrb[0].mxu0
        %4009 = vmatprep.mubr.f32.mxu0 0.0
        %4010 = vmatmul.mubr.f32.gmra.mrb[0].mxu0 %v3807
        %v4011 = vpop.f32.mrb[0].mxu0
        %v4012 = vadd.f32 0.0, %v4011
        %v4013 = vpop.f32.mrb[0].mxu0
        %4014 = vmatprep.mubr.f32.mxu0 0.0
        %4015 = vmatmul.mubr.f32.gmra.mrb[0].mxu0 %v3810
        %v4016 = vpop.f32.mrb[0].mxu0
        %v4017 = vadd.f32 0.0, %v4016
        %v4018 = vpop.f32.mrb[0].mxu0
        %4019 = vmatprep.mubr.f32.mxu0 0.0
        %4020 = vmatmul.mubr.f32.gmra.mrb[0].mxu0 %v3813
        %v4021 = vpop.f32.mrb[0].mxu0
        %v4022 = vadd.f32 0.0, %v4021
        %v4023 = vpop.f32.mrb[0].mxu0
        %4024 = vmatprep.mubr.f32.mxu0 0.0
        %4025 = vmatmul.mubr.f32.gmra.mrb[0].mxu0 %v3816
        %v4026 = vpop.f32.mrb[0].mxu0
        %v4027 = vadd.f32 0.0, %v4026
        %v4028 = vpop.f32.mrb[0].mxu0
        %4029 = vmatprep.mubr.f32.mxu0 0.0
        %4030 = vmatmul.mubr.f32.gmra.mrb[0].mxu0 %v3819
        %v4031 = vpop.f32.mrb[0].mxu0
        %v4032 = vadd.f32 0.0, %v4031
        %v4033 = vpop.f32.mrb[0].mxu0
        %4034 = vmatprep.mubr.f32.mxu0 0.0
        %4035 = vmatmul.mubr.f32.gmra.mrb[0].mxu0 %v3822
        %v4036 = vpop.f32.mrb[0].mxu0
        %v4037 = vadd.f32 0.0, %v4036
        %v4038 = vpop.f32.mrb[0].mxu0
        %4039 = vmatprep.mubr.f32.mxu0 0.0
        %4040 = vmatmul.mubr.f32.gmra.mrb[0].mxu0 %v3825
        %v4041 = vpop.f32.mrb[0].mxu0
        %v4042 = vadd.f32 0.0, %v4041
        %v4043 = vpop.f32.mrb[0].mxu0
        %4044 = vmatprep.mubr.f32.mxu0 0.0
        %4045 = vmatmul.mubr.f32.gmra.mrb[0].mxu0 %v3828
        %v4046 = vpop.f32.mrb[0].mxu0
        %v4047 = vadd.f32 0.0, %v4046
        %v4048 = vpop.f32.mrb[0].mxu0
        %4049 = vmatprep.mubr.f32.mxu0 0.0
        %4050 = vmatmul.mubr.f32.gmra.mrb[0].mxu0 %v3831
        %v4051 = vpop.f32.mrb[0].mxu0
        %v4052 = vadd.f32 0.0, %v4051
        %v4053 = vpop.f32.mrb[0].mxu0
        %4054 = vmatprep.mubr.f32.mxu0 0.0
        %4055 = vmatmul.mubr.f32.gmra.mrb[0].mxu0 %v3834
        %v4056 = vpop.f32.mrb[0].mxu0
        %v4057 = vadd.f32 0.0, %v4056
        %v4058 = vpop.f32.mrb[0].mxu0
        %4059 = vmatprep.mubr.f32.mxu0 0.0
        %4060 = vmatmul.mubr.f32.gmra.mrb[0].mxu0 %v3837
        %v4061 = vpop.f32.mrb[0].mxu0
        %v4062 = vadd.f32 0.0, %v4061
        %v4063 = vpop.f32.mrb[0].mxu0
        %4064 = vmatprep.mubr.f32.mxu0 0.0
        %4065 = vmatmul.mubr.f32.gmra.mrb[0].mxu0 %v3840
        %v4066 = vpop.f32.mrb[0].mxu0
        %v4067 = vadd.f32 0.0, %v4066
        %v4068 = vpop.f32.mrb[0].mxu0
        %4069 = vdwg.mxu0
        %v4070 = vadd.f32 %v3680, %v3912
        %v4071 = vadd.f32 %v3681, %v3917
        %v4072 = vadd.f32 %v3682, %v3922
        %v4073 = vadd.f32 %v3683, %v3927
        %v4074 = vadd.f32 %v3684, %v3932
        %v4075 = vadd.f32 %v3685, %v3937
        %v4076 = vadd.f32 %v3686, %v3942
        %v4077 = vadd.f32 %v3687, %v3947
        %v4078 = vadd.f32 %v3688, %v3952
        %v4079 = vadd.f32 %v3689, %v3957
        %v4080 = vadd.f32 %v3690, %v3962
        %v4081 = vadd.f32 %v3691, %v3967
        %v4082 = vadd.f32 %v3692, %v3972
        %v4083 = vadd.f32 %v3693, %v3977
        %v4084 = vadd.f32 %v3694, %v3982
        %v4085 = vadd.f32 %v3695, %v3987
        %v4086 = vadd.f32 %v3696, %v3992
        %v4087 = vadd.f32 %v3697, %v3997
        %v4088 = vadd.f32 %v3698, %v4002
        %v4089 = vadd.f32 %v3699, %v4007
        %v4090 = vadd.f32 %v3700, %v4012
        %v4091 = vadd.f32 %v3701, %v4017
        %v4092 = vadd.f32 %v3702, %v4022
        %v4093 = vadd.f32 %v3703, %v4027
        %v4094 = vadd.f32 %v3704, %v4032
        %v4095 = vadd.f32 %v3705, %v4037
        %v4096 = vadd.f32 %v3706, %v4042
        %v4097 = vadd.f32 %v3707, %v4047
        %v4098 = vadd.f32 %v3708, %v4052
        %v4099 = vadd.f32 %v3709, %v4057
        %v4100 = vadd.f32 %v3710, %v4062
        %v4101 = vadd.f32 %v3711, %v4067
        %v4102 = vld [vmem:[%s275 + $0x22] sm:$0xff]
        %v4103 = vld [vmem:[%s275 + $0x2a] sm:$0xff]
        %v4104 = vld [vmem:[%s275 + $0x32] sm:$0xff]
        %v4105 = vld [vmem:[%s275 + $0x3a] sm:$0xff]
        %v4106 = vld [vmem:[%s275 + $0x42] sm:$0xff]
        %v4107 = vld [vmem:[%s275 + $0x4a] sm:$0xff]
        %v4108 = vld [vmem:[%s275 + $0x52] sm:$0xff]
        %v4109 = vld [vmem:[%s275 + $0x5a] sm:$0xff]
        %v4110 = vld [vmem:[%s275 + $0x62] sm:$0xff]
        %v4111 = vld [vmem:[%s275 + $0x6a] sm:$0xff]
        %v4112 = vld [vmem:[%s275 + $0x72] sm:$0xff]
        %v4113 = vld [vmem:[%s275 + $0x7a] sm:$0xff]
        %v4114 = vld [vmem:[%s275 + $0x82] sm:$0xff]
        %v4115 = vld [vmem:[%s275 + $0x8a] sm:$0xff]
        %v4116 = vld [vmem:[%s275 + $0x92] sm:$0xff]
        %v4117 = vld [vmem:[%s275 + $0x9a] sm:$0xff]
        %v4118 = vld [vmem:[%s275 + $0xa2] sm:$0xff]
        %v4119 = vld [vmem:[%s275 + $0xaa] sm:$0xff]
        %v4120 = vld [vmem:[%s275 + $0xb2] sm:$0xff]
        %v4121 = vld [vmem:[%s275 + $0xba] sm:$0xff]
        %v4122 = vld [vmem:[%s275 + $0xc2] sm:$0xff]
        %v4123 = vld [vmem:[%s275 + $0xca] sm:$0xff]
        %v4124 = vld [vmem:[%s275 + $0xd2] sm:$0xff]
        %v4125 = vld [vmem:[%s275 + $0xda] sm:$0xff]
        %v4126 = vld [vmem:[%s275 + $0xe2] sm:$0xff]
        %v4127 = vld [vmem:[%s275 + $0xea] sm:$0xff]
        %v4128 = vld [vmem:[%s275 + $0xf2] sm:$0xff]
        %v4129 = vld [vmem:[%s275 + $0xfa] sm:$0xff]
        %v4130 = vld [vmem:[%s275 + $0x102] sm:$0xff]
        %v4131 = vld [vmem:[%s275 + $0x10a] sm:$0xff]
        %v4132 = vld [vmem:[%s275 + $0x112] sm:$0xff]
        %v4133 = vld [vmem:[%s275 + $0x11a] sm:$0xff]
        %v4134 = vsel %vm1634, %v4102, 0.0
        %v4135 = vsel %vm1635, %v4103, 0.0
        %v4136 = vsel %vm1636, %v4104, 0.0
        %v4137 = vsel %vm1637, %v4105, 0.0
        %v4138 = vsel %vm1638, %v4106, 0.0
        %v4139 = vsel %vm1639, %v4107, 0.0
        %v4140 = vsel %vm1640, %v4108, 0.0
        %v4141 = vsel %vm1641, %v4109, 0.0
        %v4142 = vsel %vm1642, %v4110, 0.0
        %v4143 = vsel %vm1643, %v4111, 0.0
        %v4144 = vsel %vm1644, %v4112, 0.0
        %v4145 = vsel %vm1645, %v4113, 0.0
        %v4146 = vsel %vm1646, %v4114, 0.0
        %v4147 = vsel %vm1647, %v4115, 0.0
        %v4148 = vsel %vm1648, %v4116, 0.0
        %v4149 = vsel %vm1649, %v4117, 0.0
        %v4150 = vsel %vm1650, %v4118, 0.0
        %v4151 = vsel %vm1651, %v4119, 0.0
        %v4152 = vsel %vm1652, %v4120, 0.0
        %v4153 = vsel %vm1653, %v4121, 0.0
        %v4154 = vsel %vm1654, %v4122, 0.0
        %v4155 = vsel %vm1655, %v4123, 0.0
        %v4156 = vsel %vm1656, %v4124, 0.0
        %v4157 = vsel %vm1657, %v4125, 0.0
        %v4158 = vsel %vm1658, %v4126, 0.0
        %v4159 = vsel %vm1659, %v4127, 0.0
        %v4160 = vsel %vm1660, %v4128, 0.0
        %v4161 = vsel %vm1661, %v4129, 0.0
        %v4162 = vsel %vm1662, %v4130, 0.0
        %v4163 = vsel %vm1663, %v4131, 0.0
        %v4164 = vsel %vm1664, %v4132, 0.0
        %v4165 = vsel %vm1665, %v4133, 0.0
        %s4166 = scalar_lea.vmem %s1, 32
        %v4167 = vld [vmem:[%s4166] sm:$0x7]
        %v4169 = vsel %vm920, %v4134, 0
        %v4172 = vsel %vm920, %v4135, 0
        %v4175 = vsel %vm920, %v4136, 0
        %v4178 = vsel %vm920, %v4137, 0
        %v4181 = vsel %vm920, %v4138, 0
        %v4184 = vsel %vm920, %v4139, 0
        %v4187 = vsel %vm920, %v4140, 0
        %v4190 = vsel %vm920, %v4141, 0
        %v4193 = vsel %vm920, %v4142, 0
        %v4196 = vsel %vm920, %v4143, 0
        %v4199 = vsel %vm920, %v4144, 0
        %v4202 = vsel %vm920, %v4145, 0
        %v4205 = vsel %vm920, %v4146, 0
        %v4208 = vsel %vm920, %v4147, 0
        %v4211 = vsel %vm920, %v4148, 0
        %v4214 = vsel %vm920, %v4149, 0
        %v4217 = vsel %vm920, %v4150, 0
        %v4220 = vsel %vm920, %v4151, 0
        %v4223 = vsel %vm920, %v4152, 0
        %v4226 = vsel %vm920, %v4153, 0
        %v4229 = vsel %vm920, %v4154, 0
        %v4232 = vsel %vm920, %v4155, 0
        %v4235 = vsel %vm920, %v4156, 0
        %v4238 = vsel %vm920, %v4157, 0
        %v4241 = vsel %vm920, %v4158, 0
        %v4244 = vsel %vm920, %v4159, 0
        %v4247 = vsel %vm920, %v4160, 0
        %v4250 = vsel %vm920, %v4161, 0
        %v4253 = vsel %vm920, %v4162, 0
        %v4256 = vsel %vm920, %v4163, 0
        %v4259 = vsel %vm920, %v4164, 0
        %v4262 = vsel %vm920, %v4165, 0
        %v4265 = vsel %vm1017, %v4167, 0
        %4267 = vmatprep.subr.mxu0 0.0
        %4268 = vmatpush1.msra.mxu0 %v4265
        %4269 = vmatprep.subr.mxu0 0.0
        %4270 = vmatpush1.msra.mxu0 0.0
        %4271 = vmatprep.subr.mxu0 0.0
        %4272 = vmatpush1.msra.mxu0 0.0
        %4273 = vmatprep.subr.mxu0 0.0
        %4274 = vmatpush1.msra.mxu0 0.0
        %4275 = vmatprep.subr.mxu0 0.0
        %4276 = vmatpush1.msra.mxu0 0.0
        %4277 = vmatprep.subr.mxu0 0.0
        %4278 = vmatpush1.msra.mxu0 0.0
        %4279 = vmatprep.subr.mxu0 0.0
        %4280 = vmatpush1.msra.mxu0 0.0
        %4281 = vmatprep.subr.mxu0 0.0
        %4282 = vmatpush1.msra.mxu0 0.0
        %4283 = vmatprep.subr.mxu0 0.0
        %4284 = vmatpush1.msra.mxu0 0.0
        %4285 = vmatprep.subr.mxu0 0.0
        %4286 = vmatpush1.msra.mxu0 0.0
        %4287 = vmatprep.subr.mxu0 0.0
        %4288 = vmatpush1.msra.mxu0 0.0
        %4289 = vmatprep.subr.mxu0 0.0
        %4290 = vmatpush1.msra.mxu0 0.0
        %4291 = vmatprep.subr.mxu0 0.0
        %4292 = vmatpush1.msra.mxu0 0.0
        %4293 = vmatprep.subr.mxu0 0.0
        %4294 = vmatpush1.msra.mxu0 0.0
        %4295 = vmatprep.subr.mxu0 0.0
        %4296 = vmatpush1.msra.mxu0 0.0
        %4297 = vmatprep.subr.mxu0 0.0
        %4298 = vmatpush1.msra.mxu0 0.0
        %4299 = vmatprep.subr.mxu0 0.0
        %4300 = vmatpush1.msra.mxu0 0.0
        %4301 = vmatprep.subr.mxu0 0.0
        %4302 = vmatpush1.msra.mxu0 0.0
        %4303 = vmatprep.subr.mxu0 0.0
        %4304 = vmatpush1.msra.mxu0 0.0
        %4305 = vmatprep.subr.mxu0 0.0
        %4306 = vmatpush1.msra.mxu0 0.0
        %4307 = vmatprep.subr.mxu0 0.0
        %4308 = vmatpush1.msra.mxu0 0.0
        %4309 = vmatprep.subr.mxu0 0.0
        %4310 = vmatpush1.msra.mxu0 0.0
        %4311 = vmatprep.subr.mxu0 0.0
        %4312 = vmatpush1.msra.mxu0 0.0
        %4313 = vmatprep.subr.mxu0 0.0
        %4314 = vmatpush1.msra.mxu0 0.0
        %4315 = vmatprep.subr.mxu0 0.0
        %4316 = vmatpush1.msra.mxu0 0.0
        %4317 = vmatprep.subr.mxu0 0.0
        %4318 = vmatpush1.msra.mxu0 0.0
        %4319 = vmatprep.subr.mxu0 0.0
        %4320 = vmatpush1.msra.mxu0 0.0
        %4321 = vmatprep.subr.mxu0 0.0
        %4322 = vmatpush1.msra.mxu0 0.0
        %4323 = vmatprep.subr.mxu0 0.0
        %4324 = vmatpush1.msra.mxu0 0.0
        %4325 = vmatprep.subr.mxu0 0.0
        %4326 = vmatpush1.msra.mxu0 0.0
        %4327 = vmatprep.subr.mxu0 0.0
        %4328 = vmatpush1.msra.mxu0 0.0
        %4329 = vmatprep.subr.mxu0 0.0
        %4330 = vmatpush1.msra.mxu0 0.0
        %4331 = vmatprep.mubr.f32.mxu0 0.0
        %4332 = vmatmul.mubr.f32.gmra.mrb[0].mxu0 %v4169
        %v4333 = vpop.f32.mrb[0].mxu0
        %v4334 = vadd.f32 0.0, %v4333
        %v4335 = vpop.f32.mrb[0].mxu0
        %4336 = vmatprep.mubr.f32.mxu0 0.0
        %4337 = vmatmul.mubr.f32.gmra.mrb[0].mxu0 %v4172
        %v4338 = vpop.f32.mrb[0].mxu0
        %v4339 = vadd.f32 0.0, %v4338
        %v4340 = vpop.f32.mrb[0].mxu0
        %4341 = vmatprep.mubr.f32.mxu0 0.0
        %4342 = vmatmul.mubr.f32.gmra.mrb[0].mxu0 %v4175
        %v4343 = vpop.f32.mrb[0].mxu0
        %v4344 = vadd.f32 0.0, %v4343
        %v4345 = vpop.f32.mrb[0].mxu0
        %4346 = vmatprep.mubr.f32.mxu0 0.0
        %4347 = vmatmul.mubr.f32.gmra.mrb[0].mxu0 %v4178
        %v4348 = vpop.f32.mrb[0].mxu0
        %v4349 = vadd.f32 0.0, %v4348
        %v4350 = vpop.f32.mrb[0].mxu0
        %4351 = vmatprep.mubr.f32.mxu0 0.0
        %4352 = vmatmul.mubr.f32.gmra.mrb[0].mxu0 %v4181
        %v4353 = vpop.f32.mrb[0].mxu0
        %v4354 = vadd.f32 0.0, %v4353
        %v4355 = vpop.f32.mrb[0].mxu0
        %4356 = vmatprep.mubr.f32.mxu0 0.0
        %4357 = vmatmul.mubr.f32.gmra.mrb[0].mxu0 %v4184
        %v4358 = vpop.f32.mrb[0].mxu0
        %v4359 = vadd.f32 0.0, %v4358
        %v4360 = vpop.f32.mrb[0].mxu0
        %4361 = vmatprep.mubr.f32.mxu0 0.0
        %4362 = vmatmul.mubr.f32.gmra.mrb[0].mxu0 %v4187
        %v4363 = vpop.f32.mrb[0].mxu0
        %v4364 = vadd.f32 0.0, %v4363
        %v4365 = vpop.f32.mrb[0].mxu0
        %4366 = vmatprep.mubr.f32.mxu0 0.0
        %4367 = vmatmul.mubr.f32.gmra.mrb[0].mxu0 %v4190
        %v4368 = vpop.f32.mrb[0].mxu0
        %v4369 = vadd.f32 0.0, %v4368
        %v4370 = vpop.f32.mrb[0].mxu0
        %4371 = vmatprep.mubr.f32.mxu0 0.0
        %4372 = vmatmul.mubr.f32.gmra.mrb[0].mxu0 %v4193
        %v4373 = vpop.f32.mrb[0].mxu0
        %v4374 = vadd.f32 0.0, %v4373
        %v4375 = vpop.f32.mrb[0].mxu0
        %4376 = vmatprep.mubr.f32.mxu0 0.0
        %4377 = vmatmul.mubr.f32.gmra.mrb[0].mxu0 %v4196
        %v4378 = vpop.f32.mrb[0].mxu0
        %v4379 = vadd.f32 0.0, %v4378
        %v4380 = vpop.f32.mrb[0].mxu0
        %4381 = vmatprep.mubr.f32.mxu0 0.0
        %4382 = vmatmul.mubr.f32.gmra.mrb[0].mxu0 %v4199
        %v4383 = vpop.f32.mrb[0].mxu0
        %v4384 = vadd.f32 0.0, %v4383
        %v4385 = vpop.f32.mrb[0].mxu0
        %4386 = vmatprep.mubr.f32.mxu0 0.0
        %4387 = vmatmul.mubr.f32.gmra.mrb[0].mxu0 %v4202
        %v4388 = vpop.f32.mrb[0].mxu0
        %v4389 = vadd.f32 0.0, %v4388
        %v4390 = vpop.f32.mrb[0].mxu0
        %4391 = vmatprep.mubr.f32.mxu0 0.0
        %4392 = vmatmul.mubr.f32.gmra.mrb[0].mxu0 %v4205
        %v4393 = vpop.f32.mrb[0].mxu0
        %v4394 = vadd.f32 0.0, %v4393
        %v4395 = vpop.f32.mrb[0].mxu0
        %4396 = vmatprep.mubr.f32.mxu0 0.0
        %4397 = vmatmul.mubr.f32.gmra.mrb[0].mxu0 %v4208
        %v4398 = vpop.f32.mrb[0].mxu0
        %v4399 = vadd.f32 0.0, %v4398
        %v4400 = vpop.f32.mrb[0].mxu0
        %4401 = vmatprep.mubr.f32.mxu0 0.0
        %4402 = vmatmul.mubr.f32.gmra.mrb[0].mxu0 %v4211
        %v4403 = vpop.f32.mrb[0].mxu0
        %v4404 = vadd.f32 0.0, %v4403
        %v4405 = vpop.f32.mrb[0].mxu0
        %4406 = vmatprep.mubr.f32.mxu0 0.0
        %4407 = vmatmul.mubr.f32.gmra.mrb[0].mxu0 %v4214
        %v4408 = vpop.f32.mrb[0].mxu0
        %v4409 = vadd.f32 0.0, %v4408
        %v4410 = vpop.f32.mrb[0].mxu0
        %4411 = vmatprep.mubr.f32.mxu0 0.0
        %4412 = vmatmul.mubr.f32.gmra.mrb[0].mxu0 %v4217
        %v4413 = vpop.f32.mrb[0].mxu0
        %v4414 = vadd.f32 0.0, %v4413
        %v4415 = vpop.f32.mrb[0].mxu0
        %4416 = vmatprep.mubr.f32.mxu0 0.0
        %4417 = vmatmul.mubr.f32.gmra.mrb[0].mxu0 %v4220
        %v4418 = vpop.f32.mrb[0].mxu0
        %v4419 = vadd.f32 0.0, %v4418
        %v4420 = vpop.f32.mrb[0].mxu0
        %4421 = vmatprep.mubr.f32.mxu0 0.0
        %4422 = vmatmul.mubr.f32.gmra.mrb[0].mxu0 %v4223
        %v4423 = vpop.f32.mrb[0].mxu0
        %v4424 = vadd.f32 0.0, %v4423
        %v4425 = vpop.f32.mrb[0].mxu0
        %4426 = vmatprep.mubr.f32.mxu0 0.0
        %4427 = vmatmul.mubr.f32.gmra.mrb[0].mxu0 %v4226
        %v4428 = vpop.f32.mrb[0].mxu0
        %v4429 = vadd.f32 0.0, %v4428
        %v4430 = vpop.f32.mrb[0].mxu0
        %4431 = vmatprep.mubr.f32.mxu0 0.0
        %4432 = vmatmul.mubr.f32.gmra.mrb[0].mxu0 %v4229
        %v4433 = vpop.f32.mrb[0].mxu0
        %v4434 = vadd.f32 0.0, %v4433
        %v4435 = vpop.f32.mrb[0].mxu0
        %4436 = vmatprep.mubr.f32.mxu0 0.0
        %4437 = vmatmul.mubr.f32.gmra.mrb[0].mxu0 %v4232
        %v4438 = vpop.f32.mrb[0].mxu0
        %v4439 = vadd.f32 0.0, %v4438
        %v4440 = vpop.f32.mrb[0].mxu0
        %4441 = vmatprep.mubr.f32.mxu0 0.0
        %4442 = vmatmul.mubr.f32.gmra.mrb[0].mxu0 %v4235
        %v4443 = vpop.f32.mrb[0].mxu0
        %v4444 = vadd.f32 0.0, %v4443
        %v4445 = vpop.f32.mrb[0].mxu0
        %4446 = vmatprep.mubr.f32.mxu0 0.0
        %4447 = vmatmul.mubr.f32.gmra.mrb[0].mxu0 %v4238
        %v4448 = vpop.f32.mrb[0].mxu0
        %v4449 = vadd.f32 0.0, %v4448
        %v4450 = vpop.f32.mrb[0].mxu0
        %4451 = vmatprep.mubr.f32.mxu0 0.0
        %4452 = vmatmul.mubr.f32.gmra.mrb[0].mxu0 %v4241
        %v4453 = vpop.f32.mrb[0].mxu0
        %v4454 = vadd.f32 0.0, %v4453
        %v4455 = vpop.f32.mrb[0].mxu0
        %4456 = vmatprep.mubr.f32.mxu0 0.0
        %4457 = vmatmul.mubr.f32.gmra.mrb[0].mxu0 %v4244
        %v4458 = vpop.f32.mrb[0].mxu0
        %v4459 = vadd.f32 0.0, %v4458
        %v4460 = vpop.f32.mrb[0].mxu0
        %4461 = vmatprep.mubr.f32.mxu0 0.0
        %4462 = vmatmul.mubr.f32.gmra.mrb[0].mxu0 %v4247
        %v4463 = vpop.f32.mrb[0].mxu0
        %v4464 = vadd.f32 0.0, %v4463
        %v4465 = vpop.f32.mrb[0].mxu0
        %4466 = vmatprep.mubr.f32.mxu0 0.0
        %4467 = vmatmul.mubr.f32.gmra.mrb[0].mxu0 %v4250
        %v4468 = vpop.f32.mrb[0].mxu0
        %v4469 = vadd.f32 0.0, %v4468
        %v4470 = vpop.f32.mrb[0].mxu0
        %4471 = vmatprep.mubr.f32.mxu0 0.0
        %4472 = vmatmul.mubr.f32.gmra.mrb[0].mxu0 %v4253
        %v4473 = vpop.f32.mrb[0].mxu0
        %v4474 = vadd.f32 0.0, %v4473
        %v4475 = vpop.f32.mrb[0].mxu0
        %4476 = vmatprep.mubr.f32.mxu0 0.0
        %4477 = vmatmul.mubr.f32.gmra.mrb[0].mxu0 %v4256
        %v4478 = vpop.f32.mrb[0].mxu0
        %v4479 = vadd.f32 0.0, %v4478
        %v4480 = vpop.f32.mrb[0].mxu0
        %4481 = vmatprep.mubr.f32.mxu0 0.0
        %4482 = vmatmul.mubr.f32.gmra.mrb[0].mxu0 %v4259
        %v4483 = vpop.f32.mrb[0].mxu0
        %v4484 = vadd.f32 0.0, %v4483
        %v4485 = vpop.f32.mrb[0].mxu0
        %4486 = vmatprep.mubr.f32.mxu0 0.0
        %4487 = vmatmul.mubr.f32.gmra.mrb[0].mxu0 %v4262
        %v4488 = vpop.f32.mrb[0].mxu0
        %v4489 = vadd.f32 0.0, %v4488
        %v4490 = vpop.f32.mrb[0].mxu0
        %4491 = vdwg.mxu0
        %v4492 = vadd.f32 %v4070, %v4334
        %v4493 = vadd.f32 %v4071, %v4339
        %v4494 = vadd.f32 %v4072, %v4344
        %v4495 = vadd.f32 %v4073, %v4349
        %v4496 = vadd.f32 %v4074, %v4354
        %v4497 = vadd.f32 %v4075, %v4359
        %v4498 = vadd.f32 %v4076, %v4364
        %v4499 = vadd.f32 %v4077, %v4369
        %v4500 = vadd.f32 %v4078, %v4374
        %v4501 = vadd.f32 %v4079, %v4379
        %v4502 = vadd.f32 %v4080, %v4384
        %v4503 = vadd.f32 %v4081, %v4389
        %v4504 = vadd.f32 %v4082, %v4394
        %v4505 = vadd.f32 %v4083, %v4399
        %v4506 = vadd.f32 %v4084, %v4404
        %v4507 = vadd.f32 %v4085, %v4409
        %v4508 = vadd.f32 %v4086, %v4414
        %v4509 = vadd.f32 %v4087, %v4419
        %v4510 = vadd.f32 %v4088, %v4424
        %v4511 = vadd.f32 %v4089, %v4429
        %v4512 = vadd.f32 %v4090, %v4434
        %v4513 = vadd.f32 %v4091, %v4439
        %v4514 = vadd.f32 %v4092, %v4444
        %v4515 = vadd.f32 %v4093, %v4449
        %v4516 = vadd.f32 %v4094, %v4454
        %v4517 = vadd.f32 %v4095, %v4459
        %v4518 = vadd.f32 %v4096, %v4464
        %v4519 = vadd.f32 %v4097, %v4469
        %v4520 = vadd.f32 %v4098, %v4474
        %v4521 = vadd.f32 %v4099, %v4479
        %v4522 = vadd.f32 %v4100, %v4484
        %v4523 = vadd.f32 %v4101, %v4489
        %v4524 = vld [vmem:[%s2] sm:$0x1]
        %v4526 = vlaneseq
        %v4527 = vshrl.u32 %v4526, 7
        %v4528 = vsub.s32 0, %v4527
        %v4529 = vrot.slane %v4524, %v4528
        %v4531 = vadd.f32 %v4492, %v4529
        %v4532 = vadd.f32 %v4493, %v4529
        %v4533 = vadd.f32 %v4494, %v4529
        %v4534 = vadd.f32 %v4495, %v4529
        %v4535 = vadd.f32 %v4496, %v4529
        %v4536 = vadd.f32 %v4497, %v4529
        %v4537 = vadd.f32 %v4498, %v4529
        %v4538 = vadd.f32 %v4499, %v4529
        %v4539 = vadd.f32 %v4500, %v4529
        %v4540 = vadd.f32 %v4501, %v4529
        %v4541 = vadd.f32 %v4502, %v4529
        %v4542 = vadd.f32 %v4503, %v4529
        %v4543 = vadd.f32 %v4504, %v4529
        %v4544 = vadd.f32 %v4505, %v4529
        %v4545 = vadd.f32 %v4506, %v4529
        %v4546 = vadd.f32 %v4507, %v4529
        %v4547 = vadd.f32 %v4508, %v4529
        %v4548 = vadd.f32 %v4509, %v4529
        %v4549 = vadd.f32 %v4510, %v4529
        %v4550 = vadd.f32 %v4511, %v4529
        %v4551 = vadd.f32 %v4512, %v4529
        %v4552 = vadd.f32 %v4513, %v4529
        %v4553 = vadd.f32 %v4514, %v4529
        %v4554 = vadd.f32 %v4515, %v4529
        %v4555 = vadd.f32 %v4516, %v4529
        %v4556 = vadd.f32 %v4517, %v4529
        %v4557 = vadd.f32 %v4518, %v4529
        %v4558 = vadd.f32 %v4519, %v4529
        %v4559 = vadd.f32 %v4520, %v4529
        %v4560 = vadd.f32 %v4521, %v4529
        %v4561 = vadd.f32 %v4522, %v4529
        %v4562 = vadd.f32 %v4523, %v4529
        %v4563 = vmax.f32 %v4531, 0.0
        %v4564 = vmax.f32 %v4532, 0.0
        %v4565 = vmax.f32 %v4533, 0.0
        %v4566 = vmax.f32 %v4534, 0.0
        %v4567 = vmax.f32 %v4535, 0.0
        %v4568 = vmax.f32 %v4536, 0.0
        %v4569 = vmax.f32 %v4537, 0.0
        %v4570 = vmax.f32 %v4538, 0.0
        %v4571 = vmax.f32 %v4539, 0.0
        %v4572 = vmax.f32 %v4540, 0.0
        %v4573 = vmax.f32 %v4541, 0.0
        %v4574 = vmax.f32 %v4542, 0.0
        %v4575 = vmax.f32 %v4543, 0.0
        %v4576 = vmax.f32 %v4544, 0.0
        %v4577 = vmax.f32 %v4545, 0.0
        %v4578 = vmax.f32 %v4546, 0.0
        %v4579 = vmax.f32 %v4547, 0.0
        %v4580 = vmax.f32 %v4548, 0.0
        %v4581 = vmax.f32 %v4549, 0.0
        %v4582 = vmax.f32 %v4550, 0.0
        %v4583 = vmax.f32 %v4551, 0.0
        %v4584 = vmax.f32 %v4552, 0.0
        %v4585 = vmax.f32 %v4553, 0.0
        %v4586 = vmax.f32 %v4554, 0.0
        %v4587 = vmax.f32 %v4555, 0.0
        %v4588 = vmax.f32 %v4556, 0.0
        %v4589 = vmax.f32 %v4557, 0.0
        %v4590 = vmax.f32 %v4558, 0.0
        %v4591 = vmax.f32 %v4559, 0.0
        %v4592 = vmax.f32 %v4560, 0.0
        %v4593 = vmax.f32 %v4561, 0.0
        %v4594 = vmax.f32 %v4562, 0.0
        %vm4595 = vcmask 97280
        %4596 = vst.msk [vmem:[#allocation2] sm:$0xff] %vm4595, %v4563
        %4597 = vst.msk [vmem:[#allocation2 + $0x8] sm:$0xff] %vm4595, %v4564
        %4598 = vst.msk [vmem:[#allocation2 + $0x10] sm:$0xff] %vm4595, %v4565
        %4599 = vst.msk [vmem:[#allocation2 + $0x18] sm:$0xff] %vm4595, %v4566
        %4600 = vst.msk [vmem:[#allocation2 + $0x20] sm:$0xff] %vm4595, %v4567
        %4601 = vst.msk [vmem:[#allocation2 + $0x28] sm:$0xff] %vm4595, %v4568
        %4602 = vst.msk [vmem:[#allocation2 + $0x30] sm:$0xff] %vm4595, %v4569
        %4603 = vst.msk [vmem:[#allocation2 + $0x38] sm:$0xff] %vm4595, %v4570
        %4604 = vst.msk [vmem:[#allocation2 + $0x40] sm:$0xff] %vm4595, %v4571
        %4605 = vst.msk [vmem:[#allocation2 + $0x48] sm:$0xff] %vm4595, %v4572
        %4606 = vst.msk [vmem:[#allocation2 + $0x50] sm:$0xff] %vm4595, %v4573
        %4607 = vst.msk [vmem:[#allocation2 + $0x58] sm:$0xff] %vm4595, %v4574
        %4608 = vst.msk [vmem:[#allocation2 + $0x60] sm:$0xff] %vm4595, %v4575
        %4609 = vst.msk [vmem:[#allocation2 + $0x68] sm:$0xff] %vm4595, %v4576
        %4610 = vst.msk [vmem:[#allocation2 + $0x70] sm:$0xff] %vm4595, %v4577
        %4611 = vst.msk [vmem:[#allocation2 + $0x78] sm:$0xff] %vm4595, %v4578
        %4612 = vst.msk [vmem:[#allocation2 + $0x80] sm:$0xff] %vm4595, %v4579
        %4613 = vst.msk [vmem:[#allocation2 + $0x88] sm:$0xff] %vm4595, %v4580
        %4614 = vst.msk [vmem:[#allocation2 + $0x90] sm:$0xff] %vm4595, %v4581
        %4615 = vst.msk [vmem:[#allocation2 + $0x98] sm:$0xff] %vm4595, %v4582
        %4616 = vst.msk [vmem:[#allocation2 + $0xa0] sm:$0xff] %vm4595, %v4583
        %4617 = vst.msk [vmem:[#allocation2 + $0xa8] sm:$0xff] %vm4595, %v4584
        %4618 = vst.msk [vmem:[#allocation2 + $0xb0] sm:$0xff] %vm4595, %v4585
        %4619 = vst.msk [vmem:[#allocation2 + $0xb8] sm:$0xff] %vm4595, %v4586
        %4620 = vst.msk [vmem:[#allocation2 + $0xc0] sm:$0xff] %vm4595, %v4587
        %4621 = vst.msk [vmem:[#allocation2 + $0xc8] sm:$0xff] %vm4595, %v4588
        %4622 = vst.msk [vmem:[#allocation2 + $0xd0] sm:$0xff] %vm4595, %v4589
        %4623 = vst.msk [vmem:[#allocation2 + $0xd8] sm:$0xff] %vm4595, %v4590
        %4624 = vst.msk [vmem:[#allocation2 + $0xe0] sm:$0xff] %vm4595, %v4591
        %4625 = vst.msk [vmem:[#allocation2 + $0xe8] sm:$0xff] %vm4595, %v4592
        %4626 = vst.msk [vmem:[#allocation2 + $0xf0] sm:$0xff] %vm4595, %v4593
        %4627 = vst.msk [vmem:[#allocation2 + $0xf8] sm:$0xff] %vm4595, %v4594
        %v4628 = vld [vmem:[#allocation2] ss:$2 sm:$0xff]
        %s4629 = scalar_lea.vmem [#allocation2], 16
        %v4630 = vld [vmem:[%s4629] ss:$2 sm:$0xff]
        %s4631 = scalar_lea.vmem [#allocation2], 32
        %v4632 = vld [vmem:[%s4631] ss:$2 sm:$0xff]
        %s4633 = scalar_lea.vmem [#allocation2], 48
        %v4634 = vld [vmem:[%s4633] ss:$2 sm:$0xff]
        %s4635 = scalar_lea.vmem [#allocation2], 64
        %v4636 = vld [vmem:[%s4635] ss:$2 sm:$0xff]
        %s4637 = scalar_lea.vmem [#allocation2], 80
        %v4638 = vld [vmem:[%s4637] ss:$2 sm:$0xff]
        %s4639 = scalar_lea.vmem [#allocation2], 96
        %v4640 = vld [vmem:[%s4639] ss:$2 sm:$0xff]
        %s4641 = scalar_lea.vmem [#allocation2], 112
        %v4642 = vld [vmem:[%s4641] ss:$2 sm:$0xff]
        %s4643 = scalar_lea.vmem [#allocation2], 128
        %v4644 = vld [vmem:[%s4643] ss:$2 sm:$0xff]
        %s4645 = scalar_lea.vmem [#allocation2], 144
        %v4646 = vld [vmem:[%s4645] ss:$2 sm:$0xff]
        %s4647 = scalar_lea.vmem [#allocation2], 160
        %v4648 = vld [vmem:[%s4647] ss:$2 sm:$0xff]
        %s4649 = scalar_lea.vmem [#allocation2], 176
        %v4650 = vld [vmem:[%s4649] ss:$2 sm:$0xff]
        %s4651 = scalar_lea.vmem [#allocation2], 192
        %v4652 = vld [vmem:[%s4651] ss:$2 sm:$0xff]
        %s4653 = scalar_lea.vmem [#allocation2], 208
        %v4654 = vld [vmem:[%s4653] ss:$2 sm:$0xff]
        %s4655 = scalar_lea.vmem [#allocation2], 224
        %v4656 = vld [vmem:[%s4655] ss:$2 sm:$0xff]
        %s4657 = scalar_lea.vmem [#allocation2], 240
        %v4658 = vld [vmem:[%s4657] ss:$2 sm:$0xff]
        %s4659 = scalar_lea.vmem [#allocation2], 1
        %v4660 = vld [vmem:[%s4659] ss:$2 sm:$0xff]
        %s4661 = scalar_lea.vmem [#allocation2], 17
        %v4662 = vld [vmem:[%s4661] ss:$2 sm:$0xff]
        %s4663 = scalar_lea.vmem [#allocation2], 33
        %v4664 = vld [vmem:[%s4663] ss:$2 sm:$0xff]
        %s4665 = scalar_lea.vmem [#allocation2], 49
        %v4666 = vld [vmem:[%s4665] ss:$2 sm:$0xff]
        %s4667 = scalar_lea.vmem [#allocation2], 65
        %v4668 = vld [vmem:[%s4667] ss:$2 sm:$0xff]
        %s4669 = scalar_lea.vmem [#allocation2], 81
        %v4670 = vld [vmem:[%s4669] ss:$2 sm:$0xff]
        %s4671 = scalar_lea.vmem [#allocation2], 97
        %v4672 = vld [vmem:[%s4671] ss:$2 sm:$0xff]
        %s4673 = scalar_lea.vmem [#allocation2], 113
        %v4674 = vld [vmem:[%s4673] ss:$2 sm:$0xff]
        %s4675 = scalar_lea.vmem [#allocation2], 129
        %v4676 = vld [vmem:[%s4675] ss:$2 sm:$0xff]
        %s4677 = scalar_lea.vmem [#allocation2], 145
        %v4678 = vld [vmem:[%s4677] ss:$2 sm:$0xff]
        %s4679 = scalar_lea.vmem [#allocation2], 161
        %v4680 = vld [vmem:[%s4679] ss:$2 sm:$0xff]
        %s4681 = scalar_lea.vmem [#allocation2], 177
        %v4682 = vld [vmem:[%s4681] ss:$2 sm:$0xff]
        %s4683 = scalar_lea.vmem [#allocation2], 193
        %v4684 = vld [vmem:[%s4683] ss:$2 sm:$0xff]
        %s4685 = scalar_lea.vmem [#allocation2], 209
        %v4686 = vld [vmem:[%s4685] ss:$2 sm:$0xff]
        %s4687 = scalar_lea.vmem [#allocation2], 225
        %v4688 = vld [vmem:[%s4687] ss:$2 sm:$0xff]
        %s4689 = scalar_lea.vmem [#allocation2], 241
        %v4690 = vld [vmem:[%s4689] ss:$2 sm:$0xff]
        %v4691 = vmax.f32 %v4628, %v4660
        %v4692 = vmax.f32 %v4630, %v4662
        %v4693 = vmax.f32 %v4632, %v4664
        %v4694 = vmax.f32 %v4634, %v4666
        %v4695 = vmax.f32 %v4636, %v4668
        %v4696 = vmax.f32 %v4638, %v4670
        %v4697 = vmax.f32 %v4640, %v4672
        %v4698 = vmax.f32 %v4642, %v4674
        %v4699 = vmax.f32 %v4644, %v4676
        %v4700 = vmax.f32 %v4646, %v4678
        %v4701 = vmax.f32 %v4648, %v4680
        %v4702 = vmax.f32 %v4650, %v4682
        %v4703 = vmax.f32 %v4652, %v4684
        %v4704 = vmax.f32 %v4654, %v4686
        %v4705 = vmax.f32 %v4656, %v4688
        %v4706 = vmax.f32 %v4658, %v4690
        %v4707 = vmax.f32 %v4691, %v4692
        %v4708 = vmax.f32 %v4693, %v4694
        %v4709 = vmax.f32 %v4695, %v4696
        %v4710 = vmax.f32 %v4697, %v4698
        %v4711 = vmax.f32 %v4699, %v4700
        %v4712 = vmax.f32 %v4701, %v4702
        %v4713 = vmax.f32 %v4703, %v4704
        %v4714 = vmax.f32 %v4705, %v4706
        %4715 = vst.msk [vmem:[#allocation3] sm:$0xff] %vm4595, 0.0
        %4716 = vst.msk [vmem:[#allocation3 + $0x8] sm:$0xff] %vm4595, 0.0
        %4717 = vst.msk [vmem:[#allocation3 + $0x50] sm:$0xff] %vm4595, 0.0
        %4718 = vst.msk [vmem:[#allocation3 + $0x58] sm:$0xff] %vm4595, 0.0
        %4719 = vst.msk [vmem:[#allocation3 + $0x10] sm:$0xff] %vm4595, %v4707
        %4720 = vst.msk [vmem:[#allocation3 + $0x18] sm:$0xff] %vm4595, %v4708
        %4721 = vst.msk [vmem:[#allocation3 + $0x20] sm:$0xff] %vm4595, %v4709
        %4722 = vst.msk [vmem:[#allocation3 + $0x28] sm:$0xff] %vm4595, %v4710
        %4723 = vst.msk [vmem:[#allocation3 + $0x30] sm:$0xff] %vm4595, %v4711
        %4724 = vst.msk [vmem:[#allocation3 + $0x38] sm:$0xff] %vm4595, %v4712
        %4725 = vst.msk [vmem:[#allocation3 + $0x40] sm:$0xff] %vm4595, %v4713
        %4726 = vst.msk [vmem:[#allocation3 + $0x48] sm:$0xff] %vm4595, %v4714
        %vm4727 = vcmp.lt.s32.totalorder %v277, 0
        %v4728 = vsub.s32 0, %v277
        %v4729 = vsel %vm4727, %v4728, %v277
        %v4730 = vshrl.u32 %v4729, 3
        %v4731 = vand.u32 %v4729, 7
        %v4732 = vsub.s32 0, %v4731
        %v4733 = vsel %vm4727, %v4732, %v4731
        %vm4734 = vcmp.lt.s32.totalorder %v278, 0
        %v4735 = vsub.s32 0, %v278
        %v4736 = vsel %vm4734, %v4735, %v278
        %v4737 = vshrl.u32 %v4736, 3
        %v4738 = vand.u32 %v4736, 7
        %v4739 = vsub.s32 0, %v4738
        %v4740 = vsel %vm4734, %v4739, %v4738
        %vm4741 = vcmp.lt.s32.totalorder %v279, 0
        %v4742 = vsub.s32 0, %v279
        %v4743 = vsel %vm4741, %v4742, %v279
        %v4744 = vshrl.u32 %v4743, 3
        %v4745 = vand.u32 %v4743, 7
        %v4746 = vsub.s32 0, %v4745
        %v4747 = vsel %vm4741, %v4746, %v4745
        %vm4748 = vcmp.lt.s32.totalorder %v280, 0
        %v4749 = vsub.s32 0, %v280
        %v4750 = vsel %vm4748, %v4749, %v280
        %v4751 = vshrl.u32 %v4750, 3
        %v4752 = vand.u32 %v4750, 7
        %v4753 = vsub.s32 0, %v4752
        %v4754 = vsel %vm4748, %v4753, %v4752
        %vm4755 = vcmp.lt.s32.totalorder %v281, 0
        %v4756 = vsub.s32 0, %v281
        %v4757 = vsel %vm4755, %v4756, %v281
        %v4758 = vshrl.u32 %v4757, 3
        %v4759 = vand.u32 %v4757, 7
        %v4760 = vsub.s32 0, %v4759
        %v4761 = vsel %vm4755, %v4760, %v4759
        %vm4762 = vcmp.lt.s32.totalorder %v282, 0
        %v4763 = vsub.s32 0, %v282
        %v4764 = vsel %vm4762, %v4763, %v282
        %v4765 = vshrl.u32 %v4764, 3
        %v4766 = vand.u32 %v4764, 7
        %v4767 = vsub.s32 0, %v4766
        %v4768 = vsel %vm4762, %v4767, %v4766
        %vm4769 = vcmp.lt.s32.totalorder %v283, 0
        %v4770 = vsub.s32 0, %v283
        %v4771 = vsel %vm4769, %v4770, %v283
        %v4772 = vshrl.u32 %v4771, 3
        %v4773 = vand.u32 %v4771, 7
        %v4774 = vsub.s32 0, %v4773
        %v4775 = vsel %vm4769, %v4774, %v4773
        %vm4776 = vcmp.lt.s32.totalorder %v284, 0
        %v4777 = vsub.s32 0, %v284
        %v4778 = vsel %vm4776, %v4777, %v284
        %v4779 = vshrl.u32 %v4778, 3
        %v4780 = vand.u32 %v4778, 7
        %v4781 = vsub.s32 0, %v4780
        %v4782 = vsel %vm4776, %v4781, %v4780
        %vm4783 = vcmp.ne.s32.totalorder %v4733, 0
        %vm4784 = vcmp.ne.s32.totalorder %v4740, 0
        %vm4785 = vcmp.ne.s32.totalorder %v4747, 0
        %vm4786 = vcmp.ne.s32.totalorder %v4754, 0
        %vm4787 = vcmp.ne.s32.totalorder %v4761, 0
        %vm4788 = vcmp.ne.s32.totalorder %v4768, 0
        %vm4789 = vcmp.ne.s32.totalorder %v4775, 0
        %vm4790 = vcmp.ne.s32.totalorder %v4782, 0
        %vm4791 = vcmp.lt.s32.totalorder %v4733, 0
        %vm4792 = vcmp.lt.s32.totalorder %v4740, 0
        %vm4793 = vcmp.lt.s32.totalorder %v4747, 0
        %vm4794 = vcmp.lt.s32.totalorder %v4754, 0
        %vm4795 = vcmp.lt.s32.totalorder %v4761, 0
        %vm4796 = vcmp.lt.s32.totalorder %v4768, 0
        %vm4797 = vcmp.lt.s32.totalorder %v4775, 0
        %vm4798 = vcmp.lt.s32.totalorder %v4782, 0
        %vm4799 = vmand %vm4791, %vm4783
        %vm4800 = vmand %vm4792, %vm4784
        %vm4801 = vmand %vm4793, %vm4785
        %vm4802 = vmand %vm4794, %vm4786
        %vm4803 = vmand %vm4795, %vm4787
        %vm4804 = vmand %vm4796, %vm4788
        %vm4805 = vmand %vm4797, %vm4789
        %vm4806 = vmand %vm4798, %vm4790
        %v4807 = vadd.s32 %v4733, 8
        %v4808 = vadd.s32 %v4740, 8
        %v4809 = vadd.s32 %v4747, 8
        %v4810 = vadd.s32 %v4754, 8
        %v4811 = vadd.s32 %v4761, 8
        %v4812 = vadd.s32 %v4768, 8
        %v4813 = vadd.s32 %v4775, 8
        %v4814 = vadd.s32 %v4782, 8
        %v4815 = vsel %vm4799, %v4807, %v4733
        %v4816 = vsel %vm4800, %v4808, %v4740
        %v4817 = vsel %vm4801, %v4809, %v4747
        %v4818 = vsel %vm4802, %v4810, %v4754
        %v4819 = vsel %vm4803, %v4811, %v4761
        %v4820 = vsel %vm4804, %v4812, %v4768
        %v4821 = vsel %vm4805, %v4813, %v4775
        %v4822 = vsel %vm4806, %v4814, %v4782
        %vm4823 = vcmp.ne.s32.totalorder %v4815, 0
        %vm4824 = vcmp.ne.s32.totalorder %v4816, 0
        %vm4825 = vcmp.ne.s32.totalorder %v4817, 0
        %vm4826 = vcmp.ne.s32.totalorder %v4818, 0
        %vm4827 = vcmp.ne.s32.totalorder %v4819, 0
        %vm4828 = vcmp.ne.s32.totalorder %v4820, 0
        %vm4829 = vcmp.ne.s32.totalorder %v4821, 0
        %vm4830 = vcmp.ne.s32.totalorder %v4822, 0
        %vm4831 = vcmp.ne.s32.totalorder %v4815, 7
        %vm4832 = vcmp.ne.s32.totalorder %v4816, 7
        %vm4833 = vcmp.ne.s32.totalorder %v4817, 7
        %vm4834 = vcmp.ne.s32.totalorder %v4818, 7
        %vm4835 = vcmp.ne.s32.totalorder %v4819, 7
        %vm4836 = vcmp.ne.s32.totalorder %v4820, 7
        %vm4837 = vcmp.ne.s32.totalorder %v4821, 7
        %vm4838 = vcmp.ne.s32.totalorder %v4822, 7
        %v4839 = vld [vmem:[#allocation3 + $0x7] sm:$0xff]
        %v4840 = vld [vmem:[#allocation3 + $0xf] sm:$0xff]
        %v4841 = vld [vmem:[#allocation3 + $0x17] sm:$0xff]
        %v4842 = vld [vmem:[#allocation3 + $0x1f] sm:$0xff]
        %v4843 = vld [vmem:[#allocation3 + $0x27] sm:$0xff]
        %v4844 = vld [vmem:[#allocation3 + $0x2f] sm:$0xff]
        %v4845 = vld [vmem:[#allocation3 + $0x37] sm:$0xff]
        %v4846 = vld [vmem:[#allocation3 + $0x3f] sm:$0xff]
        %v4847 = vsel %vm4823, 1, 0
        %v4848 = vsel %vm4824, 1, 0
        %v4849 = vsel %vm4825, 1, 0
        %v4850 = vsel %vm4826, 1, 0
        %v4851 = vsel %vm4827, 1, 0
        %v4852 = vsel %vm4828, 1, 0
        %v4853 = vsel %vm4829, 1, 0
        %v4854 = vsel %vm4830, 1, 0
        %vm4855 = vcmp.eq.s32.totalorder %v4847, 1
        %vm4856 = vcmp.eq.s32.totalorder %v4848, 1
        %vm4857 = vcmp.eq.s32.totalorder %v4849, 1
        %vm4858 = vcmp.eq.s32.totalorder %v4850, 1
        %vm4859 = vcmp.eq.s32.totalorder %v4851, 1
        %vm4860 = vcmp.eq.s32.totalorder %v4852, 1
        %vm4861 = vcmp.eq.s32.totalorder %v4853, 1
        %vm4862 = vcmp.eq.s32.totalorder %v4854, 1
        %v4863 = vsel %vm4855, %v4839, 0.0
        %v4864 = vsel %vm4856, %v4840, 0.0
        %v4865 = vsel %vm4857, %v4841, 0.0
        %v4866 = vsel %vm4858, %v4842, 0.0
        %v4867 = vsel %vm4859, %v4843, 0.0
        %v4868 = vsel %vm4860, %v4844, 0.0
        %v4869 = vsel %vm4861, %v4845, 0.0
        %v4870 = vsel %vm4862, %v4846, 0.0
        %v4871 = vld [vmem:[%s3] sm:$0xff]
        %v4872 = vld [vmem:[%s3 + $0x8] sm:$0xf]
        %v4873 = vld [vmem:[#allocation3 + $0x8] sm:$0xff]
        %v4874 = vld [vmem:[#allocation3 + $0x10] sm:$0xff]
        %v4875 = vld [vmem:[#allocation3 + $0x18] sm:$0xff]
        %v4876 = vld [vmem:[#allocation3 + $0x20] sm:$0xff]
        %v4877 = vld [vmem:[#allocation3 + $0x28] sm:$0xff]
        %v4878 = vld [vmem:[#allocation3 + $0x30] sm:$0xff]
        %v4879 = vld [vmem:[#allocation3 + $0x38] sm:$0xff]
        %v4880 = vld [vmem:[#allocation3 + $0x40] sm:$0xff]
        %s4881 = scalar_lea.vmem %s3, 16
        %v4882 = vld [vmem:[%s4881] sm:$0xff]
        %v4883 = vld [vmem:[%s4881 + $0x8] sm:$0xf]
        %v4885 = vsel %vm4595, %v4873, 0
        %v4888 = vsel %vm4595, %v4874, 0
        %v4891 = vsel %vm4595, %v4875, 0
        %v4894 = vsel %vm4595, %v4876, 0
        %v4897 = vsel %vm4595, %v4877, 0
        %v4900 = vsel %vm4595, %v4878, 0
        %v4903 = vsel %vm4595, %v4879, 0
        %v4906 = vsel %vm4595, %v4880, 0
        %vm4908 = vcmask 1043456
        %v4910 = vsel %vm4908, %v4883, 0
        %4912 = vmatprep.subr.mxu0 0.0
        %4913 = vmatpush1.msra.mxu0 %v4882
        %4914 = vmatprep.subr.mxu0 0.0
        %4915 = vmatpush1.msra.mxu0 %v4910
        %4916 = vmatprep.subr.mxu0 0.0
        %4917 = vmatpush1.msra.mxu0 0.0
        %4918 = vmatprep.subr.mxu0 0.0
        %4919 = vmatpush1.msra.mxu0 0.0
        %4920 = vmatprep.subr.mxu0 0.0
        %4921 = vmatpush1.msra.mxu0 0.0
        %4922 = vmatprep.subr.mxu0 0.0
        %4923 = vmatpush1.msra.mxu0 0.0
        %4924 = vmatprep.subr.mxu0 0.0
        %4925 = vmatpush1.msra.mxu0 0.0
        %4926 = vmatprep.subr.mxu0 0.0
        %4927 = vmatpush1.msra.mxu0 0.0
        %4928 = vmatprep.subr.mxu0 0.0
        %4929 = vmatpush1.msra.mxu0 0.0
        %4930 = vmatprep.subr.mxu0 0.0
        %4931 = vmatpush1.msra.mxu0 0.0
        %4932 = vmatprep.subr.mxu0 0.0
        %4933 = vmatpush1.msra.mxu0 0.0
        %4934 = vmatprep.subr.mxu0 0.0
        %4935 = vmatpush1.msra.mxu0 0.0
        %4936 = vmatprep.subr.mxu0 0.0
        %4937 = vmatpush1.msra.mxu0 0.0
        %4938 = vmatprep.subr.mxu0 0.0
        %4939 = vmatpush1.msra.mxu0 0.0
        %4940 = vmatprep.subr.mxu0 0.0
        %4941 = vmatpush1.msra.mxu0 0.0
        %4942 = vmatprep.subr.mxu0 0.0
        %4943 = vmatpush1.msra.mxu0 0.0
        %4944 = vmatprep.subr.mxu0 0.0
        %4945 = vmatpush1.msra.mxu0 0.0
        %4946 = vmatprep.subr.mxu0 0.0
        %4947 = vmatpush1.msra.mxu0 0.0
        %4948 = vmatprep.subr.mxu0 0.0
        %4949 = vmatpush1.msra.mxu0 0.0
        %4950 = vmatprep.subr.mxu0 0.0
        %4951 = vmatpush1.msra.mxu0 0.0
        %4952 = vmatprep.subr.mxu0 0.0
        %4953 = vmatpush1.msra.mxu0 0.0
        %4954 = vmatprep.subr.mxu0 0.0
        %4955 = vmatpush1.msra.mxu0 0.0
        %4956 = vmatprep.subr.mxu0 0.0
        %4957 = vmatpush1.msra.mxu0 0.0
        %4958 = vmatprep.subr.mxu0 0.0
        %4959 = vmatpush1.msra.mxu0 0.0
        %4960 = vmatprep.subr.mxu0 0.0
        %4961 = vmatpush1.msra.mxu0 0.0
        %4962 = vmatprep.subr.mxu0 0.0
        %4963 = vmatpush1.msra.mxu0 0.0
        %4964 = vmatprep.subr.mxu0 0.0
        %4965 = vmatpush1.msra.mxu0 0.0
        %4966 = vmatprep.subr.mxu0 0.0
        %4967 = vmatpush1.msra.mxu0 0.0
        %4968 = vmatprep.subr.mxu0 0.0
        %4969 = vmatpush1.msra.mxu0 0.0
        %4970 = vmatprep.subr.mxu0 0.0
        %4971 = vmatpush1.msra.mxu0 0.0
        %4972 = vmatprep.subr.mxu0 0.0
        %4973 = vmatpush1.msra.mxu0 0.0
        %4974 = vmatprep.subr.mxu0 0.0
        %4975 = vmatpush1.msra.mxu0 0.0
        %4976 = vmatprep.mubr.f32.mxu0 0.0
        %4977 = vmatmul.mubr.f32.gmra.mrb[0].mxu0 %v4885
        %v4978 = vpop.f32.mrb[0].mxu0
        %v4979 = vadd.f32 0.0, %v4978
        %v4980 = vpop.f32.mrb[0].mxu0
        %4981 = vmatprep.mubr.f32.mxu0 0.0
        %4982 = vmatmul.mubr.f32.gmra.mrb[0].mxu0 %v4888
        %v4983 = vpop.f32.mrb[0].mxu0
        %v4984 = vadd.f32 0.0, %v4983
        %v4985 = vpop.f32.mrb[0].mxu0
        %4986 = vmatprep.mubr.f32.mxu0 0.0
        %4987 = vmatmul.mubr.f32.gmra.mrb[0].mxu0 %v4891
        %v4988 = vpop.f32.mrb[0].mxu0
        %v4989 = vadd.f32 0.0, %v4988
        %v4990 = vpop.f32.mrb[0].mxu0
        %4991 = vmatprep.mubr.f32.mxu0 0.0
        %4992 = vmatmul.mubr.f32.gmra.mrb[0].mxu0 %v4894
        %v4993 = vpop.f32.mrb[0].mxu0
        %v4994 = vadd.f32 0.0, %v4993
        %v4995 = vpop.f32.mrb[0].mxu0
        %4996 = vmatprep.mubr.f32.mxu0 0.0
        %4997 = vmatmul.mubr.f32.gmra.mrb[0].mxu0 %v4897
        %v4998 = vpop.f32.mrb[0].mxu0
        %v4999 = vadd.f32 0.0, %v4998
        %v5000 = vpop.f32.mrb[0].mxu0
        %5001 = vmatprep.mubr.f32.mxu0 0.0
        %5002 = vmatmul.mubr.f32.gmra.mrb[0].mxu0 %v4900
        %v5003 = vpop.f32.mrb[0].mxu0
        %v5004 = vadd.f32 0.0, %v5003
        %v5005 = vpop.f32.mrb[0].mxu0
        %5006 = vmatprep.mubr.f32.mxu0 0.0
        %5007 = vmatmul.mubr.f32.gmra.mrb[0].mxu0 %v4903
        %v5008 = vpop.f32.mrb[0].mxu0
        %v5009 = vadd.f32 0.0, %v5008
        %v5010 = vpop.f32.mrb[0].mxu0
        %5011 = vmatprep.mubr.f32.mxu0 0.0
        %5012 = vmatmul.mubr.f32.gmra.mrb[0].mxu0 %v4906
        %v5013 = vpop.f32.mrb[0].mxu0
        %v5014 = vadd.f32 0.0, %v5013
        %v5015 = vpop.f32.mrb[0].mxu0
        %5016 = vdwg.mxu0
        %v5018 = vsel %vm4595, %v4863, 0
        %v5021 = vsel %vm4595, %v4864, 0
        %v5024 = vsel %vm4595, %v4865, 0
        %v5027 = vsel %vm4595, %v4866, 0
        %v5030 = vsel %vm4595, %v4867, 0
        %v5033 = vsel %vm4595, %v4868, 0
        %v5036 = vsel %vm4595, %v4869, 0
        %v5039 = vsel %vm4595, %v4870, 0
        %v5042 = vsel %vm4908, %v4872, 0
        %5044 = vmatprep.subr.mxu0 0.0
        %5045 = vmatpush1.msra.mxu0 %v4871
        %5046 = vmatprep.subr.mxu0 0.0
        %5047 = vmatpush1.msra.mxu0 %v5042
        %5048 = vmatprep.subr.mxu0 0.0
        %5049 = vmatpush1.msra.mxu0 0.0
        %5050 = vmatprep.subr.mxu0 0.0
        %5051 = vmatpush1.msra.mxu0 0.0
        %5052 = vmatprep.subr.mxu0 0.0
        %5053 = vmatpush1.msra.mxu0 0.0
        %5054 = vmatprep.subr.mxu0 0.0
        %5055 = vmatpush1.msra.mxu0 0.0
        %5056 = vmatprep.subr.mxu0 0.0
        %5057 = vmatpush1.msra.mxu0 0.0
        %5058 = vmatprep.subr.mxu0 0.0
        %5059 = vmatpush1.msra.mxu0 0.0
        %5060 = vmatprep.subr.mxu0 0.0
        %5061 = vmatpush1.msra.mxu0 0.0
        %5062 = vmatprep.subr.mxu0 0.0
        %5063 = vmatpush1.msra.mxu0 0.0
        %5064 = vmatprep.subr.mxu0 0.0
        %5065 = vmatpush1.msra.mxu0 0.0
        %5066 = vmatprep.subr.mxu0 0.0
        %5067 = vmatpush1.msra.mxu0 0.0
        %5068 = vmatprep.subr.mxu0 0.0
        %5069 = vmatpush1.msra.mxu0 0.0
        %5070 = vmatprep.subr.mxu0 0.0
        %5071 = vmatpush1.msra.mxu0 0.0
        %5072 = vmatprep.subr.mxu0 0.0
        %5073 = vmatpush1.msra.mxu0 0.0
        %5074 = vmatprep.subr.mxu0 0.0
        %5075 = vmatpush1.msra.mxu0 0.0
        %5076 = vmatprep.subr.mxu0 0.0
        %5077 = vmatpush1.msra.mxu0 0.0
        %5078 = vmatprep.subr.mxu0 0.0
        %5079 = vmatpush1.msra.mxu0 0.0
        %5080 = vmatprep.subr.mxu0 0.0
        %5081 = vmatpush1.msra.mxu0 0.0
        %5082 = vmatprep.subr.mxu0 0.0
        %5083 = vmatpush1.msra.mxu0 0.0
        %5084 = vmatprep.subr.mxu0 0.0
        %5085 = vmatpush1.msra.mxu0 0.0
        %5086 = vmatprep.subr.mxu0 0.0
        %5087 = vmatpush1.msra.mxu0 0.0
        %5088 = vmatprep.subr.mxu0 0.0
        %5089 = vmatpush1.msra.mxu0 0.0
        %5090 = vmatprep.subr.mxu0 0.0
        %5091 = vmatpush1.msra.mxu0 0.0
        %5092 = vmatprep.subr.mxu0 0.0
        %5093 = vmatpush1.msra.mxu0 0.0
        %5094 = vmatprep.subr.mxu0 0.0
        %5095 = vmatpush1.msra.mxu0 0.0
        %5096 = vmatprep.subr.mxu0 0.0
        %5097 = vmatpush1.msra.mxu0 0.0
        %5098 = vmatprep.subr.mxu0 0.0
        %5099 = vmatpush1.msra.mxu0 0.0
        %5100 = vmatprep.subr.mxu0 0.0
        %5101 = vmatpush1.msra.mxu0 0.0
        %5102 = vmatprep.subr.mxu0 0.0
        %5103 = vmatpush1.msra.mxu0 0.0
        %5104 = vmatprep.subr.mxu0 0.0
        %5105 = vmatpush1.msra.mxu0 0.0
        %5106 = vmatprep.subr.mxu0 0.0
        %5107 = vmatpush1.msra.mxu0 0.0
        %5108 = vmatprep.mubr.f32.mxu0 0.0
        %5109 = vmatmul.mubr.f32.gmra.mrb[0].mxu0 %v5018
        %v5110 = vpop.f32.mrb[0].mxu0
        %v5111 = vadd.f32 %v4979, %v5110
        %v5112 = vpop.f32.mrb[0].mxu0
        %5113 = vmatprep.mubr.f32.mxu0 0.0
        %5114 = vmatmul.mubr.f32.gmra.mrb[0].mxu0 %v5021
        %v5115 = vpop.f32.mrb[0].mxu0
        %v5116 = vadd.f32 %v4984, %v5115
        %v5117 = vpop.f32.mrb[0].mxu0
        %5118 = vmatprep.mubr.f32.mxu0 0.0
        %5119 = vmatmul.mubr.f32.gmra.mrb[0].mxu0 %v5024
        %v5120 = vpop.f32.mrb[0].mxu0
        %v5121 = vadd.f32 %v4989, %v5120
        %v5122 = vpop.f32.mrb[0].mxu0
        %5123 = vmatprep.mubr.f32.mxu0 0.0
        %5124 = vmatmul.mubr.f32.gmra.mrb[0].mxu0 %v5027
        %v5125 = vpop.f32.mrb[0].mxu0
        %v5126 = vadd.f32 %v4994, %v5125
        %v5127 = vpop.f32.mrb[0].mxu0
        %5128 = vmatprep.mubr.f32.mxu0 0.0
        %5129 = vmatmul.mubr.f32.gmra.mrb[0].mxu0 %v5030
        %v5130 = vpop.f32.mrb[0].mxu0
        %v5131 = vadd.f32 %v4999, %v5130
        %v5132 = vpop.f32.mrb[0].mxu0
        %5133 = vmatprep.mubr.f32.mxu0 0.0
        %5134 = vmatmul.mubr.f32.gmra.mrb[0].mxu0 %v5033
        %v5135 = vpop.f32.mrb[0].mxu0
        %v5136 = vadd.f32 %v5004, %v5135
        %v5137 = vpop.f32.mrb[0].mxu0
        %5138 = vmatprep.mubr.f32.mxu0 0.0
        %5139 = vmatmul.mubr.f32.gmra.mrb[0].mxu0 %v5036
        %v5140 = vpop.f32.mrb[0].mxu0
        %v5141 = vadd.f32 %v5009, %v5140
        %v5142 = vpop.f32.mrb[0].mxu0
        %5143 = vmatprep.mubr.f32.mxu0 0.0
        %5144 = vmatmul.mubr.f32.gmra.mrb[0].mxu0 %v5039
        %v5145 = vpop.f32.mrb[0].mxu0
        %v5146 = vadd.f32 %v5014, %v5145
        %v5147 = vpop.f32.mrb[0].mxu0
        %5148 = vdwg.mxu0
        %v5149 = vld [vmem:[#allocation3 + $0x9] sm:$0xff]
        %v5150 = vld [vmem:[#allocation3 + $0x11] sm:$0xff]
        %v5151 = vld [vmem:[#allocation3 + $0x19] sm:$0xff]
        %v5152 = vld [vmem:[#allocation3 + $0x21] sm:$0xff]
        %v5153 = vld [vmem:[#allocation3 + $0x29] sm:$0xff]
        %v5154 = vld [vmem:[#allocation3 + $0x31] sm:$0xff]
        %v5155 = vld [vmem:[#allocation3 + $0x39] sm:$0xff]
        %v5156 = vld [vmem:[#allocation3 + $0x41] sm:$0xff]
        %v5157 = vsel %vm4831, 1, 0
        %v5158 = vsel %vm4832, 1, 0
        %v5159 = vsel %vm4833, 1, 0
        %v5160 = vsel %vm4834, 1, 0
        %v5161 = vsel %vm4835, 1, 0
        %v5162 = vsel %vm4836, 1, 0
        %v5163 = vsel %vm4837, 1, 0
        %v5164 = vsel %vm4838, 1, 0
        %vm5165 = vcmp.eq.s32.totalorder %v5157, 1
        %vm5166 = vcmp.eq.s32.totalorder %v5158, 1
        %vm5167 = vcmp.eq.s32.totalorder %v5159, 1
        %vm5168 = vcmp.eq.s32.totalorder %v5160, 1
        %vm5169 = vcmp.eq.s32.totalorder %v5161, 1
        %vm5170 = vcmp.eq.s32.totalorder %v5162, 1
        %vm5171 = vcmp.eq.s32.totalorder %v5163, 1
        %vm5172 = vcmp.eq.s32.totalorder %v5164, 1
        %v5173 = vsel %vm5165, %v5149, 0.0
        %v5174 = vsel %vm5166, %v5150, 0.0
        %v5175 = vsel %vm5167, %v5151, 0.0
        %v5176 = vsel %vm5168, %v5152, 0.0
        %v5177 = vsel %vm5169, %v5153, 0.0
        %v5178 = vsel %vm5170, %v5154, 0.0
        %v5179 = vsel %vm5171, %v5155, 0.0
        %v5180 = vsel %vm5172, %v5156, 0.0
        %s5181 = scalar_lea.vmem %s3, 32
        %v5182 = vld [vmem:[%s5181] sm:$0xff]
        %v5183 = vld [vmem:[%s5181 + $0x8] sm:$0xf]
        %v5185 = vsel %vm4595, %v5173, 0
        %v5188 = vsel %vm4595, %v5174, 0
        %v5191 = vsel %vm4595, %v5175, 0
        %v5194 = vsel %vm4595, %v5176, 0
        %v5197 = vsel %vm4595, %v5177, 0
        %v5200 = vsel %vm4595, %v5178, 0
        %v5203 = vsel %vm4595, %v5179, 0
        %v5206 = vsel %vm4595, %v5180, 0
        %v5209 = vsel %vm4908, %v5183, 0
        %5211 = vmatprep.subr.mxu0 0.0
        %5212 = vmatpush1.msra.mxu0 %v5182
        %5213 = vmatprep.subr.mxu0 0.0
        %5214 = vmatpush1.msra.mxu0 %v5209
        %5215 = vmatprep.subr.mxu0 0.0
        %5216 = vmatpush1.msra.mxu0 0.0
        %5217 = vmatprep.subr.mxu0 0.0
        %5218 = vmatpush1.msra.mxu0 0.0
        %5219 = vmatprep.subr.mxu0 0.0
        %5220 = vmatpush1.msra.mxu0 0.0
        %5221 = vmatprep.subr.mxu0 0.0
        %5222 = vmatpush1.msra.mxu0 0.0
        %5223 = vmatprep.subr.mxu0 0.0
        %5224 = vmatpush1.msra.mxu0 0.0
        %5225 = vmatprep.subr.mxu0 0.0
        %5226 = vmatpush1.msra.mxu0 0.0
        %5227 = vmatprep.subr.mxu0 0.0
        %5228 = vmatpush1.msra.mxu0 0.0
        %5229 = vmatprep.subr.mxu0 0.0
        %5230 = vmatpush1.msra.mxu0 0.0
        %5231 = vmatprep.subr.mxu0 0.0
        %5232 = vmatpush1.msra.mxu0 0.0
        %5233 = vmatprep.subr.mxu0 0.0
        %5234 = vmatpush1.msra.mxu0 0.0
        %5235 = vmatprep.subr.mxu0 0.0
        %5236 = vmatpush1.msra.mxu0 0.0
        %5237 = vmatprep.subr.mxu0 0.0
        %5238 = vmatpush1.msra.mxu0 0.0
        %5239 = vmatprep.subr.mxu0 0.0
        %5240 = vmatpush1.msra.mxu0 0.0
        %5241 = vmatprep.subr.mxu0 0.0
        %5242 = vmatpush1.msra.mxu0 0.0
        %5243 = vmatprep.subr.mxu0 0.0
        %5244 = vmatpush1.msra.mxu0 0.0
        %5245 = vmatprep.subr.mxu0 0.0
        %5246 = vmatpush1.msra.mxu0 0.0
        %5247 = vmatprep.subr.mxu0 0.0
        %5248 = vmatpush1.msra.mxu0 0.0
        %5249 = vmatprep.subr.mxu0 0.0
        %5250 = vmatpush1.msra.mxu0 0.0
        %5251 = vmatprep.subr.mxu0 0.0
        %5252 = vmatpush1.msra.mxu0 0.0
        %5253 = vmatprep.subr.mxu0 0.0
        %5254 = vmatpush1.msra.mxu0 0.0
        %5255 = vmatprep.subr.mxu0 0.0
        %5256 = vmatpush1.msra.mxu0 0.0
        %5257 = vmatprep.subr.mxu0 0.0
        %5258 = vmatpush1.msra.mxu0 0.0
        %5259 = vmatprep.subr.mxu0 0.0
        %5260 = vmatpush1.msra.mxu0 0.0
        %5261 = vmatprep.subr.mxu0 0.0
        %5262 = vmatpush1.msra.mxu0 0.0
        %5263 = vmatprep.subr.mxu0 0.0
        %5264 = vmatpush1.msra.mxu0 0.0
        %5265 = vmatprep.subr.mxu0 0.0
        %5266 = vmatpush1.msra.mxu0 0.0
        %5267 = vmatprep.subr.mxu0 0.0
        %5268 = vmatpush1.msra.mxu0 0.0
        %5269 = vmatprep.subr.mxu0 0.0
        %5270 = vmatpush1.msra.mxu0 0.0
        %5271 = vmatprep.subr.mxu0 0.0
        %5272 = vmatpush1.msra.mxu0 0.0
        %5273 = vmatprep.subr.mxu0 0.0
        %5274 = vmatpush1.msra.mxu0 0.0
        %5275 = vmatprep.mubr.f32.mxu0 0.0
        %5276 = vmatmul.mubr.f32.gmra.mrb[0].mxu0 %v5185
        %v5277 = vpop.f32.mrb[0].mxu0
        %v5278 = vadd.f32 0.0, %v5277
        %v5279 = vpop.f32.mrb[0].mxu0
        %5280 = vmatprep.mubr.f32.mxu0 0.0
        %5281 = vmatmul.mubr.f32.gmra.mrb[0].mxu0 %v5188
        %v5282 = vpop.f32.mrb[0].mxu0
        %v5283 = vadd.f32 0.0, %v5282
        %v5284 = vpop.f32.mrb[0].mxu0
        %5285 = vmatprep.mubr.f32.mxu0 0.0
        %5286 = vmatmul.mubr.f32.gmra.mrb[0].mxu0 %v5191
        %v5287 = vpop.f32.mrb[0].mxu0
        %v5288 = vadd.f32 0.0, %v5287
        %v5289 = vpop.f32.mrb[0].mxu0
        %5290 = vmatprep.mubr.f32.mxu0 0.0
        %5291 = vmatmul.mubr.f32.gmra.mrb[0].mxu0 %v5194
        %v5292 = vpop.f32.mrb[0].mxu0
        %v5293 = vadd.f32 0.0, %v5292
        %v5294 = vpop.f32.mrb[0].mxu0
        %5295 = vmatprep.mubr.f32.mxu0 0.0
        %5296 = vmatmul.mubr.f32.gmra.mrb[0].mxu0 %v5197
        %v5297 = vpop.f32.mrb[0].mxu0
        %v5298 = vadd.f32 0.0, %v5297
        %v5299 = vpop.f32.mrb[0].mxu0
        %5300 = vmatprep.mubr.f32.mxu0 0.0
        %5301 = vmatmul.mubr.f32.gmra.mrb[0].mxu0 %v5200
        %v5302 = vpop.f32.mrb[0].mxu0
        %v5303 = vadd.f32 0.0, %v5302
        %v5304 = vpop.f32.mrb[0].mxu0
        %5305 = vmatprep.mubr.f32.mxu0 0.0
        %5306 = vmatmul.mubr.f32.gmra.mrb[0].mxu0 %v5203
        %v5307 = vpop.f32.mrb[0].mxu0
        %v5308 = vadd.f32 0.0, %v5307
        %v5309 = vpop.f32.mrb[0].mxu0
        %5310 = vmatprep.mubr.f32.mxu0 0.0
        %5311 = vmatmul.mubr.f32.gmra.mrb[0].mxu0 %v5206
        %v5312 = vpop.f32.mrb[0].mxu0
        %v5313 = vadd.f32 0.0, %v5312
        %v5314 = vpop.f32.mrb[0].mxu0
        %5315 = vdwg.mxu0
        %v5316 = vadd.f32 %v5111, %v5278
        %v5317 = vadd.f32 %v5116, %v5283
        %v5318 = vadd.f32 %v5121, %v5288
        %v5319 = vadd.f32 %v5126, %v5293
        %v5320 = vadd.f32 %v5131, %v5298
        %v5321 = vadd.f32 %v5136, %v5303
        %v5322 = vadd.f32 %v5141, %v5308
        %v5323 = vadd.f32 %v5146, %v5313
        %v5324 = vld [vmem:[#allocation3 + $0xf] sm:$0xff]
        %v5325 = vld [vmem:[#allocation3 + $0x17] sm:$0xff]
        %v5326 = vld [vmem:[#allocation3 + $0x1f] sm:$0xff]
        %v5327 = vld [vmem:[#allocation3 + $0x27] sm:$0xff]
        %v5328 = vld [vmem:[#allocation3 + $0x2f] sm:$0xff]
        %v5329 = vld [vmem:[#allocation3 + $0x37] sm:$0xff]
        %v5330 = vld [vmem:[#allocation3 + $0x3f] sm:$0xff]
        %v5331 = vld [vmem:[#allocation3 + $0x47] sm:$0xff]
        %v5332 = vsel %vm4855, %v5324, 0.0
        %v5333 = vsel %vm4856, %v5325, 0.0
        %v5334 = vsel %vm4857, %v5326, 0.0
        %v5335 = vsel %vm4858, %v5327, 0.0
        %v5336 = vsel %vm4859, %v5328, 0.0
        %v5337 = vsel %vm4860, %v5329, 0.0
        %v5338 = vsel %vm4861, %v5330, 0.0
        %v5339 = vsel %vm4862, %v5331, 0.0
        %s5340 = scalar_lea.vmem %s3, 48
        %v5341 = vld [vmem:[%s5340] sm:$0xff]
        %v5342 = vld [vmem:[%s5340 + $0x8] sm:$0xf]
        %v5344 = vsel %vm4595, %v5332, 0
        %v5347 = vsel %vm4595, %v5333, 0
        %v5350 = vsel %vm4595, %v5334, 0
        %v5353 = vsel %vm4595, %v5335, 0
        %v5356 = vsel %vm4595, %v5336, 0
        %v5359 = vsel %vm4595, %v5337, 0
        %v5362 = vsel %vm4595, %v5338, 0
        %v5365 = vsel %vm4595, %v5339, 0
        %v5368 = vsel %vm4908, %v5342, 0
        %5370 = vmatprep.subr.mxu0 0.0
        %5371 = vmatpush1.msra.mxu0 %v5341
        %5372 = vmatprep.subr.mxu0 0.0
        %5373 = vmatpush1.msra.mxu0 %v5368
        %5374 = vmatprep.subr.mxu0 0.0
        %5375 = vmatpush1.msra.mxu0 0.0
        %5376 = vmatprep.subr.mxu0 0.0
        %5377 = vmatpush1.msra.mxu0 0.0
        %5378 = vmatprep.subr.mxu0 0.0
        %5379 = vmatpush1.msra.mxu0 0.0
        %5380 = vmatprep.subr.mxu0 0.0
        %5381 = vmatpush1.msra.mxu0 0.0
        %5382 = vmatprep.subr.mxu0 0.0
        %5383 = vmatpush1.msra.mxu0 0.0
        %5384 = vmatprep.subr.mxu0 0.0
        %5385 = vmatpush1.msra.mxu0 0.0
        %5386 = vmatprep.subr.mxu0 0.0
        %5387 = vmatpush1.msra.mxu0 0.0
        %5388 = vmatprep.subr.mxu0 0.0
        %5389 = vmatpush1.msra.mxu0 0.0
        %5390 = vmatprep.subr.mxu0 0.0
        %5391 = vmatpush1.msra.mxu0 0.0
        %5392 = vmatprep.subr.mxu0 0.0
        %5393 = vmatpush1.msra.mxu0 0.0
        %5394 = vmatprep.subr.mxu0 0.0
        %5395 = vmatpush1.msra.mxu0 0.0
        %5396 = vmatprep.subr.mxu0 0.0
        %5397 = vmatpush1.msra.mxu0 0.0
        %5398 = vmatprep.subr.mxu0 0.0
        %5399 = vmatpush1.msra.mxu0 0.0
        %5400 = vmatprep.subr.mxu0 0.0
        %5401 = vmatpush1.msra.mxu0 0.0
        %5402 = vmatprep.subr.mxu0 0.0
        %5403 = vmatpush1.msra.mxu0 0.0
        %5404 = vmatprep.subr.mxu0 0.0
        %5405 = vmatpush1.msra.mxu0 0.0
        %5406 = vmatprep.subr.mxu0 0.0
        %5407 = vmatpush1.msra.mxu0 0.0
        %5408 = vmatprep.subr.mxu0 0.0
        %5409 = vmatpush1.msra.mxu0 0.0
        %5410 = vmatprep.subr.mxu0 0.0
        %5411 = vmatpush1.msra.mxu0 0.0
        %5412 = vmatprep.subr.mxu0 0.0
        %5413 = vmatpush1.msra.mxu0 0.0
        %5414 = vmatprep.subr.mxu0 0.0
        %5415 = vmatpush1.msra.mxu0 0.0
        %5416 = vmatprep.subr.mxu0 0.0
        %5417 = vmatpush1.msra.mxu0 0.0
        %5418 = vmatprep.subr.mxu0 0.0
        %5419 = vmatpush1.msra.mxu0 0.0
        %5420 = vmatprep.subr.mxu0 0.0
        %5421 = vmatpush1.msra.mxu0 0.0
        %5422 = vmatprep.subr.mxu0 0.0
        %5423 = vmatpush1.msra.mxu0 0.0
        %5424 = vmatprep.subr.mxu0 0.0
        %5425 = vmatpush1.msra.mxu0 0.0
        %5426 = vmatprep.subr.mxu0 0.0
        %5427 = vmatpush1.msra.mxu0 0.0
        %5428 = vmatprep.subr.mxu0 0.0
        %5429 = vmatpush1.msra.mxu0 0.0
        %5430 = vmatprep.subr.mxu0 0.0
        %5431 = vmatpush1.msra.mxu0 0.0
        %5432 = vmatprep.subr.mxu0 0.0
        %5433 = vmatpush1.msra.mxu0 0.0
        %5434 = vmatprep.mubr.f32.mxu0 0.0
        %5435 = vmatmul.mubr.f32.gmra.mrb[0].mxu0 %v5344
        %v5436 = vpop.f32.mrb[0].mxu0
        %v5437 = vadd.f32 0.0, %v5436
        %v5438 = vpop.f32.mrb[0].mxu0
        %5439 = vmatprep.mubr.f32.mxu0 0.0
        %5440 = vmatmul.mubr.f32.gmra.mrb[0].mxu0 %v5347
        %v5441 = vpop.f32.mrb[0].mxu0
        %v5442 = vadd.f32 0.0, %v5441
        %v5443 = vpop.f32.mrb[0].mxu0
        %5444 = vmatprep.mubr.f32.mxu0 0.0
        %5445 = vmatmul.mubr.f32.gmra.mrb[0].mxu0 %v5350
        %v5446 = vpop.f32.mrb[0].mxu0
        %v5447 = vadd.f32 0.0, %v5446
        %v5448 = vpop.f32.mrb[0].mxu0
        %5449 = vmatprep.mubr.f32.mxu0 0.0
        %5450 = vmatmul.mubr.f32.gmra.mrb[0].mxu0 %v5353
        %v5451 = vpop.f32.mrb[0].mxu0
        %v5452 = vadd.f32 0.0, %v5451
        %v5453 = vpop.f32.mrb[0].mxu0
        %5454 = vmatprep.mubr.f32.mxu0 0.0
        %5455 = vmatmul.mubr.f32.gmra.mrb[0].mxu0 %v5356
        %v5456 = vpop.f32.mrb[0].mxu0
        %v5457 = vadd.f32 0.0, %v5456
        %v5458 = vpop.f32.mrb[0].mxu0
        %5459 = vmatprep.mubr.f32.mxu0 0.0
        %5460 = vmatmul.mubr.f32.gmra.mrb[0].mxu0 %v5359
        %v5461 = vpop.f32.mrb[0].mxu0
        %v5462 = vadd.f32 0.0, %v5461
        %v5463 = vpop.f32.mrb[0].mxu0
        %5464 = vmatprep.mubr.f32.mxu0 0.0
        %5465 = vmatmul.mubr.f32.gmra.mrb[0].mxu0 %v5362
        %v5466 = vpop.f32.mrb[0].mxu0
        %v5467 = vadd.f32 0.0, %v5466
        %v5468 = vpop.f32.mrb[0].mxu0
        %5469 = vmatprep.mubr.f32.mxu0 0.0
        %5470 = vmatmul.mubr.f32.gmra.mrb[0].mxu0 %v5365
        %v5471 = vpop.f32.mrb[0].mxu0
        %v5472 = vadd.f32 0.0, %v5471
        %v5473 = vpop.f32.mrb[0].mxu0
        %5474 = vdwg.mxu0
        %v5475 = vadd.f32 %v5316, %v5437
        %v5476 = vadd.f32 %v5317, %v5442
        %v5477 = vadd.f32 %v5318, %v5447
        %v5478 = vadd.f32 %v5319, %v5452
        %v5479 = vadd.f32 %v5320, %v5457
        %v5480 = vadd.f32 %v5321, %v5462
        %v5481 = vadd.f32 %v5322, %v5467
        %v5482 = vadd.f32 %v5323, %v5472
        %v5483 = vld [vmem:[#allocation3 + $0x10] sm:$0xff]
        %v5484 = vld [vmem:[#allocation3 + $0x18] sm:$0xff]
        %v5485 = vld [vmem:[#allocation3 + $0x20] sm:$0xff]
        %v5486 = vld [vmem:[#allocation3 + $0x28] sm:$0xff]
        %v5487 = vld [vmem:[#allocation3 + $0x30] sm:$0xff]
        %v5488 = vld [vmem:[#allocation3 + $0x38] sm:$0xff]
        %v5489 = vld [vmem:[#allocation3 + $0x40] sm:$0xff]
        %v5490 = vld [vmem:[#allocation3 + $0x48] sm:$0xff]
        %s5491 = scalar_lea.vmem %s3, 64
        %v5492 = vld [vmem:[%s5491] sm:$0xff]
        %v5493 = vld [vmem:[%s5491 + $0x8] sm:$0xf]
        %v5495 = vsel %vm4595, %v5483, 0
        %v5498 = vsel %vm4595, %v5484, 0
        %v5501 = vsel %vm4595, %v5485, 0
        %v5504 = vsel %vm4595, %v5486, 0
        %v5507 = vsel %vm4595, %v5487, 0
        %v5510 = vsel %vm4595, %v5488, 0
        %v5513 = vsel %vm4595, %v5489, 0
        %v5516 = vsel %vm4595, %v5490, 0
        %v5519 = vsel %vm4908, %v5493, 0
        %5521 = vmatprep.subr.mxu0 0.0
        %5522 = vmatpush1.msra.mxu0 %v5492
        %5523 = vmatprep.subr.mxu0 0.0
        %5524 = vmatpush1.msra.mxu0 %v5519
        %5525 = vmatprep.subr.mxu0 0.0
        %5526 = vmatpush1.msra.mxu0 0.0
        %5527 = vmatprep.subr.mxu0 0.0
        %5528 = vmatpush1.msra.mxu0 0.0
        %5529 = vmatprep.subr.mxu0 0.0
        %5530 = vmatpush1.msra.mxu0 0.0
        %5531 = vmatprep.subr.mxu0 0.0
        %5532 = vmatpush1.msra.mxu0 0.0
        %5533 = vmatprep.subr.mxu0 0.0
        %5534 = vmatpush1.msra.mxu0 0.0
        %5535 = vmatprep.subr.mxu0 0.0
        %5536 = vmatpush1.msra.mxu0 0.0
        %5537 = vmatprep.subr.mxu0 0.0
        %5538 = vmatpush1.msra.mxu0 0.0
        %5539 = vmatprep.subr.mxu0 0.0
        %5540 = vmatpush1.msra.mxu0 0.0
        %5541 = vmatprep.subr.mxu0 0.0
        %5542 = vmatpush1.msra.mxu0 0.0
        %5543 = vmatprep.subr.mxu0 0.0
        %5544 = vmatpush1.msra.mxu0 0.0
        %5545 = vmatprep.subr.mxu0 0.0
        %5546 = vmatpush1.msra.mxu0 0.0
        %5547 = vmatprep.subr.mxu0 0.0
        %5548 = vmatpush1.msra.mxu0 0.0
        %5549 = vmatprep.subr.mxu0 0.0
        %5550 = vmatpush1.msra.mxu0 0.0
        %5551 = vmatprep.subr.mxu0 0.0
        %5552 = vmatpush1.msra.mxu0 0.0
        %5553 = vmatprep.subr.mxu0 0.0
        %5554 = vmatpush1.msra.mxu0 0.0
        %5555 = vmatprep.subr.mxu0 0.0
        %5556 = vmatpush1.msra.mxu0 0.0
        %5557 = vmatprep.subr.mxu0 0.0
        %5558 = vmatpush1.msra.mxu0 0.0
        %5559 = vmatprep.subr.mxu0 0.0
        %5560 = vmatpush1.msra.mxu0 0.0
        %5561 = vmatprep.subr.mxu0 0.0
        %5562 = vmatpush1.msra.mxu0 0.0
        %5563 = vmatprep.subr.mxu0 0.0
        %5564 = vmatpush1.msra.mxu0 0.0
        %5565 = vmatprep.subr.mxu0 0.0
        %5566 = vmatpush1.msra.mxu0 0.0
        %5567 = vmatprep.subr.mxu0 0.0
        %5568 = vmatpush1.msra.mxu0 0.0
        %5569 = vmatprep.subr.mxu0 0.0
        %5570 = vmatpush1.msra.mxu0 0.0
        %5571 = vmatprep.subr.mxu0 0.0
        %5572 = vmatpush1.msra.mxu0 0.0
        %5573 = vmatprep.subr.mxu0 0.0
        %5574 = vmatpush1.msra.mxu0 0.0
        %5575 = vmatprep.subr.mxu0 0.0
        %5576 = vmatpush1.msra.mxu0 0.0
        %5577 = vmatprep.subr.mxu0 0.0
        %5578 = vmatpush1.msra.mxu0 0.0
        %5579 = vmatprep.subr.mxu0 0.0
        %5580 = vmatpush1.msra.mxu0 0.0
        %5581 = vmatprep.subr.mxu0 0.0
        %5582 = vmatpush1.msra.mxu0 0.0
        %5583 = vmatprep.subr.mxu0 0.0
        %5584 = vmatpush1.msra.mxu0 0.0
        %5585 = vmatprep.mubr.f32.mxu0 0.0
        %5586 = vmatmul.mubr.f32.gmra.mrb[0].mxu0 %v5495
        %v5587 = vpop.f32.mrb[0].mxu0
        %v5588 = vadd.f32 0.0, %v5587
        %v5589 = vpop.f32.mrb[0].mxu0
        %5590 = vmatprep.mubr.f32.mxu0 0.0
        %5591 = vmatmul.mubr.f32.gmra.mrb[0].mxu0 %v5498
        %v5592 = vpop.f32.mrb[0].mxu0
        %v5593 = vadd.f32 0.0, %v5592
        %v5594 = vpop.f32.mrb[0].mxu0
        %5595 = vmatprep.mubr.f32.mxu0 0.0
        %5596 = vmatmul.mubr.f32.gmra.mrb[0].mxu0 %v5501
        %v5597 = vpop.f32.mrb[0].mxu0
        %v5598 = vadd.f32 0.0, %v5597
        %v5599 = vpop.f32.mrb[0].mxu0
        %5600 = vmatprep.mubr.f32.mxu0 0.0
        %5601 = vmatmul.mubr.f32.gmra.mrb[0].mxu0 %v5504
        %v5602 = vpop.f32.mrb[0].mxu0
        %v5603 = vadd.f32 0.0, %v5602
        %v5604 = vpop.f32.mrb[0].mxu0
        %5605 = vmatprep.mubr.f32.mxu0 0.0
        %5606 = vmatmul.mubr.f32.gmra.mrb[0].mxu0 %v5507
        %v5607 = vpop.f32.mrb[0].mxu0
        %v5608 = vadd.f32 0.0, %v5607
        %v5609 = vpop.f32.mrb[0].mxu0
        %5610 = vmatprep.mubr.f32.mxu0 0.0
        %5611 = vmatmul.mubr.f32.gmra.mrb[0].mxu0 %v5510
        %v5612 = vpop.f32.mrb[0].mxu0
        %v5613 = vadd.f32 0.0, %v5612
        %v5614 = vpop.f32.mrb[0].mxu0
        %5615 = vmatprep.mubr.f32.mxu0 0.0
        %5616 = vmatmul.mubr.f32.gmra.mrb[0].mxu0 %v5513
        %v5617 = vpop.f32.mrb[0].mxu0
        %v5618 = vadd.f32 0.0, %v5617
        %v5619 = vpop.f32.mrb[0].mxu0
        %5620 = vmatprep.mubr.f32.mxu0 0.0
        %5621 = vmatmul.mubr.f32.gmra.mrb[0].mxu0 %v5516
        %v5622 = vpop.f32.mrb[0].mxu0
        %v5623 = vadd.f32 0.0, %v5622
        %v5624 = vpop.f32.mrb[0].mxu0
        %5625 = vdwg.mxu0
        %v5626 = vadd.f32 %v5475, %v5588
        %v5627 = vadd.f32 %v5476, %v5593
        %v5628 = vadd.f32 %v5477, %v5598
        %v5629 = vadd.f32 %v5478, %v5603
        %v5630 = vadd.f32 %v5479, %v5608
        %v5631 = vadd.f32 %v5480, %v5613
        %v5632 = vadd.f32 %v5481, %v5618
        %v5633 = vadd.f32 %v5482, %v5623
        %v5634 = vld [vmem:[#allocation3 + $0x11] sm:$0xff]
        %v5635 = vld [vmem:[#allocation3 + $0x19] sm:$0xff]
        %v5636 = vld [vmem:[#allocation3 + $0x21] sm:$0xff]
        %v5637 = vld [vmem:[#allocation3 + $0x29] sm:$0xff]
        %v5638 = vld [vmem:[#allocation3 + $0x31] sm:$0xff]
        %v5639 = vld [vmem:[#allocation3 + $0x39] sm:$0xff]
        %v5640 = vld [vmem:[#allocation3 + $0x41] sm:$0xff]
        %v5641 = vld [vmem:[#allocation3 + $0x49] sm:$0xff]
        %v5642 = vsel %vm5165, %v5634, 0.0
        %v5643 = vsel %vm5166, %v5635, 0.0
        %v5644 = vsel %vm5167, %v5636, 0.0
        %v5645 = vsel %vm5168, %v5637, 0.0
        %v5646 = vsel %vm5169, %v5638, 0.0
        %v5647 = vsel %vm5170, %v5639, 0.0
        %v5648 = vsel %vm5171, %v5640, 0.0
        %v5649 = vsel %vm5172, %v5641, 0.0
        %s5650 = scalar_lea.vmem %s3, 80
        %v5651 = vld [vmem:[%s5650] sm:$0xff]
        %v5652 = vld [vmem:[%s5650 + $0x8] sm:$0xf]
        %v5654 = vsel %vm4595, %v5642, 0
        %v5657 = vsel %vm4595, %v5643, 0
        %v5660 = vsel %vm4595, %v5644, 0
        %v5663 = vsel %vm4595, %v5645, 0
        %v5666 = vsel %vm4595, %v5646, 0
        %v5669 = vsel %vm4595, %v5647, 0
        %v5672 = vsel %vm4595, %v5648, 0
        %v5675 = vsel %vm4595, %v5649, 0
        %v5678 = vsel %vm4908, %v5652, 0
        %5680 = vmatprep.subr.mxu0 0.0
        %5681 = vmatpush1.msra.mxu0 %v5651
        %5682 = vmatprep.subr.mxu0 0.0
        %5683 = vmatpush1.msra.mxu0 %v5678
        %5684 = vmatprep.subr.mxu0 0.0
        %5685 = vmatpush1.msra.mxu0 0.0
        %5686 = vmatprep.subr.mxu0 0.0
        %5687 = vmatpush1.msra.mxu0 0.0
        %5688 = vmatprep.subr.mxu0 0.0
        %5689 = vmatpush1.msra.mxu0 0.0
        %5690 = vmatprep.subr.mxu0 0.0
        %5691 = vmatpush1.msra.mxu0 0.0
        %5692 = vmatprep.subr.mxu0 0.0
        %5693 = vmatpush1.msra.mxu0 0.0
        %5694 = vmatprep.subr.mxu0 0.0
        %5695 = vmatpush1.msra.mxu0 0.0
        %5696 = vmatprep.subr.mxu0 0.0
        %5697 = vmatpush1.msra.mxu0 0.0
        %5698 = vmatprep.subr.mxu0 0.0
        %5699 = vmatpush1.msra.mxu0 0.0
        %5700 = vmatprep.subr.mxu0 0.0
        %5701 = vmatpush1.msra.mxu0 0.0
        %5702 = vmatprep.subr.mxu0 0.0
        %5703 = vmatpush1.msra.mxu0 0.0
        %5704 = vmatprep.subr.mxu0 0.0
        %5705 = vmatpush1.msra.mxu0 0.0
        %5706 = vmatprep.subr.mxu0 0.0
        %5707 = vmatpush1.msra.mxu0 0.0
        %5708 = vmatprep.subr.mxu0 0.0
        %5709 = vmatpush1.msra.mxu0 0.0
        %5710 = vmatprep.subr.mxu0 0.0
        %5711 = vmatpush1.msra.mxu0 0.0
        %5712 = vmatprep.subr.mxu0 0.0
        %5713 = vmatpush1.msra.mxu0 0.0
        %5714 = vmatprep.subr.mxu0 0.0
        %5715 = vmatpush1.msra.mxu0 0.0
        %5716 = vmatprep.subr.mxu0 0.0
        %5717 = vmatpush1.msra.mxu0 0.0
        %5718 = vmatprep.subr.mxu0 0.0
        %5719 = vmatpush1.msra.mxu0 0.0
        %5720 = vmatprep.subr.mxu0 0.0
        %5721 = vmatpush1.msra.mxu0 0.0
        %5722 = vmatprep.subr.mxu0 0.0
        %5723 = vmatpush1.msra.mxu0 0.0
        %5724 = vmatprep.subr.mxu0 0.0
        %5725 = vmatpush1.msra.mxu0 0.0
        %5726 = vmatprep.subr.mxu0 0.0
        %5727 = vmatpush1.msra.mxu0 0.0
        %5728 = vmatprep.subr.mxu0 0.0
        %5729 = vmatpush1.msra.mxu0 0.0
        %5730 = vmatprep.subr.mxu0 0.0
        %5731 = vmatpush1.msra.mxu0 0.0
        %5732 = vmatprep.subr.mxu0 0.0
        %5733 = vmatpush1.msra.mxu0 0.0
        %5734 = vmatprep.subr.mxu0 0.0
        %5735 = vmatpush1.msra.mxu0 0.0
        %5736 = vmatprep.subr.mxu0 0.0
        %5737 = vmatpush1.msra.mxu0 0.0
        %5738 = vmatprep.subr.mxu0 0.0
        %5739 = vmatpush1.msra.mxu0 0.0
        %5740 = vmatprep.subr.mxu0 0.0
        %5741 = vmatpush1.msra.mxu0 0.0
        %5742 = vmatprep.subr.mxu0 0.0
        %5743 = vmatpush1.msra.mxu0 0.0
        %5744 = vmatprep.mubr.f32.mxu0 0.0
        %5745 = vmatmul.mubr.f32.gmra.mrb[0].mxu0 %v5654
        %v5746 = vpop.f32.mrb[0].mxu0
        %v5747 = vadd.f32 0.0, %v5746
        %v5748 = vpop.f32.mrb[0].mxu0
        %5749 = vmatprep.mubr.f32.mxu0 0.0
        %5750 = vmatmul.mubr.f32.gmra.mrb[0].mxu0 %v5657
        %v5751 = vpop.f32.mrb[0].mxu0
        %v5752 = vadd.f32 0.0, %v5751
        %v5753 = vpop.f32.mrb[0].mxu0
        %5754 = vmatprep.mubr.f32.mxu0 0.0
        %5755 = vmatmul.mubr.f32.gmra.mrb[0].mxu0 %v5660
        %v5756 = vpop.f32.mrb[0].mxu0
        %v5757 = vadd.f32 0.0, %v5756
        %v5758 = vpop.f32.mrb[0].mxu0
        %5759 = vmatprep.mubr.f32.mxu0 0.0
        %5760 = vmatmul.mubr.f32.gmra.mrb[0].mxu0 %v5663
        %v5761 = vpop.f32.mrb[0].mxu0
        %v5762 = vadd.f32 0.0, %v5761
        %v5763 = vpop.f32.mrb[0].mxu0
        %5764 = vmatprep.mubr.f32.mxu0 0.0
        %5765 = vmatmul.mubr.f32.gmra.mrb[0].mxu0 %v5666
        %v5766 = vpop.f32.mrb[0].mxu0
        %v5767 = vadd.f32 0.0, %v5766
        %v5768 = vpop.f32.mrb[0].mxu0
        %5769 = vmatprep.mubr.f32.mxu0 0.0
        %5770 = vmatmul.mubr.f32.gmra.mrb[0].mxu0 %v5669
        %v5771 = vpop.f32.mrb[0].mxu0
        %v5772 = vadd.f32 0.0, %v5771
        %v5773 = vpop.f32.mrb[0].mxu0
        %5774 = vmatprep.mubr.f32.mxu0 0.0
        %5775 = vmatmul.mubr.f32.gmra.mrb[0].mxu0 %v5672
        %v5776 = vpop.f32.mrb[0].mxu0
        %v5777 = vadd.f32 0.0, %v5776
        %v5778 = vpop.f32.mrb[0].mxu0
        %5779 = vmatprep.mubr.f32.mxu0 0.0
        %5780 = vmatmul.mubr.f32.gmra.mrb[0].mxu0 %v5675
        %v5781 = vpop.f32.mrb[0].mxu0
        %v5782 = vadd.f32 0.0, %v5781
        %v5783 = vpop.f32.mrb[0].mxu0
        %5784 = vdwg.mxu0
        %v5785 = vadd.f32 %v5626, %v5747
        %v5786 = vadd.f32 %v5627, %v5752
        %v5787 = vadd.f32 %v5628, %v5757
        %v5788 = vadd.f32 %v5629, %v5762
        %v5789 = vadd.f32 %v5630, %v5767
        %v5790 = vadd.f32 %v5631, %v5772
        %v5791 = vadd.f32 %v5632, %v5777
        %v5792 = vadd.f32 %v5633, %v5782
        %v5793 = vld [vmem:[#allocation3 + $0x17] sm:$0xff]
        %v5794 = vld [vmem:[#allocation3 + $0x1f] sm:$0xff]
        %v5795 = vld [vmem:[#allocation3 + $0x27] sm:$0xff]
        %v5796 = vld [vmem:[#allocation3 + $0x2f] sm:$0xff]
        %v5797 = vld [vmem:[#allocation3 + $0x37] sm:$0xff]
        %v5798 = vld [vmem:[#allocation3 + $0x3f] sm:$0xff]
        %v5799 = vld [vmem:[#allocation3 + $0x47] sm:$0xff]
        %v5800 = vld [vmem:[#allocation3 + $0x4f] sm:$0xff]
        %v5801 = vsel %vm4855, %v5793, 0.0
        %v5802 = vsel %vm4856, %v5794, 0.0
        %v5803 = vsel %vm4857, %v5795, 0.0
        %v5804 = vsel %vm4858, %v5796, 0.0
        %v5805 = vsel %vm4859, %v5797, 0.0
        %v5806 = vsel %vm4860, %v5798, 0.0
        %v5807 = vsel %vm4861, %v5799, 0.0
        %v5808 = vsel %vm4862, %v5800, 0.0
        %s5809 = scalar_lea.vmem %s3, 96
        %v5810 = vld [vmem:[%s5809] sm:$0xff]
        %v5811 = vld [vmem:[%s5809 + $0x8] sm:$0xf]
        %v5813 = vsel %vm4595, %v5801, 0
        %v5816 = vsel %vm4595, %v5802, 0
        %v5819 = vsel %vm4595, %v5803, 0
        %v5822 = vsel %vm4595, %v5804, 0
        %v5825 = vsel %vm4595, %v5805, 0
        %v5828 = vsel %vm4595, %v5806, 0
        %v5831 = vsel %vm4595, %v5807, 0
        %v5834 = vsel %vm4595, %v5808, 0
        %v5837 = vsel %vm4908, %v5811, 0
        %5839 = vmatprep.subr.mxu0 0.0
        %5840 = vmatpush1.msra.mxu0 %v5810
        %5841 = vmatprep.subr.mxu0 0.0
        %5842 = vmatpush1.msra.mxu0 %v5837
        %5843 = vmatprep.subr.mxu0 0.0
        %5844 = vmatpush1.msra.mxu0 0.0
        %5845 = vmatprep.subr.mxu0 0.0
        %5846 = vmatpush1.msra.mxu0 0.0
        %5847 = vmatprep.subr.mxu0 0.0
        %5848 = vmatpush1.msra.mxu0 0.0
        %5849 = vmatprep.subr.mxu0 0.0
        %5850 = vmatpush1.msra.mxu0 0.0
        %5851 = vmatprep.subr.mxu0 0.0
        %5852 = vmatpush1.msra.mxu0 0.0
        %5853 = vmatprep.subr.mxu0 0.0
        %5854 = vmatpush1.msra.mxu0 0.0
        %5855 = vmatprep.subr.mxu0 0.0
        %5856 = vmatpush1.msra.mxu0 0.0
        %5857 = vmatprep.subr.mxu0 0.0
        %5858 = vmatpush1.msra.mxu0 0.0
        %5859 = vmatprep.subr.mxu0 0.0
        %5860 = vmatpush1.msra.mxu0 0.0
        %5861 = vmatprep.subr.mxu0 0.0
        %5862 = vmatpush1.msra.mxu0 0.0
        %5863 = vmatprep.subr.mxu0 0.0
        %5864 = vmatpush1.msra.mxu0 0.0
        %5865 = vmatprep.subr.mxu0 0.0
        %5866 = vmatpush1.msra.mxu0 0.0
        %5867 = vmatprep.subr.mxu0 0.0
        %5868 = vmatpush1.msra.mxu0 0.0
        %5869 = vmatprep.subr.mxu0 0.0
        %5870 = vmatpush1.msra.mxu0 0.0
        %5871 = vmatprep.subr.mxu0 0.0
        %5872 = vmatpush1.msra.mxu0 0.0
        %5873 = vmatprep.subr.mxu0 0.0
        %5874 = vmatpush1.msra.mxu0 0.0
        %5875 = vmatprep.subr.mxu0 0.0
        %5876 = vmatpush1.msra.mxu0 0.0
        %5877 = vmatprep.subr.mxu0 0.0
        %5878 = vmatpush1.msra.mxu0 0.0
        %5879 = vmatprep.subr.mxu0 0.0
        %5880 = vmatpush1.msra.mxu0 0.0
        %5881 = vmatprep.subr.mxu0 0.0
        %5882 = vmatpush1.msra.mxu0 0.0
        %5883 = vmatprep.subr.mxu0 0.0
        %5884 = vmatpush1.msra.mxu0 0.0
        %5885 = vmatprep.subr.mxu0 0.0
        %5886 = vmatpush1.msra.mxu0 0.0
        %5887 = vmatprep.subr.mxu0 0.0
        %5888 = vmatpush1.msra.mxu0 0.0
        %5889 = vmatprep.subr.mxu0 0.0
        %5890 = vmatpush1.msra.mxu0 0.0
        %5891 = vmatprep.subr.mxu0 0.0
        %5892 = vmatpush1.msra.mxu0 0.0
        %5893 = vmatprep.subr.mxu0 0.0
        %5894 = vmatpush1.msra.mxu0 0.0
        %5895 = vmatprep.subr.mxu0 0.0
        %5896 = vmatpush1.msra.mxu0 0.0
        %5897 = vmatprep.subr.mxu0 0.0
        %5898 = vmatpush1.msra.mxu0 0.0
        %5899 = vmatprep.subr.mxu0 0.0
        %5900 = vmatpush1.msra.mxu0 0.0
        %5901 = vmatprep.subr.mxu0 0.0
        %5902 = vmatpush1.msra.mxu0 0.0
        %5903 = vmatprep.mubr.f32.mxu0 0.0
        %5904 = vmatmul.mubr.f32.gmra.mrb[0].mxu0 %v5813
        %v5905 = vpop.f32.mrb[0].mxu0
        %v5906 = vadd.f32 0.0, %v5905
        %v5907 = vpop.f32.mrb[0].mxu0
        %5908 = vmatprep.mubr.f32.mxu0 0.0
        %5909 = vmatmul.mubr.f32.gmra.mrb[0].mxu0 %v5816
        %v5910 = vpop.f32.mrb[0].mxu0
        %v5911 = vadd.f32 0.0, %v5910
        %v5912 = vpop.f32.mrb[0].mxu0
        %5913 = vmatprep.mubr.f32.mxu0 0.0
        %5914 = vmatmul.mubr.f32.gmra.mrb[0].mxu0 %v5819
        %v5915 = vpop.f32.mrb[0].mxu0
        %v5916 = vadd.f32 0.0, %v5915
        %v5917 = vpop.f32.mrb[0].mxu0
        %5918 = vmatprep.mubr.f32.mxu0 0.0
        %5919 = vmatmul.mubr.f32.gmra.mrb[0].mxu0 %v5822
        %v5920 = vpop.f32.mrb[0].mxu0
        %v5921 = vadd.f32 0.0, %v5920
        %v5922 = vpop.f32.mrb[0].mxu0
        %5923 = vmatprep.mubr.f32.mxu0 0.0
        %5924 = vmatmul.mubr.f32.gmra.mrb[0].mxu0 %v5825
        %v5925 = vpop.f32.mrb[0].mxu0
        %v5926 = vadd.f32 0.0, %v5925
        %v5927 = vpop.f32.mrb[0].mxu0
        %5928 = vmatprep.mubr.f32.mxu0 0.0
        %5929 = vmatmul.mubr.f32.gmra.mrb[0].mxu0 %v5828
        %v5930 = vpop.f32.mrb[0].mxu0
        %v5931 = vadd.f32 0.0, %v5930
        %v5932 = vpop.f32.mrb[0].mxu0
        %5933 = vmatprep.mubr.f32.mxu0 0.0
        %5934 = vmatmul.mubr.f32.gmra.mrb[0].mxu0 %v5831
        %v5935 = vpop.f32.mrb[0].mxu0
        %v5936 = vadd.f32 0.0, %v5935
        %v5937 = vpop.f32.mrb[0].mxu0
        %5938 = vmatprep.mubr.f32.mxu0 0.0
        %5939 = vmatmul.mubr.f32.gmra.mrb[0].mxu0 %v5834
        %v5940 = vpop.f32.mrb[0].mxu0
        %v5941 = vadd.f32 0.0, %v5940
        %v5942 = vpop.f32.mrb[0].mxu0
        %5943 = vdwg.mxu0
        %v5944 = vadd.f32 %v5785, %v5906
        %v5945 = vadd.f32 %v5786, %v5911
        %v5946 = vadd.f32 %v5787, %v5916
        %v5947 = vadd.f32 %v5788, %v5921
        %v5948 = vadd.f32 %v5789, %v5926
        %v5949 = vadd.f32 %v5790, %v5931
        %v5950 = vadd.f32 %v5791, %v5936
        %v5951 = vadd.f32 %v5792, %v5941
        %v5952 = vld [vmem:[#allocation3 + $0x18] sm:$0xff]
        %v5953 = vld [vmem:[#allocation3 + $0x20] sm:$0xff]
        %v5954 = vld [vmem:[#allocation3 + $0x28] sm:$0xff]
        %v5955 = vld [vmem:[#allocation3 + $0x30] sm:$0xff]
        %v5956 = vld [vmem:[#allocation3 + $0x38] sm:$0xff]
        %v5957 = vld [vmem:[#allocation3 + $0x40] sm:$0xff]
        %v5958 = vld [vmem:[#allocation3 + $0x48] sm:$0xff]
        %v5959 = vld [vmem:[#allocation3 + $0x50] sm:$0xff]
        %s5960 = scalar_lea.vmem %s3, 112
        %v5961 = vld [vmem:[%s5960] sm:$0xff]
        %v5962 = vld [vmem:[%s5960 + $0x8] sm:$0xf]
        %v5964 = vsel %vm4595, %v5952, 0
        %v5967 = vsel %vm4595, %v5953, 0
        %v5970 = vsel %vm4595, %v5954, 0
        %v5973 = vsel %vm4595, %v5955, 0
        %v5976 = vsel %vm4595, %v5956, 0
        %v5979 = vsel %vm4595, %v5957, 0
        %v5982 = vsel %vm4595, %v5958, 0
        %v5985 = vsel %vm4595, %v5959, 0
        %v5988 = vsel %vm4908, %v5962, 0
        %5990 = vmatprep.subr.mxu0 0.0
        %5991 = vmatpush1.msra.mxu0 %v5961
        %5992 = vmatprep.subr.mxu0 0.0
        %5993 = vmatpush1.msra.mxu0 %v5988
        %5994 = vmatprep.subr.mxu0 0.0
        %5995 = vmatpush1.msra.mxu0 0.0
        %5996 = vmatprep.subr.mxu0 0.0
        %5997 = vmatpush1.msra.mxu0 0.0
        %5998 = vmatprep.subr.mxu0 0.0
        %5999 = vmatpush1.msra.mxu0 0.0
        %6000 = vmatprep.subr.mxu0 0.0
        %6001 = vmatpush1.msra.mxu0 0.0
        %6002 = vmatprep.subr.mxu0 0.0
        %6003 = vmatpush1.msra.mxu0 0.0
        %6004 = vmatprep.subr.mxu0 0.0
        %6005 = vmatpush1.msra.mxu0 0.0
        %6006 = vmatprep.subr.mxu0 0.0
        %6007 = vmatpush1.msra.mxu0 0.0
        %6008 = vmatprep.subr.mxu0 0.0
        %6009 = vmatpush1.msra.mxu0 0.0
        %6010 = vmatprep.subr.mxu0 0.0
        %6011 = vmatpush1.msra.mxu0 0.0
        %6012 = vmatprep.subr.mxu0 0.0
        %6013 = vmatpush1.msra.mxu0 0.0
        %6014 = vmatprep.subr.mxu0 0.0
        %6015 = vmatpush1.msra.mxu0 0.0
        %6016 = vmatprep.subr.mxu0 0.0
        %6017 = vmatpush1.msra.mxu0 0.0
        %6018 = vmatprep.subr.mxu0 0.0
        %6019 = vmatpush1.msra.mxu0 0.0
        %6020 = vmatprep.subr.mxu0 0.0
        %6021 = vmatpush1.msra.mxu0 0.0
        %6022 = vmatprep.subr.mxu0 0.0
        %6023 = vmatpush1.msra.mxu0 0.0
        %6024 = vmatprep.subr.mxu0 0.0
        %6025 = vmatpush1.msra.mxu0 0.0
        %6026 = vmatprep.subr.mxu0 0.0
        %6027 = vmatpush1.msra.mxu0 0.0
        %6028 = vmatprep.subr.mxu0 0.0
        %6029 = vmatpush1.msra.mxu0 0.0
        %6030 = vmatprep.subr.mxu0 0.0
        %6031 = vmatpush1.msra.mxu0 0.0
        %6032 = vmatprep.subr.mxu0 0.0
        %6033 = vmatpush1.msra.mxu0 0.0
        %6034 = vmatprep.subr.mxu0 0.0
        %6035 = vmatpush1.msra.mxu0 0.0
        %6036 = vmatprep.subr.mxu0 0.0
        %6037 = vmatpush1.msra.mxu0 0.0
        %6038 = vmatprep.subr.mxu0 0.0
        %6039 = vmatpush1.msra.mxu0 0.0
        %6040 = vmatprep.subr.mxu0 0.0
        %6041 = vmatpush1.msra.mxu0 0.0
        %6042 = vmatprep.subr.mxu0 0.0
        %6043 = vmatpush1.msra.mxu0 0.0
        %6044 = vmatprep.subr.mxu0 0.0
        %6045 = vmatpush1.msra.mxu0 0.0
        %6046 = vmatprep.subr.mxu0 0.0
        %6047 = vmatpush1.msra.mxu0 0.0
        %6048 = vmatprep.subr.mxu0 0.0
        %6049 = vmatpush1.msra.mxu0 0.0
        %6050 = vmatprep.subr.mxu0 0.0
        %6051 = vmatpush1.msra.mxu0 0.0
        %6052 = vmatprep.subr.mxu0 0.0
        %6053 = vmatpush1.msra.mxu0 0.0
        %6054 = vmatprep.mubr.f32.mxu0 0.0
        %6055 = vmatmul.mubr.f32.gmra.mrb[0].mxu0 %v5964
        %v6056 = vpop.f32.mrb[0].mxu0
        %v6057 = vadd.f32 0.0, %v6056
        %v6058 = vpop.f32.mrb[0].mxu0
        %6059 = vmatprep.mubr.f32.mxu0 0.0
        %6060 = vmatmul.mubr.f32.gmra.mrb[0].mxu0 %v5967
        %v6061 = vpop.f32.mrb[0].mxu0
        %v6062 = vadd.f32 0.0, %v6061
        %v6063 = vpop.f32.mrb[0].mxu0
        %6064 = vmatprep.mubr.f32.mxu0 0.0
        %6065 = vmatmul.mubr.f32.gmra.mrb[0].mxu0 %v5970
        %v6066 = vpop.f32.mrb[0].mxu0
        %v6067 = vadd.f32 0.0, %v6066
        %v6068 = vpop.f32.mrb[0].mxu0
        %6069 = vmatprep.mubr.f32.mxu0 0.0
        %6070 = vmatmul.mubr.f32.gmra.mrb[0].mxu0 %v5973
        %v6071 = vpop.f32.mrb[0].mxu0
        %v6072 = vadd.f32 0.0, %v6071
        %v6073 = vpop.f32.mrb[0].mxu0
        %6074 = vmatprep.mubr.f32.mxu0 0.0
        %6075 = vmatmul.mubr.f32.gmra.mrb[0].mxu0 %v5976
        %v6076 = vpop.f32.mrb[0].mxu0
        %v6077 = vadd.f32 0.0, %v6076
        %v6078 = vpop.f32.mrb[0].mxu0
        %6079 = vmatprep.mubr.f32.mxu0 0.0
        %6080 = vmatmul.mubr.f32.gmra.mrb[0].mxu0 %v5979
        %v6081 = vpop.f32.mrb[0].mxu0
        %v6082 = vadd.f32 0.0, %v6081
        %v6083 = vpop.f32.mrb[0].mxu0
        %6084 = vmatprep.mubr.f32.mxu0 0.0
        %6085 = vmatmul.mubr.f32.gmra.mrb[0].mxu0 %v5982
        %v6086 = vpop.f32.mrb[0].mxu0
        %v6087 = vadd.f32 0.0, %v6086
        %v6088 = vpop.f32.mrb[0].mxu0
        %6089 = vmatprep.mubr.f32.mxu0 0.0
        %6090 = vmatmul.mubr.f32.gmra.mrb[0].mxu0 %v5985
        %v6091 = vpop.f32.mrb[0].mxu0
        %v6092 = vadd.f32 0.0, %v6091
        %v6093 = vpop.f32.mrb[0].mxu0
        %6094 = vdwg.mxu0
        %v6095 = vadd.f32 %v5944, %v6057
        %v6096 = vadd.f32 %v5945, %v6062
        %v6097 = vadd.f32 %v5946, %v6067
        %v6098 = vadd.f32 %v5947, %v6072
        %v6099 = vadd.f32 %v5948, %v6077
        %v6100 = vadd.f32 %v5949, %v6082
        %v6101 = vadd.f32 %v5950, %v6087
        %v6102 = vadd.f32 %v5951, %v6092
        %v6103 = vld [vmem:[#allocation3 + $0x19] sm:$0xff]
        %v6104 = vld [vmem:[#allocation3 + $0x21] sm:$0xff]
        %v6105 = vld [vmem:[#allocation3 + $0x29] sm:$0xff]
        %v6106 = vld [vmem:[#allocation3 + $0x31] sm:$0xff]
        %v6107 = vld [vmem:[#allocation3 + $0x39] sm:$0xff]
        %v6108 = vld [vmem:[#allocation3 + $0x41] sm:$0xff]
        %v6109 = vld [vmem:[#allocation3 + $0x49] sm:$0xff]
        %v6110 = vld [vmem:[#allocation3 + $0x51] sm:$0xff]
        %v6111 = vsel %vm5165, %v6103, 0.0
        %v6112 = vsel %vm5166, %v6104, 0.0
        %v6113 = vsel %vm5167, %v6105, 0.0
        %v6114 = vsel %vm5168, %v6106, 0.0
        %v6115 = vsel %vm5169, %v6107, 0.0
        %v6116 = vsel %vm5170, %v6108, 0.0
        %v6117 = vsel %vm5171, %v6109, 0.0
        %v6118 = vsel %vm5172, %v6110, 0.0
        %s6119 = scalar_lea.vmem %s3, 128
        %v6120 = vld [vmem:[%s6119] sm:$0xff]
        %v6121 = vld [vmem:[%s6119 + $0x8] sm:$0xf]
        %v6123 = vsel %vm4595, %v6111, 0
        %v6126 = vsel %vm4595, %v6112, 0
        %v6129 = vsel %vm4595, %v6113, 0
        %v6132 = vsel %vm4595, %v6114, 0
        %v6135 = vsel %vm4595, %v6115, 0
        %v6138 = vsel %vm4595, %v6116, 0
        %v6141 = vsel %vm4595, %v6117, 0
        %v6144 = vsel %vm4595, %v6118, 0
        %v6147 = vsel %vm4908, %v6121, 0
        %6149 = vmatprep.subr.mxu0 0.0
        %6150 = vmatpush1.msra.mxu0 %v6120
        %6151 = vmatprep.subr.mxu0 0.0
        %6152 = vmatpush1.msra.mxu0 %v6147
        %6153 = vmatprep.subr.mxu0 0.0
        %6154 = vmatpush1.msra.mxu0 0.0
        %6155 = vmatprep.subr.mxu0 0.0
        %6156 = vmatpush1.msra.mxu0 0.0
        %6157 = vmatprep.subr.mxu0 0.0
        %6158 = vmatpush1.msra.mxu0 0.0
        %6159 = vmatprep.subr.mxu0 0.0
        %6160 = vmatpush1.msra.mxu0 0.0
        %6161 = vmatprep.subr.mxu0 0.0
        %6162 = vmatpush1.msra.mxu0 0.0
        %6163 = vmatprep.subr.mxu0 0.0
        %6164 = vmatpush1.msra.mxu0 0.0
        %6165 = vmatprep.subr.mxu0 0.0
        %6166 = vmatpush1.msra.mxu0 0.0
        %6167 = vmatprep.subr.mxu0 0.0
        %6168 = vmatpush1.msra.mxu0 0.0
        %6169 = vmatprep.subr.mxu0 0.0
        %6170 = vmatpush1.msra.mxu0 0.0
        %6171 = vmatprep.subr.mxu0 0.0
        %6172 = vmatpush1.msra.mxu0 0.0
        %6173 = vmatprep.subr.mxu0 0.0
        %6174 = vmatpush1.msra.mxu0 0.0
        %6175 = vmatprep.subr.mxu0 0.0
        %6176 = vmatpush1.msra.mxu0 0.0
        %6177 = vmatprep.subr.mxu0 0.0
        %6178 = vmatpush1.msra.mxu0 0.0
        %6179 = vmatprep.subr.mxu0 0.0
        %6180 = vmatpush1.msra.mxu0 0.0
        %6181 = vmatprep.subr.mxu0 0.0
        %6182 = vmatpush1.msra.mxu0 0.0
        %6183 = vmatprep.subr.mxu0 0.0
        %6184 = vmatpush1.msra.mxu0 0.0
        %6185 = vmatprep.subr.mxu0 0.0
        %6186 = vmatpush1.msra.mxu0 0.0
        %6187 = vmatprep.subr.mxu0 0.0
        %6188 = vmatpush1.msra.mxu0 0.0
        %6189 = vmatprep.subr.mxu0 0.0
        %6190 = vmatpush1.msra.mxu0 0.0
        %6191 = vmatprep.subr.mxu0 0.0
        %6192 = vmatpush1.msra.mxu0 0.0
        %6193 = vmatprep.subr.mxu0 0.0
        %6194 = vmatpush1.msra.mxu0 0.0
        %6195 = vmatprep.subr.mxu0 0.0
        %6196 = vmatpush1.msra.mxu0 0.0
        %6197 = vmatprep.subr.mxu0 0.0
        %6198 = vmatpush1.msra.mxu0 0.0
        %6199 = vmatprep.subr.mxu0 0.0
        %6200 = vmatpush1.msra.mxu0 0.0
        %6201 = vmatprep.subr.mxu0 0.0
        %6202 = vmatpush1.msra.mxu0 0.0
        %6203 = vmatprep.subr.mxu0 0.0
        %6204 = vmatpush1.msra.mxu0 0.0
        %6205 = vmatprep.subr.mxu0 0.0
        %6206 = vmatpush1.msra.mxu0 0.0
        %6207 = vmatprep.subr.mxu0 0.0
        %6208 = vmatpush1.msra.mxu0 0.0
        %6209 = vmatprep.subr.mxu0 0.0
        %6210 = vmatpush1.msra.mxu0 0.0
        %6211 = vmatprep.subr.mxu0 0.0
        %6212 = vmatpush1.msra.mxu0 0.0
        %6213 = vmatprep.mubr.f32.mxu0 0.0
        %6214 = vmatmul.mubr.f32.gmra.mrb[0].mxu0 %v6123
        %v6215 = vpop.f32.mrb[0].mxu0
        %v6216 = vadd.f32 0.0, %v6215
        %v6217 = vpop.f32.mrb[0].mxu0
        %6218 = vmatprep.mubr.f32.mxu0 0.0
        %6219 = vmatmul.mubr.f32.gmra.mrb[0].mxu0 %v6126
        %v6220 = vpop.f32.mrb[0].mxu0
        %v6221 = vadd.f32 0.0, %v6220
        %v6222 = vpop.f32.mrb[0].mxu0
        %6223 = vmatprep.mubr.f32.mxu0 0.0
        %6224 = vmatmul.mubr.f32.gmra.mrb[0].mxu0 %v6129
        %v6225 = vpop.f32.mrb[0].mxu0
        %v6226 = vadd.f32 0.0, %v6225
        %v6227 = vpop.f32.mrb[0].mxu0
        %6228 = vmatprep.mubr.f32.mxu0 0.0
        %6229 = vmatmul.mubr.f32.gmra.mrb[0].mxu0 %v6132
        %v6230 = vpop.f32.mrb[0].mxu0
        %v6231 = vadd.f32 0.0, %v6230
        %v6232 = vpop.f32.mrb[0].mxu0
        %6233 = vmatprep.mubr.f32.mxu0 0.0
        %6234 = vmatmul.mubr.f32.gmra.mrb[0].mxu0 %v6135
        %v6235 = vpop.f32.mrb[0].mxu0
        %v6236 = vadd.f32 0.0, %v6235
        %v6237 = vpop.f32.mrb[0].mxu0
        %6238 = vmatprep.mubr.f32.mxu0 0.0
        %6239 = vmatmul.mubr.f32.gmra.mrb[0].mxu0 %v6138
        %v6240 = vpop.f32.mrb[0].mxu0
        %v6241 = vadd.f32 0.0, %v6240
        %v6242 = vpop.f32.mrb[0].mxu0
        %6243 = vmatprep.mubr.f32.mxu0 0.0
        %6244 = vmatmul.mubr.f32.gmra.mrb[0].mxu0 %v6141
        %v6245 = vpop.f32.mrb[0].mxu0
        %v6246 = vadd.f32 0.0, %v6245
        %v6247 = vpop.f32.mrb[0].mxu0
        %6248 = vmatprep.mubr.f32.mxu0 0.0
        %6249 = vmatmul.mubr.f32.gmra.mrb[0].mxu0 %v6144
        %v6250 = vpop.f32.mrb[0].mxu0
        %v6251 = vadd.f32 0.0, %v6250
        %v6252 = vpop.f32.mrb[0].mxu0
        %6253 = vdwg.mxu0
        %v6254 = vadd.f32 %v6095, %v6216
        %v6255 = vadd.f32 %v6096, %v6221
        %v6256 = vadd.f32 %v6097, %v6226
        %v6257 = vadd.f32 %v6098, %v6231
        %v6258 = vadd.f32 %v6099, %v6236
        %v6259 = vadd.f32 %v6100, %v6241
        %v6260 = vadd.f32 %v6101, %v6246
        %v6261 = vadd.f32 %v6102, %v6251
        %v6262 = vld [vmem:[%s4] sm:$0x1]
        %v6264 = vlaneseq
        %v6265 = vshrl.u32 %v6264, 7
        %v6266 = vsub.s32 0, %v6265
        %v6267 = vrot.slane %v6262, %v6266
        %v6269 = vadd.f32 %v6254, %v6267
        %v6270 = vadd.f32 %v6255, %v6267
        %v6271 = vadd.f32 %v6256, %v6267
        %v6272 = vadd.f32 %v6257, %v6267
        %v6273 = vadd.f32 %v6258, %v6267
        %v6274 = vadd.f32 %v6259, %v6267
        %v6275 = vadd.f32 %v6260, %v6267
        %v6276 = vadd.f32 %v6261, %v6267
        %v6277 = vmax.f32 %v6269, 0.0
        %v6278 = vmax.f32 %v6270, 0.0
        %v6279 = vmax.f32 %v6271, 0.0
        %v6280 = vmax.f32 %v6272, 0.0
        %v6281 = vmax.f32 %v6273, 0.0
        %v6282 = vmax.f32 %v6274, 0.0
        %v6283 = vmax.f32 %v6275, 0.0
        %v6284 = vmax.f32 %v6276, 0.0
        %v6285 = vld [vmem:[%s5] sm:$0xff]
        %v6286 = vld [vmem:[%s5 + $0x8] sm:$0xff]
        %v6287 = vld [vmem:[%s5 + $0x10] sm:$0xff]
        %v6288 = vld [vmem:[%s5 + $0x18] sm:$0xff]
        %v6289 = vld [vmem:[%s5 + $0x20] sm:$0xff]
        %v6290 = vld [vmem:[%s5 + $0x28] sm:$0xff]
        %v6291 = vld [vmem:[%s5 + $0x30] sm:$0xff]
        %v6292 = vld [vmem:[%s5 + $0x38] sm:$0xff]
        %v6293 = vmul.f32 %v6277, %v6285
        %v6294 = vmul.f32 %v6278, %v6286
        %v6295 = vmul.f32 %v6279, %v6287
        %v6296 = vmul.f32 %v6280, %v6288
        %v6297 = vmul.f32 %v6281, %v6289
        %v6298 = vmul.f32 %v6282, %v6290
        %v6299 = vmul.f32 %v6283, %v6291
        %v6300 = vmul.f32 %v6284, %v6292
        %vm6301 = vcmask 162816
        %v6302 = vsel %vm6301, %v6293, 0.0
        %6303 = vadd.xlane.f32.xlu0 %v6302
        %v6304 = vpop.xlane.xlu0 %6303
        %v6305 = vsel %vm6301, %v6294, 0.0
        %6306 = vadd.xlane.f32.xlu0 %v6305
        %v6307 = vpop.xlane.xlu0 %6306
        %v6308 = vsel %vm6301, %v6295, 0.0
        %6309 = vadd.xlane.f32.xlu0 %v6308
        %v6310 = vpop.xlane.xlu0 %6309
        %v6311 = vsel %vm6301, %v6296, 0.0
        %6312 = vadd.xlane.f32.xlu0 %v6311
        %v6313 = vpop.xlane.xlu0 %6312
        %v6314 = vsel %vm6301, %v6297, 0.0
        %6315 = vadd.xlane.f32.xlu0 %v6314
        %v6316 = vpop.xlane.xlu0 %6315
        %v6317 = vsel %vm6301, %v6298, 0.0
        %6318 = vadd.xlane.f32.xlu0 %v6317
        %v6319 = vpop.xlane.xlu0 %6318
        %v6320 = vsel %vm6301, %v6299, 0.0
        %6321 = vadd.xlane.f32.xlu0 %v6320
        %v6322 = vpop.xlane.xlu0 %6321
        %v6323 = vsel %vm6301, %v6300, 0.0
        %6324 = vadd.xlane.f32.xlu0 %v6323
        %v6325 = vpop.xlane.xlu0 %6324
        %v6326 = vadd.f32 %v6304, %v6307
        %v6327 = vadd.f32 %v6326, %v6310
        %v6328 = vadd.f32 %v6327, %v6313
        %v6329 = vadd.f32 %v6328, %v6316
        %v6330 = vadd.f32 %v6329, %v6319
        %v6331 = vadd.f32 %v6330, %v6322
        %v6332 = vadd.f32 %v6331, %v6325
        %v6333 = vrot.slane %v6332, 4
        %v6334 = vadd.f32 %v6332, %v6333
        %v6335 = vrot.slane %v6334, 2
        %v6336 = vadd.f32 %v6334, %v6335
        %v6337 = vrot.slane %v6336, 1
        %v6338 = vadd.f32 %v6336, %v6337
        %s6339 = scalar_lea.vmem %s5, 64
        %v6340 = vld [vmem:[%s6339] sm:$0xff]
        %v6341 = vld [vmem:[%s6339 + $0x8] sm:$0xff]
        %v6342 = vld [vmem:[%s6339 + $0x10] sm:$0xff]
        %v6343 = vld [vmem:[%s6339 + $0x18] sm:$0xff]
        %v6344 = vld [vmem:[%s6339 + $0x20] sm:$0xff]
        %v6345 = vld [vmem:[%s6339 + $0x28] sm:$0xff]
        %v6346 = vld [vmem:[%s6339 + $0x30] sm:$0xff]
        %v6347 = vld [vmem:[%s6339 + $0x38] sm:$0xff]
        %v6348 = vmul.f32 %v6277, %v6340
        %v6349 = vmul.f32 %v6278, %v6341
        %v6350 = vmul.f32 %v6279, %v6342
        %v6351 = vmul.f32 %v6280, %v6343
        %v6352 = vmul.f32 %v6281, %v6344
        %v6353 = vmul.f32 %v6282, %v6345
        %v6354 = vmul.f32 %v6283, %v6346
        %v6355 = vmul.f32 %v6284, %v6347
        %v6356 = vsel %vm6301, %v6348, 0.0
        %6357 = vadd.xlane.f32.xlu0 %v6356
        %v6358 = vpop.xlane.xlu0 %6357
        %v6359 = vsel %vm6301, %v6349, 0.0
        %6360 = vadd.xlane.f32.xlu0 %v6359
        %v6361 = vpop.xlane.xlu0 %6360
        %v6362 = vsel %vm6301, %v6350, 0.0
        %6363 = vadd.xlane.f32.xlu0 %v6362
        %v6364 = vpop.xlane.xlu0 %6363
        %v6365 = vsel %vm6301, %v6351, 0.0
        %6366 = vadd.xlane.f32.xlu0 %v6365
        %v6367 = vpop.xlane.xlu0 %6366
        %v6368 = vsel %vm6301, %v6352, 0.0
        %6369 = vadd.xlane.f32.xlu0 %v6368
        %v6370 = vpop.xlane.xlu0 %6369
        %v6371 = vsel %vm6301, %v6353, 0.0
        %6372 = vadd.xlane.f32.xlu0 %v6371
        %v6373 = vpop.xlane.xlu0 %6372
        %v6374 = vsel %vm6301, %v6354, 0.0
        %6375 = vadd.xlane.f32.xlu0 %v6374
        %v6376 = vpop.xlane.xlu0 %6375
        %v6377 = vsel %vm6301, %v6355, 0.0
        %6378 = vadd.xlane.f32.xlu0 %v6377
        %v6379 = vpop.xlane.xlu0 %6378
        %v6380 = vadd.f32 %v6358, %v6361
        %v6381 = vadd.f32 %v6380, %v6364
        %v6382 = vadd.f32 %v6381, %v6367
        %v6383 = vadd.f32 %v6382, %v6370
        %v6384 = vadd.f32 %v6383, %v6373
        %v6385 = vadd.f32 %v6384, %v6376
        %v6386 = vadd.f32 %v6385, %v6379
        %v6387 = vrot.slane %v6386, 4
        %v6388 = vadd.f32 %v6386, %v6387
        %v6389 = vrot.slane %v6388, 2
        %v6390 = vadd.f32 %v6388, %v6389
        %v6391 = vrot.slane %v6390, 1
        %v6392 = vadd.f32 %v6390, %v6391
        %s6393 = scalar_lea.vmem %s5, 128
        %v6394 = vld [vmem:[%s6393] sm:$0xff]
        %v6395 = vld [vmem:[%s6393 + $0x8] sm:$0xff]
        %v6396 = vld [vmem:[%s6393 + $0x10] sm:$0xff]
        %v6397 = vld [vmem:[%s6393 + $0x18] sm:$0xff]
        %v6398 = vld [vmem:[%s6393 + $0x20] sm:$0xff]
        %v6399 = vld [vmem:[%s6393 + $0x28] sm:$0xff]
        %v6400 = vld [vmem:[%s6393 + $0x30] sm:$0xff]
        %v6401 = vld [vmem:[%s6393 + $0x38] sm:$0xff]
        %v6402 = vmul.f32 %v6277, %v6394
        %v6403 = vmul.f32 %v6278, %v6395
        %v6404 = vmul.f32 %v6279, %v6396
        %v6405 = vmul.f32 %v6280, %v6397
        %v6406 = vmul.f32 %v6281, %v6398
        %v6407 = vmul.f32 %v6282, %v6399
        %v6408 = vmul.f32 %v6283, %v6400
        %v6409 = vmul.f32 %v6284, %v6401
        %v6410 = vsel %vm6301, %v6402, 0.0
        %6411 = vadd.xlane.f32.xlu0 %v6410
        %v6412 = vpop.xlane.xlu0 %6411
        %v6413 = vsel %vm6301, %v6403, 0.0
        %6414 = vadd.xlane.f32.xlu0 %v6413
        %v6415 = vpop.xlane.xlu0 %6414
        %v6416 = vsel %vm6301, %v6404, 0.0
        %6417 = vadd.xlane.f32.xlu0 %v6416
        %v6418 = vpop.xlane.xlu0 %6417
        %v6419 = vsel %vm6301, %v6405, 0.0
        %6420 = vadd.xlane.f32.xlu0 %v6419
        %v6421 = vpop.xlane.xlu0 %6420
        %v6422 = vsel %vm6301, %v6406, 0.0
        %6423 = vadd.xlane.f32.xlu0 %v6422
        %v6424 = vpop.xlane.xlu0 %6423
        %v6425 = vsel %vm6301, %v6407, 0.0
        %6426 = vadd.xlane.f32.xlu0 %v6425
        %v6427 = vpop.xlane.xlu0 %6426
        %v6428 = vsel %vm6301, %v6408, 0.0
        %6429 = vadd.xlane.f32.xlu0 %v6428
        %v6430 = vpop.xlane.xlu0 %6429
        %v6431 = vsel %vm6301, %v6409, 0.0
        %6432 = vadd.xlane.f32.xlu0 %v6431
        %v6433 = vpop.xlane.xlu0 %6432
        %v6434 = vadd.f32 %v6412, %v6415
        %v6435 = vadd.f32 %v6434, %v6418
        %v6436 = vadd.f32 %v6435, %v6421
        %v6437 = vadd.f32 %v6436, %v6424
        %v6438 = vadd.f32 %v6437, %v6427
        %v6439 = vadd.f32 %v6438, %v6430
        %v6440 = vadd.f32 %v6439, %v6433
        %v6441 = vrot.slane %v6440, 4
        %v6442 = vadd.f32 %v6440, %v6441
        %v6443 = vrot.slane %v6442, 2
        %v6444 = vadd.f32 %v6442, %v6443
        %v6445 = vrot.slane %v6444, 1
        %v6446 = vadd.f32 %v6444, %v6445
        %vm6447 = vcmask 7168
        %v6448 = vsel %vm6447, %v6338, %v6392
        %vm6449 = vcmask 15360
        %v6450 = vsel %vm6449, %v6448, %v6446
        %v6451 = vld [vmem:[%s6] sm:$0x1]
        %v6452 = vadd.f32 %v6450, %v6451
        %vm6453 = vcmask 16384
        %6454 = vst.msk [vmem:[%s270] sm:$0x1] %vm6453, %v6452
        %s6455 = sand.u32 %s181, 1
        %s6456 = scalar_lea.sflag [#allocation5], %s6455
        %s6457 = sand.u32 %s181, 1
        %s6458 = scalar_lea.vmem [#allocation4], %s6457
        // Predicated region
        $region49: #{bconv_forward.1} parent=47 // pred_check
          %p6459 = pneg %p191
        $region50: #{bconv_forward.1} parent=47 // pred_check_branch
          %6461 = sbr.rel (%p6459) target = $region52
        $region51: #{bconv_forward.1} parent=47 // pred_region
          %s6463 = ssub.s32 16, 16
          %6464 = vsyncadd %s6456, %s6463
          %s6465 = smul.addr %s21, 16
          %s6466 = scalar_lea.hbm %s7, %s6465
          %s6468 = sshll.u32 %s6458, 4
          %s6469 = int_to_ptr.vmem [resolvable:$true] %s6468
          %6471 = dma.vmem_to_hbm [thread:$0]  %s6469, 16, %s6466, %s6456
        $region52: #{bconv_forward.1} parent=47 // pred_fallthru
          _
      $region48: #{bconv_forward.1} parent=5 // pred_fallthru
        _
      %p6472 = scmp.le.s32.totalorder 2, %s16
      // Predicated region
      $region53: #{bconv_forward.1} parent=5 // pred_check
        %p6473 = pneg %p6472
      $region54: #{bconv_forward.1} parent=5 // pred_check_branch
        %6475 = sbr.rel (%p6473) target = $region56
      $region55: #{bconv_forward.1} parent=5 // pred_region
        %s6476 = ssub.s32 %s16, 2
        // Predicated region
        $region57: #{bconv_forward.1} parent=55 // pred_check
          %p6477 = pneg %p197
        $region58: #{bconv_forward.1} parent=55 // pred_check_branch
          %6479 = sbr.rel (%p6477) target = $region60
        $region59: #{bconv_forward.1} parent=55 // pred_region
          %s6480 = sand.u32 %s182, 1
          %s6481 = scalar_lea.sflag [#allocation5], %s6480
          %s6482 = sand.u32 %s182, 1
          %s6483 = scalar_lea.vmem [#allocation4], %s6482
          %6484 = dma.done %s6481, 16
        $region60: #{bconv_forward.1} parent=55 // pred_fallthru
          _
      $region56: #{bconv_forward.1} parent=5 // pred_fallthru
        _
    $region6: #{bconv_forward.1} parent=1 // loop_footer
      %s20 = sadd.s32 1, %s16
    $region7: #{bconv_forward.1} parent=1 // loop_footer_branch
      %15 = sbr.rel target = $region3
    $region8: #{bconv_forward.1} parent=1 // loop_exit
      _
    %6485 = vsyncpa [#allocation5], 1
    %s6486 = scalar_lea.sflag [#allocation5], 1
    %6487 = vsyncpa %s6486, 1

</llo_original>
